<compile_context>
chip_gen: v7x
topology: tpu7x:2x2x1
jax: 0.10.0
libtpu: 0.0.40
codegen_flags: <defaults>
</compile_context>

<pallas_src>
import functools
import math

import jax
import jax.numpy as jnp
from jax.experimental import pallas as pl
from jax.experimental.pallas import tpu as pltpu

_VMEM_LIMIT = 48 * 1024 * 1024  # explicit scoped-VMEM cap (fits v5e/v6e/v7x)


def _round_up(x, m):
    return (x + m - 1) // m * m


# ----------------------------------------------------------------------------
# Pallas kernels
# ----------------------------------------------------------------------------
def _gemm_bias_act_kernel(a_ref, b_ref, bias_ref, o_ref, *, activation):
    """o = act(a @ b + bias). a:(bm,K) bf16, b:(K,N) bf16, bias:(1,N) f32."""
    acc = jnp.dot(a_ref[...], b_ref[...], preferred_element_type=jnp.float32)
    acc = acc + bias_ref[...]
    if activation == "relu":
        acc = jnp.maximum(acc, 0.0)
    o_ref[...] = acc.astype(o_ref.dtype)


def gemm_bias_act(a, b, bias, activation="none", block_m=512,
                  out_dtype=jnp.bfloat16):
    """act(a @ b + bias), M-tiled (parallel grid), bf16 operands, f32 acc.

    block_m=512 is a safe default for all chips; on v5e/v6e (128 MiB VMEM) it
    can be raised toward 1024-2048 for large M to amortize per-step overhead.
    """
    M, K = a.shape
    K2, N = b.shape
    assert K == K2 and N % 128 == 0
    a = a.astype(jnp.bfloat16)
    b = b.astype(jnp.bfloat16)
    bias2 = bias.reshape(1, N).astype(jnp.float32)
    bm = M if M <= block_m else block_m
    grid = (pl.cdiv(M, bm),)
    return pl.pallas_call(
        functools.partial(_gemm_bias_act_kernel, activation=activation),
        out_shape=jax.ShapeDtypeStruct((M, N), out_dtype),
        grid=grid,
        in_specs=[
            pl.BlockSpec((bm, K), lambda i: (i, 0)),
            pl.BlockSpec((K, N), lambda i: (0, 0)),
            pl.BlockSpec((1, N), lambda i: (0, 0)),
        ],
        out_specs=pl.BlockSpec((bm, N), lambda i: (i, 0)),
        compiler_params=pltpu.CompilerParams(
            dimension_semantics=("parallel",),
            vmem_limit_bytes=_VMEM_LIMIT),
    )(a, b, bias2)


def _conv3_pool_linear_kernel(cols_ref, w3_ref, b3_ref, wl_ref, bl_ref, o_ref,
                              *, BB, Hc, Wc):
    """Fused conv3(+BN) -> MaxPool(3,s2,p1) -> AvgPool(1) -> Linear -> ReLU.

    cols_ref: (Hc*Wc*BB, K) bf16, rows ordered (ih, iw, local_b), BB == 8 so
              every pooling slice h[r:r+BB, :] is sublane-aligned.
    w3_ref:   (K, Cp) bf16 block-diagonal (padded to 128 lanes).
    wl_ref:   (Cp, 6*feat) bf16 block-diagonal.
    o_ref:    (BB, 6*feat) bf16.
    """
    h = jnp.dot(cols_ref[...], w3_ref[...], preferred_element_type=jnp.float32)
    h = h + b3_ref[...]  # (Hc*Wc*BB, Cp); no ReLU (matches the PyTorch Sequential)
    Cp = h.shape[-1]

    # MaxPool2d(3, stride=2, padding=1) followed by AdaptiveAvgPool2d(1).
    Ph = (Hc - 1) // 2 + 1
    Pw = (Wc - 1) // 2 + 1
    acc = jnp.zeros((BB, Cp), jnp.float32)
    for oh in range(Ph):
        for ow in range(Pw):
            m = None
            for ih in range(max(0, 2 * oh - 1), min(Hc, 2 * oh + 2)):
                for iw in range(max(0, 2 * ow - 1), min(Wc, 2 * ow + 2)):
                    r = (ih * Wc + iw) * BB
                    v = h[r:r + BB, :]          # aligned (BB=8, Cp) vreg tile
                    m = v if m is None else jnp.maximum(m, v)
            acc = acc + m
    pooled = (acc * (1.0 / float(Ph * Pw))).astype(jnp.bfloat16)  # (BB, Cp)

    # Per-channel Linear + ReLU, packed block-diagonally (Cp -> 6*feat).
    f = jnp.dot(pooled, wl_ref[...], preferred_element_type=jnp.float32)
    o_ref[...] = jnp.maximum(f + bl_ref[...], 0.0).astype(o_ref.dtype)


def conv3_pool_linear(cols3, W3, b3, Wl, bl, *, nb, BB, Hc, Wc):
    K = cols3.shape[-1]
    Cp = W3.shape[1]
    N = Wl.shape[1]
    rows_per_block = Hc * Wc * BB
    return pl.pallas_call(
        functools.partial(_conv3_pool_linear_kernel, BB=BB, Hc=Hc, Wc=Wc),
        out_shape=jax.ShapeDtypeStruct((nb * BB, N), jnp.bfloat16),
        grid=(nb,),
        in_specs=[
            pl.BlockSpec((rows_per_block, K), lambda i: (i, 0)),
            pl.BlockSpec((K, Cp), lambda i: (0, 0)),
            pl.BlockSpec((1, Cp), lambda i: (0, 0)),
            pl.BlockSpec((Cp, N), lambda i: (0, 0)),
            pl.BlockSpec((1, N), lambda i: (0, 0)),
        ],
        out_specs=pl.BlockSpec((BB, N), lambda i: (i, 0)),
        compiler_params=pltpu.CompilerParams(
            dimension_semantics=("parallel",),
            vmem_limit_bytes=_VMEM_LIMIT),
    )(cols3.astype(jnp.bfloat16), W3, b3.reshape(1, -1).astype(jnp.float32),
      Wl, bl.reshape(1, -1).astype(jnp.float32))


def _lstm_regressor_kernel(x_ref, wih1_ref, whh1_ref, b1_ref,
                           w2_ref, b2_ref,
                           rw1_ref, rb1_ref, rw2_ref, rb2_ref,
                           o_ref, *, T, B, H):
    """Fused 2-layer LSTM over T steps + regressor (Linear-ReLU-Linear).

    x_ref: (T*B, D) bf16 time-major flattened sequence (B is a multiple of 8).
    Layer-1 input projection hoisted out of the recurrence (one GEMM).
    Layer-2 recurrence: ONE matmul/step via [h1_t, h2_{t-1}] @ [wih2; whh2].
    Gate order matches PyTorch: i, f, g, o.
    """
    gx = jnp.dot(x_ref[...], wih1_ref[...], preferred_element_type=jnp.float32)
    gx = gx + b1_ref[...]  # (T*B, 4H) -- off the serial critical path

    def gates(pre):
        i = jax.nn.sigmoid(pre[:, 0 * H:1 * H])
        f = jax.nn.sigmoid(pre[:, 1 * H:2 * H])
        g = jnp.tanh(pre[:, 2 * H:3 * H])
        o = jax.nn.sigmoid(pre[:, 3 * H:4 * H])
        return i, f, g, o

    h1 = jnp.zeros((B, H), jnp.float32)
    c1 = jnp.zeros((B, H), jnp.float32)
    h2 = jnp.zeros((B, H), jnp.float32)
    c2 = jnp.zeros((B, H), jnp.float32)

    for t in range(T):  # T is small (6): fully unrolled, aligned static slices
        pre1 = gx[t * B:(t + 1) * B, :] + jnp.dot(
            h1.astype(jnp.bfloat16), whh1_ref[...],
            preferred_element_type=jnp.float32)
        i1, f1, g1, o1 = gates(pre1)
        c1 = f1 * c1 + i1 * g1
        h1 = o1 * jnp.tanh(c1)

        hcat = jnp.concatenate([h1, h2], axis=1).astype(jnp.bfloat16)  # (B, 2H)
        pre2 = jnp.dot(hcat, w2_ref[...],
                       preferred_element_type=jnp.float32) + b2_ref[...]
        i2, f2, g2, o2 = gates(pre2)
        c2 = f2 * c2 + i2 * g2
        h2 = o2 * jnp.tanh(c2)

    # Regressor: Linear -> ReLU -> Dropout(identity) -> Linear (output padded
    # to 128 lanes; column 0 is the real prediction).
    r = jnp.maximum(
        jnp.dot(h2.astype(jnp.bfloat16), rw1_ref[...],
                preferred_element_type=jnp.float32) + rb1_ref[...], 0.0)
    out = jnp.dot(r.astype(jnp.bfloat16), rw2_ref[...],
                  preferred_element_type=jnp.float32) + rb2_ref[...]
    o_ref[...] = out.astype(o_ref.dtype)


def lstm_regressor(xflat, lp1, lp2, rw1, rb1, rw2, rb2, *, T, B, H):
    # TODO(synk): for large batches add a batch grid axis (parallel) so v7x's
    #             two TensorCores split the recurrence.
    return pl.pallas_call(
        functools.partial(_lstm_regressor_kernel, T=T, B=B, H=H),
        out_shape=jax.ShapeDtypeStruct((B, rw2.shape[1]), jnp.float32),
    )(xflat.astype(jnp.bfloat16),
      lp1["wih"], lp1["whh"], lp1["b"],
      lp2["w"], lp2["b"],
      rw1, rb1.reshape(1, -1), rw2, rb2.reshape(1, -1))


# ----------------------------------------------------------------------------
# JAX glue: im2col, parameter init (padded block-diagonal packing), forward
# ----------------------------------------------------------------------------
def im2col(x_nhwc, ksize, stride, pad):
    """3x3 patch extraction -> (B, Ho, Wo, ksize*ksize*C), ordered (kh, kw, c)."""
    B, H, W, C = x_nhwc.shape
    xp = jnp.pad(x_nhwc, ((0, 0), (pad, pad), (pad, pad), (0, 0)))
    Ho = (H + 2 * pad - ksize) // stride + 1
    Wo = (W + 2 * pad - ksize) // stride + 1
    cols = []
    for kh in range(ksize):
        for kw in range(ksize):
            cols.append(
                xp[:, kh:kh + stride * Ho:stride, kw:kw + stride * Wo:stride, :])
    return jnp.concatenate(cols, axis=-1), Ho, Wo


def init_params(key, in_channels=6, base=8, feat=128, hidden=128):
    """Synthetic parameters; per-channel extractors packed block-diagonally into
    lane-dense (multiple-of-128) padded weights, stored in bf16."""
    assert in_channels == 6, "输入通道数必须为6"
    C2 = base * 2
    CPA = _round_up(in_channels * base, 128)   # padded conv1/conv2 output width
    CPB = _round_up(in_channels * C2, 128)     # padded conv3 output width
    NL = in_channels * feat                    # packed Linear output width
    assert NL % 128 == 0
    bn_scale = 1.0 / math.sqrt(1.0 + 1e-5)     # eval-mode BN (mean=0, var=1) folded
    k = key

    def nxt():
        nonlocal k
        k, sub = jax.random.split(k)
        return sub

    def block_diag_conv(w_list, cin, cout, cin_tot, cout_tot):
        # w_list[ch]: (9*cin, cout) in (kh, kw, cin)-major GEMM layout.
        W = jnp.zeros((9, cin_tot, cout_tot), jnp.float32)
        for ch, w in enumerate(w_list):
            W = W.at[:, ch * cin:(ch + 1) * cin, ch * cout:(ch + 1) * cout].set(
                w.reshape(9, cin, cout))
        return W.reshape(9 * cin_tot, cout_tot)

    def block_diag_dense(w_list, din_tot, dout_tot):
        din, dout = w_list[0].shape
        W = jnp.zeros((din_tot, dout_tot), jnp.float32)
        for ch, w in enumerate(w_list):
            W = W.at[ch * din:(ch + 1) * din, ch * dout:(ch + 1) * dout].set(w)
        return W

    w1s, w2s, w3s, wls = [], [], [], []
    for _ in range(in_channels):
        w1s.append(jax.random.normal(nxt(), (9 * 1, base), jnp.float32)
                   * math.sqrt(2.0 / (base * 9)))
        w2s.append(jax.random.normal(nxt(), (9 * base, base), jnp.float32)
                   * math.sqrt(2.0 / (base * 9)))
        w3s.append(jax.random.normal(nxt(), (9 * base, C2), jnp.float32)
                   * math.sqrt(2.0 / (C2 * 9)))
        wls.append(jax.random.normal(nxt(), (C2, feat), jnp.float32)
                   * math.sqrt(2.0 / (C2 + feat)))

    # Pack the 6 per-channel extractors block-diagonally; pad widths to 128
    # lanes (pad rows/cols are zero -> pad output channels stay exactly zero).
    W1 = block_diag_conv(w1s, 1, base, in_channels, CPA) * bn_scale   # (54, CPA)
    K1 = 9 * in_channels
    K1P = _round_up(K1, 64)
    W1 = jnp.pad(W1, ((0, K1P - K1), (0, 0)))                         # (64, CPA)
    W2 = block_diag_conv(w2s, base, base, CPA, CPA) * bn_scale        # (9*CPA, CPA)
    W3 = block_diag_conv(w3s, base, C2, CPA, CPB) * bn_scale          # (9*CPA, CPB)
    Wl = block_diag_dense(wls, CPB, NL)                               # (CPB, NL)

    b1 = jnp.zeros((CPA,), jnp.float32)
    b2 = jnp.zeros((CPA,), jnp.float32)
    b3 = jnp.zeros((CPB,), jnp.float32)
    bl = jnp.zeros((NL,), jnp.float32)

    lstm_raw = []
    for layer in range(2):
        D = feat if layer == 0 else hidden
        bound = 1.0 / math.sqrt(hidden)
        wih = jax.random.uniform(nxt(), (D, 4 * hidden), jnp.float32, -bound, bound)
        whh = jax.random.uniform(nxt(), (hidden, 4 * hidden), jnp.float32, -bound, bound)
        bih = jax.random.uniform(nxt(), (4 * hidden,), jnp.float32, -bound, bound)
        bhh = jax.random.uniform(nxt(), (4 * hidden,), jnp.float32, -bound, bound)
        lstm_raw.append((wih, whh, (bih + bhh).reshape(1, 4 * hidden)))

    lstm1 = dict(wih=lstm_raw[0][0].astype(jnp.bfloat16),
                 whh=lstm_raw[0][1].astype(jnp.bfloat16),
                 b=lstm_raw[0][2])
    # Layer-2: pre-concatenate [wih2; whh2] -> (2H, 4H) for a single
    # dependent matmul per recurrence step.
    lstm2 = dict(w=jnp.concatenate([lstm_raw[1][0], lstm_raw[1][1]],
                                   axis=0).astype(jnp.bfloat16),
                 b=lstm_raw[1][2])

    reg_w1 = (jax.random.normal(nxt(), (hidden, 128), jnp.float32)
              * math.sqrt(2.0 / (hidden + 128))).astype(jnp.bfloat16)
    reg_b1 = jnp.zeros((128,), jnp.float32)
    rw2 = jax.random.normal(nxt(), (128, 1), jnp.float32) * math.sqrt(2.0 / (128 + 1))
    reg_w2 = jnp.pad(rw2, ((0, 0), (0, 127))).astype(jnp.bfloat16)   # lane-dense out
    reg_b2 = jnp.zeros((128,), jnp.float32)

    return dict(W1=W1.astype(jnp.bfloat16), b1=b1,
                W2=W2.astype(jnp.bfloat16), b2=b2,
                W3=W3.astype(jnp.bfloat16), b3=b3,
                Wl=Wl.astype(jnp.bfloat16), bl=bl,
                lstm1=lstm1, lstm2=lstm2,
                reg_w1=reg_w1, reg_b1=reg_b1, reg_w2=reg_w2, reg_b2=reg_b2)


def forward(x, params):
    """x: [B, 6, H, W] (NCHW). Returns [B, 1]."""
    B, T, _, _ = x.shape                    # T = 6 channels -> LSTM timesteps
    feat = params["lstm1"]["wih"].shape[0]
    hidden = params["lstm1"]["whh"].shape[0]

    BB = 8                                  # batch tile: sublane-aligned pooling
    Bp = _round_up(B, BB)
    xb = jnp.pad(x, ((0, Bp - B), (0, 0), (0, 0), (0, 0)))
    h = jnp.transpose(xb, (0, 2, 3, 1)).astype(jnp.bfloat16)   # NHWC, C=6

    # Conv1 (3x3, s2, p1) + BN + ReLU — all 6 channels in one padded block-diag GEMM.
    p1, Ho, Wo = im2col(h, 3, 2, 1)
    K1P = params["W1"].shape[0]
    p1 = jnp.pad(p1, ((0, 0), (0, 0), (0, 0), (0, K1P - p1.shape[-1])))
    h = gemm_bias_act(p1.reshape(Bp * Ho * Wo, K1P), params["W1"], params["b1"],
                      "relu").reshape(Bp, Ho, Wo, -1)
    # Conv2 (3x3, s2, p1) + BN + ReLU (padded channels stay zero through ReLU).
    p2, Ho, Wo = im2col(h, 3, 2, 1)
    h = gemm_bias_act(p2.reshape(Bp * Ho * Wo, -1), params["W2"], params["b2"],
                      "relu").reshape(Bp, Ho, Wo, -1)

    # Conv3 (3x3, s1, p1) + BN + MaxPool(3,s2,p1) + AvgPool(1) + Linear + ReLU,
    # fused. Rows ordered (batch_block, ih, iw, local_b) with an 8-sample batch
    # tile so every pooling slice is a full sublane group, and the batch-block
    # grid axis is parallel.
    p3, Hc, Wc = im2col(h, 3, 1, 1)
    K3 = p3.shape[-1]
    nb = Bp // BB
    cols3 = (p3.reshape(nb, BB, Hc, Wc, K3)
               .transpose(0, 2, 3, 1, 4)
               .reshape(nb * Hc * Wc * BB, K3))
    feats = conv3_pool_linear(cols3, params["W3"], params["b3"],
                              params["Wl"], params["bl"],
                              nb=nb, BB=BB, Hc=Hc, Wc=Wc)      # (Bp, 6*feat)

    # Time-major (T, Bp, feat) flattened for the fused LSTM+regressor kernel.
    xseq = (feats.reshape(Bp, T, feat)
                 .transpose(1, 0, 2)
                 .reshape(T * Bp, feat))

    out = lstm_regressor(xseq, params["lstm1"], params["lstm2"],
                         params["reg_w1"], params["reg_b1"],
                         params["reg_w2"], params["reg_b2"],
                         T=T, B=Bp, H=hidden)                  # (Bp, 128)
    return out[:B, :1]                                         # (B, 1)


if __name__ == "__main__":
    key = jax.random.PRNGKey(0)
    pkey, xkey = jax.random.split(key)

    # Small config consistent with the module: in_channels must be 6.
    B, C_IN, H, W = 2, 6, 16, 16
    params = init_params(pkey, in_channels=C_IN, base=8, feat=128, hidden=128)
    x = jax.random.normal(xkey, (B, C_IN, H, W), jnp.float32)

    fwd = jax.jit(forward)
    out = fwd(x, params)
    jax.block_until_ready(out)
    assert out.shape == (B, 1), out.shape
    assert out.dtype == jnp.float32
    print("KERNEL_OK")
</pallas_src>

<mosaic_0001>
module attributes {stable_mosaic.version = 11 : i64} {
  func.func @_gemm_bias_act_kernel(%arg0: i32, %arg1: memref<512x64xbf16, #tpu.memory_space<vmem>>, %arg2: memref<64x128xbf16, #tpu.memory_space<vmem>>, %arg3: memref<1x128xf32, #tpu.memory_space<vmem>>, %arg4: memref<512x128xbf16, #tpu.memory_space<vmem>>) attributes {dimension_semantics = [#tpu.dimension_semantics<parallel>], iteration_bounds = array<i64: 1>, scalar_prefetch = 0 : i64, scratch_operands = 0 : i64, tpu.core_type = #tpu.core_type<tc>, window_params = [{transform_indices = @transform_0, window_bounds = array<i64: 512, 64>}, {pipeline_mode = #tpu.pipeline_mode<synchronous>, transform_indices = @transform_1, window_bounds = array<i64: 64, 128>}, {pipeline_mode = #tpu.pipeline_mode<synchronous>, transform_indices = @transform_2, window_bounds = array<i64: 1, 128>}, {transform_indices = @transform_3, window_bounds = array<i64: 512, 128>}]} {
    %c0 = arith.constant 0 : index
    %c0_0 = arith.constant 0 : index
    %0 = vector.load %arg1[%c0, %c0_0] : memref<512x64xbf16, #tpu.memory_space<vmem>>, vector<512x64xbf16>
    %c0_1 = arith.constant 0 : index
    %c0_2 = arith.constant 0 : index
    %1 = vector.load %arg2[%c0_1, %c0_2] : memref<64x128xbf16, #tpu.memory_space<vmem>>, vector<64x128xbf16>
    %cst = arith.constant dense<0.000000e+00> : vector<512x128xf32>
    %2 = tpu.matmul %0, %1, %cst {dimension_numbers = #tpu.dot_dimension_numbers<[1], [0], [0], [1], [0, 0, 1, 1], [], []>} : vector<512x64xbf16>, vector<64x128xbf16>, vector<512x128xf32> -> vector<512x128xf32>
    %c0_3 = arith.constant 0 : index
    %c0_4 = arith.constant 0 : index
    %3 = vector.load %arg3[%c0_3, %c0_4] : memref<1x128xf32, #tpu.memory_space<vmem>>, vector<1x128xf32>
    %4 = vector.broadcast %3 : vector<1x128xf32> to vector<512x128xf32>
    %5 = arith.addf %2, %4 : vector<512x128xf32>
    %cst_5 = arith.constant 0.000000e+00 : f32
    %6 = vector.broadcast %cst_5 : f32 to vector<512x128xf32>
    %7 = arith.maximumf %5, %6 : vector<512x128xf32>
    %8 = arith.truncf %7 : vector<512x128xf32> to vector<512x128xbf16>
    %c0_6 = arith.constant 0 : index
    %c0_7 = arith.constant 0 : index
    %9 = vector.load %arg4[%c0_6, %c0_7] : memref<512x128xbf16, #tpu.memory_space<vmem>>, vector<512x128xbf16>
    tpu.vector_store %arg4[%c0_6, %c0_7], %8 {strides = array<i32>} : memref<512x128xbf16, #tpu.memory_space<vmem>>, vector<512x128xbf16>,
    return
  }
  func.func @transform_0(%arg0: i32) -> (i32, i32) {
    %c0_i32 = arith.constant 0 : i32
    %c0_i32_0 = arith.constant 0 : i32
    return %arg0, %c0_i32 : i32, i32
  }
  func.func @transform_1(%arg0: i32) -> (i32, i32) {
    %c0_i32 = arith.constant 0 : i32
    %c0_i32_0 = arith.constant 0 : i32
    %c0_i32_1 = arith.constant 0 : i32
    return %c0_i32, %c0_i32_0 : i32, i32
  }
  func.func @transform_2(%arg0: i32) -> (i32, i32) {
    %c0_i32 = arith.constant 0 : i32
    %c0_i32_0 = arith.constant 0 : i32
    %c0_i32_1 = arith.constant 0 : i32
    return %c0_i32, %c0_i32_0 : i32, i32
  }
  func.func @transform_3(%arg0: i32) -> (i32, i32) {
    %c0_i32 = arith.constant 0 : i32
    %c0_i32_0 = arith.constant 0 : i32
    return %arg0, %c0_i32 : i32, i32
  }
}

module attributes {stable_mosaic.version = 11 : i64} {
  func.func @_gemm_bias_act_kernel(%arg0: i32, %arg1: memref<128x1152xbf16, #tpu.memory_space<vmem>>, %arg2: memref<1152x128xbf16, #tpu.memory_space<vmem>>, %arg3: memref<1x128xf32, #tpu.memory_space<vmem>>, %arg4: memref<128x128xbf16, #tpu.memory_space<vmem>>) attributes {dimension_semantics = [#tpu.dimension_semantics<parallel>], iteration_bounds = array<i64: 1>, scalar_prefetch = 0 : i64, scratch_operands = 0 : i64, tpu.core_type = #tpu.core_type<tc>, window_params = [{transform_indices = @transform_0, window_bounds = array<i64: 128, 1152>}, {pipeline_mode = #tpu.pipeline_mode<synchronous>, transform_indices = @transform_1, window_bounds = array<i64: 1152, 128>}, {pipeline_mode = #tpu.pipeline_mode<synchronous>, transform_indices = @transform_2, window_bounds = array<i64: 1, 128>}, {transform_indices = @transform_3, window_bounds = array<i64: 128, 128>}]} {
    %c0 = arith.constant 0 : index
    %c0_0 = arith.constant 0 : index
    %0 = vector.load %arg1[%c0, %c0_0] : memref<128x1152xbf16, #tpu.memory_space<vmem>>, vector<128x1152xbf16>
    %c0_1 = arith.constant 0 : index
    %c0_2 = arith.constant 0 : index
    %1 = vector.load %arg2[%c0_1, %c0_2] : memref<1152x128xbf16, #tpu.memory_space<vmem>>, vector<1152x128xbf16>
    %cst = arith.constant dense<0.000000e+00> : vector<128x128xf32>
    %2 = tpu.matmul %0, %1, %cst {dimension_numbers = #tpu.dot_dimension_numbers<[1], [0], [0], [1], [0, 0, 1, 1], [], []>} : vector<128x1152xbf16>, vector<1152x128xbf16>, vector<128x128xf32> -> vector<128x128xf32>
    %c0_3 = arith.constant 0 : index
    %c0_4 = arith.constant 0 : index
    %3 = vector.load %arg3[%c0_3, %c0_4] : memref<1x128xf32, #tpu.memory_space<vmem>>, vector<1x128xf32>
    %4 = vector.broadcast %3 : vector<1x128xf32> to vector<128x128xf32>
    %5 = arith.addf %2, %4 : vector<128x128xf32>
    %cst_5 = arith.constant 0.000000e+00 : f32
    %6 = vector.broadcast %cst_5 : f32 to vector<128x128xf32>
    %7 = arith.maximumf %5, %6 : vector<128x128xf32>
    %8 = arith.truncf %7 : vector<128x128xf32> to vector<128x128xbf16>
    %c0_6 = arith.constant 0 : index
    %c0_7 = arith.constant 0 : index
    %9 = vector.load %arg4[%c0_6, %c0_7] : memref<128x128xbf16, #tpu.memory_space<vmem>>, vector<128x128xbf16>
    tpu.vector_store %arg4[%c0_6, %c0_7], %8 {strides = array<i32>} : memref<128x128xbf16, #tpu.memory_space<vmem>>, vector<128x128xbf16>,
    return
  }
  func.func @transform_0(%arg0: i32) -> (i32, i32) {
    %c0_i32 = arith.constant 0 : i32
    %c0_i32_0 = arith.constant 0 : i32
    return %arg0, %c0_i32 : i32, i32
  }
  func.func @transform_1(%arg0: i32) -> (i32, i32) {
    %c0_i32 = arith.constant 0 : i32
    %c0_i32_0 = arith.constant 0 : i32
    %c0_i32_1 = arith.constant 0 : i32
    return %c0_i32, %c0_i32_0 : i32, i32
  }
  func.func @transform_2(%arg0: i32) -> (i32, i32) {
    %c0_i32 = arith.constant 0 : i32
    %c0_i32_0 = arith.constant 0 : i32
    %c0_i32_1 = arith.constant 0 : i32
    return %c0_i32, %c0_i32_0 : i32, i32
  }
  func.func @transform_3(%arg0: i32) -> (i32, i32) {
    %c0_i32 = arith.constant 0 : i32
    %c0_i32_0 = arith.constant 0 : i32
    return %arg0, %c0_i32 : i32, i32
  }
}

module attributes {stable_mosaic.version = 11 : i64} {
  func.func @_lstm_regressor_kernel(%arg0: memref<48x128xbf16, #tpu.memory_space<vmem>>, %arg1: memref<128x512xbf16, #tpu.memory_space<vmem>>, %arg2: memref<128x512xbf16, #tpu.memory_space<vmem>>, %arg3: memref<1x512xf32, #tpu.memory_space<vmem>>, %arg4: memref<256x512xbf16, #tpu.memory_space<vmem>>, %arg5: memref<1x512xf32, #tpu.memory_space<vmem>>, %arg6: memref<128x128xbf16, #tpu.memory_space<vmem>>, %arg7: memref<1x128xf32, #tpu.memory_space<vmem>>, %arg8: memref<128x128xbf16, #tpu.memory_space<vmem>>, %arg9: memref<1x128xf32, #tpu.memory_space<vmem>>, %arg10: memref<8x128xf32, #tpu.memory_space<vmem>>) attributes {dimension_semantics = [], scalar_prefetch = 0 : i64, scratch_operands = 0 : i64, tpu.core_type = #tpu.core_type<tc>} {
    %c0 = arith.constant 0 : index
    %c0_0 = arith.constant 0 : index
    %0 = vector.load %arg0[%c0, %c0_0] : memref<48x128xbf16, #tpu.memory_space<vmem>>, vector<48x128xbf16>
    %c0_1 = arith.constant 0 : index
    %c0_2 = arith.constant 0 : index
    %1 = vector.load %arg1[%c0_1, %c0_2] : memref<128x512xbf16, #tpu.memory_space<vmem>>, vector<128x512xbf16>
    %cst = arith.constant dense<0.000000e+00> : vector<48x512xf32>
    %2 = tpu.matmul %0, %1, %cst {dimension_numbers = #tpu.dot_dimension_numbers<[1], [0], [0], [1], [0, 0, 1, 1], [], []>} : vector<48x128xbf16>, vector<128x512xbf16>, vector<48x512xf32> -> vector<48x512xf32>
    %c0_3 = arith.constant 0 : index
    %c0_4 = arith.constant 0 : index
    %3 = vector.load %arg3[%c0_3, %c0_4] : memref<1x512xf32, #tpu.memory_space<vmem>>, vector<1x512xf32>
    %4 = vector.broadcast %3 : vector<1x512xf32> to vector<48x512xf32>
    %5 = arith.addf %2, %4 : vector<48x512xf32>
    %cst_5 = arith.constant 0.000000e+00 : f32
    %6 = vector.broadcast %cst_5 : f32 to vector<8x128xf32>
    %cst_6 = arith.constant 0.000000e+00 : f32
    %7 = vector.broadcast %cst_6 : f32 to vector<8x128xf32>
    %cst_7 = arith.constant 0.000000e+00 : f32
    %8 = vector.broadcast %cst_7 : f32 to vector<8x128xf32>
    %cst_8 = arith.constant 0.000000e+00 : f32
    %9 = vector.broadcast %cst_8 : f32 to vector<8x128xf32>
    %10 = vector.extract_strided_slice %5 {offsets = [0, 0], sizes = [8, 512], strides = [1, 1]} : vector<48x512xf32> to vector<8x512xf32>
    %11 = arith.truncf %6 : vector<8x128xf32> to vector<8x128xbf16>
    %c0_9 = arith.constant 0 : index
    %c0_10 = arith.constant 0 : index
    %12 = vector.load %arg2[%c0_9, %c0_10] : memref<128x512xbf16, #tpu.memory_space<vmem>>, vector<128x512xbf16>
    %cst_11 = arith.constant dense<0.000000e+00> : vector<8x512xf32>
    %13 = tpu.matmul %11, %12, %cst_11 {dimension_numbers = #tpu.dot_dimension_numbers<[1], [0], [0], [1], [0, 0, 1, 1], [], []>} : vector<8x128xbf16>, vector<128x512xbf16>, vector<8x512xf32> -> vector<8x512xf32>
    %14 = arith.addf %10, %13 : vector<8x512xf32>
    %15 = vector.extract_strided_slice %14 {offsets = [0, 0], sizes = [8, 128], strides = [1, 1]} : vector<8x512xf32> to vector<8x128xf32>
    %16 = arith.negf %15 : vector<8x128xf32>
    %17 = math.exp %16 : vector<8x128xf32>
    %cst_12 = arith.constant 1.000000e+00 : f32
    %18 = vector.broadcast %cst_12 : f32 to vector<8x128xf32>
    %19 = arith.addf %18, %17 : vector<8x128xf32>
    %20 = arith.divf %18, %19 : vector<8x128xf32>
    %21 = vector.extract_strided_slice %14 {offsets = [0, 128], sizes = [8, 128], strides = [1, 1]} : vector<8x512xf32> to vector<8x128xf32>
    %22 = arith.negf %21 : vector<8x128xf32>
    %23 = math.exp %22 : vector<8x128xf32>
    %cst_13 = arith.constant 1.000000e+00 : f32
    %24 = vector.broadcast %cst_13 : f32 to vector<8x128xf32>
    %25 = arith.addf %24, %23 : vector<8x128xf32>
    %26 = arith.divf %24, %25 : vector<8x128xf32>
    %27 = vector.extract_strided_slice %14 {offsets = [0, 256], sizes = [8, 128], strides = [1, 1]} : vector<8x512xf32> to vector<8x128xf32>
    %28 = math.tanh %27 : vector<8x128xf32>
    %29 = vector.extract_strided_slice %14 {offsets = [0, 384], sizes = [8, 128], strides = [1, 1]} : vector<8x512xf32> to vector<8x128xf32>
    %30 = arith.negf %29 : vector<8x128xf32>
    %31 = math.exp %30 : vector<8x128xf32>
    %cst_14 = arith.constant 1.000000e+00 : f32
    %32 = vector.broadcast %cst_14 : f32 to vector<8x128xf32>
    %33 = arith.addf %32, %31 : vector<8x128xf32>
    %34 = arith.divf %32, %33 : vector<8x128xf32>
    %35 = arith.mulf %26, %7 : vector<8x128xf32>
    %36 = arith.mulf %20, %28 : vector<8x128xf32>
    %37 = arith.addf %35, %36 : vector<8x128xf32>
    %38 = math.tanh %37 : vector<8x128xf32>
    %39 = arith.mulf %34, %38 : vector<8x128xf32>
    %40 = tpu.concatenate %39, %8 in 1 : vector<8x128xf32>, vector<8x128xf32> -> vector<8x256xf32>
    %41 = arith.truncf %40 : vector<8x256xf32> to vector<8x256xbf16>
    %c0_15 = arith.constant 0 : index
    %c0_16 = arith.constant 0 : index
    %42 = vector.load %arg4[%c0_15, %c0_16] : memref<256x512xbf16, #tpu.memory_space<vmem>>, vector<256x512xbf16>
    %cst_17 = arith.constant dense<0.000000e+00> : vector<8x512xf32>
    %43 = tpu.matmul %41, %42, %cst_17 {dimension_numbers = #tpu.dot_dimension_numbers<[1], [0], [0], [1], [0, 0, 1, 1], [], []>} : vector<8x256xbf16>, vector<256x512xbf16>, vector<8x512xf32> -> vector<8x512xf32>
    %c0_18 = arith.constant 0 : index
    %c0_19 = arith.constant 0 : index
    %44 = vector.load %arg5[%c0_18, %c0_19] : memref<1x512xf32, #tpu.memory_space<vmem>>, vector<1x512xf32>
    %45 = vector.broadcast %44 : vector<1x512xf32> to vector<8x512xf32>
    %46 = arith.addf %43, %45 : vector<8x512xf32>
    %47 = vector.extract_strided_slice %46 {offsets = [0, 0], sizes = [8, 128], strides = [1, 1]} : vector<8x512xf32> to vector<8x128xf32>
    %48 = arith.negf %47 : vector<8x128xf32>
    %49 = math.exp %48 : vector<8x128xf32>
    %cst_20 = arith.constant 1.000000e+00 : f32
    %50 = vector.broadcast %cst_20 : f32 to vector<8x128xf32>
    %51 = arith.addf %50, %49 : vector<8x128xf32>
    %52 = arith.divf %50, %51 : vector<8x128xf32>
    %53 = vector.extract_strided_slice %46 {offsets = [0, 128], sizes = [8, 128], strides = [1, 1]} : vector<8x512xf32> to vector<8x128xf32>
    %54 = arith.negf %53 : vector<8x128xf32>
    %55 = math.exp %54 : vector<8x128xf32>
    %cst_21 = arith.constant 1.000000e+00 : f32
    %56 = vector.broadcast %cst_21 : f32 to vector<8x128xf32>
    %57 = arith.addf %56, %55 : vector<8x128xf32>
    %58 = arith.divf %56, %57 : vector<8x128xf32>
    %59 = vector.extract_strided_slice %46 {offsets = [0, 256], sizes = [8, 128], strides = [1, 1]} : vector<8x512xf32> to vector<8x128xf32>
    %60 = math.tanh %59 : vector<8x128xf32>
    %61 = vector.extract_strided_slice %46 {offsets = [0, 384], sizes = [8, 128], strides = [1, 1]} : vector<8x512xf32> to vector<8x128xf32>
    %62 = arith.negf %61 : vector<8x128xf32>
    %63 = math.exp %62 : vector<8x128xf32>
    %cst_22 = arith.constant 1.000000e+00 : f32
    %64 = vector.broadcast %cst_22 : f32 to vector<8x128xf32>
    %65 = arith.addf %64, %63 : vector<8x128xf32>
    %66 = arith.divf %64, %65 : vector<8x128xf32>
    %67 = arith.mulf %58, %9 : vector<8x128xf32>
    %68 = arith.mulf %52, %60 : vector<8x128xf32>
    %69 = arith.addf %67, %68 : vector<8x128xf32>
    %70 = math.tanh %69 : vector<8x128xf32>
    %71 = arith.mulf %66, %70 : vector<8x128xf32>
    %72 = vector.extract_strided_slice %5 {offsets = [8, 0], sizes = [8, 512], strides = [1, 1]} : vector<48x512xf32> to vector<8x512xf32>
    %73 = arith.truncf %39 : vector<8x128xf32> to vector<8x128xbf16>
    %c0_23 = arith.constant 0 : index
    %c0_24 = arith.constant 0 : index
    %74 = vector.load %arg2[%c0_23, %c0_24] : memref<128x512xbf16, #tpu.memory_space<vmem>>, vector<128x512xbf16>
    %cst_25 = arith.constant dense<0.000000e+00> : vector<8x512xf32>
    %75 = tpu.matmul %73, %74, %cst_25 {dimension_numbers = #tpu.dot_dimension_numbers<[1], [0], [0], [1], [0, 0, 1, 1], [], []>} : vector<8x128xbf16>, vector<128x512xbf16>, vector<8x512xf32> -> vector<8x512xf32>
    %76 = arith.addf %72, %75 : vector<8x512xf32>
    %77 = vector.extract_strided_slice %76 {offsets = [0, 0], sizes = [8, 128], strides = [1, 1]} : vector<8x512xf32> to vector<8x128xf32>
    %78 = arith.negf %77 : vector<8x128xf32>
    %79 = math.exp %78 : vector<8x128xf32>
    %cst_26 = arith.constant 1.000000e+00 : f32
    %80 = vector.broadcast %cst_26 : f32 to vector<8x128xf32>
    %81 = arith.addf %80, %79 : vector<8x128xf32>
    %82 = arith.divf %80, %81 : vector<8x128xf32>
    %83 = vector.extract_strided_slice %76 {offsets = [0, 128], sizes = [8, 128], strides = [1, 1]} : vector<8x512xf32> to vector<8x128xf32>
    %84 = arith.negf %83 : vector<8x128xf32>
    %85 = math.exp %84 : vector<8x128xf32>
    %cst_27 = arith.constant 1.000000e+00 : f32
    %86 = vector.broadcast %cst_27 : f32 to vector<8x128xf32>
    %87 = arith.addf %86, %85 : vector<8x128xf32>
    %88 = arith.divf %86, %87 : vector<8x128xf32>
    %89 = vector.extract_strided_slice %76 {offsets = [0, 256], sizes = [8, 128], strides = [1, 1]} : vector<8x512xf32> to vector<8x128xf32>
    %90 = math.tanh %89 : vector<8x128xf32>
    %91 = vector.extract_strided_slice %76 {offsets = [0, 384], sizes = [8, 128], strides = [1, 1]} : vector<8x512xf32> to vector<8x128xf32>
    %92 = arith.negf %91 : vector<8x128xf32>
    %93 = math.exp %92 : vector<8x128xf32>
    %cst_28 = arith.constant 1.000000e+00 : f32
    %94 = vector.broadcast %cst_28 : f32 to vector<8x128xf32>
    %95 = arith.addf %94, %93 : vector<8x128xf32>
    %96 = arith.divf %94, %95 : vector<8x128xf32>
    %97 = arith.mulf %88, %37 : vector<8x128xf32>
    %98 = arith.mulf %82, %90 : vector<8x128xf32>
    %99 = arith.addf %97, %98 : vector<8x128xf32>
    %100 = math.tanh %99 : vector<8x128xf32>
    %101 = arith.mulf %96, %100 : vector<8x128xf32>
    %102 = tpu.concatenate %101, %71 in 1 : vector<8x128xf32>, vector<8x128xf32> -> vector<8x256xf32>
    %103 = arith.truncf %102 : vector<8x256xf32> to vector<8x256xbf16>
    %c0_29 = arith.constant 0 : index
    %c0_30 = arith.constant 0 : index
    %104 = vector.load %arg4[%c0_29, %c0_30] : memref<256x512xbf16, #tpu.memory_space<vmem>>, vector<256x512xbf16>
    %cst_31 = arith.constant dense<0.000000e+00> : vector<8x512xf32>
    %105 = tpu.matmul %103, %104, %cst_31 {dimension_numbers = #tpu.dot_dimension_numbers<[1], [0], [0], [1], [0, 0, 1, 1], [], []>} : vector<8x256xbf16>, vector<256x512xbf16>, vector<8x512xf32> -> vector<8x512xf32>
    %c0_32 = arith.constant 0 : index
    %c0_33 = arith.constant 0 : index
    %106 = vector.load %arg5[%c0_32, %c0_33] : memref<1x512xf32, #tpu.memory_space<vmem>>, vector<1x512xf32>
    %107 = vector.broadcast %106 : vector<1x512xf32> to vector<8x512xf32>
    %108 = arith.addf %105, %107 : vector<8x512xf32>
    %109 = vector.extract_strided_slice %108 {offsets = [0, 0], sizes = [8, 128], strides = [1, 1]} : vector<8x512xf32> to vector<8x128xf32>
    %110 = arith.negf %109 : vector<8x128xf32>
    %111 = math.exp %110 : vector<8x128xf32>
    %cst_34 = arith.constant 1.000000e+00 : f32
    %112 = vector.broadcast %cst_34 : f32 to vector<8x128xf32>
    %113 = arith.addf %112, %111 : vector<8x128xf32>
    %114 = arith.divf %112, %113 : vector<8x128xf32>
    %115 = vector.extract_strided_slice %108 {offsets = [0, 128], sizes = [8, 128], strides = [1, 1]} : vector<8x512xf32> to vector<8x128xf32>
    %116 = arith.negf %115 : vector<8x128xf32>
    %117 = math.exp %116 : vector<8x128xf32>
    %cst_35 = arith.constant 1.000000e+00 : f32
    %118 = vector.broadcast %cst_35 : f32 to vector<8x128xf32>
    %119 = arith.addf %118, %117 : vector<8x128xf32>
    %120 = arith.divf %118, %119 : vector<8x128xf32>
    %121 = vector.extract_strided_slice %108 {offsets = [0, 256], sizes = [8, 128], strides = [1, 1]} : vector<8x512xf32> to vector<8x128xf32>
    %122 = math.tanh %121 : vector<8x128xf32>
    %123 = vector.extract_strided_slice %108 {offsets = [0, 384], sizes = [8, 128], strides = [1, 1]} : vector<8x512xf32> to vector<8x128xf32>
    %124 = arith.negf %123 : vector<8x128xf32>
    %125 = math.exp %124 : vector<8x128xf32>
    %cst_36 = arith.constant 1.000000e+00 : f32
    %126 = vector.broadcast %cst_36 : f32 to vector<8x128xf32>
    %127 = arith.addf %126, %125 : vector<8x128xf32>
    %128 = arith.divf %126, %127 : vector<8x128xf32>
    %129 = arith.mulf %120, %69 : vector<8x128xf32>
    %130 = arith.mulf %114, %122 : vector<8x128xf32>
    %131 = arith.addf %129, %130 : vector<8x128xf32>
    %132 = math.tanh %131 : vector<8x128xf32>
    %133 = arith.mulf %128, %132 : vector<8x128xf32>
    %134 = vector.extract_strided_slice %5 {offsets = [16, 0], sizes = [8, 512], strides = [1, 1]} : vector<48x512xf32> to vector<8x512xf32>
    %135 = arith.truncf %101 : vector<8x128xf32> to vector<8x128xbf16>
    %c0_37 = arith.constant 0 : index
    %c0_38 = arith.constant 0 : index
    %136 = vector.load %arg2[%c0_37, %c0_38] : memref<128x512xbf16, #tpu.memory_space<vmem>>, vector<128x512xbf16>
    %cst_39 = arith.constant dense<0.000000e+00> : vector<8x512xf32>
    %137 = tpu.matmul %135, %136, %cst_39 {dimension_numbers = #tpu.dot_dimension_numbers<[1], [0], [0], [1], [0, 0, 1, 1], [], []>} : vector<8x128xbf16>, vector<128x512xbf16>, vector<8x512xf32> -> vector<8x512xf32>
    %138 = arith.addf %134, %137 : vector<8x512xf32>
    %139 = vector.extract_strided_slice %138 {offsets = [0, 0], sizes = [8, 128], strides = [1, 1]} : vector<8x512xf32> to vector<8x128xf32>
    %140 = arith.negf %139 : vector<8x128xf32>
    %141 = math.exp %140 : vector<8x128xf32>
    %cst_40 = arith.constant 1.000000e+00 : f32
    %142 = vector.broadcast %cst_40 : f32 to vector<8x128xf32>
    %143 = arith.addf %142, %141 : vector<8x128xf32>
    %144 = arith.divf %142, %143 : vector<8x128xf32>
    %145 = vector.extract_strided_slice %138 {offsets = [0, 128], sizes = [8, 128], strides = [1, 1]} : vector<8x512xf32> to vector<8x128xf32>
    %146 = arith.negf %145 : vector<8x128xf32>
    %147 = math.exp %146 : vector<8x128xf32>
    %cst_41 = arith.constant 1.000000e+00 : f32
    %148 = vector.broadcast %cst_41 : f32 to vector<8x128xf32>
    %149 = arith.addf %148, %147 : vector<8x128xf32>
    %150 = arith.divf %148, %149 : vector<8x128xf32>
    %151 = vector.extract_strided_slice %138 {offsets = [0, 256], sizes = [8, 128], strides = [1, 1]} : vector<8x512xf32> to vector<8x128xf32>
    %152 = math.tanh %151 : vector<8x128xf32>
    %153 = vector.extract_strided_slice %138 {offsets = [0, 384], sizes = [8, 128], strides = [1, 1]} : vector<8x512xf32> to vector<8x128xf32>
    %154 = arith.negf %153 : vector<8x128xf32>
    %155 = math.exp %154 : vector<8x128xf32>
    %cst_42 = arith.constant 1.000000e+00 : f32
    %156 = vector.broadcast %cst_42 : f32 to vector<8x128xf32>
    %157 = arith.addf %156, %155 : vector<8x128xf32>
    %158 = arith.divf %156, %157 : vector<8x128xf32>
    %159 = arith.mulf %150, %99 : vector<8x128xf32>
    %160 = arith.mulf %144, %152 : vector<8x128xf32>
    %161 = arith.addf %159, %160 : vector<8x128xf32>
    %162 = math.tanh %161 : vector<8x128xf32>
    %163 = arith.mulf %158, %162 : vector<8x128xf32>
    %164 = tpu.concatenate %163, %133 in 1 : vector<8x128xf32>, vector<8x128xf32> -> vector<8x256xf32>
    %165 = arith.truncf %164 : vector<8x256xf32> to vector<8x256xbf16>
    %c0_43 = arith.constant 0 : index
    %c0_44 = arith.constant 0 : index
    %166 = vector.load %arg4[%c0_43, %c0_44] : memref<256x512xbf16, #tpu.memory_space<vmem>>, vector<256x512xbf16>
    %cst_45 = arith.constant dense<0.000000e+00> : vector<8x512xf32>
    %167 = tpu.matmul %165, %166, %cst_45 {dimension_numbers = #tpu.dot_dimension_numbers<[1], [0], [0], [1], [0, 0, 1, 1], [], []>} : vector<8x256xbf16>, vector<256x512xbf16>, vector<8x512xf32> -> vector<8x512xf32>
    %c0_46 = arith.constant 0 : index
    %c0_47 = arith.constant 0 : index
    %168 = vector.load %arg5[%c0_46, %c0_47] : memref<1x512xf32, #tpu.memory_space<vmem>>, vector<1x512xf32>
    %169 = vector.broadcast %168 : vector<1x512xf32> to vector<8x512xf32>
    %170 = arith.addf %167, %169 : vector<8x512xf32>
    %171 = vector.extract_strided_slice %170 {offsets = [0, 0], sizes = [8, 128], strides = [1, 1]} : vector<8x512xf32> to vector<8x128xf32>
    %172 = arith.negf %171 : vector<8x128xf32>
    %173 = math.exp %172 : vector<8x128xf32>
    %cst_48 = arith.constant 1.000000e+00 : f32
    %174 = vector.broadcast %cst_48 : f32 to vector<8x128xf32>
    %175 = arith.addf %174, %173 : vector<8x128xf32>
    %176 = arith.divf %174, %175 : vector<8x128xf32>
    %177 = vector.extract_strided_slice %170 {offsets = [0, 128], sizes = [8, 128], strides = [1, 1]} : vector<8x512xf32> to vector<8x128xf32>
    %178 = arith.negf %177 : vector<8x128xf32>
    %179 = math.exp %178 : vector<8x128xf32>
    %cst_49 = arith.constant 1.000000e+00 : f32
    %180 = vector.broadcast %cst_49 : f32 to vector<8x128xf32>
    %181 = arith.addf %180, %179 : vector<8x128xf32>
    %182 = arith.divf %180, %181 : vector<8x128xf32>
    %183 = vector.extract_strided_slice %170 {offsets = [0, 256], sizes = [8, 128], strides = [1, 1]} : vector<8x512xf32> to vector<8x128xf32>
    %184 = math.tanh %183 : vector<8x128xf32>
    %185 = vector.extract_strided_slice %170 {offsets = [0, 384], sizes = [8, 128], strides = [1, 1]} : vector<8x512xf32> to vector<8x128xf32>
    %186 = arith.negf %185 : vector<8x128xf32>
    %187 = math.exp %186 : vector<8x128xf32>
    %cst_50 = arith.constant 1.000000e+00 : f32
    %188 = vector.broadcast %cst_50 : f32 to vector<8x128xf32>
    %189 = arith.addf %188, %187 : vector<8x128xf32>
    %190 = arith.divf %188, %189 : vector<8x128xf32>
    %191 = arith.mulf %182, %131 : vector<8x128xf32>
    %192 = arith.mulf %176, %184 : vector<8x128xf32>
    %193 = arith.addf %191, %192 : vector<8x128xf32>
    %194 = math.tanh %193 : vector<8x128xf32>
    %195 = arith.mulf %190, %194 : vector<8x128xf32>
    %196 = vector.extract_strided_slice %5 {offsets = [24, 0], sizes = [8, 512], strides = [1, 1]} : vector<48x512xf32> to vector<8x512xf32>
    %197 = arith.truncf %163 : vector<8x128xf32> to vector<8x128xbf16>
    %c0_51 = arith.constant 0 : index
    %c0_52 = arith.constant 0 : index
    %198 = vector.load %arg2[%c0_51, %c0_52] : memref<128x512xbf16, #tpu.memory_space<vmem>>, vector<128x512xbf16>
    %cst_53 = arith.constant dense<0.000000e+00> : vector<8x512xf32>
    %199 = tpu.matmul %197, %198, %cst_53 {dimension_numbers = #tpu.dot_dimension_numbers<[1], [0], [0], [1], [0, 0, 1, 1], [], []>} : vector<8x128xbf16>, vector<128x512xbf16>, vector<8x512xf32> -> vector<8x512xf32>
    %200 = arith.addf %196, %199 : vector<8x512xf32>
    %201 = vector.extract_strided_slice %200 {offsets = [0, 0], sizes = [8, 128], strides = [1, 1]} : vector<8x512xf32> to vector<8x128xf32>
    %202 = arith.negf %201 : vector<8x128xf32>
    %203 = math.exp %202 : vector<8x128xf32>
    %cst_54 = arith.constant 1.000000e+00 : f32
    %204 = vector.broadcast %cst_54 : f32 to vector<8x128xf32>
    %205 = arith.addf %204, %203 : vector<8x128xf32>
    %206 = arith.divf %204, %205 : vector<8x128xf32>
    %207 = vector.extract_strided_slice %200 {offsets = [0, 128], sizes = [8, 128], strides = [1, 1]} : vector<8x512xf32> to vector<8x128xf32>
    %208 = arith.negf %207 : vector<8x128xf32>
    %209 = math.exp %208 : vector<8x128xf32>
    %cst_55 = arith.constant 1.000000e+00 : f32
    %210 = vector.broadcast %cst_55 : f32 to vector<8x128xf32>
    %211 = arith.addf %210, %209 : vector<8x128xf32>
    %212 = arith.divf %210, %211 : vector<8x128xf32>
    %213 = vector.extract_strided_slice %200 {offsets = [0, 256], sizes = [8, 128], strides = [1, 1]} : vector<8x512xf32> to vector<8x128xf32>
    %214 = math.tanh %213 : vector<8x128xf32>
    %215 = vector.extract_strided_slice %200 {offsets = [0, 384], sizes = [8, 128], strides = [1, 1]} : vector<8x512xf32> to vector<8x128xf32>
    %216 = arith.negf %215 : vector<8x128xf32>
    %217 = math.exp %216 : vector<8x128xf32>
    %cst_56 = arith.constant 1.000000e+00 : f32
    %218 = vector.broadcast %cst_56 : f32 to vector<8x128xf32>
    %219 = arith.addf %218, %217 : vector<8x128xf32>
    %220 = arith.divf %218, %219 : vector<8x128xf32>
    %221 = arith.mulf %212, %161 : vector<8x128xf32>
    %222 = arith.mulf %206, %214 : vector<8x128xf32>
    %223 = arith.addf %221, %222 : vector<8x128xf32>
    %224 = math.tanh %223 : vector<8x128xf32>
    %225 = arith.mulf %220, %224 : vector<8x128xf32>
    %226 = tpu.concatenate %225, %195 in 1 : vector<8x128xf32>, vector<8x128xf32> -> vector<8x256xf32>
    %227 = arith.truncf %226 : vector<8x256xf32> to vector<8x256xbf16>
    %c0_57 = arith.constant 0 : index
    %c0_58 = arith.constant 0 : index
    %228 = vector.load %arg4[%c0_57, %c0_58] : memref<256x512xbf16, #tpu.memory_space<vmem>>, vector<256x512xbf16>
    %cst_59 = arith.constant dense<0.000000e+00> : vector<8x512xf32>
    %229 = tpu.matmul %227, %228, %cst_59 {dimension_numbers = #tpu.dot_dimension_numbers<[1], [0], [0], [1], [0, 0, 1, 1], [], []>} : vector<8x256xbf16>, vector<256x512xbf16>, vector<8x512xf32> -> vector<8x512xf32>
    %c0_60 = arith.constant 0 : index
    %c0_61 = arith.constant 0 : index
    %230 = vector.load %arg5[%c0_60, %c0_61] : memref<1x512xf32, #tpu.memory_space<vmem>>, vector<1x512xf32>
    %231 = vector.broadcast %230 : vector<1x512xf32> to vector<8x512xf32>
    %232 = arith.addf %229, %231 : vector<8x512xf32>
    %233 = vector.extract_strided_slice %232 {offsets = [0, 0], sizes = [8, 128], strides = [1, 1]} : vector<8x512xf32> to vector<8x128xf32>
    %234 = arith.negf %233 : vector<8x128xf32>
    %235 = math.exp %234 : vector<8x128xf32>
    %cst_62 = arith.constant 1.000000e+00 : f32
    %236 = vector.broadcast %cst_62 : f32 to vector<8x128xf32>
    %237 = arith.addf %236, %235 : vector<8x128xf32>
    %238 = arith.divf %236, %237 : vector<8x128xf32>
    %239 = vector.extract_strided_slice %232 {offsets = [0, 128], sizes = [8, 128], strides = [1, 1]} : vector<8x512xf32> to vector<8x128xf32>
    %240 = arith.negf %239 : vector<8x128xf32>
    %241 = math.exp %240 : vector<8x128xf32>
    %cst_63 = arith.constant 1.000000e+00 : f32
    %242 = vector.broadcast %cst_63 : f32 to vector<8x128xf32>
    %243 = arith.addf %242, %241 : vector<8x128xf32>
    %244 = arith.divf %242, %243 : vector<8x128xf32>
    %245 = vector.extract_strided_slice %232 {offsets = [0, 256], sizes = [8, 128], strides = [1, 1]} : vector<8x512xf32> to vector<8x128xf32>
    %246 = math.tanh %245 : vector<8x128xf32>
    %247 = vector.extract_strided_slice %232 {offsets = [0, 384], sizes = [8, 128], strides = [1, 1]} : vector<8x512xf32> to vector<8x128xf32>
    %248 = arith.negf %247 : vector<8x128xf32>
    %249 = math.exp %248 : vector<8x128xf32>
    %cst_64 = arith.constant 1.000000e+00 : f32
    %250 = vector.broadcast %cst_64 : f32 to vector<8x128xf32>
    %251 = arith.addf %250, %249 : vector<8x128xf32>
    %252 = arith.divf %250, %251 : vector<8x128xf32>
    %253 = arith.mulf %244, %193 : vector<8x128xf32>
    %254 = arith.mulf %238, %246 : vector<8x128xf32>
    %255 = arith.addf %253, %254 : vector<8x128xf32>
    %256 = math.tanh %255 : vector<8x128xf32>
    %257 = arith.mulf %252, %256 : vector<8x128xf32>
    %258 = vector.extract_strided_slice %5 {offsets = [32, 0], sizes = [8, 512], strides = [1, 1]} : vector<48x512xf32> to vector<8x512xf32>
    %259 = arith.truncf %225 : vector<8x128xf32> to vector<8x128xbf16>
    %c0_65 = arith.constant 0 : index
    %c0_66 = arith.constant 0 : index
    %260 = vector.load %arg2[%c0_65, %c0_66] : memref<128x512xbf16, #tpu.memory_space<vmem>>, vector<128x512xbf16>
    %cst_67 = arith.constant dense<0.000000e+00> : vector<8x512xf32>
    %261 = tpu.matmul %259, %260, %cst_67 {dimension_numbers = #tpu.dot_dimension_numbers<[1], [0], [0], [1], [0, 0, 1, 1], [], []>} : vector<8x128xbf16>, vector<128x512xbf16>, vector<8x512xf32> -> vector<8x512xf32>
    %262 = arith.addf %258, %261 : vector<8x512xf32>
    %263 = vector.extract_strided_slice %262 {offsets = [0, 0], sizes = [8, 128], strides = [1, 1]} : vector<8x512xf32> to vector<8x128xf32>
    %264 = arith.negf %263 : vector<8x128xf32>
    %265 = math.exp %264 : vector<8x128xf32>
    %cst_68 = arith.constant 1.000000e+00 : f32
    %266 = vector.broadcast %cst_68 : f32 to vector<8x128xf32>
    %267 = arith.addf %266, %265 : vector<8x128xf32>
    %268 = arith.divf %266, %267 : vector<8x128xf32>
    %269 = vector.extract_strided_slice %262 {offsets = [0, 128], sizes = [8, 128], strides = [1, 1]} : vector<8x512xf32> to vector<8x128xf32>
    %270 = arith.negf %269 : vector<8x128xf32>
    %271 = math.exp %270 : vector<8x128xf32>
    %cst_69 = arith.constant 1.000000e+00 : f32
    %272 = vector.broadcast %cst_69 : f32 to vector<8x128xf32>
    %273 = arith.addf %272, %271 : vector<8x128xf32>
    %274 = arith.divf %272, %273 : vector<8x128xf32>
    %275 = vector.extract_strided_slice %262 {offsets = [0, 256], sizes = [8, 128], strides = [1, 1]} : vector<8x512xf32> to vector<8x128xf32>
    %276 = math.tanh %275 : vector<8x128xf32>
    %277 = vector.extract_strided_slice %262 {offsets = [0, 384], sizes = [8, 128], strides = [1, 1]} : vector<8x512xf32> to vector<8x128xf32>
    %278 = arith.negf %277 : vector<8x128xf32>
    %279 = math.exp %278 : vector<8x128xf32>
    %cst_70 = arith.constant 1.000000e+00 : f32
    %280 = vector.broadcast %cst_70 : f32 to vector<8x128xf32>
    %281 = arith.addf %280, %279 : vector<8x128xf32>
    %282 = arith.divf %280, %281 : vector<8x128xf32>
    %283 = arith.mulf %274, %223 : vector<8x128xf32>
    %284 = arith.mulf %268, %276 : vector<8x128xf32>
    %285 = arith.addf %283, %284 : vector<8x128xf32>
    %286 = math.tanh %285 : vector<8x128xf32>
    %287 = arith.mulf %282, %286 : vector<8x128xf32>
    %288 = tpu.concatenate %287, %257 in 1 : vector<8x128xf32>, vector<8x128xf32> -> vector<8x256xf32>
    %289 = arith.truncf %288 : vector<8x256xf32> to vector<8x256xbf16>
    %c0_71 = arith.constant 0 : index
    %c0_72 = arith.constant 0 : index
    %290 = vector.load %arg4[%c0_71, %c0_72] : memref<256x512xbf16, #tpu.memory_space<vmem>>, vector<256x512xbf16>
    %cst_73 = arith.constant dense<0.000000e+00> : vector<8x512xf32>
    %291 = tpu.matmul %289, %290, %cst_73 {dimension_numbers = #tpu.dot_dimension_numbers<[1], [0], [0], [1], [0, 0, 1, 1], [], []>} : vector<8x256xbf16>, vector<256x512xbf16>, vector<8x512xf32> -> vector<8x512xf32>
    %c0_74 = arith.constant 0 : index
    %c0_75 = arith.constant 0 : index
    %292 = vector.load %arg5[%c0_74, %c0_75] : memref<1x512xf32, #tpu.memory_space<vmem>>, vector<1x512xf32>
    %293 = vector.broadcast %292 : vector<1x512xf32> to vector<8x512xf32>
    %294 = arith.addf %291, %293 : vector<8x512xf32>
    %295 = vector.extract_strided_slice %294 {offsets = [0, 0], sizes = [8, 128], strides = [1, 1]} : vector<8x512xf32> to vector<8x128xf32>
    %296 = arith.negf %295 : vector<8x128xf32>
    %297 = math.exp %296 : vector<8x128xf32>
    %cst_76 = arith.constant 1.000000e+00 : f32
    %298 = vector.broadcast %cst_76 : f32 to vector<8x128xf32>
    %299 = arith.addf %298, %297 : vector<8x128xf32>
    %300 = arith.divf %298, %299 : vector<8x128xf32>
    %301 = vector.extract_strided_slice %294 {offsets = [0, 128], sizes = [8, 128], strides = [1, 1]} : vector<8x512xf32> to vector<8x128xf32>
    %302 = arith.negf %301 : vector<8x128xf32>
    %303 = math.exp %302 : vector<8x128xf32>
    %cst_77 = arith.constant 1.000000e+00 : f32
    %304 = vector.broadcast %cst_77 : f32 to vector<8x128xf32>
    %305 = arith.addf %304, %303 : vector<8x128xf32>
    %306 = arith.divf %304, %305 : vector<8x128xf32>
    %307 = vector.extract_strided_slice %294 {offsets = [0, 256], sizes = [8, 128], strides = [1, 1]} : vector<8x512xf32> to vector<8x128xf32>
    %308 = math.tanh %307 : vector<8x128xf32>
    %309 = vector.extract_strided_slice %294 {offsets = [0, 384], sizes = [8, 128], strides = [1, 1]} : vector<8x512xf32> to vector<8x128xf32>
    %310 = arith.negf %309 : vector<8x128xf32>
    %311 = math.exp %310 : vector<8x128xf32>
    %cst_78 = arith.constant 1.000000e+00 : f32
    %312 = vector.broadcast %cst_78 : f32 to vector<8x128xf32>
    %313 = arith.addf %312, %311 : vector<8x128xf32>
    %314 = arith.divf %312, %313 : vector<8x128xf32>
    %315 = arith.mulf %306, %255 : vector<8x128xf32>
    %316 = arith.mulf %300, %308 : vector<8x128xf32>
    %317 = arith.addf %315, %316 : vector<8x128xf32>
    %318 = math.tanh %317 : vector<8x128xf32>
    %319 = arith.mulf %314, %318 : vector<8x128xf32>
    %320 = vector.extract_strided_slice %5 {offsets = [40, 0], sizes = [8, 512], strides = [1, 1]} : vector<48x512xf32> to vector<8x512xf32>
    %321 = arith.truncf %287 : vector<8x128xf32> to vector<8x128xbf16>
    %c0_79 = arith.constant 0 : index
    %c0_80 = arith.constant 0 : index
    %322 = vector.load %arg2[%c0_79, %c0_80] : memref<128x512xbf16, #tpu.memory_space<vmem>>, vector<128x512xbf16>
    %cst_81 = arith.constant dense<0.000000e+00> : vector<8x512xf32>
    %323 = tpu.matmul %321, %322, %cst_81 {dimension_numbers = #tpu.dot_dimension_numbers<[1], [0], [0], [1], [0, 0, 1, 1], [], []>} : vector<8x128xbf16>, vector<128x512xbf16>, vector<8x512xf32> -> vector<8x512xf32>
    %324 = arith.addf %320, %323 : vector<8x512xf32>
    %325 = vector.extract_strided_slice %324 {offsets = [0, 0], sizes = [8, 128], strides = [1, 1]} : vector<8x512xf32> to vector<8x128xf32>
    %326 = arith.negf %325 : vector<8x128xf32>
    %327 = math.exp %326 : vector<8x128xf32>
    %cst_82 = arith.constant 1.000000e+00 : f32
    %328 = vector.broadcast %cst_82 : f32 to vector<8x128xf32>
    %329 = arith.addf %328, %327 : vector<8x128xf32>
    %330 = arith.divf %328, %329 : vector<8x128xf32>
    %331 = vector.extract_strided_slice %324 {offsets = [0, 128], sizes = [8, 128], strides = [1, 1]} : vector<8x512xf32> to vector<8x128xf32>
    %332 = arith.negf %331 : vector<8x128xf32>
    %333 = math.exp %332 : vector<8x128xf32>
    %cst_83 = arith.constant 1.000000e+00 : f32
    %334 = vector.broadcast %cst_83 : f32 to vector<8x128xf32>
    %335 = arith.addf %334, %333 : vector<8x128xf32>
    %336 = arith.divf %334, %335 : vector<8x128xf32>
    %337 = vector.extract_strided_slice %324 {offsets = [0, 256], sizes = [8, 128], strides = [1, 1]} : vector<8x512xf32> to vector<8x128xf32>
    %338 = math.tanh %337 : vector<8x128xf32>
    %339 = vector.extract_strided_slice %324 {offsets = [0, 384], sizes = [8, 128], strides = [1, 1]} : vector<8x512xf32> to vector<8x128xf32>
    %340 = arith.negf %339 : vector<8x128xf32>
    %341 = math.exp %340 : vector<8x128xf32>
    %cst_84 = arith.constant 1.000000e+00 : f32
    %342 = vector.broadcast %cst_84 : f32 to vector<8x128xf32>
    %343 = arith.addf %342, %341 : vector<8x128xf32>
    %344 = arith.divf %342, %343 : vector<8x128xf32>
    %345 = arith.mulf %336, %285 : vector<8x128xf32>
    %346 = arith.mulf %330, %338 : vector<8x128xf32>
    %347 = arith.addf %345, %346 : vector<8x128xf32>
    %348 = math.tanh %347 : vector<8x128xf32>
    %349 = arith.mulf %344, %348 : vector<8x128xf32>
    %350 = tpu.concatenate %349, %319 in 1 : vector<8x128xf32>, vector<8x128xf32> -> vector<8x256xf32>
    %351 = arith.truncf %350 : vector<8x256xf32> to vector<8x256xbf16>
    %c0_85 = arith.constant 0 : index
    %c0_86 = arith.constant 0 : index
    %352 = vector.load %arg4[%c0_85, %c0_86] : memref<256x512xbf16, #tpu.memory_space<vmem>>, vector<256x512xbf16>
    %cst_87 = arith.constant dense<0.000000e+00> : vector<8x512xf32>
    %353 = tpu.matmul %351, %352, %cst_87 {dimension_numbers = #tpu.dot_dimension_numbers<[1], [0], [0], [1], [0, 0, 1, 1], [], []>} : vector<8x256xbf16>, vector<256x512xbf16>, vector<8x512xf32> -> vector<8x512xf32>
    %c0_88 = arith.constant 0 : index
    %c0_89 = arith.constant 0 : index
    %354 = vector.load %arg5[%c0_88, %c0_89] : memref<1x512xf32, #tpu.memory_space<vmem>>, vector<1x512xf32>
    %355 = vector.broadcast %354 : vector<1x512xf32> to vector<8x512xf32>
    %356 = arith.addf %353, %355 : vector<8x512xf32>
    %357 = vector.extract_strided_slice %356 {offsets = [0, 0], sizes = [8, 128], strides = [1, 1]} : vector<8x512xf32> to vector<8x128xf32>
    %358 = arith.negf %357 : vector<8x128xf32>
    %359 = math.exp %358 : vector<8x128xf32>
    %cst_90 = arith.constant 1.000000e+00 : f32
    %360 = vector.broadcast %cst_90 : f32 to vector<8x128xf32>
    %361 = arith.addf %360, %359 : vector<8x128xf32>
    %362 = arith.divf %360, %361 : vector<8x128xf32>
    %363 = vector.extract_strided_slice %356 {offsets = [0, 128], sizes = [8, 128], strides = [1, 1]} : vector<8x512xf32> to vector<8x128xf32>
    %364 = arith.negf %363 : vector<8x128xf32>
    %365 = math.exp %364 : vector<8x128xf32>
    %cst_91 = arith.constant 1.000000e+00 : f32
    %366 = vector.broadcast %cst_91 : f32 to vector<8x128xf32>
    %367 = arith.addf %366, %365 : vector<8x128xf32>
    %368 = arith.divf %366, %367 : vector<8x128xf32>
    %369 = vector.extract_strided_slice %356 {offsets = [0, 256], sizes = [8, 128], strides = [1, 1]} : vector<8x512xf32> to vector<8x128xf32>
    %370 = math.tanh %369 : vector<8x128xf32>
    %371 = vector.extract_strided_slice %356 {offsets = [0, 384], sizes = [8, 128], strides = [1, 1]} : vector<8x512xf32> to vector<8x128xf32>
    %372 = arith.negf %371 : vector<8x128xf32>
    %373 = math.exp %372 : vector<8x128xf32>
    %cst_92 = arith.constant 1.000000e+00 : f32
    %374 = vector.broadcast %cst_92 : f32 to vector<8x128xf32>
    %375 = arith.addf %374, %373 : vector<8x128xf32>
    %376 = arith.divf %374, %375 : vector<8x128xf32>
    %377 = arith.mulf %368, %317 : vector<8x128xf32>
    %378 = arith.mulf %362, %370 : vector<8x128xf32>
    %379 = arith.addf %377, %378 : vector<8x128xf32>
    %380 = math.tanh %379 : vector<8x128xf32>
    %381 = arith.mulf %376, %380 : vector<8x128xf32>
    %382 = arith.truncf %381 : vector<8x128xf32> to vector<8x128xbf16>
    %c0_93 = arith.constant 0 : index
    %c0_94 = arith.constant 0 : index
    %383 = vector.load %arg6[%c0_93, %c0_94] : memref<128x128xbf16, #tpu.memory_space<vmem>>, vector<128x128xbf16>
    %cst_95 = arith.constant dense<0.000000e+00> : vector<8x128xf32>
    %384 = tpu.matmul %382, %383, %cst_95 {dimension_numbers = #tpu.dot_dimension_numbers<[1], [0], [0], [1], [0, 0, 1, 1], [], []>} : vector<8x128xbf16>, vector<128x128xbf16>, vector<8x128xf32> -> vector<8x128xf32>
    %c0_96 = arith.constant 0 : index
    %c0_97 = arith.constant 0 : index
    %385 = vector.load %arg7[%c0_96, %c0_97] : memref<1x128xf32, #tpu.memory_space<vmem>>, vector<1x128xf32>
    %386 = vector.broadcast %385 : vector<1x128xf32> to vector<8x128xf32>
    %387 = arith.addf %384, %386 : vector<8x128xf32>
    %cst_98 = arith.constant 0.000000e+00 : f32
    %388 = vector.broadcast %cst_98 : f32 to vector<8x128xf32>
    %389 = arith.maximumf %387, %388 : vector<8x128xf32>
    %390 = arith.truncf %389 : vector<8x128xf32> to vector<8x128xbf16>
    %c0_99 = arith.constant 0 : index
    %c0_100 = arith.constant 0 : index
    %391 = vector.load %arg8[%c0_99, %c0_100] : memref<128x128xbf16, #tpu.memory_space<vmem>>, vector<128x128xbf16>
    %cst_101 = arith.constant dense<0.000000e+00> : vector<8x128xf32>
    %392 = tpu.matmul %390, %391, %cst_101 {dimension_numbers = #tpu.dot_dimension_numbers<[1], [0], [0], [1], [0, 0, 1, 1], [], []>} : vector<8x128xbf16>, vector<128x128xbf16>, vector<8x128xf32> -> vector<8x128xf32>
    %c0_102 = arith.constant 0 : index
    %c0_103 = arith.constant 0 : index
    %393 = vector.load %arg9[%c0_102, %c0_103] : memref<1x128xf32, #tpu.memory_space<vmem>>, vector<1x128xf32>
    %394 = vector.broadcast %393 : vector<1x128xf32> to vector<8x128xf32>
    %395 = arith.addf %392, %394 : vector<8x128xf32>
    %c0_104 = arith.constant 0 : index
    %c0_105 = arith.constant 0 : index
    %396 = vector.load %arg10[%c0_104, %c0_105] : memref<8x128xf32, #tpu.memory_space<vmem>>, vector<8x128xf32>
    tpu.vector_store %arg10[%c0_104, %c0_105], %395 {strides = array<i32>} : memref<8x128xf32, #tpu.memory_space<vmem>>, vector<8x128xf32>,
    return
  }
}

module attributes {stable_mosaic.version = 11 : i64} {
  func.func @_conv3_pool_linear_kernel(%arg0: i32, %arg1: memref<128x1152xbf16, #tpu.memory_space<vmem>>, %arg2: memref<1152x128xbf16, #tpu.memory_space<vmem>>, %arg3: memref<1x128xf32, #tpu.memory_space<vmem>>, %arg4: memref<128x768xbf16, #tpu.memory_space<vmem>>, %arg5: memref<1x768xf32, #tpu.memory_space<vmem>>, %arg6: memref<8x768xbf16, #tpu.memory_space<vmem>>) attributes {dimension_semantics = [#tpu.dimension_semantics<parallel>], iteration_bounds = array<i64: 1>, scalar_prefetch = 0 : i64, scratch_operands = 0 : i64, tpu.core_type = #tpu.core_type<tc>, window_params = [{transform_indices = @transform_0, window_bounds = array<i64: 128, 1152>}, {pipeline_mode = #tpu.pipeline_mode<synchronous>, transform_indices = @transform_1, window_bounds = array<i64: 1152, 128>}, {pipeline_mode = #tpu.pipeline_mode<synchronous>, transform_indices = @transform_2, window_bounds = array<i64: 1, 128>}, {pipeline_mode = #tpu.pipeline_mode<synchronous>, transform_indices = @transform_3, window_bounds = array<i64: 128, 768>}, {pipeline_mode = #tpu.pipeline_mode<synchronous>, transform_indices = @transform_4, window_bounds = array<i64: 1, 768>}, {transform_indices = @transform_5, window_bounds = array<i64: 8, 768>}]} {
    %c0 = arith.constant 0 : index
    %c0_0 = arith.constant 0 : index
    %0 = vector.load %arg1[%c0, %c0_0] : memref<128x1152xbf16, #tpu.memory_space<vmem>>, vector<128x1152xbf16>
    %c0_1 = arith.constant 0 : index
    %c0_2 = arith.constant 0 : index
    %1 = vector.load %arg2[%c0_1, %c0_2] : memref<1152x128xbf16, #tpu.memory_space<vmem>>, vector<1152x128xbf16>
    %cst = arith.constant dense<0.000000e+00> : vector<128x128xf32>
    %2 = tpu.matmul %0, %1, %cst {dimension_numbers = #tpu.dot_dimension_numbers<[1], [0], [0], [1], [0, 0, 1, 1], [], []>} : vector<128x1152xbf16>, vector<1152x128xbf16>, vector<128x128xf32> -> vector<128x128xf32>
    %c0_3 = arith.constant 0 : index
    %c0_4 = arith.constant 0 : index
    %3 = vector.load %arg3[%c0_3, %c0_4] : memref<1x128xf32, #tpu.memory_space<vmem>>, vector<1x128xf32>
    %4 = vector.broadcast %3 : vector<1x128xf32> to vector<128x128xf32>
    %5 = arith.addf %2, %4 : vector<128x128xf32>
    %cst_5 = arith.constant 0.000000e+00 : f32
    %6 = vector.broadcast %cst_5 : f32 to vector<8x128xf32>
    %7 = vector.extract_strided_slice %5 {offsets = [0, 0], sizes = [8, 128], strides = [1, 1]} : vector<128x128xf32> to vector<8x128xf32>
    %8 = vector.extract_strided_slice %5 {offsets = [8, 0], sizes = [8, 128], strides = [1, 1]} : vector<128x128xf32> to vector<8x128xf32>
    %9 = arith.maximumf %7, %8 : vector<8x128xf32>
    %10 = vector.extract_strided_slice %5 {offsets = [32, 0], sizes = [8, 128], strides = [1, 1]} : vector<128x128xf32> to vector<8x128xf32>
    %11 = arith.maximumf %9, %10 : vector<8x128xf32>
    %12 = vector.extract_strided_slice %5 {offsets = [40, 0], sizes = [8, 128], strides = [1, 1]} : vector<128x128xf32> to vector<8x128xf32>
    %13 = arith.maximumf %11, %12 : vector<8x128xf32>
    %14 = arith.addf %6, %13 : vector<8x128xf32>
    %15 = vector.extract_strided_slice %5 {offsets = [8, 0], sizes = [8, 128], strides = [1, 1]} : vector<128x128xf32> to vector<8x128xf32>
    %16 = vector.extract_strided_slice %5 {offsets = [16, 0], sizes = [8, 128], strides = [1, 1]} : vector<128x128xf32> to vector<8x128xf32>
    %17 = arith.maximumf %15, %16 : vector<8x128xf32>
    %18 = vector.extract_strided_slice %5 {offsets = [24, 0], sizes = [8, 128], strides = [1, 1]} : vector<128x128xf32> to vector<8x128xf32>
    %19 = arith.maximumf %17, %18 : vector<8x128xf32>
    %20 = vector.extract_strided_slice %5 {offsets = [40, 0], sizes = [8, 128], strides = [1, 1]} : vector<128x128xf32> to vector<8x128xf32>
    %21 = arith.maximumf %19, %20 : vector<8x128xf32>
    %22 = vector.extract_strided_slice %5 {offsets = [48, 0], sizes = [8, 128], strides = [1, 1]} : vector<128x128xf32> to vector<8x128xf32>
    %23 = arith.maximumf %21, %22 : vector<8x128xf32>
    %24 = vector.extract_strided_slice %5 {offsets = [56, 0], sizes = [8, 128], strides = [1, 1]} : vector<128x128xf32> to vector<8x128xf32>
    %25 = arith.maximumf %23, %24 : vector<8x128xf32>
    %26 = arith.addf %14, %25 : vector<8x128xf32>
    %27 = vector.extract_strided_slice %5 {offsets = [32, 0], sizes = [8, 128], strides = [1, 1]} : vector<128x128xf32> to vector<8x128xf32>
    %28 = vector.extract_strided_slice %5 {offsets = [40, 0], sizes = [8, 128], strides = [1, 1]} : vector<128x128xf32> to vector<8x128xf32>
    %29 = arith.maximumf %27, %28 : vector<8x128xf32>
    %30 = vector.extract_strided_slice %5 {offsets = [64, 0], sizes = [8, 128], strides = [1, 1]} : vector<128x128xf32> to vector<8x128xf32>
    %31 = arith.maximumf %29, %30 : vector<8x128xf32>
    %32 = vector.extract_strided_slice %5 {offsets = [72, 0], sizes = [8, 128], strides = [1, 1]} : vector<128x128xf32> to vector<8x128xf32>
    %33 = arith.maximumf %31, %32 : vector<8x128xf32>
    %34 = vector.extract_strided_slice %5 {offsets = [96, 0], sizes = [8, 128], strides = [1, 1]} : vector<128x128xf32> to vector<8x128xf32>
    %35 = arith.maximumf %33, %34 : vector<8x128xf32>
    %36 = vector.extract_strided_slice %5 {offsets = [104, 0], sizes = [8, 128], strides = [1, 1]} : vector<128x128xf32> to vector<8x128xf32>
    %37 = arith.maximumf %35, %36 : vector<8x128xf32>
    %38 = arith.addf %26, %37 : vector<8x128xf32>
    %39 = vector.extract_strided_slice %5 {offsets = [40, 0], sizes = [8, 128], strides = [1, 1]} : vector<128x128xf32> to vector<8x128xf32>
    %40 = vector.extract_strided_slice %5 {offsets = [48, 0], sizes = [8, 128], strides = [1, 1]} : vector<128x128xf32> to vector<8x128xf32>
    %41 = arith.maximumf %39, %40 : vector<8x128xf32>
    %42 = vector.extract_strided_slice %5 {offsets = [56, 0], sizes = [8, 128], strides = [1, 1]} : vector<128x128xf32> to vector<8x128xf32>
    %43 = arith.maximumf %41, %42 : vector<8x128xf32>
    %44 = vector.extract_strided_slice %5 {offsets = [72, 0], sizes = [8, 128], strides = [1, 1]} : vector<128x128xf32> to vector<8x128xf32>
    %45 = arith.maximumf %43, %44 : vector<8x128xf32>
    %46 = vector.extract_strided_slice %5 {offsets = [80, 0], sizes = [8, 128], strides = [1, 1]} : vector<128x128xf32> to vector<8x128xf32>
    %47 = arith.maximumf %45, %46 : vector<8x128xf32>
    %48 = vector.extract_strided_slice %5 {offsets = [88, 0], sizes = [8, 128], strides = [1, 1]} : vector<128x128xf32> to vector<8x128xf32>
    %49 = arith.maximumf %47, %48 : vector<8x128xf32>
    %50 = vector.extract_strided_slice %5 {offsets = [104, 0], sizes = [8, 128], strides = [1, 1]} : vector<128x128xf32> to vector<8x128xf32>
    %51 = arith.maximumf %49, %50 : vector<8x128xf32>
    %52 = vector.extract_strided_slice %5 {offsets = [112, 0], sizes = [8, 128], strides = [1, 1]} : vector<128x128xf32> to vector<8x128xf32>
    %53 = arith.maximumf %51, %52 : vector<8x128xf32>
    %54 = vector.extract_strided_slice %5 {offsets = [120, 0], sizes = [8, 128], strides = [1, 1]} : vector<128x128xf32> to vector<8x128xf32>
    %55 = arith.maximumf %53, %54 : vector<8x128xf32>
    %56 = arith.addf %38, %55 : vector<8x128xf32>
    %cst_6 = arith.constant 2.500000e-01 : f32
    %57 = vector.broadcast %cst_6 : f32 to vector<8x128xf32>
    %58 = arith.mulf %56, %57 : vector<8x128xf32>
    %59 = arith.truncf %58 : vector<8x128xf32> to vector<8x128xbf16>
    %c0_7 = arith.constant 0 : index
    %c0_8 = arith.constant 0 : index
    %60 = vector.load %arg4[%c0_7, %c0_8] : memref<128x768xbf16, #tpu.memory_space<vmem>>, vector<128x768xbf16>
    %cst_9 = arith.constant dense<0.000000e+00> : vector<8x768xf32>
    %61 = tpu.matmul %59, %60, %cst_9 {dimension_numbers = #tpu.dot_dimension_numbers<[1], [0], [0], [1], [0, 0, 1, 1], [], []>} : vector<8x128xbf16>, vector<128x768xbf16>, vector<8x768xf32> -> vector<8x768xf32>
    %c0_10 = arith.constant 0 : index
    %c0_11 = arith.constant 0 : index
    %62 = vector.load %arg5[%c0_10, %c0_11] : memref<1x768xf32, #tpu.memory_space<vmem>>, vector<1x768xf32>
    %63 = vector.broadcast %62 : vector<1x768xf32> to vector<8x768xf32>
    %64 = arith.addf %61, %63 : vector<8x768xf32>
    %cst_12 = arith.constant 0.000000e+00 : f32
    %65 = vector.broadcast %cst_12 : f32 to vector<8x768xf32>
    %66 = arith.maximumf %64, %65 : vector<8x768xf32>
    %67 = arith.truncf %66 : vector<8x768xf32> to vector<8x768xbf16>
    %c0_13 = arith.constant 0 : index
    %c0_14 = arith.constant 0 : index
    %68 = vector.load %arg6[%c0_13, %c0_14] : memref<8x768xbf16, #tpu.memory_space<vmem>>, vector<8x768xbf16>
    tpu.vector_store %arg6[%c0_13, %c0_14], %67 {strides = array<i32>} : memref<8x768xbf16, #tpu.memory_space<vmem>>, vector<8x768xbf16>,
    return
  }
  func.func @transform_0(%arg0: i32) -> (i32, i32) {
    %c0_i32 = arith.constant 0 : i32
    %c0_i32_0 = arith.constant 0 : i32
    return %arg0, %c0_i32 : i32, i32
  }
  func.func @transform_1(%arg0: i32) -> (i32, i32) {
    %c0_i32 = arith.constant 0 : i32
    %c0_i32_0 = arith.constant 0 : i32
    %c0_i32_1 = arith.constant 0 : i32
    return %c0_i32, %c0_i32_0 : i32, i32
  }
  func.func @transform_2(%arg0: i32) -> (i32, i32) {
    %c0_i32 = arith.constant 0 : i32
    %c0_i32_0 = arith.constant 0 : i32
    %c0_i32_1 = arith.constant 0 : i32
    return %c0_i32, %c0_i32_0 : i32, i32
  }
  func.func @transform_3(%arg0: i32) -> (i32, i32) {
    %c0_i32 = arith.constant 0 : i32
    %c0_i32_0 = arith.constant 0 : i32
    %c0_i32_1 = arith.constant 0 : i32
    return %c0_i32, %c0_i32_0 : i32, i32
  }
  func.func @transform_4(%arg0: i32) -> (i32, i32) {
    %c0_i32 = arith.constant 0 : i32
    %c0_i32_0 = arith.constant 0 : i32
    %c0_i32_1 = arith.constant 0 : i32
    return %c0_i32, %c0_i32_0 : i32, i32
  }
  func.func @transform_5(%arg0: i32) -> (i32, i32) {
    %c0_i32 = arith.constant 0 : i32
    %c0_i32_0 = arith.constant 0 : i32
    return %arg0, %c0_i32 : i32, i32
  }
}

</mosaic_0001>

<llo_original>
// kernel: forward.4
$region0: #{forward.4}
  #allocation0 [shape = 'u32[]', space=smem, size = 0x4, offset = 0x4, fixed_abs, tag = 'smem constant byte address 0x4 - core index']
  #allocation1 [shape = 'u32[144,128]{1,0:T(1,128)}', space=vmem, size = 0x12000, scoped, tag = 'internal scratch']
  %s0 = inlined_call_operand.vmem [shape: bf16[512,64], index: 0, kind: input, shape index: {}]
  %s1 = inlined_call_operand.vmem [shape: bf16[64,128], index: 1, kind: input, shape index: {}]
  %s2 = inlined_call_operand.vmem [shape: f32[1,128], index: 2, kind: input, shape index: {}]
  %s3 = inlined_call_operand.vmem [shape: bf16[512,128], index: 3, kind: output, shape index: {}]
  %s4 = sld [smem:[#allocation0]]
  $region22: #{forward.4} parent=0
    _
  %s6 = ssub.s32 1, %s4
  %s7 = scalar_select 0, %s6, %s4
  // Predicated region
  $region2: #{forward.4} parent=0 // pred_check
    _
  $region3: #{forward.4} parent=0 // pred_check_branch
    %9 = sbr.rel (0) target = $region5
  $region4: #{forward.4} parent=0 // pred_region
    _
  $region5: #{forward.4} parent=0 // pred_fallthru
    _
  // Predicated region
  $region6: #{forward.4} parent=0 // pred_check
    _
  $region7: #{forward.4} parent=0 // pred_check_branch
    %11 = sbr.rel (0) target = $region9
  $region8: #{forward.4} parent=0 // pred_region
    _
  $region9: #{forward.4} parent=0 // pred_fallthru
    _
  // Predicated region
  $region10: #{forward.4} parent=0 // pred_check
    _
  $region11: #{forward.4} parent=0 // pred_check_branch
    %13 = sbr.rel (0) target = $region13
  $region12: #{forward.4} parent=0 // pred_region
    _
  $region13: #{forward.4} parent=0 // pred_fallthru
    _
  %v15 = vld [vmem:[%s0] sm:$0xf]
  %v16 = vld [vmem:[%s0 + $0x4] sm:$0xf]
  %v17 = vld [vmem:[%s0 + $0x8] sm:$0xf]
  %v18 = vld [vmem:[%s0 + $0xc] sm:$0xf]
  %v19 = vld [vmem:[%s0 + $0x10] sm:$0xf]
  %v20 = vld [vmem:[%s0 + $0x14] sm:$0xf]
  %v21 = vld [vmem:[%s0 + $0x18] sm:$0xf]
  %v22 = vld [vmem:[%s0 + $0x1c] sm:$0xf]
  %v23 = vld [vmem:[%s0 + $0x20] sm:$0xf]
  %v24 = vld [vmem:[%s0 + $0x24] sm:$0xf]
  %v25 = vld [vmem:[%s0 + $0x28] sm:$0xf]
  %v26 = vld [vmem:[%s0 + $0x2c] sm:$0xf]
  %v27 = vld [vmem:[%s0 + $0x30] sm:$0xf]
  %v28 = vld [vmem:[%s0 + $0x34] sm:$0xf]
  %v29 = vld [vmem:[%s0 + $0x38] sm:$0xf]
  %v30 = vld [vmem:[%s0 + $0x3c] sm:$0xf]
  %v31 = vld [vmem:[%s0 + $0x40] sm:$0xf]
  %v32 = vld [vmem:[%s0 + $0x44] sm:$0xf]
  %v33 = vld [vmem:[%s0 + $0x48] sm:$0xf]
  %v34 = vld [vmem:[%s0 + $0x4c] sm:$0xf]
  %v35 = vld [vmem:[%s0 + $0x50] sm:$0xf]
  %v36 = vld [vmem:[%s0 + $0x54] sm:$0xf]
  %v37 = vld [vmem:[%s0 + $0x58] sm:$0xf]
  %v38 = vld [vmem:[%s0 + $0x5c] sm:$0xf]
  %v39 = vld [vmem:[%s0 + $0x60] sm:$0xf]
  %v40 = vld [vmem:[%s0 + $0x64] sm:$0xf]
  %v41 = vld [vmem:[%s0 + $0x68] sm:$0xf]
  %v42 = vld [vmem:[%s0 + $0x6c] sm:$0xf]
  %v43 = vld [vmem:[%s0 + $0x70] sm:$0xf]
  %v44 = vld [vmem:[%s0 + $0x74] sm:$0xf]
  %v45 = vld [vmem:[%s0 + $0x78] sm:$0xf]
  %v46 = vld [vmem:[%s0 + $0x7c] sm:$0xf]
  %v47 = vld [vmem:[%s0 + $0x80] sm:$0xf]
  %v48 = vld [vmem:[%s0 + $0x84] sm:$0xf]
  %v49 = vld [vmem:[%s0 + $0x88] sm:$0xf]
  %v50 = vld [vmem:[%s0 + $0x8c] sm:$0xf]
  %v51 = vld [vmem:[%s0 + $0x90] sm:$0xf]
  %v52 = vld [vmem:[%s0 + $0x94] sm:$0xf]
  %v53 = vld [vmem:[%s0 + $0x98] sm:$0xf]
  %v54 = vld [vmem:[%s0 + $0x9c] sm:$0xf]
  %v55 = vld [vmem:[%s0 + $0xa0] sm:$0xf]
  %v56 = vld [vmem:[%s0 + $0xa4] sm:$0xf]
  %v57 = vld [vmem:[%s0 + $0xa8] sm:$0xf]
  %v58 = vld [vmem:[%s0 + $0xac] sm:$0xf]
  %v59 = vld [vmem:[%s0 + $0xb0] sm:$0xf]
  %v60 = vld [vmem:[%s0 + $0xb4] sm:$0xf]
  %v61 = vld [vmem:[%s0 + $0xb8] sm:$0xf]
  %v62 = vld [vmem:[%s0 + $0xbc] sm:$0xf]
  %v63 = vld [vmem:[%s0 + $0xc0] sm:$0xf]
  %v64 = vld [vmem:[%s0 + $0xc4] sm:$0xf]
  %v65 = vld [vmem:[%s0 + $0xc8] sm:$0xf]
  %v66 = vld [vmem:[%s0 + $0xcc] sm:$0xf]
  %v67 = vld [vmem:[%s0 + $0xd0] sm:$0xf]
  %v68 = vld [vmem:[%s0 + $0xd4] sm:$0xf]
  %v69 = vld [vmem:[%s0 + $0xd8] sm:$0xf]
  %v70 = vld [vmem:[%s0 + $0xdc] sm:$0xf]
  %v71 = vld [vmem:[%s0 + $0xe0] sm:$0xf]
  %v72 = vld [vmem:[%s0 + $0xe4] sm:$0xf]
  %v73 = vld [vmem:[%s0 + $0xe8] sm:$0xf]
  %v74 = vld [vmem:[%s0 + $0xec] sm:$0xf]
  %v75 = vld [vmem:[%s0 + $0xf0] sm:$0xf]
  %v76 = vld [vmem:[%s0 + $0xf4] sm:$0xf]
  %v77 = vld [vmem:[%s0 + $0xf8] sm:$0xf]
  %v78 = vld [vmem:[%s0 + $0xfc] sm:$0xf]
  %v79 = vld [vmem:[%s1] sm:$0xf]
  %v80 = vld [vmem:[%s1 + $0x4] sm:$0xf]
  %v81 = vld [vmem:[%s1 + $0x8] sm:$0xf]
  %v82 = vld [vmem:[%s1 + $0xc] sm:$0xf]
  %v83 = vld [vmem:[%s1 + $0x10] sm:$0xf]
  %v84 = vld [vmem:[%s1 + $0x14] sm:$0xf]
  %v85 = vld [vmem:[%s1 + $0x18] sm:$0xf]
  %v86 = vld [vmem:[%s1 + $0x1c] sm:$0xf]
  %v87 = vld [vmem:[%s2] sm:$0x1]
  %v89 = vlaneseq
  %v90 = vshrl.u32 %v89, 7
  %v91 = vsub.s32 0, %v90
  %v92 = vrot.slane %v87, %v91
  %v158 = vunpack.c.l.b16 %v15
  %v159 = vunpack.c.l.b16 %v16
  %v160 = vunpack.c.l.b16 %v17
  %v161 = vunpack.c.l.b16 %v18
  %v162 = vunpack.c.l.b16 %v19
  %v163 = vunpack.c.l.b16 %v20
  %v164 = vunpack.c.l.b16 %v21
  %v165 = vunpack.c.l.b16 %v22
  %v166 = vunpack.c.l.b16 %v23
  %v167 = vunpack.c.l.b16 %v24
  %v168 = vunpack.c.l.b16 %v25
  %v169 = vunpack.c.l.b16 %v26
  %v170 = vunpack.c.l.b16 %v27
  %v171 = vunpack.c.l.b16 %v28
  %v172 = vunpack.c.l.b16 %v29
  %v173 = vunpack.c.l.b16 %v30
  %v174 = vunpack.c.l.b16 %v31
  %v175 = vunpack.c.l.b16 %v32
  %v176 = vunpack.c.l.b16 %v33
  %v177 = vunpack.c.l.b16 %v34
  %v178 = vunpack.c.l.b16 %v35
  %v179 = vunpack.c.l.b16 %v36
  %v180 = vunpack.c.l.b16 %v37
  %v181 = vunpack.c.l.b16 %v38
  %v182 = vunpack.c.l.b16 %v39
  %v183 = vunpack.c.l.b16 %v40
  %v184 = vunpack.c.l.b16 %v41
  %v185 = vunpack.c.l.b16 %v42
  %v186 = vunpack.c.l.b16 %v43
  %v187 = vunpack.c.l.b16 %v44
  %v188 = vunpack.c.l.b16 %v45
  %v189 = vunpack.c.l.b16 %v46
  %v190 = vunpack.c.l.b16 %v47
  %v191 = vunpack.c.l.b16 %v48
  %v192 = vunpack.c.l.b16 %v49
  %v193 = vunpack.c.l.b16 %v50
  %v194 = vunpack.c.l.b16 %v51
  %v195 = vunpack.c.l.b16 %v52
  %v196 = vunpack.c.l.b16 %v53
  %v197 = vunpack.c.l.b16 %v54
  %v198 = vunpack.c.l.b16 %v55
  %v199 = vunpack.c.l.b16 %v56
  %v200 = vunpack.c.l.b16 %v57
  %v201 = vunpack.c.l.b16 %v58
  %v202 = vunpack.c.l.b16 %v59
  %v203 = vunpack.c.l.b16 %v60
  %v204 = vunpack.c.l.b16 %v61
  %v205 = vunpack.c.l.b16 %v62
  %v206 = vunpack.c.l.b16 %v63
  %v207 = vunpack.c.l.b16 %v64
  %v208 = vunpack.c.l.b16 %v65
  %v209 = vunpack.c.l.b16 %v66
  %v210 = vunpack.c.l.b16 %v67
  %v211 = vunpack.c.l.b16 %v68
  %v212 = vunpack.c.l.b16 %v69
  %v213 = vunpack.c.l.b16 %v70
  %v214 = vunpack.c.l.b16 %v71
  %v215 = vunpack.c.l.b16 %v72
  %v216 = vunpack.c.l.b16 %v73
  %v217 = vunpack.c.l.b16 %v74
  %v218 = vunpack.c.l.b16 %v75
  %v219 = vunpack.c.l.b16 %v76
  %v220 = vunpack.c.l.b16 %v77
  %v221 = vunpack.c.l.b16 %v78
  %v222 = vpack.c.b16 %v159, %v158
  %v223 = vpack.c.b16 %v161, %v160
  %v224 = vpack.c.b16 %v163, %v162
  %v225 = vpack.c.b16 %v165, %v164
  %v226 = vpack.c.b16 %v167, %v166
  %v227 = vpack.c.b16 %v169, %v168
  %v228 = vpack.c.b16 %v171, %v170
  %v229 = vpack.c.b16 %v173, %v172
  %v230 = vpack.c.b16 %v175, %v174
  %v231 = vpack.c.b16 %v177, %v176
  %v232 = vpack.c.b16 %v179, %v178
  %v233 = vpack.c.b16 %v181, %v180
  %v234 = vpack.c.b16 %v183, %v182
  %v235 = vpack.c.b16 %v185, %v184
  %v236 = vpack.c.b16 %v187, %v186
  %v237 = vpack.c.b16 %v189, %v188
  %v238 = vpack.c.b16 %v191, %v190
  %v239 = vpack.c.b16 %v193, %v192
  %v240 = vpack.c.b16 %v195, %v194
  %v241 = vpack.c.b16 %v197, %v196
  %v242 = vpack.c.b16 %v199, %v198
  %v243 = vpack.c.b16 %v201, %v200
  %v244 = vpack.c.b16 %v203, %v202
  %v245 = vpack.c.b16 %v205, %v204
  %v246 = vpack.c.b16 %v207, %v206
  %v247 = vpack.c.b16 %v209, %v208
  %v248 = vpack.c.b16 %v211, %v210
  %v249 = vpack.c.b16 %v213, %v212
  %v250 = vpack.c.b16 %v215, %v214
  %v251 = vpack.c.b16 %v217, %v216
  %v252 = vpack.c.b16 %v219, %v218
  %v253 = vpack.c.b16 %v221, %v220
  %v262 = vunpack.c.l.b16 %v79
  %v263 = vunpack.c.l.b16 %v80
  %v264 = vunpack.c.l.b16 %v81
  %v265 = vunpack.c.l.b16 %v82
  %v266 = vunpack.c.l.b16 %v83
  %v267 = vunpack.c.l.b16 %v84
  %v268 = vunpack.c.l.b16 %v85
  %v269 = vunpack.c.l.b16 %v86
  %v270 = vpack.c.b16 %v263, %v262
  %v271 = vpack.c.b16 %v265, %v264
  %v272 = vpack.c.b16 %v267, %v266
  %v273 = vpack.c.b16 %v269, %v268
  %vm278 = vcmask 523264
  %v280 = vsel %vm278, %v222, 0
  %v283 = vsel %vm278, %v223, 0
  %v286 = vsel %vm278, %v224, 0
  %v289 = vsel %vm278, %v225, 0
  %v292 = vsel %vm278, %v226, 0
  %v295 = vsel %vm278, %v227, 0
  %v298 = vsel %vm278, %v228, 0
  %v301 = vsel %vm278, %v229, 0
  %v304 = vsel %vm278, %v230, 0
  %v307 = vsel %vm278, %v231, 0
  %v310 = vsel %vm278, %v232, 0
  %v313 = vsel %vm278, %v233, 0
  %v316 = vsel %vm278, %v234, 0
  %v319 = vsel %vm278, %v235, 0
  %v322 = vsel %vm278, %v236, 0
  %v325 = vsel %vm278, %v237, 0
  %v328 = vsel %vm278, %v238, 0
  %v331 = vsel %vm278, %v239, 0
  %v334 = vsel %vm278, %v240, 0
  %v337 = vsel %vm278, %v241, 0
  %v340 = vsel %vm278, %v242, 0
  %v343 = vsel %vm278, %v243, 0
  %v346 = vsel %vm278, %v244, 0
  %v349 = vsel %vm278, %v245, 0
  %v352 = vsel %vm278, %v246, 0
  %v355 = vsel %vm278, %v247, 0
  %v358 = vsel %vm278, %v248, 0
  %v361 = vsel %vm278, %v249, 0
  %v364 = vsel %vm278, %v250, 0
  %v367 = vsel %vm278, %v251, 0
  %v370 = vsel %vm278, %v252, 0
  %v373 = vsel %vm278, %v253, 0
  %375 = vmatprep.subr.bf16.mxu0 0
  %376 = vmatpush1.bf16.msra.mxu0 %v270
  %377 = vmatprep.subr.bf16.mxu0 0
  %378 = vmatpush1.bf16.msra.mxu0 %v271
  %379 = vmatprep.subr.bf16.mxu0 0
  %380 = vmatpush1.bf16.msra.mxu0 %v272
  %381 = vmatprep.subr.bf16.mxu0 0
  %382 = vmatpush1.bf16.msra.mxu0 %v273
  %383 = vmatprep.subr.bf16.mxu0 0
  %384 = vmatpush1.bf16.msra.mxu0 0
  %385 = vmatprep.subr.bf16.mxu0 0
  %386 = vmatpush1.bf16.msra.mxu0 0
  %387 = vmatprep.subr.bf16.mxu0 0
  %388 = vmatpush1.bf16.msra.mxu0 0
  %389 = vmatprep.subr.bf16.mxu0 0
  %390 = vmatpush1.bf16.msra.mxu0 0
  %391 = vmatprep.subr.bf16.mxu0 0
  %392 = vmatpush1.bf16.msra.mxu0 0
  %393 = vmatprep.subr.bf16.mxu0 0
  %394 = vmatpush1.bf16.msra.mxu0 0
  %395 = vmatprep.subr.bf16.mxu0 0
  %396 = vmatpush1.bf16.msra.mxu0 0
  %397 = vmatprep.subr.bf16.mxu0 0
  %398 = vmatpush1.bf16.msra.mxu0 0
  %399 = vmatprep.subr.bf16.mxu0 0
  %400 = vmatpush1.bf16.msra.mxu0 0
  %401 = vmatprep.subr.bf16.mxu0 0
  %402 = vmatpush1.bf16.msra.mxu0 0
  %403 = vmatprep.subr.bf16.mxu0 0
  %404 = vmatpush1.bf16.msra.mxu0 0
  %405 = vmatprep.subr.bf16.mxu0 0
  %406 = vmatpush1.bf16.msra.mxu0 0
  %407 = vmatprep.mubr.bf16.mxu0 0
  %408 = vmatmul.mubr.bf16.gmra.mrb[0].mxu0 %v280
  %v409 = vpop.f32.mrb[0].mxu0
  %v410 = vadd.f32 %v92, %v409
  %v411 = vpop.f32.mrb[0].mxu0
  %v412 = vpop.f32.mrb[0].mxu0
  %v413 = vadd.f32 %v92, %v412
  %v414 = vpop.f32.mrb[0].mxu0
  %415 = vmatprep.mubr.bf16.mxu0 0
  %416 = vmatmul.mubr.bf16.gmra.mrb[0].mxu0 %v283
  %v417 = vpop.f32.mrb[0].mxu0
  %v418 = vadd.f32 %v92, %v417
  %v419 = vpop.f32.mrb[0].mxu0
  %v420 = vpop.f32.mrb[0].mxu0
  %v421 = vadd.f32 %v92, %v420
  %v422 = vpop.f32.mrb[0].mxu0
  %423 = vmatprep.mubr.bf16.mxu0 0
  %424 = vmatmul.mubr.bf16.gmra.mrb[0].mxu0 %v286
  %v425 = vpop.f32.mrb[0].mxu0
  %v426 = vadd.f32 %v92, %v425
  %v427 = vpop.f32.mrb[0].mxu0
  %v428 = vpop.f32.mrb[0].mxu0
  %v429 = vadd.f32 %v92, %v428
  %v430 = vpop.f32.mrb[0].mxu0
  %431 = vmatprep.mubr.bf16.mxu0 0
  %432 = vmatmul.mubr.bf16.gmra.mrb[0].mxu0 %v289
  %v433 = vpop.f32.mrb[0].mxu0
  %v434 = vadd.f32 %v92, %v433
  %v435 = vpop.f32.mrb[0].mxu0
  %v436 = vpop.f32.mrb[0].mxu0
  %v437 = vadd.f32 %v92, %v436
  %v438 = vpop.f32.mrb[0].mxu0
  %439 = vmatprep.mubr.bf16.mxu0 0
  %440 = vmatmul.mubr.bf16.gmra.mrb[0].mxu0 %v292
  %v441 = vpop.f32.mrb[0].mxu0
  %v442 = vadd.f32 %v92, %v441
  %v443 = vpop.f32.mrb[0].mxu0
  %v444 = vpop.f32.mrb[0].mxu0
  %v445 = vadd.f32 %v92, %v444
  %v446 = vpop.f32.mrb[0].mxu0
  %447 = vmatprep.mubr.bf16.mxu0 0
  %448 = vmatmul.mubr.bf16.gmra.mrb[0].mxu0 %v295
  %v449 = vpop.f32.mrb[0].mxu0
  %v450 = vadd.f32 %v92, %v449
  %v451 = vpop.f32.mrb[0].mxu0
  %v452 = vpop.f32.mrb[0].mxu0
  %v453 = vadd.f32 %v92, %v452
  %v454 = vpop.f32.mrb[0].mxu0
  %455 = vmatprep.mubr.bf16.mxu0 0
  %456 = vmatmul.mubr.bf16.gmra.mrb[0].mxu0 %v298
  %v457 = vpop.f32.mrb[0].mxu0
  %v458 = vadd.f32 %v92, %v457
  %v459 = vpop.f32.mrb[0].mxu0
  %v460 = vpop.f32.mrb[0].mxu0
  %v461 = vadd.f32 %v92, %v460
  %v462 = vpop.f32.mrb[0].mxu0
  %463 = vmatprep.mubr.bf16.mxu0 0
  %464 = vmatmul.mubr.bf16.gmra.mrb[0].mxu0 %v301
  %v465 = vpop.f32.mrb[0].mxu0
  %v466 = vadd.f32 %v92, %v465
  %v467 = vpop.f32.mrb[0].mxu0
  %v468 = vpop.f32.mrb[0].mxu0
  %v469 = vadd.f32 %v92, %v468
  %v470 = vpop.f32.mrb[0].mxu0
  %471 = vmatprep.mubr.bf16.mxu0 0
  %472 = vmatmul.mubr.bf16.gmra.mrb[0].mxu0 %v304
  %v473 = vpop.f32.mrb[0].mxu0
  %v474 = vadd.f32 %v92, %v473
  %v475 = vpop.f32.mrb[0].mxu0
  %v476 = vpop.f32.mrb[0].mxu0
  %v477 = vadd.f32 %v92, %v476
  %v478 = vpop.f32.mrb[0].mxu0
  %479 = vmatprep.mubr.bf16.mxu0 0
  %480 = vmatmul.mubr.bf16.gmra.mrb[0].mxu0 %v307
  %v481 = vpop.f32.mrb[0].mxu0
  %v482 = vadd.f32 %v92, %v481
  %v483 = vpop.f32.mrb[0].mxu0
  %v484 = vpop.f32.mrb[0].mxu0
  %v485 = vadd.f32 %v92, %v484
  %v486 = vpop.f32.mrb[0].mxu0
  %487 = vmatprep.mubr.bf16.mxu0 0
  %488 = vmatmul.mubr.bf16.gmra.mrb[0].mxu0 %v310
  %v489 = vpop.f32.mrb[0].mxu0
  %v490 = vadd.f32 %v92, %v489
  %v491 = vpop.f32.mrb[0].mxu0
  %v492 = vpop.f32.mrb[0].mxu0
  %v493 = vadd.f32 %v92, %v492
  %v494 = vpop.f32.mrb[0].mxu0
  %495 = vmatprep.mubr.bf16.mxu0 0
  %496 = vmatmul.mubr.bf16.gmra.mrb[0].mxu0 %v313
  %v497 = vpop.f32.mrb[0].mxu0
  %v498 = vadd.f32 %v92, %v497
  %v499 = vpop.f32.mrb[0].mxu0
  %v500 = vpop.f32.mrb[0].mxu0
  %v501 = vadd.f32 %v92, %v500
  %v502 = vpop.f32.mrb[0].mxu0
  %503 = vmatprep.mubr.bf16.mxu0 0
  %504 = vmatmul.mubr.bf16.gmra.mrb[0].mxu0 %v316
  %v505 = vpop.f32.mrb[0].mxu0
  %v506 = vadd.f32 %v92, %v505
  %v507 = vpop.f32.mrb[0].mxu0
  %v508 = vpop.f32.mrb[0].mxu0
  %v509 = vadd.f32 %v92, %v508
  %v510 = vpop.f32.mrb[0].mxu0
  %511 = vmatprep.mubr.bf16.mxu0 0
  %512 = vmatmul.mubr.bf16.gmra.mrb[0].mxu0 %v319
  %v513 = vpop.f32.mrb[0].mxu0
  %v514 = vadd.f32 %v92, %v513
  %v515 = vpop.f32.mrb[0].mxu0
  %v516 = vpop.f32.mrb[0].mxu0
  %v517 = vadd.f32 %v92, %v516
  %v518 = vpop.f32.mrb[0].mxu0
  %519 = vmatprep.mubr.bf16.mxu0 0
  %520 = vmatmul.mubr.bf16.gmra.mrb[0].mxu0 %v322
  %v521 = vpop.f32.mrb[0].mxu0
  %v522 = vadd.f32 %v92, %v521
  %v523 = vpop.f32.mrb[0].mxu0
  %v524 = vpop.f32.mrb[0].mxu0
  %v525 = vadd.f32 %v92, %v524
  %v526 = vpop.f32.mrb[0].mxu0
  %527 = vmatprep.mubr.bf16.mxu0 0
  %528 = vmatmul.mubr.bf16.gmra.mrb[0].mxu0 %v325
  %v529 = vpop.f32.mrb[0].mxu0
  %v530 = vadd.f32 %v92, %v529
  %v531 = vpop.f32.mrb[0].mxu0
  %v532 = vpop.f32.mrb[0].mxu0
  %v533 = vadd.f32 %v92, %v532
  %v534 = vpop.f32.mrb[0].mxu0
  %535 = vmatprep.mubr.bf16.mxu0 0
  %536 = vmatmul.mubr.bf16.gmra.mrb[0].mxu0 %v328
  %v537 = vpop.f32.mrb[0].mxu0
  %v538 = vadd.f32 %v92, %v537
  %v539 = vpop.f32.mrb[0].mxu0
  %v540 = vpop.f32.mrb[0].mxu0
  %v541 = vadd.f32 %v92, %v540
  %v542 = vpop.f32.mrb[0].mxu0
  %543 = vmatprep.mubr.bf16.mxu0 0
  %544 = vmatmul.mubr.bf16.gmra.mrb[0].mxu0 %v331
  %v545 = vpop.f32.mrb[0].mxu0
  %v546 = vadd.f32 %v92, %v545
  %v547 = vpop.f32.mrb[0].mxu0
  %v548 = vpop.f32.mrb[0].mxu0
  %v549 = vadd.f32 %v92, %v548
  %v550 = vpop.f32.mrb[0].mxu0
  %551 = vmatprep.mubr.bf16.mxu0 0
  %552 = vmatmul.mubr.bf16.gmra.mrb[0].mxu0 %v334
  %v553 = vpop.f32.mrb[0].mxu0
  %v554 = vadd.f32 %v92, %v553
  %v555 = vpop.f32.mrb[0].mxu0
  %v556 = vpop.f32.mrb[0].mxu0
  %v557 = vadd.f32 %v92, %v556
  %v558 = vpop.f32.mrb[0].mxu0
  %559 = vmatprep.mubr.bf16.mxu0 0
  %560 = vmatmul.mubr.bf16.gmra.mrb[0].mxu0 %v337
  %v561 = vpop.f32.mrb[0].mxu0
  %v562 = vadd.f32 %v92, %v561
  %v563 = vpop.f32.mrb[0].mxu0
  %v564 = vpop.f32.mrb[0].mxu0
  %v565 = vadd.f32 %v92, %v564
  %v566 = vpop.f32.mrb[0].mxu0
  %567 = vmatprep.mubr.bf16.mxu0 0
  %568 = vmatmul.mubr.bf16.gmra.mrb[0].mxu0 %v340
  %v569 = vpop.f32.mrb[0].mxu0
  %v570 = vadd.f32 %v92, %v569
  %v571 = vpop.f32.mrb[0].mxu0
  %v572 = vpop.f32.mrb[0].mxu0
  %v573 = vadd.f32 %v92, %v572
  %v574 = vpop.f32.mrb[0].mxu0
  %575 = vmatprep.mubr.bf16.mxu0 0
  %576 = vmatmul.mubr.bf16.gmra.mrb[0].mxu0 %v343
  %v577 = vpop.f32.mrb[0].mxu0
  %v578 = vadd.f32 %v92, %v577
  %v579 = vpop.f32.mrb[0].mxu0
  %v580 = vpop.f32.mrb[0].mxu0
  %v581 = vadd.f32 %v92, %v580
  %v582 = vpop.f32.mrb[0].mxu0
  %583 = vmatprep.mubr.bf16.mxu0 0
  %584 = vmatmul.mubr.bf16.gmra.mrb[0].mxu0 %v346
  %v585 = vpop.f32.mrb[0].mxu0
  %v586 = vadd.f32 %v92, %v585
  %v587 = vpop.f32.mrb[0].mxu0
  %v588 = vpop.f32.mrb[0].mxu0
  %v589 = vadd.f32 %v92, %v588
  %v590 = vpop.f32.mrb[0].mxu0
  %591 = vmatprep.mubr.bf16.mxu0 0
  %592 = vmatmul.mubr.bf16.gmra.mrb[0].mxu0 %v349
  %v593 = vpop.f32.mrb[0].mxu0
  %v594 = vadd.f32 %v92, %v593
  %v595 = vpop.f32.mrb[0].mxu0
  %v596 = vpop.f32.mrb[0].mxu0
  %v597 = vadd.f32 %v92, %v596
  %v598 = vpop.f32.mrb[0].mxu0
  %599 = vmatprep.mubr.bf16.mxu0 0
  %600 = vmatmul.mubr.bf16.gmra.mrb[0].mxu0 %v352
  %v601 = vpop.f32.mrb[0].mxu0
  %v602 = vadd.f32 %v92, %v601
  %v603 = vpop.f32.mrb[0].mxu0
  %v604 = vpop.f32.mrb[0].mxu0
  %v605 = vadd.f32 %v92, %v604
  %v606 = vpop.f32.mrb[0].mxu0
  %607 = vmatprep.mubr.bf16.mxu0 0
  %608 = vmatmul.mubr.bf16.gmra.mrb[0].mxu0 %v355
  %v609 = vpop.f32.mrb[0].mxu0
  %v610 = vadd.f32 %v92, %v609
  %v611 = vpop.f32.mrb[0].mxu0
  %v612 = vpop.f32.mrb[0].mxu0
  %v613 = vadd.f32 %v92, %v612
  %v614 = vpop.f32.mrb[0].mxu0
  %615 = vmatprep.mubr.bf16.mxu0 0
  %616 = vmatmul.mubr.bf16.gmra.mrb[0].mxu0 %v358
  %v617 = vpop.f32.mrb[0].mxu0
  %v618 = vadd.f32 %v92, %v617
  %v619 = vpop.f32.mrb[0].mxu0
  %v620 = vpop.f32.mrb[0].mxu0
  %v621 = vadd.f32 %v92, %v620
  %v622 = vpop.f32.mrb[0].mxu0
  %623 = vmatprep.mubr.bf16.mxu0 0
  %624 = vmatmul.mubr.bf16.gmra.mrb[0].mxu0 %v361
  %v625 = vpop.f32.mrb[0].mxu0
  %v626 = vadd.f32 %v92, %v625
  %v627 = vpop.f32.mrb[0].mxu0
  %v628 = vpop.f32.mrb[0].mxu0
  %v629 = vadd.f32 %v92, %v628
  %v630 = vpop.f32.mrb[0].mxu0
  %631 = vmatprep.mubr.bf16.mxu0 0
  %632 = vmatmul.mubr.bf16.gmra.mrb[0].mxu0 %v364
  %v633 = vpop.f32.mrb[0].mxu0
  %v634 = vadd.f32 %v92, %v633
  %v635 = vpop.f32.mrb[0].mxu0
  %v636 = vpop.f32.mrb[0].mxu0
  %v637 = vadd.f32 %v92, %v636
  %v638 = vpop.f32.mrb[0].mxu0
  %639 = vmatprep.mubr.bf16.mxu0 0
  %640 = vmatmul.mubr.bf16.gmra.mrb[0].mxu0 %v367
  %v641 = vpop.f32.mrb[0].mxu0
  %v642 = vadd.f32 %v92, %v641
  %v643 = vpop.f32.mrb[0].mxu0
  %v644 = vpop.f32.mrb[0].mxu0
  %v645 = vadd.f32 %v92, %v644
  %v646 = vpop.f32.mrb[0].mxu0
  %647 = vmatprep.mubr.bf16.mxu0 0
  %648 = vmatmul.mubr.bf16.gmra.mrb[0].mxu0 %v370
  %v649 = vpop.f32.mrb[0].mxu0
  %v650 = vadd.f32 %v92, %v649
  %v651 = vpop.f32.mrb[0].mxu0
  %v652 = vpop.f32.mrb[0].mxu0
  %v653 = vadd.f32 %v92, %v652
  %v654 = vpop.f32.mrb[0].mxu0
  %655 = vmatprep.mubr.bf16.mxu0 0
  %656 = vmatmul.mubr.bf16.gmra.mrb[0].mxu0 %v373
  %v657 = vpop.f32.mrb[0].mxu0
  %v658 = vadd.f32 %v92, %v657
  %v659 = vpop.f32.mrb[0].mxu0
  %v660 = vpop.f32.mrb[0].mxu0
  %v661 = vadd.f32 %v92, %v660
  %v662 = vpop.f32.mrb[0].mxu0
  %663 = vdwg.mxu0
  %v664 = vmax.f32 %v410, 0.0
  %v665 = vmax.f32 %v413, 0.0
  %v666 = vmax.f32 %v418, 0.0
  %v667 = vmax.f32 %v421, 0.0
  %v668 = vmax.f32 %v426, 0.0
  %v669 = vmax.f32 %v429, 0.0
  %v670 = vmax.f32 %v434, 0.0
  %v671 = vmax.f32 %v437, 0.0
  %v672 = vmax.f32 %v442, 0.0
  %v673 = vmax.f32 %v445, 0.0
  %v674 = vmax.f32 %v450, 0.0
  %v675 = vmax.f32 %v453, 0.0
  %v676 = vmax.f32 %v458, 0.0
  %v677 = vmax.f32 %v461, 0.0
  %v678 = vmax.f32 %v466, 0.0
  %v679 = vmax.f32 %v469, 0.0
  %v680 = vmax.f32 %v474, 0.0
  %v681 = vmax.f32 %v477, 0.0
  %v682 = vmax.f32 %v482, 0.0
  %v683 = vmax.f32 %v485, 0.0
  %v684 = vmax.f32 %v490, 0.0
  %v685 = vmax.f32 %v493, 0.0
  %v686 = vmax.f32 %v498, 0.0
  %v687 = vmax.f32 %v501, 0.0
  %v688 = vmax.f32 %v506, 0.0
  %v689 = vmax.f32 %v509, 0.0
  %v690 = vmax.f32 %v514, 0.0
  %v691 = vmax.f32 %v517, 0.0
  %v692 = vmax.f32 %v522, 0.0
  %v693 = vmax.f32 %v525, 0.0
  %v694 = vmax.f32 %v530, 0.0
  %v695 = vmax.f32 %v533, 0.0
  %v696 = vmax.f32 %v538, 0.0
  %v697 = vmax.f32 %v541, 0.0
  %v698 = vmax.f32 %v546, 0.0
  %v699 = vmax.f32 %v549, 0.0
  %v700 = vmax.f32 %v554, 0.0
  %v701 = vmax.f32 %v557, 0.0
  %v702 = vmax.f32 %v562, 0.0
  %v703 = vmax.f32 %v565, 0.0
  %v704 = vmax.f32 %v570, 0.0
  %v705 = vmax.f32 %v573, 0.0
  %v706 = vmax.f32 %v578, 0.0
  %v707 = vmax.f32 %v581, 0.0
  %v708 = vmax.f32 %v586, 0.0
  %v709 = vmax.f32 %v589, 0.0
  %v710 = vmax.f32 %v594, 0.0
  %v711 = vmax.f32 %v597, 0.0
  %v712 = vmax.f32 %v602, 0.0
  %v713 = vmax.f32 %v605, 0.0
  %v714 = vmax.f32 %v610, 0.0
  %v715 = vmax.f32 %v613, 0.0
  %v716 = vmax.f32 %v618, 0.0
  %v717 = vmax.f32 %v621, 0.0
  %v718 = vmax.f32 %v626, 0.0
  %v719 = vmax.f32 %v629, 0.0
  %v720 = vmax.f32 %v634, 0.0
  %v721 = vmax.f32 %v637, 0.0
  %v722 = vmax.f32 %v642, 0.0
  %v723 = vmax.f32 %v645, 0.0
  %v724 = vmax.f32 %v650, 0.0
  %v725 = vmax.f32 %v653, 0.0
  %v726 = vmax.f32 %v658, 0.0
  %v727 = vmax.f32 %v661, 0.0
  %v728 = vpack.c.bf16 %v665, %v664
  %v729 = vpack.c.bf16 %v667, %v666
  %v730 = vpack.c.bf16 %v669, %v668
  %v731 = vpack.c.bf16 %v671, %v670
  %v732 = vpack.c.bf16 %v673, %v672
  %v733 = vpack.c.bf16 %v675, %v674
  %v734 = vpack.c.bf16 %v677, %v676
  %v735 = vpack.c.bf16 %v679, %v678
  %v736 = vpack.c.bf16 %v681, %v680
  %v737 = vpack.c.bf16 %v683, %v682
  %v738 = vpack.c.bf16 %v685, %v684
  %v739 = vpack.c.bf16 %v687, %v686
  %v740 = vpack.c.bf16 %v689, %v688
  %v741 = vpack.c.bf16 %v691, %v690
  %v742 = vpack.c.bf16 %v693, %v692
  %v743 = vpack.c.bf16 %v695, %v694
  %v744 = vpack.c.bf16 %v697, %v696
  %v745 = vpack.c.bf16 %v699, %v698
  %v746 = vpack.c.bf16 %v701, %v700
  %v747 = vpack.c.bf16 %v703, %v702
  %v748 = vpack.c.bf16 %v705, %v704
  %v749 = vpack.c.bf16 %v707, %v706
  %v750 = vpack.c.bf16 %v709, %v708
  %v751 = vpack.c.bf16 %v711, %v710
  %v752 = vpack.c.bf16 %v713, %v712
  %v753 = vpack.c.bf16 %v715, %v714
  %v754 = vpack.c.bf16 %v717, %v716
  %v755 = vpack.c.bf16 %v719, %v718
  %v756 = vpack.c.bf16 %v721, %v720
  %v757 = vpack.c.bf16 %v723, %v722
  %v758 = vpack.c.bf16 %v725, %v724
  %v759 = vpack.c.bf16 %v727, %v726
  %v792 = vunpack.c.l.b16 %v728
  %v793 = vunpack.c.h.b16 %v728
  %v794 = vunpack.c.l.b16 %v729
  %v795 = vunpack.c.h.b16 %v729
  %v796 = vunpack.c.l.b16 %v730
  %v797 = vunpack.c.h.b16 %v730
  %v798 = vunpack.c.l.b16 %v731
  %v799 = vunpack.c.h.b16 %v731
  %v800 = vunpack.c.l.b16 %v732
  %v801 = vunpack.c.h.b16 %v732
  %v802 = vunpack.c.l.b16 %v733
  %v803 = vunpack.c.h.b16 %v733
  %v804 = vunpack.c.l.b16 %v734
  %v805 = vunpack.c.h.b16 %v734
  %v806 = vunpack.c.l.b16 %v735
  %v807 = vunpack.c.h.b16 %v735
  %v808 = vunpack.c.l.b16 %v736
  %v809 = vunpack.c.h.b16 %v736
  %v810 = vunpack.c.l.b16 %v737
  %v811 = vunpack.c.h.b16 %v737
  %v812 = vunpack.c.l.b16 %v738
  %v813 = vunpack.c.h.b16 %v738
  %v814 = vunpack.c.l.b16 %v739
  %v815 = vunpack.c.h.b16 %v739
  %v816 = vunpack.c.l.b16 %v740
  %v817 = vunpack.c.h.b16 %v740
  %v818 = vunpack.c.l.b16 %v741
  %v819 = vunpack.c.h.b16 %v741
  %v820 = vunpack.c.l.b16 %v742
  %v821 = vunpack.c.h.b16 %v742
  %v822 = vunpack.c.l.b16 %v743
  %v823 = vunpack.c.h.b16 %v743
  %v824 = vunpack.c.l.b16 %v744
  %v825 = vunpack.c.h.b16 %v744
  %v826 = vunpack.c.l.b16 %v745
  %v827 = vunpack.c.h.b16 %v745
  %v828 = vunpack.c.l.b16 %v746
  %v829 = vunpack.c.h.b16 %v746
  %v830 = vunpack.c.l.b16 %v747
  %v831 = vunpack.c.h.b16 %v747
  %v832 = vunpack.c.l.b16 %v748
  %v833 = vunpack.c.h.b16 %v748
  %v834 = vunpack.c.l.b16 %v749
  %v835 = vunpack.c.h.b16 %v749
  %v836 = vunpack.c.l.b16 %v750
  %v837 = vunpack.c.h.b16 %v750
  %v838 = vunpack.c.l.b16 %v751
  %v839 = vunpack.c.h.b16 %v751
  %v840 = vunpack.c.l.b16 %v752
  %v841 = vunpack.c.h.b16 %v752
  %v842 = vunpack.c.l.b16 %v753
  %v843 = vunpack.c.h.b16 %v753
  %v844 = vunpack.c.l.b16 %v754
  %v845 = vunpack.c.h.b16 %v754
  %v846 = vunpack.c.l.b16 %v755
  %v847 = vunpack.c.h.b16 %v755
  %v848 = vunpack.c.l.b16 %v756
  %v849 = vunpack.c.h.b16 %v756
  %v850 = vunpack.c.l.b16 %v757
  %v851 = vunpack.c.h.b16 %v757
  %v852 = vunpack.c.l.b16 %v758
  %v853 = vunpack.c.h.b16 %v758
  %v854 = vunpack.c.l.b16 %v759
  %v855 = vunpack.c.h.b16 %v759
  %v856 = vpack.c.b16 %v792, %v792
  %v857 = vpack.c.b16 %v793, %v793
  %v858 = vpack.c.b16 %v794, %v794
  %v859 = vpack.c.b16 %v795, %v795
  %v860 = vpack.c.b16 %v796, %v796
  %v861 = vpack.c.b16 %v797, %v797
  %v862 = vpack.c.b16 %v798, %v798
  %v863 = vpack.c.b16 %v799, %v799
  %v864 = vpack.c.b16 %v800, %v800
  %v865 = vpack.c.b16 %v801, %v801
  %v866 = vpack.c.b16 %v802, %v802
  %v867 = vpack.c.b16 %v803, %v803
  %v868 = vpack.c.b16 %v804, %v804
  %v869 = vpack.c.b16 %v805, %v805
  %v870 = vpack.c.b16 %v806, %v806
  %v871 = vpack.c.b16 %v807, %v807
  %v872 = vpack.c.b16 %v808, %v808
  %v873 = vpack.c.b16 %v809, %v809
  %v874 = vpack.c.b16 %v810, %v810
  %v875 = vpack.c.b16 %v811, %v811
  %v876 = vpack.c.b16 %v812, %v812
  %v877 = vpack.c.b16 %v813, %v813
  %v878 = vpack.c.b16 %v814, %v814
  %v879 = vpack.c.b16 %v815, %v815
  %v880 = vpack.c.b16 %v816, %v816
  %v881 = vpack.c.b16 %v817, %v817
  %v882 = vpack.c.b16 %v818, %v818
  %v883 = vpack.c.b16 %v819, %v819
  %v884 = vpack.c.b16 %v820, %v820
  %v885 = vpack.c.b16 %v821, %v821
  %v886 = vpack.c.b16 %v822, %v822
  %v887 = vpack.c.b16 %v823, %v823
  %v888 = vpack.c.b16 %v824, %v824
  %v889 = vpack.c.b16 %v825, %v825
  %v890 = vpack.c.b16 %v826, %v826
  %v891 = vpack.c.b16 %v827, %v827
  %v892 = vpack.c.b16 %v828, %v828
  %v893 = vpack.c.b16 %v829, %v829
  %v894 = vpack.c.b16 %v830, %v830
  %v895 = vpack.c.b16 %v831, %v831
  %v896 = vpack.c.b16 %v832, %v832
  %v897 = vpack.c.b16 %v833, %v833
  %v898 = vpack.c.b16 %v834, %v834
  %v899 = vpack.c.b16 %v835, %v835
  %v900 = vpack.c.b16 %v836, %v836
  %v901 = vpack.c.b16 %v837, %v837
  %v902 = vpack.c.b16 %v838, %v838
  %v903 = vpack.c.b16 %v839, %v839
  %v904 = vpack.c.b16 %v840, %v840
  %v905 = vpack.c.b16 %v841, %v841
  %v906 = vpack.c.b16 %v842, %v842
  %v907 = vpack.c.b16 %v843, %v843
  %v908 = vpack.c.b16 %v844, %v844
  %v909 = vpack.c.b16 %v845, %v845
  %v910 = vpack.c.b16 %v846, %v846
  %v911 = vpack.c.b16 %v847, %v847
  %v912 = vpack.c.b16 %v848, %v848
  %v913 = vpack.c.b16 %v849, %v849
  %v914 = vpack.c.b16 %v850, %v850
  %v915 = vpack.c.b16 %v851, %v851
  %v916 = vpack.c.b16 %v852, %v852
  %v917 = vpack.c.b16 %v853, %v853
  %v918 = vpack.c.b16 %v854, %v854
  %v919 = vpack.c.b16 %v855, %v855
  %984 = vst [vmem:[%s3] sm:$0xf] %v856
  %985 = vst [vmem:[%s3 + $0x4] sm:$0xf] %v857
  %986 = vst [vmem:[%s3 + $0x8] sm:$0xf] %v858
  %987 = vst [vmem:[%s3 + $0xc] sm:$0xf] %v859
  %988 = vst [vmem:[%s3 + $0x10] sm:$0xf] %v860
  %989 = vst [vmem:[%s3 + $0x14] sm:$0xf] %v861
  %990 = vst [vmem:[%s3 + $0x18] sm:$0xf] %v862
  %991 = vst [vmem:[%s3 + $0x1c] sm:$0xf] %v863
  %992 = vst [vmem:[%s3 + $0x20] sm:$0xf] %v864
  %993 = vst [vmem:[%s3 + $0x24] sm:$0xf] %v865
  %994 = vst [vmem:[%s3 + $0x28] sm:$0xf] %v866
  %995 = vst [vmem:[%s3 + $0x2c] sm:$0xf] %v867
  %996 = vst [vmem:[%s3 + $0x30] sm:$0xf] %v868
  %997 = vst [vmem:[%s3 + $0x34] sm:$0xf] %v869
  %998 = vst [vmem:[%s3 + $0x38] sm:$0xf] %v870
  %999 = vst [vmem:[%s3 + $0x3c] sm:$0xf] %v871
  %1000 = vst [vmem:[%s3 + $0x40] sm:$0xf] %v872
  %1001 = vst [vmem:[%s3 + $0x44] sm:$0xf] %v873
  %1002 = vst [vmem:[%s3 + $0x48] sm:$0xf] %v874
  %1003 = vst [vmem:[%s3 + $0x4c] sm:$0xf] %v875
  %1004 = vst [vmem:[%s3 + $0x50] sm:$0xf] %v876
  %1005 = vst [vmem:[%s3 + $0x54] sm:$0xf] %v877
  %1006 = vst [vmem:[%s3 + $0x58] sm:$0xf] %v878
  %1007 = vst [vmem:[%s3 + $0x5c] sm:$0xf] %v879
  %1008 = vst [vmem:[%s3 + $0x60] sm:$0xf] %v880
  %1009 = vst [vmem:[%s3 + $0x64] sm:$0xf] %v881
  %1010 = vst [vmem:[%s3 + $0x68] sm:$0xf] %v882
  %1011 = vst [vmem:[%s3 + $0x6c] sm:$0xf] %v883
  %1012 = vst [vmem:[%s3 + $0x70] sm:$0xf] %v884
  %1013 = vst [vmem:[%s3 + $0x74] sm:$0xf] %v885
  %1014 = vst [vmem:[%s3 + $0x78] sm:$0xf] %v886
  %1015 = vst [vmem:[%s3 + $0x7c] sm:$0xf] %v887
  %1016 = vst [vmem:[%s3 + $0x80] sm:$0xf] %v888
  %1017 = vst [vmem:[%s3 + $0x84] sm:$0xf] %v889
  %1018 = vst [vmem:[%s3 + $0x88] sm:$0xf] %v890
  %1019 = vst [vmem:[%s3 + $0x8c] sm:$0xf] %v891
  %1020 = vst [vmem:[%s3 + $0x90] sm:$0xf] %v892
  %1021 = vst [vmem:[%s3 + $0x94] sm:$0xf] %v893
  %1022 = vst [vmem:[%s3 + $0x98] sm:$0xf] %v894
  %1023 = vst [vmem:[%s3 + $0x9c] sm:$0xf] %v895
  %1024 = vst [vmem:[%s3 + $0xa0] sm:$0xf] %v896
  %1025 = vst [vmem:[%s3 + $0xa4] sm:$0xf] %v897
  %1026 = vst [vmem:[%s3 + $0xa8] sm:$0xf] %v898
  %1027 = vst [vmem:[%s3 + $0xac] sm:$0xf] %v899
  %1028 = vst [vmem:[%s3 + $0xb0] sm:$0xf] %v900
  %1029 = vst [vmem:[%s3 + $0xb4] sm:$0xf] %v901
  %1030 = vst [vmem:[%s3 + $0xb8] sm:$0xf] %v902
  %1031 = vst [vmem:[%s3 + $0xbc] sm:$0xf] %v903
  %1032 = vst [vmem:[%s3 + $0xc0] sm:$0xf] %v904
  %1033 = vst [vmem:[%s3 + $0xc4] sm:$0xf] %v905
  %1034 = vst [vmem:[%s3 + $0xc8] sm:$0xf] %v906
  %1035 = vst [vmem:[%s3 + $0xcc] sm:$0xf] %v907
  %1036 = vst [vmem:[%s3 + $0xd0] sm:$0xf] %v908
  %1037 = vst [vmem:[%s3 + $0xd4] sm:$0xf] %v909
  %1038 = vst [vmem:[%s3 + $0xd8] sm:$0xf] %v910
  %1039 = vst [vmem:[%s3 + $0xdc] sm:$0xf] %v911
  %1040 = vst [vmem:[%s3 + $0xe0] sm:$0xf] %v912
  %1041 = vst [vmem:[%s3 + $0xe4] sm:$0xf] %v913
  %1042 = vst [vmem:[%s3 + $0xe8] sm:$0xf] %v914
  %1043 = vst [vmem:[%s3 + $0xec] sm:$0xf] %v915
  %1044 = vst [vmem:[%s3 + $0xf0] sm:$0xf] %v916
  %1045 = vst [vmem:[%s3 + $0xf4] sm:$0xf] %v917
  %1046 = vst [vmem:[%s3 + $0xf8] sm:$0xf] %v918
  %1047 = vst [vmem:[%s3 + $0xfc] sm:$0xf] %v919
  // Predicated region
  $region14: #{forward.4} parent=0 // pred_check
    _
  $region15: #{forward.4} parent=0 // pred_check_branch
    %1049 = sbr.rel (0) target = $region17
  $region16: #{forward.4} parent=0 // pred_region
    _
  $region17: #{forward.4} parent=0 // pred_fallthru
    _
  // Predicated region
  $region18: #{forward.4} parent=0 // pred_check
    _
  $region19: #{forward.4} parent=0 // pred_check_branch
    %1051 = sbr.rel (0) target = $region21
  $region20: #{forward.4} parent=0 // pred_region
    _
  $region21: #{forward.4} parent=0 // pred_fallthru
    _

// kernel: forward.5
$region0: #{forward.5}
  #allocation0 [shape = 'u32[]', space=smem, size = 0x4, offset = 0x4, fixed_abs, tag = 'smem constant byte address 0x4 - core index']
  #allocation1 [shape = 'u32[144,128]{1,0:T(1,128)}', space=vmem, size = 0x12000, scoped, tag = 'internal scratch']
  %s0 = inlined_call_operand.vmem [shape: bf16[128,1152], index: 0, kind: input, shape index: {}]
  %s1 = inlined_call_operand.vmem [shape: bf16[1152,128], index: 1, kind: input, shape index: {}]
  %s2 = inlined_call_operand.vmem [shape: f32[1,128], index: 2, kind: input, shape index: {}]
  %s3 = inlined_call_operand.vmem [shape: bf16[128,128], index: 3, kind: output, shape index: {}]
  %s4 = sld [smem:[#allocation0]]
  $region22: #{forward.5} parent=0
    _
  %s6 = ssub.s32 1, %s4
  %s7 = scalar_select 0, %s6, %s4
  // Predicated region
  $region2: #{forward.5} parent=0 // pred_check
    _
  $region3: #{forward.5} parent=0 // pred_check_branch
    %9 = sbr.rel (0) target = $region5
  $region4: #{forward.5} parent=0 // pred_region
    _
  $region5: #{forward.5} parent=0 // pred_fallthru
    _
  // Predicated region
  $region6: #{forward.5} parent=0 // pred_check
    _
  $region7: #{forward.5} parent=0 // pred_check_branch
    %11 = sbr.rel (0) target = $region9
  $region8: #{forward.5} parent=0 // pred_region
    _
  $region9: #{forward.5} parent=0 // pred_fallthru
    _
  // Predicated region
  $region10: #{forward.5} parent=0 // pred_check
    _
  $region11: #{forward.5} parent=0 // pred_check_branch
    %13 = sbr.rel (0) target = $region13
  $region12: #{forward.5} parent=0 // pred_region
    _
  $region13: #{forward.5} parent=0 // pred_fallthru
    _
  %v15 = vld [vmem:[%s0] sm:$0xff]
  %v16 = vld [vmem:[%s0 + $0x8] sm:$0xff]
  %v17 = vld [vmem:[%s0 + $0x10] sm:$0xff]
  %v18 = vld [vmem:[%s0 + $0x18] sm:$0xff]
  %v19 = vld [vmem:[%s0 + $0x20] sm:$0xf]
  %v20 = vld [vmem:[%s0 + $0x24] sm:$0xff]
  %v21 = vld [vmem:[%s0 + $0x2c] sm:$0xff]
  %v22 = vld [vmem:[%s0 + $0x34] sm:$0xff]
  %v23 = vld [vmem:[%s0 + $0x3c] sm:$0xff]
  %v24 = vld [vmem:[%s0 + $0x44] sm:$0xf]
  %v25 = vld [vmem:[%s0 + $0x48] sm:$0xff]
  %v26 = vld [vmem:[%s0 + $0x50] sm:$0xff]
  %v27 = vld [vmem:[%s0 + $0x58] sm:$0xff]
  %v28 = vld [vmem:[%s0 + $0x60] sm:$0xff]
  %v29 = vld [vmem:[%s0 + $0x68] sm:$0xf]
  %v30 = vld [vmem:[%s0 + $0x6c] sm:$0xff]
  %v31 = vld [vmem:[%s0 + $0x74] sm:$0xff]
  %v32 = vld [vmem:[%s0 + $0x7c] sm:$0xff]
  %v33 = vld [vmem:[%s0 + $0x84] sm:$0xff]
  %v34 = vld [vmem:[%s0 + $0x8c] sm:$0xf]
  %v35 = vld [vmem:[%s0 + $0x90] sm:$0xff]
  %v36 = vld [vmem:[%s0 + $0x98] sm:$0xff]
  %v37 = vld [vmem:[%s0 + $0xa0] sm:$0xff]
  %v38 = vld [vmem:[%s0 + $0xa8] sm:$0xff]
  %v39 = vld [vmem:[%s0 + $0xb0] sm:$0xf]
  %v40 = vld [vmem:[%s0 + $0xb4] sm:$0xff]
  %v41 = vld [vmem:[%s0 + $0xbc] sm:$0xff]
  %v42 = vld [vmem:[%s0 + $0xc4] sm:$0xff]
  %v43 = vld [vmem:[%s0 + $0xcc] sm:$0xff]
  %v44 = vld [vmem:[%s0 + $0xd4] sm:$0xf]
  %v45 = vld [vmem:[%s0 + $0xd8] sm:$0xff]
  %v46 = vld [vmem:[%s0 + $0xe0] sm:$0xff]
  %v47 = vld [vmem:[%s0 + $0xe8] sm:$0xff]
  %v48 = vld [vmem:[%s0 + $0xf0] sm:$0xff]
  %v49 = vld [vmem:[%s0 + $0xf8] sm:$0xf]
  %v50 = vld [vmem:[%s0 + $0xfc] sm:$0xff]
  %v51 = vld [vmem:[%s0 + $0x104] sm:$0xff]
  %v52 = vld [vmem:[%s0 + $0x10c] sm:$0xff]
  %v53 = vld [vmem:[%s0 + $0x114] sm:$0xff]
  %v54 = vld [vmem:[%s0 + $0x11c] sm:$0xf]
  %v55 = vld [vmem:[%s0 + $0x120] sm:$0xff]
  %v56 = vld [vmem:[%s0 + $0x128] sm:$0xff]
  %v57 = vld [vmem:[%s0 + $0x130] sm:$0xff]
  %v58 = vld [vmem:[%s0 + $0x138] sm:$0xff]
  %v59 = vld [vmem:[%s0 + $0x140] sm:$0xf]
  %v60 = vld [vmem:[%s0 + $0x144] sm:$0xff]
  %v61 = vld [vmem:[%s0 + $0x14c] sm:$0xff]
  %v62 = vld [vmem:[%s0 + $0x154] sm:$0xff]
  %v63 = vld [vmem:[%s0 + $0x15c] sm:$0xff]
  %v64 = vld [vmem:[%s0 + $0x164] sm:$0xf]
  %v65 = vld [vmem:[%s0 + $0x168] sm:$0xff]
  %v66 = vld [vmem:[%s0 + $0x170] sm:$0xff]
  %v67 = vld [vmem:[%s0 + $0x178] sm:$0xff]
  %v68 = vld [vmem:[%s0 + $0x180] sm:$0xff]
  %v69 = vld [vmem:[%s0 + $0x188] sm:$0xf]
  %v70 = vld [vmem:[%s0 + $0x18c] sm:$0xff]
  %v71 = vld [vmem:[%s0 + $0x194] sm:$0xff]
  %v72 = vld [vmem:[%s0 + $0x19c] sm:$0xff]
  %v73 = vld [vmem:[%s0 + $0x1a4] sm:$0xff]
  %v74 = vld [vmem:[%s0 + $0x1ac] sm:$0xf]
  %v75 = vld [vmem:[%s0 + $0x1b0] sm:$0xff]
  %v76 = vld [vmem:[%s0 + $0x1b8] sm:$0xff]
  %v77 = vld [vmem:[%s0 + $0x1c0] sm:$0xff]
  %v78 = vld [vmem:[%s0 + $0x1c8] sm:$0xff]
  %v79 = vld [vmem:[%s0 + $0x1d0] sm:$0xf]
  %v80 = vld [vmem:[%s0 + $0x1d4] sm:$0xff]
  %v81 = vld [vmem:[%s0 + $0x1dc] sm:$0xff]
  %v82 = vld [vmem:[%s0 + $0x1e4] sm:$0xff]
  %v83 = vld [vmem:[%s0 + $0x1ec] sm:$0xff]
  %v84 = vld [vmem:[%s0 + $0x1f4] sm:$0xf]
  %v85 = vld [vmem:[%s0 + $0x1f8] sm:$0xff]
  %v86 = vld [vmem:[%s0 + $0x200] sm:$0xff]
  %v87 = vld [vmem:[%s0 + $0x208] sm:$0xff]
  %v88 = vld [vmem:[%s0 + $0x210] sm:$0xff]
  %v89 = vld [vmem:[%s0 + $0x218] sm:$0xf]
  %v90 = vld [vmem:[%s0 + $0x21c] sm:$0xff]
  %v91 = vld [vmem:[%s0 + $0x224] sm:$0xff]
  %v92 = vld [vmem:[%s0 + $0x22c] sm:$0xff]
  %v93 = vld [vmem:[%s0 + $0x234] sm:$0xff]
  %v94 = vld [vmem:[%s0 + $0x23c] sm:$0xf]
  %v95 = vld [vmem:[%s1] sm:$0xf]
  %v96 = vld [vmem:[%s1 + $0x4] sm:$0xf]
  %v97 = vld [vmem:[%s1 + $0x8] sm:$0xf]
  %v98 = vld [vmem:[%s1 + $0xc] sm:$0xf]
  %v99 = vld [vmem:[%s1 + $0x10] sm:$0xf]
  %v100 = vld [vmem:[%s1 + $0x14] sm:$0xf]
  %v101 = vld [vmem:[%s1 + $0x18] sm:$0xf]
  %v102 = vld [vmem:[%s1 + $0x1c] sm:$0xf]
  %v103 = vld [vmem:[%s1 + $0x20] sm:$0xf]
  %v104 = vld [vmem:[%s1 + $0x24] sm:$0xf]
  %v105 = vld [vmem:[%s1 + $0x28] sm:$0xf]
  %v106 = vld [vmem:[%s1 + $0x2c] sm:$0xf]
  %v107 = vld [vmem:[%s1 + $0x30] sm:$0xf]
  %v108 = vld [vmem:[%s1 + $0x34] sm:$0xf]
  %v109 = vld [vmem:[%s1 + $0x38] sm:$0xf]
  %v110 = vld [vmem:[%s1 + $0x3c] sm:$0xf]
  %v111 = vld [vmem:[%s1 + $0x40] sm:$0xf]
  %v112 = vld [vmem:[%s1 + $0x44] sm:$0xf]
  %v113 = vld [vmem:[%s1 + $0x48] sm:$0xf]
  %v114 = vld [vmem:[%s1 + $0x4c] sm:$0xf]
  %v115 = vld [vmem:[%s1 + $0x50] sm:$0xf]
  %v116 = vld [vmem:[%s1 + $0x54] sm:$0xf]
  %v117 = vld [vmem:[%s1 + $0x58] sm:$0xf]
  %v118 = vld [vmem:[%s1 + $0x5c] sm:$0xf]
  %v119 = vld [vmem:[%s1 + $0x60] sm:$0xf]
  %v120 = vld [vmem:[%s1 + $0x64] sm:$0xf]
  %v121 = vld [vmem:[%s1 + $0x68] sm:$0xf]
  %v122 = vld [vmem:[%s1 + $0x6c] sm:$0xf]
  %v123 = vld [vmem:[%s1 + $0x70] sm:$0xf]
  %v124 = vld [vmem:[%s1 + $0x74] sm:$0xf]
  %v125 = vld [vmem:[%s1 + $0x78] sm:$0xf]
  %v126 = vld [vmem:[%s1 + $0x7c] sm:$0xf]
  %v127 = vld [vmem:[%s1 + $0x80] sm:$0xf]
  %v128 = vld [vmem:[%s1 + $0x84] sm:$0xf]
  %v129 = vld [vmem:[%s1 + $0x88] sm:$0xf]
  %v130 = vld [vmem:[%s1 + $0x8c] sm:$0xf]
  %v131 = vld [vmem:[%s1 + $0x90] sm:$0xf]
  %v132 = vld [vmem:[%s1 + $0x94] sm:$0xf]
  %v133 = vld [vmem:[%s1 + $0x98] sm:$0xf]
  %v134 = vld [vmem:[%s1 + $0x9c] sm:$0xf]
  %v135 = vld [vmem:[%s1 + $0xa0] sm:$0xf]
  %v136 = vld [vmem:[%s1 + $0xa4] sm:$0xf]
  %v137 = vld [vmem:[%s1 + $0xa8] sm:$0xf]
  %v138 = vld [vmem:[%s1 + $0xac] sm:$0xf]
  %v139 = vld [vmem:[%s1 + $0xb0] sm:$0xf]
  %v140 = vld [vmem:[%s1 + $0xb4] sm:$0xf]
  %v141 = vld [vmem:[%s1 + $0xb8] sm:$0xf]
  %v142 = vld [vmem:[%s1 + $0xbc] sm:$0xf]
  %v143 = vld [vmem:[%s1 + $0xc0] sm:$0xf]
  %v144 = vld [vmem:[%s1 + $0xc4] sm:$0xf]
  %v145 = vld [vmem:[%s1 + $0xc8] sm:$0xf]
  %v146 = vld [vmem:[%s1 + $0xcc] sm:$0xf]
  %v147 = vld [vmem:[%s1 + $0xd0] sm:$0xf]
  %v148 = vld [vmem:[%s1 + $0xd4] sm:$0xf]
  %v149 = vld [vmem:[%s1 + $0xd8] sm:$0xf]
  %v150 = vld [vmem:[%s1 + $0xdc] sm:$0xf]
  %v151 = vld [vmem:[%s1 + $0xe0] sm:$0xf]
  %v152 = vld [vmem:[%s1 + $0xe4] sm:$0xf]
  %v153 = vld [vmem:[%s1 + $0xe8] sm:$0xf]
  %v154 = vld [vmem:[%s1 + $0xec] sm:$0xf]
  %v155 = vld [vmem:[%s1 + $0xf0] sm:$0xf]
  %v156 = vld [vmem:[%s1 + $0xf4] sm:$0xf]
  %v157 = vld [vmem:[%s1 + $0xf8] sm:$0xf]
  %v158 = vld [vmem:[%s1 + $0xfc] sm:$0xf]
  %v159 = vld [vmem:[%s1 + $0x100] sm:$0xf]
  %v160 = vld [vmem:[%s1 + $0x104] sm:$0xf]
  %v161 = vld [vmem:[%s1 + $0x108] sm:$0xf]
  %v162 = vld [vmem:[%s1 + $0x10c] sm:$0xf]
  %v163 = vld [vmem:[%s1 + $0x110] sm:$0xf]
  %v164 = vld [vmem:[%s1 + $0x114] sm:$0xf]
  %v165 = vld [vmem:[%s1 + $0x118] sm:$0xf]
  %v166 = vld [vmem:[%s1 + $0x11c] sm:$0xf]
  %v167 = vld [vmem:[%s1 + $0x120] sm:$0xf]
  %v168 = vld [vmem:[%s1 + $0x124] sm:$0xf]
  %v169 = vld [vmem:[%s1 + $0x128] sm:$0xf]
  %v170 = vld [vmem:[%s1 + $0x12c] sm:$0xf]
  %v171 = vld [vmem:[%s1 + $0x130] sm:$0xf]
  %v172 = vld [vmem:[%s1 + $0x134] sm:$0xf]
  %v173 = vld [vmem:[%s1 + $0x138] sm:$0xf]
  %v174 = vld [vmem:[%s1 + $0x13c] sm:$0xf]
  %v175 = vld [vmem:[%s1 + $0x140] sm:$0xf]
  %v176 = vld [vmem:[%s1 + $0x144] sm:$0xf]
  %v177 = vld [vmem:[%s1 + $0x148] sm:$0xf]
  %v178 = vld [vmem:[%s1 + $0x14c] sm:$0xf]
  %v179 = vld [vmem:[%s1 + $0x150] sm:$0xf]
  %v180 = vld [vmem:[%s1 + $0x154] sm:$0xf]
  %v181 = vld [vmem:[%s1 + $0x158] sm:$0xf]
  %v182 = vld [vmem:[%s1 + $0x15c] sm:$0xf]
  %v183 = vld [vmem:[%s1 + $0x160] sm:$0xf]
  %v184 = vld [vmem:[%s1 + $0x164] sm:$0xf]
  %v185 = vld [vmem:[%s1 + $0x168] sm:$0xf]
  %v186 = vld [vmem:[%s1 + $0x16c] sm:$0xf]
  %v187 = vld [vmem:[%s1 + $0x170] sm:$0xf]
  %v188 = vld [vmem:[%s1 + $0x174] sm:$0xf]
  %v189 = vld [vmem:[%s1 + $0x178] sm:$0xf]
  %v190 = vld [vmem:[%s1 + $0x17c] sm:$0xf]
  %v191 = vld [vmem:[%s1 + $0x180] sm:$0xf]
  %v192 = vld [vmem:[%s1 + $0x184] sm:$0xf]
  %v193 = vld [vmem:[%s1 + $0x188] sm:$0xf]
  %v194 = vld [vmem:[%s1 + $0x18c] sm:$0xf]
  %v195 = vld [vmem:[%s1 + $0x190] sm:$0xf]
  %v196 = vld [vmem:[%s1 + $0x194] sm:$0xf]
  %v197 = vld [vmem:[%s1 + $0x198] sm:$0xf]
  %v198 = vld [vmem:[%s1 + $0x19c] sm:$0xf]
  %v199 = vld [vmem:[%s1 + $0x1a0] sm:$0xf]
  %v200 = vld [vmem:[%s1 + $0x1a4] sm:$0xf]
  %v201 = vld [vmem:[%s1 + $0x1a8] sm:$0xf]
  %v202 = vld [vmem:[%s1 + $0x1ac] sm:$0xf]
  %v203 = vld [vmem:[%s1 + $0x1b0] sm:$0xf]
  %v204 = vld [vmem:[%s1 + $0x1b4] sm:$0xf]
  %v205 = vld [vmem:[%s1 + $0x1b8] sm:$0xf]
  %v206 = vld [vmem:[%s1 + $0x1bc] sm:$0xf]
  %v207 = vld [vmem:[%s1 + $0x1c0] sm:$0xf]
  %v208 = vld [vmem:[%s1 + $0x1c4] sm:$0xf]
  %v209 = vld [vmem:[%s1 + $0x1c8] sm:$0xf]
  %v210 = vld [vmem:[%s1 + $0x1cc] sm:$0xf]
  %v211 = vld [vmem:[%s1 + $0x1d0] sm:$0xf]
  %v212 = vld [vmem:[%s1 + $0x1d4] sm:$0xf]
  %v213 = vld [vmem:[%s1 + $0x1d8] sm:$0xf]
  %v214 = vld [vmem:[%s1 + $0x1dc] sm:$0xf]
  %v215 = vld [vmem:[%s1 + $0x1e0] sm:$0xf]
  %v216 = vld [vmem:[%s1 + $0x1e4] sm:$0xf]
  %v217 = vld [vmem:[%s1 + $0x1e8] sm:$0xf]
  %v218 = vld [vmem:[%s1 + $0x1ec] sm:$0xf]
  %v219 = vld [vmem:[%s1 + $0x1f0] sm:$0xf]
  %v220 = vld [vmem:[%s1 + $0x1f4] sm:$0xf]
  %v221 = vld [vmem:[%s1 + $0x1f8] sm:$0xf]
  %v222 = vld [vmem:[%s1 + $0x1fc] sm:$0xf]
  %v223 = vld [vmem:[%s1 + $0x200] sm:$0xf]
  %v224 = vld [vmem:[%s1 + $0x204] sm:$0xf]
  %v225 = vld [vmem:[%s1 + $0x208] sm:$0xf]
  %v226 = vld [vmem:[%s1 + $0x20c] sm:$0xf]
  %v227 = vld [vmem:[%s1 + $0x210] sm:$0xf]
  %v228 = vld [vmem:[%s1 + $0x214] sm:$0xf]
  %v229 = vld [vmem:[%s1 + $0x218] sm:$0xf]
  %v230 = vld [vmem:[%s1 + $0x21c] sm:$0xf]
  %v231 = vld [vmem:[%s1 + $0x220] sm:$0xf]
  %v232 = vld [vmem:[%s1 + $0x224] sm:$0xf]
  %v233 = vld [vmem:[%s1 + $0x228] sm:$0xf]
  %v234 = vld [vmem:[%s1 + $0x22c] sm:$0xf]
  %v235 = vld [vmem:[%s1 + $0x230] sm:$0xf]
  %v236 = vld [vmem:[%s1 + $0x234] sm:$0xf]
  %v237 = vld [vmem:[%s1 + $0x238] sm:$0xf]
  %v238 = vld [vmem:[%s1 + $0x23c] sm:$0xf]
  %v239 = vld [vmem:[%s2] sm:$0x1]
  %v241 = vlaneseq
  %v242 = vshrl.u32 %v241, 7
  %v243 = vsub.s32 0, %v242
  %v244 = vrot.slane %v239, %v243
  %v326 = vunpack.c.l.b16 %v15
  %v327 = vunpack.c.h.b16 %v15
  %v328 = vunpack.c.l.b16 %v16
  %v329 = vunpack.c.h.b16 %v16
  %v330 = vunpack.c.l.b16 %v17
  %v331 = vunpack.c.h.b16 %v17
  %v332 = vunpack.c.l.b16 %v18
  %v333 = vunpack.c.h.b16 %v18
  %v334 = vunpack.c.l.b16 %v19
  %v335 = vunpack.c.l.b16 %v20
  %v336 = vunpack.c.h.b16 %v20
  %v337 = vunpack.c.l.b16 %v21
  %v338 = vunpack.c.h.b16 %v21
  %v339 = vunpack.c.l.b16 %v22
  %v340 = vunpack.c.h.b16 %v22
  %v341 = vunpack.c.l.b16 %v23
  %v342 = vunpack.c.h.b16 %v23
  %v343 = vunpack.c.l.b16 %v24
  %v344 = vunpack.c.l.b16 %v25
  %v345 = vunpack.c.h.b16 %v25
  %v346 = vunpack.c.l.b16 %v26
  %v347 = vunpack.c.h.b16 %v26
  %v348 = vunpack.c.l.b16 %v27
  %v349 = vunpack.c.h.b16 %v27
  %v350 = vunpack.c.l.b16 %v28
  %v351 = vunpack.c.h.b16 %v28
  %v352 = vunpack.c.l.b16 %v29
  %v353 = vunpack.c.l.b16 %v30
  %v354 = vunpack.c.h.b16 %v30
  %v355 = vunpack.c.l.b16 %v31
  %v356 = vunpack.c.h.b16 %v31
  %v357 = vunpack.c.l.b16 %v32
  %v358 = vunpack.c.h.b16 %v32
  %v359 = vunpack.c.l.b16 %v33
  %v360 = vunpack.c.h.b16 %v33
  %v361 = vunpack.c.l.b16 %v34
  %v362 = vunpack.c.l.b16 %v35
  %v363 = vunpack.c.h.b16 %v35
  %v364 = vunpack.c.l.b16 %v36
  %v365 = vunpack.c.h.b16 %v36
  %v366 = vunpack.c.l.b16 %v37
  %v367 = vunpack.c.h.b16 %v37
  %v368 = vunpack.c.l.b16 %v38
  %v369 = vunpack.c.h.b16 %v38
  %v370 = vunpack.c.l.b16 %v39
  %v371 = vunpack.c.l.b16 %v40
  %v372 = vunpack.c.h.b16 %v40
  %v373 = vunpack.c.l.b16 %v41
  %v374 = vunpack.c.h.b16 %v41
  %v375 = vunpack.c.l.b16 %v42
  %v376 = vunpack.c.h.b16 %v42
  %v377 = vunpack.c.l.b16 %v43
  %v378 = vunpack.c.h.b16 %v43
  %v379 = vunpack.c.l.b16 %v44
  %v380 = vunpack.c.l.b16 %v45
  %v381 = vunpack.c.h.b16 %v45
  %v382 = vunpack.c.l.b16 %v46
  %v383 = vunpack.c.h.b16 %v46
  %v384 = vunpack.c.l.b16 %v47
  %v385 = vunpack.c.h.b16 %v47
  %v386 = vunpack.c.l.b16 %v48
  %v387 = vunpack.c.h.b16 %v48
  %v388 = vunpack.c.l.b16 %v49
  %v389 = vunpack.c.l.b16 %v50
  %v390 = vunpack.c.h.b16 %v50
  %v391 = vunpack.c.l.b16 %v51
  %v392 = vunpack.c.h.b16 %v51
  %v393 = vunpack.c.l.b16 %v52
  %v394 = vunpack.c.h.b16 %v52
  %v395 = vunpack.c.l.b16 %v53
  %v396 = vunpack.c.h.b16 %v53
  %v397 = vunpack.c.l.b16 %v54
  %v398 = vunpack.c.l.b16 %v55
  %v399 = vunpack.c.h.b16 %v55
  %v400 = vunpack.c.l.b16 %v56
  %v401 = vunpack.c.h.b16 %v56
  %v402 = vunpack.c.l.b16 %v57
  %v403 = vunpack.c.h.b16 %v57
  %v404 = vunpack.c.l.b16 %v58
  %v405 = vunpack.c.h.b16 %v58
  %v406 = vunpack.c.l.b16 %v59
  %v407 = vunpack.c.l.b16 %v60
  %v408 = vunpack.c.h.b16 %v60
  %v409 = vunpack.c.l.b16 %v61
  %v410 = vunpack.c.h.b16 %v61
  %v411 = vunpack.c.l.b16 %v62
  %v412 = vunpack.c.h.b16 %v62
  %v413 = vunpack.c.l.b16 %v63
  %v414 = vunpack.c.h.b16 %v63
  %v415 = vunpack.c.l.b16 %v64
  %v416 = vunpack.c.l.b16 %v65
  %v417 = vunpack.c.h.b16 %v65
  %v418 = vunpack.c.l.b16 %v66
  %v419 = vunpack.c.h.b16 %v66
  %v420 = vunpack.c.l.b16 %v67
  %v421 = vunpack.c.h.b16 %v67
  %v422 = vunpack.c.l.b16 %v68
  %v423 = vunpack.c.h.b16 %v68
  %v424 = vunpack.c.l.b16 %v69
  %v425 = vunpack.c.l.b16 %v70
  %v426 = vunpack.c.h.b16 %v70
  %v427 = vunpack.c.l.b16 %v71
  %v428 = vunpack.c.h.b16 %v71
  %v429 = vunpack.c.l.b16 %v72
  %v430 = vunpack.c.h.b16 %v72
  %v431 = vunpack.c.l.b16 %v73
  %v432 = vunpack.c.h.b16 %v73
  %v433 = vunpack.c.l.b16 %v74
  %v434 = vunpack.c.l.b16 %v75
  %v435 = vunpack.c.h.b16 %v75
  %v436 = vunpack.c.l.b16 %v76
  %v437 = vunpack.c.h.b16 %v76
  %v438 = vunpack.c.l.b16 %v77
  %v439 = vunpack.c.h.b16 %v77
  %v440 = vunpack.c.l.b16 %v78
  %v441 = vunpack.c.h.b16 %v78
  %v442 = vunpack.c.l.b16 %v79
  %v443 = vunpack.c.l.b16 %v80
  %v444 = vunpack.c.h.b16 %v80
  %v445 = vunpack.c.l.b16 %v81
  %v446 = vunpack.c.h.b16 %v81
  %v447 = vunpack.c.l.b16 %v82
  %v448 = vunpack.c.h.b16 %v82
  %v449 = vunpack.c.l.b16 %v83
  %v450 = vunpack.c.h.b16 %v83
  %v451 = vunpack.c.l.b16 %v84
  %v452 = vunpack.c.l.b16 %v85
  %v453 = vunpack.c.h.b16 %v85
  %v454 = vunpack.c.l.b16 %v86
  %v455 = vunpack.c.h.b16 %v86
  %v456 = vunpack.c.l.b16 %v87
  %v457 = vunpack.c.h.b16 %v87
  %v458 = vunpack.c.l.b16 %v88
  %v459 = vunpack.c.h.b16 %v88
  %v460 = vunpack.c.l.b16 %v89
  %v461 = vunpack.c.l.b16 %v90
  %v462 = vunpack.c.h.b16 %v90
  %v463 = vunpack.c.l.b16 %v91
  %v464 = vunpack.c.h.b16 %v91
  %v465 = vunpack.c.l.b16 %v92
  %v466 = vunpack.c.h.b16 %v92
  %v467 = vunpack.c.l.b16 %v93
  %v468 = vunpack.c.h.b16 %v93
  %v469 = vunpack.c.l.b16 %v94
  %v470 = vpack.c.b16 %v335, %v326
  %v471 = vpack.c.b16 %v336, %v327
  %v472 = vpack.c.b16 %v337, %v328
  %v473 = vpack.c.b16 %v338, %v329
  %v474 = vpack.c.b16 %v339, %v330
  %v475 = vpack.c.b16 %v340, %v331
  %v476 = vpack.c.b16 %v341, %v332
  %v477 = vpack.c.b16 %v342, %v333
  %v478 = vpack.c.b16 %v343, %v334
  %v479 = vpack.c.b16 %v353, %v344
  %v480 = vpack.c.b16 %v354, %v345
  %v481 = vpack.c.b16 %v355, %v346
  %v482 = vpack.c.b16 %v356, %v347
  %v483 = vpack.c.b16 %v357, %v348
  %v484 = vpack.c.b16 %v358, %v349
  %v485 = vpack.c.b16 %v359, %v350
  %v486 = vpack.c.b16 %v360, %v351
  %v487 = vpack.c.b16 %v361, %v352
  %v488 = vpack.c.b16 %v371, %v362
  %v489 = vpack.c.b16 %v372, %v363
  %v490 = vpack.c.b16 %v373, %v364
  %v491 = vpack.c.b16 %v374, %v365
  %v492 = vpack.c.b16 %v375, %v366
  %v493 = vpack.c.b16 %v376, %v367
  %v494 = vpack.c.b16 %v377, %v368
  %v495 = vpack.c.b16 %v378, %v369
  %v496 = vpack.c.b16 %v379, %v370
  %v497 = vpack.c.b16 %v389, %v380
  %v498 = vpack.c.b16 %v390, %v381
  %v499 = vpack.c.b16 %v391, %v382
  %v500 = vpack.c.b16 %v392, %v383
  %v501 = vpack.c.b16 %v393, %v384
  %v502 = vpack.c.b16 %v394, %v385
  %v503 = vpack.c.b16 %v395, %v386
  %v504 = vpack.c.b16 %v396, %v387
  %v505 = vpack.c.b16 %v397, %v388
  %v506 = vpack.c.b16 %v407, %v398
  %v507 = vpack.c.b16 %v408, %v399
  %v508 = vpack.c.b16 %v409, %v400
  %v509 = vpack.c.b16 %v410, %v401
  %v510 = vpack.c.b16 %v411, %v402
  %v511 = vpack.c.b16 %v412, %v403
  %v512 = vpack.c.b16 %v413, %v404
  %v513 = vpack.c.b16 %v414, %v405
  %v514 = vpack.c.b16 %v415, %v406
  %v515 = vpack.c.b16 %v425, %v416
  %v516 = vpack.c.b16 %v426, %v417
  %v517 = vpack.c.b16 %v427, %v418
  %v518 = vpack.c.b16 %v428, %v419
  %v519 = vpack.c.b16 %v429, %v420
  %v520 = vpack.c.b16 %v430, %v421
  %v521 = vpack.c.b16 %v431, %v422
  %v522 = vpack.c.b16 %v432, %v423
  %v523 = vpack.c.b16 %v433, %v424
  %v524 = vpack.c.b16 %v443, %v434
  %v525 = vpack.c.b16 %v444, %v435
  %v526 = vpack.c.b16 %v445, %v436
  %v527 = vpack.c.b16 %v446, %v437
  %v528 = vpack.c.b16 %v447, %v438
  %v529 = vpack.c.b16 %v448, %v439
  %v530 = vpack.c.b16 %v449, %v440
  %v531 = vpack.c.b16 %v450, %v441
  %v532 = vpack.c.b16 %v451, %v442
  %v533 = vpack.c.b16 %v461, %v452
  %v534 = vpack.c.b16 %v462, %v453
  %v535 = vpack.c.b16 %v463, %v454
  %v536 = vpack.c.b16 %v464, %v455
  %v537 = vpack.c.b16 %v465, %v456
  %v538 = vpack.c.b16 %v466, %v457
  %v539 = vpack.c.b16 %v467, %v458
  %v540 = vpack.c.b16 %v468, %v459
  %v541 = vpack.c.b16 %v469, %v460
  %v758 = vunpack.c.l.b16 %v95
  %v759 = vunpack.c.l.b16 %v96
  %v760 = vunpack.c.l.b16 %v97
  %v761 = vunpack.c.l.b16 %v98
  %v762 = vunpack.c.l.b16 %v99
  %v763 = vunpack.c.l.b16 %v100
  %v764 = vunpack.c.l.b16 %v101
  %v765 = vunpack.c.l.b16 %v102
  %v766 = vunpack.c.l.b16 %v103
  %v767 = vunpack.c.l.b16 %v104
  %v768 = vunpack.c.l.b16 %v105
  %v769 = vunpack.c.l.b16 %v106
  %v770 = vunpack.c.l.b16 %v107
  %v771 = vunpack.c.l.b16 %v108
  %v772 = vunpack.c.l.b16 %v109
  %v773 = vunpack.c.l.b16 %v110
  %v774 = vunpack.c.l.b16 %v111
  %v775 = vunpack.c.l.b16 %v112
  %v776 = vunpack.c.l.b16 %v113
  %v777 = vunpack.c.l.b16 %v114
  %v778 = vunpack.c.l.b16 %v115
  %v779 = vunpack.c.l.b16 %v116
  %v780 = vunpack.c.l.b16 %v117
  %v781 = vunpack.c.l.b16 %v118
  %v782 = vunpack.c.l.b16 %v119
  %v783 = vunpack.c.l.b16 %v120
  %v784 = vunpack.c.l.b16 %v121
  %v785 = vunpack.c.l.b16 %v122
  %v786 = vunpack.c.l.b16 %v123
  %v787 = vunpack.c.l.b16 %v124
  %v788 = vunpack.c.l.b16 %v125
  %v789 = vunpack.c.l.b16 %v126
  %v790 = vunpack.c.l.b16 %v127
  %v791 = vunpack.c.l.b16 %v128
  %v792 = vunpack.c.l.b16 %v129
  %v793 = vunpack.c.l.b16 %v130
  %v794 = vunpack.c.l.b16 %v131
  %v795 = vunpack.c.l.b16 %v132
  %v796 = vunpack.c.l.b16 %v133
  %v797 = vunpack.c.l.b16 %v134
  %v798 = vunpack.c.l.b16 %v135
  %v799 = vunpack.c.l.b16 %v136
  %v800 = vunpack.c.l.b16 %v137
  %v801 = vunpack.c.l.b16 %v138
  %v802 = vunpack.c.l.b16 %v139
  %v803 = vunpack.c.l.b16 %v140
  %v804 = vunpack.c.l.b16 %v141
  %v805 = vunpack.c.l.b16 %v142
  %v806 = vunpack.c.l.b16 %v143
  %v807 = vunpack.c.l.b16 %v144
  %v808 = vunpack.c.l.b16 %v145
  %v809 = vunpack.c.l.b16 %v146
  %v810 = vunpack.c.l.b16 %v147
  %v811 = vunpack.c.l.b16 %v148
  %v812 = vunpack.c.l.b16 %v149
  %v813 = vunpack.c.l.b16 %v150
  %v814 = vunpack.c.l.b16 %v151
  %v815 = vunpack.c.l.b16 %v152
  %v816 = vunpack.c.l.b16 %v153
  %v817 = vunpack.c.l.b16 %v154
  %v818 = vunpack.c.l.b16 %v155
  %v819 = vunpack.c.l.b16 %v156
  %v820 = vunpack.c.l.b16 %v157
  %v821 = vunpack.c.l.b16 %v158
  %v822 = vunpack.c.l.b16 %v159
  %v823 = vunpack.c.l.b16 %v160
  %v824 = vunpack.c.l.b16 %v161
  %v825 = vunpack.c.l.b16 %v162
  %v826 = vunpack.c.l.b16 %v163
  %v827 = vunpack.c.l.b16 %v164
  %v828 = vunpack.c.l.b16 %v165
  %v829 = vunpack.c.l.b16 %v166
  %v830 = vunpack.c.l.b16 %v167
  %v831 = vunpack.c.l.b16 %v168
  %v832 = vunpack.c.l.b16 %v169
  %v833 = vunpack.c.l.b16 %v170
  %v834 = vunpack.c.l.b16 %v171
  %v835 = vunpack.c.l.b16 %v172
  %v836 = vunpack.c.l.b16 %v173
  %v837 = vunpack.c.l.b16 %v174
  %v838 = vunpack.c.l.b16 %v175
  %v839 = vunpack.c.l.b16 %v176
  %v840 = vunpack.c.l.b16 %v177
  %v841 = vunpack.c.l.b16 %v178
  %v842 = vunpack.c.l.b16 %v179
  %v843 = vunpack.c.l.b16 %v180
  %v844 = vunpack.c.l.b16 %v181
  %v845 = vunpack.c.l.b16 %v182
  %v846 = vunpack.c.l.b16 %v183
  %v847 = vunpack.c.l.b16 %v184
  %v848 = vunpack.c.l.b16 %v185
  %v849 = vunpack.c.l.b16 %v186
  %v850 = vunpack.c.l.b16 %v187
  %v851 = vunpack.c.l.b16 %v188
  %v852 = vunpack.c.l.b16 %v189
  %v853 = vunpack.c.l.b16 %v190
  %v854 = vunpack.c.l.b16 %v191
  %v855 = vunpack.c.l.b16 %v192
  %v856 = vunpack.c.l.b16 %v193
  %v857 = vunpack.c.l.b16 %v194
  %v858 = vunpack.c.l.b16 %v195
  %v859 = vunpack.c.l.b16 %v196
  %v860 = vunpack.c.l.b16 %v197
  %v861 = vunpack.c.l.b16 %v198
  %v862 = vunpack.c.l.b16 %v199
  %v863 = vunpack.c.l.b16 %v200
  %v864 = vunpack.c.l.b16 %v201
  %v865 = vunpack.c.l.b16 %v202
  %v866 = vunpack.c.l.b16 %v203
  %v867 = vunpack.c.l.b16 %v204
  %v868 = vunpack.c.l.b16 %v205
  %v869 = vunpack.c.l.b16 %v206
  %v870 = vunpack.c.l.b16 %v207
  %v871 = vunpack.c.l.b16 %v208
  %v872 = vunpack.c.l.b16 %v209
  %v873 = vunpack.c.l.b16 %v210
  %v874 = vunpack.c.l.b16 %v211
  %v875 = vunpack.c.l.b16 %v212
  %v876 = vunpack.c.l.b16 %v213
  %v877 = vunpack.c.l.b16 %v214
  %v878 = vunpack.c.l.b16 %v215
  %v879 = vunpack.c.l.b16 %v216
  %v880 = vunpack.c.l.b16 %v217
  %v881 = vunpack.c.l.b16 %v218
  %v882 = vunpack.c.l.b16 %v219
  %v883 = vunpack.c.l.b16 %v220
  %v884 = vunpack.c.l.b16 %v221
  %v885 = vunpack.c.l.b16 %v222
  %v886 = vunpack.c.l.b16 %v223
  %v887 = vunpack.c.l.b16 %v224
  %v888 = vunpack.c.l.b16 %v225
  %v889 = vunpack.c.l.b16 %v226
  %v890 = vunpack.c.l.b16 %v227
  %v891 = vunpack.c.l.b16 %v228
  %v892 = vunpack.c.l.b16 %v229
  %v893 = vunpack.c.l.b16 %v230
  %v894 = vunpack.c.l.b16 %v231
  %v895 = vunpack.c.l.b16 %v232
  %v896 = vunpack.c.l.b16 %v233
  %v897 = vunpack.c.l.b16 %v234
  %v898 = vunpack.c.l.b16 %v235
  %v899 = vunpack.c.l.b16 %v236
  %v900 = vunpack.c.l.b16 %v237
  %v901 = vunpack.c.l.b16 %v238
  %v902 = vpack.c.b16 %v759, %v758
  %v903 = vpack.c.b16 %v761, %v760
  %v904 = vpack.c.b16 %v763, %v762
  %v905 = vpack.c.b16 %v765, %v764
  %v906 = vpack.c.b16 %v767, %v766
  %v907 = vpack.c.b16 %v769, %v768
  %v908 = vpack.c.b16 %v771, %v770
  %v909 = vpack.c.b16 %v773, %v772
  %v910 = vpack.c.b16 %v775, %v774
  %v911 = vpack.c.b16 %v777, %v776
  %v912 = vpack.c.b16 %v779, %v778
  %v913 = vpack.c.b16 %v781, %v780
  %v914 = vpack.c.b16 %v783, %v782
  %v915 = vpack.c.b16 %v785, %v784
  %v916 = vpack.c.b16 %v787, %v786
  %v917 = vpack.c.b16 %v789, %v788
  %v918 = vpack.c.b16 %v791, %v790
  %v919 = vpack.c.b16 %v793, %v792
  %v920 = vpack.c.b16 %v795, %v794
  %v921 = vpack.c.b16 %v797, %v796
  %v922 = vpack.c.b16 %v799, %v798
  %v923 = vpack.c.b16 %v801, %v800
  %v924 = vpack.c.b16 %v803, %v802
  %v925 = vpack.c.b16 %v805, %v804
  %v926 = vpack.c.b16 %v807, %v806
  %v927 = vpack.c.b16 %v809, %v808
  %v928 = vpack.c.b16 %v811, %v810
  %v929 = vpack.c.b16 %v813, %v812
  %v930 = vpack.c.b16 %v815, %v814
  %v931 = vpack.c.b16 %v817, %v816
  %v932 = vpack.c.b16 %v819, %v818
  %v933 = vpack.c.b16 %v821, %v820
  %v934 = vpack.c.b16 %v823, %v822
  %v935 = vpack.c.b16 %v825, %v824
  %v936 = vpack.c.b16 %v827, %v826
  %v937 = vpack.c.b16 %v829, %v828
  %v938 = vpack.c.b16 %v831, %v830
  %v939 = vpack.c.b16 %v833, %v832
  %v940 = vpack.c.b16 %v835, %v834
  %v941 = vpack.c.b16 %v837, %v836
  %v942 = vpack.c.b16 %v839, %v838
  %v943 = vpack.c.b16 %v841, %v840
  %v944 = vpack.c.b16 %v843, %v842
  %v945 = vpack.c.b16 %v845, %v844
  %v946 = vpack.c.b16 %v847, %v846
  %v947 = vpack.c.b16 %v849, %v848
  %v948 = vpack.c.b16 %v851, %v850
  %v949 = vpack.c.b16 %v853, %v852
  %v950 = vpack.c.b16 %v855, %v854
  %v951 = vpack.c.b16 %v857, %v856
  %v952 = vpack.c.b16 %v859, %v858
  %v953 = vpack.c.b16 %v861, %v860
  %v954 = vpack.c.b16 %v863, %v862
  %v955 = vpack.c.b16 %v865, %v864
  %v956 = vpack.c.b16 %v867, %v866
  %v957 = vpack.c.b16 %v869, %v868
  %v958 = vpack.c.b16 %v871, %v870
  %v959 = vpack.c.b16 %v873, %v872
  %v960 = vpack.c.b16 %v875, %v874
  %v961 = vpack.c.b16 %v877, %v876
  %v962 = vpack.c.b16 %v879, %v878
  %v963 = vpack.c.b16 %v881, %v880
  %v964 = vpack.c.b16 %v883, %v882
  %v965 = vpack.c.b16 %v885, %v884
  %v966 = vpack.c.b16 %v887, %v886
  %v967 = vpack.c.b16 %v889, %v888
  %v968 = vpack.c.b16 %v891, %v890
  %v969 = vpack.c.b16 %v893, %v892
  %v970 = vpack.c.b16 %v895, %v894
  %v971 = vpack.c.b16 %v897, %v896
  %v972 = vpack.c.b16 %v899, %v898
  %v973 = vpack.c.b16 %v901, %v900
  %1046 = vmatprep.subr.bf16.mxu0 0
  %1047 = vmatpush1.bf16.msra.mxu0 %v902
  %1048 = vmatprep.subr.bf16.mxu0 0
  %1049 = vmatpush1.bf16.msra.mxu0 %v903
  %1050 = vmatprep.subr.bf16.mxu0 0
  %1051 = vmatpush1.bf16.msra.mxu0 %v904
  %1052 = vmatprep.subr.bf16.mxu0 0
  %1053 = vmatpush1.bf16.msra.mxu0 %v905
  %1054 = vmatprep.subr.bf16.mxu0 0
  %1055 = vmatpush1.bf16.msra.mxu0 %v906
  %1056 = vmatprep.subr.bf16.mxu0 0
  %1057 = vmatpush1.bf16.msra.mxu0 %v907
  %1058 = vmatprep.subr.bf16.mxu0 0
  %1059 = vmatpush1.bf16.msra.mxu0 %v908
  %1060 = vmatprep.subr.bf16.mxu0 0
  %1061 = vmatpush1.bf16.msra.mxu0 %v909
  %1062 = vmatprep.subr.bf16.mxu0 0
  %1063 = vmatpush1.bf16.msra.mxu0 %v910
  %1064 = vmatprep.subr.bf16.mxu0 0
  %1065 = vmatpush1.bf16.msra.mxu0 %v911
  %1066 = vmatprep.subr.bf16.mxu0 0
  %1067 = vmatpush1.bf16.msra.mxu0 %v912
  %1068 = vmatprep.subr.bf16.mxu0 0
  %1069 = vmatpush1.bf16.msra.mxu0 %v913
  %1070 = vmatprep.subr.bf16.mxu0 0
  %1071 = vmatpush1.bf16.msra.mxu0 %v914
  %1072 = vmatprep.subr.bf16.mxu0 0
  %1073 = vmatpush1.bf16.msra.mxu0 %v915
  %1074 = vmatprep.subr.bf16.mxu0 0
  %1075 = vmatpush1.bf16.msra.mxu0 %v916
  %1076 = vmatprep.subr.bf16.mxu0 0
  %1077 = vmatpush1.bf16.msra.mxu0 %v917
  %1078 = vmatprep.mubr.bf16.mxu0 %v471
  %1079 = vmatmul.mubr.bf16.gmra.mrb[0].mxu0 %v470
  %v1080 = vpop.f32.mrb[0].mxu0
  %v1081 = vadd.f32 %v244, %v1080
  %v1082 = vpop.f32.mrb[0].mxu0
  %v1083 = vpop.f32.mrb[0].mxu0
  %v1084 = vadd.f32 %v244, %v1083
  %v1085 = vpop.f32.mrb[0].mxu0
  %1086 = vmatprep.mubr.bf16.mxu0 %v480
  %1087 = vmatmul.mubr.bf16.gmra.mrb[0].mxu0 %v479
  %v1088 = vpop.f32.mrb[0].mxu0
  %v1089 = vadd.f32 %v244, %v1088
  %v1090 = vpop.f32.mrb[0].mxu0
  %v1091 = vpop.f32.mrb[0].mxu0
  %v1092 = vadd.f32 %v244, %v1091
  %v1093 = vpop.f32.mrb[0].mxu0
  %1094 = vmatprep.mubr.bf16.mxu0 %v489
  %1095 = vmatmul.mubr.bf16.gmra.mrb[0].mxu0 %v488
  %v1096 = vpop.f32.mrb[0].mxu0
  %v1097 = vadd.f32 %v244, %v1096
  %v1098 = vpop.f32.mrb[0].mxu0
  %v1099 = vpop.f32.mrb[0].mxu0
  %v1100 = vadd.f32 %v244, %v1099
  %v1101 = vpop.f32.mrb[0].mxu0
  %1102 = vmatprep.mubr.bf16.mxu0 %v498
  %1103 = vmatmul.mubr.bf16.gmra.mrb[0].mxu0 %v497
  %v1104 = vpop.f32.mrb[0].mxu0
  %v1105 = vadd.f32 %v244, %v1104
  %v1106 = vpop.f32.mrb[0].mxu0
  %v1107 = vpop.f32.mrb[0].mxu0
  %v1108 = vadd.f32 %v244, %v1107
  %v1109 = vpop.f32.mrb[0].mxu0
  %1110 = vmatprep.mubr.bf16.mxu0 %v507
  %1111 = vmatmul.mubr.bf16.gmra.mrb[0].mxu0 %v506
  %v1112 = vpop.f32.mrb[0].mxu0
  %v1113 = vadd.f32 %v244, %v1112
  %v1114 = vpop.f32.mrb[0].mxu0
  %v1115 = vpop.f32.mrb[0].mxu0
  %v1116 = vadd.f32 %v244, %v1115
  %v1117 = vpop.f32.mrb[0].mxu0
  %1118 = vmatprep.mubr.bf16.mxu0 %v516
  %1119 = vmatmul.mubr.bf16.gmra.mrb[0].mxu0 %v515
  %v1120 = vpop.f32.mrb[0].mxu0
  %v1121 = vadd.f32 %v244, %v1120
  %v1122 = vpop.f32.mrb[0].mxu0
  %v1123 = vpop.f32.mrb[0].mxu0
  %v1124 = vadd.f32 %v244, %v1123
  %v1125 = vpop.f32.mrb[0].mxu0
  %1126 = vmatprep.mubr.bf16.mxu0 %v525
  %1127 = vmatmul.mubr.bf16.gmra.mrb[0].mxu0 %v524
  %v1128 = vpop.f32.mrb[0].mxu0
  %v1129 = vadd.f32 %v244, %v1128
  %v1130 = vpop.f32.mrb[0].mxu0
  %v1131 = vpop.f32.mrb[0].mxu0
  %v1132 = vadd.f32 %v244, %v1131
  %v1133 = vpop.f32.mrb[0].mxu0
  %1134 = vmatprep.mubr.bf16.mxu0 %v534
  %1135 = vmatmul.mubr.bf16.gmra.mrb[0].mxu0 %v533
  %v1136 = vpop.f32.mrb[0].mxu0
  %v1137 = vadd.f32 %v244, %v1136
  %v1138 = vpop.f32.mrb[0].mxu0
  %v1139 = vpop.f32.mrb[0].mxu0
  %v1140 = vadd.f32 %v244, %v1139
  %v1141 = vpop.f32.mrb[0].mxu0
  %1142 = vdwg.mxu0
  %1143 = vmatprep.subr.bf16.mxu0 0
  %1144 = vmatpush1.bf16.msra.mxu0 %v918
  %1145 = vmatprep.subr.bf16.mxu0 0
  %1146 = vmatpush1.bf16.msra.mxu0 %v919
  %1147 = vmatprep.subr.bf16.mxu0 0
  %1148 = vmatpush1.bf16.msra.mxu0 %v920
  %1149 = vmatprep.subr.bf16.mxu0 0
  %1150 = vmatpush1.bf16.msra.mxu0 %v921
  %1151 = vmatprep.subr.bf16.mxu0 0
  %1152 = vmatpush1.bf16.msra.mxu0 %v922
  %1153 = vmatprep.subr.bf16.mxu0 0
  %1154 = vmatpush1.bf16.msra.mxu0 %v923
  %1155 = vmatprep.subr.bf16.mxu0 0
  %1156 = vmatpush1.bf16.msra.mxu0 %v924
  %1157 = vmatprep.subr.bf16.mxu0 0
  %1158 = vmatpush1.bf16.msra.mxu0 %v925
  %1159 = vmatprep.subr.bf16.mxu0 0
  %1160 = vmatpush1.bf16.msra.mxu0 %v926
  %1161 = vmatprep.subr.bf16.mxu0 0
  %1162 = vmatpush1.bf16.msra.mxu0 %v927
  %1163 = vmatprep.subr.bf16.mxu0 0
  %1164 = vmatpush1.bf16.msra.mxu0 %v928
  %1165 = vmatprep.subr.bf16.mxu0 0
  %1166 = vmatpush1.bf16.msra.mxu0 %v929
  %1167 = vmatprep.subr.bf16.mxu0 0
  %1168 = vmatpush1.bf16.msra.mxu0 %v930
  %1169 = vmatprep.subr.bf16.mxu0 0
  %1170 = vmatpush1.bf16.msra.mxu0 %v931
  %1171 = vmatprep.subr.bf16.mxu0 0
  %1172 = vmatpush1.bf16.msra.mxu0 %v932
  %1173 = vmatprep.subr.bf16.mxu0 0
  %1174 = vmatpush1.bf16.msra.mxu0 %v933
  %1175 = vmatprep.mubr.bf16.mxu0 %v473
  %1176 = vmatmul.mubr.bf16.gmra.mrb[0].mxu0 %v472
  %v1177 = vpop.f32.mrb[0].mxu0
  %v1178 = vadd.f32 %v1081, %v1177
  %v1179 = vpop.f32.mrb[0].mxu0
  %v1180 = vpop.f32.mrb[0].mxu0
  %v1181 = vadd.f32 %v1084, %v1180
  %v1182 = vpop.f32.mrb[0].mxu0
  %1183 = vmatprep.mubr.bf16.mxu0 %v482
  %1184 = vmatmul.mubr.bf16.gmra.mrb[0].mxu0 %v481
  %v1185 = vpop.f32.mrb[0].mxu0
  %v1186 = vadd.f32 %v1089, %v1185
  %v1187 = vpop.f32.mrb[0].mxu0
  %v1188 = vpop.f32.mrb[0].mxu0
  %v1189 = vadd.f32 %v1092, %v1188
  %v1190 = vpop.f32.mrb[0].mxu0
  %1191 = vmatprep.mubr.bf16.mxu0 %v491
  %1192 = vmatmul.mubr.bf16.gmra.mrb[0].mxu0 %v490
  %v1193 = vpop.f32.mrb[0].mxu0
  %v1194 = vadd.f32 %v1097, %v1193
  %v1195 = vpop.f32.mrb[0].mxu0
  %v1196 = vpop.f32.mrb[0].mxu0
  %v1197 = vadd.f32 %v1100, %v1196
  %v1198 = vpop.f32.mrb[0].mxu0
  %1199 = vmatprep.mubr.bf16.mxu0 %v500
  %1200 = vmatmul.mubr.bf16.gmra.mrb[0].mxu0 %v499
  %v1201 = vpop.f32.mrb[0].mxu0
  %v1202 = vadd.f32 %v1105, %v1201
  %v1203 = vpop.f32.mrb[0].mxu0
  %v1204 = vpop.f32.mrb[0].mxu0
  %v1205 = vadd.f32 %v1108, %v1204
  %v1206 = vpop.f32.mrb[0].mxu0
  %1207 = vmatprep.mubr.bf16.mxu0 %v509
  %1208 = vmatmul.mubr.bf16.gmra.mrb[0].mxu0 %v508
  %v1209 = vpop.f32.mrb[0].mxu0
  %v1210 = vadd.f32 %v1113, %v1209
  %v1211 = vpop.f32.mrb[0].mxu0
  %v1212 = vpop.f32.mrb[0].mxu0
  %v1213 = vadd.f32 %v1116, %v1212
  %v1214 = vpop.f32.mrb[0].mxu0
  %1215 = vmatprep.mubr.bf16.mxu0 %v518
  %1216 = vmatmul.mubr.bf16.gmra.mrb[0].mxu0 %v517
  %v1217 = vpop.f32.mrb[0].mxu0
  %v1218 = vadd.f32 %v1121, %v1217
  %v1219 = vpop.f32.mrb[0].mxu0
  %v1220 = vpop.f32.mrb[0].mxu0
  %v1221 = vadd.f32 %v1124, %v1220
  %v1222 = vpop.f32.mrb[0].mxu0
  %1223 = vmatprep.mubr.bf16.mxu0 %v527
  %1224 = vmatmul.mubr.bf16.gmra.mrb[0].mxu0 %v526
  %v1225 = vpop.f32.mrb[0].mxu0
  %v1226 = vadd.f32 %v1129, %v1225
  %v1227 = vpop.f32.mrb[0].mxu0
  %v1228 = vpop.f32.mrb[0].mxu0
  %v1229 = vadd.f32 %v1132, %v1228
  %v1230 = vpop.f32.mrb[0].mxu0
  %1231 = vmatprep.mubr.bf16.mxu0 %v536
  %1232 = vmatmul.mubr.bf16.gmra.mrb[0].mxu0 %v535
  %v1233 = vpop.f32.mrb[0].mxu0
  %v1234 = vadd.f32 %v1137, %v1233
  %v1235 = vpop.f32.mrb[0].mxu0
  %v1236 = vpop.f32.mrb[0].mxu0
  %v1237 = vadd.f32 %v1140, %v1236
  %v1238 = vpop.f32.mrb[0].mxu0
  %1239 = vdwg.mxu0
  %1240 = vmatprep.subr.bf16.mxu0 0
  %1241 = vmatpush1.bf16.msra.mxu0 %v934
  %1242 = vmatprep.subr.bf16.mxu0 0
  %1243 = vmatpush1.bf16.msra.mxu0 %v935
  %1244 = vmatprep.subr.bf16.mxu0 0
  %1245 = vmatpush1.bf16.msra.mxu0 %v936
  %1246 = vmatprep.subr.bf16.mxu0 0
  %1247 = vmatpush1.bf16.msra.mxu0 %v937
  %1248 = vmatprep.subr.bf16.mxu0 0
  %1249 = vmatpush1.bf16.msra.mxu0 %v938
  %1250 = vmatprep.subr.bf16.mxu0 0
  %1251 = vmatpush1.bf16.msra.mxu0 %v939
  %1252 = vmatprep.subr.bf16.mxu0 0
  %1253 = vmatpush1.bf16.msra.mxu0 %v940
  %1254 = vmatprep.subr.bf16.mxu0 0
  %1255 = vmatpush1.bf16.msra.mxu0 %v941
  %1256 = vmatprep.subr.bf16.mxu0 0
  %1257 = vmatpush1.bf16.msra.mxu0 %v942
  %1258 = vmatprep.subr.bf16.mxu0 0
  %1259 = vmatpush1.bf16.msra.mxu0 %v943
  %1260 = vmatprep.subr.bf16.mxu0 0
  %1261 = vmatpush1.bf16.msra.mxu0 %v944
  %1262 = vmatprep.subr.bf16.mxu0 0
  %1263 = vmatpush1.bf16.msra.mxu0 %v945
  %1264 = vmatprep.subr.bf16.mxu0 0
  %1265 = vmatpush1.bf16.msra.mxu0 %v946
  %1266 = vmatprep.subr.bf16.mxu0 0
  %1267 = vmatpush1.bf16.msra.mxu0 %v947
  %1268 = vmatprep.subr.bf16.mxu0 0
  %1269 = vmatpush1.bf16.msra.mxu0 %v948
  %1270 = vmatprep.subr.bf16.mxu0 0
  %1271 = vmatpush1.bf16.msra.mxu0 %v949
  %1272 = vmatprep.mubr.bf16.mxu0 %v475
  %1273 = vmatmul.mubr.bf16.gmra.mrb[0].mxu0 %v474
  %v1274 = vpop.f32.mrb[0].mxu0
  %v1275 = vadd.f32 %v1178, %v1274
  %v1276 = vpop.f32.mrb[0].mxu0
  %v1277 = vpop.f32.mrb[0].mxu0
  %v1278 = vadd.f32 %v1181, %v1277
  %v1279 = vpop.f32.mrb[0].mxu0
  %1280 = vmatprep.mubr.bf16.mxu0 %v484
  %1281 = vmatmul.mubr.bf16.gmra.mrb[0].mxu0 %v483
  %v1282 = vpop.f32.mrb[0].mxu0
  %v1283 = vadd.f32 %v1186, %v1282
  %v1284 = vpop.f32.mrb[0].mxu0
  %v1285 = vpop.f32.mrb[0].mxu0
  %v1286 = vadd.f32 %v1189, %v1285
  %v1287 = vpop.f32.mrb[0].mxu0
  %1288 = vmatprep.mubr.bf16.mxu0 %v493
  %1289 = vmatmul.mubr.bf16.gmra.mrb[0].mxu0 %v492
  %v1290 = vpop.f32.mrb[0].mxu0
  %v1291 = vadd.f32 %v1194, %v1290
  %v1292 = vpop.f32.mrb[0].mxu0
  %v1293 = vpop.f32.mrb[0].mxu0
  %v1294 = vadd.f32 %v1197, %v1293
  %v1295 = vpop.f32.mrb[0].mxu0
  %1296 = vmatprep.mubr.bf16.mxu0 %v502
  %1297 = vmatmul.mubr.bf16.gmra.mrb[0].mxu0 %v501
  %v1298 = vpop.f32.mrb[0].mxu0
  %v1299 = vadd.f32 %v1202, %v1298
  %v1300 = vpop.f32.mrb[0].mxu0
  %v1301 = vpop.f32.mrb[0].mxu0
  %v1302 = vadd.f32 %v1205, %v1301
  %v1303 = vpop.f32.mrb[0].mxu0
  %1304 = vmatprep.mubr.bf16.mxu0 %v511
  %1305 = vmatmul.mubr.bf16.gmra.mrb[0].mxu0 %v510
  %v1306 = vpop.f32.mrb[0].mxu0
  %v1307 = vadd.f32 %v1210, %v1306
  %v1308 = vpop.f32.mrb[0].mxu0
  %v1309 = vpop.f32.mrb[0].mxu0
  %v1310 = vadd.f32 %v1213, %v1309
  %v1311 = vpop.f32.mrb[0].mxu0
  %1312 = vmatprep.mubr.bf16.mxu0 %v520
  %1313 = vmatmul.mubr.bf16.gmra.mrb[0].mxu0 %v519
  %v1314 = vpop.f32.mrb[0].mxu0
  %v1315 = vadd.f32 %v1218, %v1314
  %v1316 = vpop.f32.mrb[0].mxu0
  %v1317 = vpop.f32.mrb[0].mxu0
  %v1318 = vadd.f32 %v1221, %v1317
  %v1319 = vpop.f32.mrb[0].mxu0
  %1320 = vmatprep.mubr.bf16.mxu0 %v529
  %1321 = vmatmul.mubr.bf16.gmra.mrb[0].mxu0 %v528
  %v1322 = vpop.f32.mrb[0].mxu0
  %v1323 = vadd.f32 %v1226, %v1322
  %v1324 = vpop.f32.mrb[0].mxu0
  %v1325 = vpop.f32.mrb[0].mxu0
  %v1326 = vadd.f32 %v1229, %v1325
  %v1327 = vpop.f32.mrb[0].mxu0
  %1328 = vmatprep.mubr.bf16.mxu0 %v538
  %1329 = vmatmul.mubr.bf16.gmra.mrb[0].mxu0 %v537
  %v1330 = vpop.f32.mrb[0].mxu0
  %v1331 = vadd.f32 %v1234, %v1330
  %v1332 = vpop.f32.mrb[0].mxu0
  %v1333 = vpop.f32.mrb[0].mxu0
  %v1334 = vadd.f32 %v1237, %v1333
  %v1335 = vpop.f32.mrb[0].mxu0
  %1336 = vdwg.mxu0
  %1337 = vmatprep.subr.bf16.mxu0 0
  %1338 = vmatpush1.bf16.msra.mxu0 %v950
  %1339 = vmatprep.subr.bf16.mxu0 0
  %1340 = vmatpush1.bf16.msra.mxu0 %v951
  %1341 = vmatprep.subr.bf16.mxu0 0
  %1342 = vmatpush1.bf16.msra.mxu0 %v952
  %1343 = vmatprep.subr.bf16.mxu0 0
  %1344 = vmatpush1.bf16.msra.mxu0 %v953
  %1345 = vmatprep.subr.bf16.mxu0 0
  %1346 = vmatpush1.bf16.msra.mxu0 %v954
  %1347 = vmatprep.subr.bf16.mxu0 0
  %1348 = vmatpush1.bf16.msra.mxu0 %v955
  %1349 = vmatprep.subr.bf16.mxu0 0
  %1350 = vmatpush1.bf16.msra.mxu0 %v956
  %1351 = vmatprep.subr.bf16.mxu0 0
  %1352 = vmatpush1.bf16.msra.mxu0 %v957
  %1353 = vmatprep.subr.bf16.mxu0 0
  %1354 = vmatpush1.bf16.msra.mxu0 %v958
  %1355 = vmatprep.subr.bf16.mxu0 0
  %1356 = vmatpush1.bf16.msra.mxu0 %v959
  %1357 = vmatprep.subr.bf16.mxu0 0
  %1358 = vmatpush1.bf16.msra.mxu0 %v960
  %1359 = vmatprep.subr.bf16.mxu0 0
  %1360 = vmatpush1.bf16.msra.mxu0 %v961
  %1361 = vmatprep.subr.bf16.mxu0 0
  %1362 = vmatpush1.bf16.msra.mxu0 %v962
  %1363 = vmatprep.subr.bf16.mxu0 0
  %1364 = vmatpush1.bf16.msra.mxu0 %v963
  %1365 = vmatprep.subr.bf16.mxu0 0
  %1366 = vmatpush1.bf16.msra.mxu0 %v964
  %1367 = vmatprep.subr.bf16.mxu0 0
  %1368 = vmatpush1.bf16.msra.mxu0 %v965
  %1369 = vmatprep.mubr.bf16.mxu0 %v477
  %1370 = vmatmul.mubr.bf16.gmra.mrb[0].mxu0 %v476
  %v1371 = vpop.f32.mrb[0].mxu0
  %v1372 = vadd.f32 %v1275, %v1371
  %v1373 = vpop.f32.mrb[0].mxu0
  %v1374 = vpop.f32.mrb[0].mxu0
  %v1375 = vadd.f32 %v1278, %v1374
  %v1376 = vpop.f32.mrb[0].mxu0
  %1377 = vmatprep.mubr.bf16.mxu0 %v486
  %1378 = vmatmul.mubr.bf16.gmra.mrb[0].mxu0 %v485
  %v1379 = vpop.f32.mrb[0].mxu0
  %v1380 = vadd.f32 %v1283, %v1379
  %v1381 = vpop.f32.mrb[0].mxu0
  %v1382 = vpop.f32.mrb[0].mxu0
  %v1383 = vadd.f32 %v1286, %v1382
  %v1384 = vpop.f32.mrb[0].mxu0
  %1385 = vmatprep.mubr.bf16.mxu0 %v495
  %1386 = vmatmul.mubr.bf16.gmra.mrb[0].mxu0 %v494
  %v1387 = vpop.f32.mrb[0].mxu0
  %v1388 = vadd.f32 %v1291, %v1387
  %v1389 = vpop.f32.mrb[0].mxu0
  %v1390 = vpop.f32.mrb[0].mxu0
  %v1391 = vadd.f32 %v1294, %v1390
  %v1392 = vpop.f32.mrb[0].mxu0
  %1393 = vmatprep.mubr.bf16.mxu0 %v504
  %1394 = vmatmul.mubr.bf16.gmra.mrb[0].mxu0 %v503
  %v1395 = vpop.f32.mrb[0].mxu0
  %v1396 = vadd.f32 %v1299, %v1395
  %v1397 = vpop.f32.mrb[0].mxu0
  %v1398 = vpop.f32.mrb[0].mxu0
  %v1399 = vadd.f32 %v1302, %v1398
  %v1400 = vpop.f32.mrb[0].mxu0
  %1401 = vmatprep.mubr.bf16.mxu0 %v513
  %1402 = vmatmul.mubr.bf16.gmra.mrb[0].mxu0 %v512
  %v1403 = vpop.f32.mrb[0].mxu0
  %v1404 = vadd.f32 %v1307, %v1403
  %v1405 = vpop.f32.mrb[0].mxu0
  %v1406 = vpop.f32.mrb[0].mxu0
  %v1407 = vadd.f32 %v1310, %v1406
  %v1408 = vpop.f32.mrb[0].mxu0
  %1409 = vmatprep.mubr.bf16.mxu0 %v522
  %1410 = vmatmul.mubr.bf16.gmra.mrb[0].mxu0 %v521
  %v1411 = vpop.f32.mrb[0].mxu0
  %v1412 = vadd.f32 %v1315, %v1411
  %v1413 = vpop.f32.mrb[0].mxu0
  %v1414 = vpop.f32.mrb[0].mxu0
  %v1415 = vadd.f32 %v1318, %v1414
  %v1416 = vpop.f32.mrb[0].mxu0
  %1417 = vmatprep.mubr.bf16.mxu0 %v531
  %1418 = vmatmul.mubr.bf16.gmra.mrb[0].mxu0 %v530
  %v1419 = vpop.f32.mrb[0].mxu0
  %v1420 = vadd.f32 %v1323, %v1419
  %v1421 = vpop.f32.mrb[0].mxu0
  %v1422 = vpop.f32.mrb[0].mxu0
  %v1423 = vadd.f32 %v1326, %v1422
  %v1424 = vpop.f32.mrb[0].mxu0
  %1425 = vmatprep.mubr.bf16.mxu0 %v540
  %1426 = vmatmul.mubr.bf16.gmra.mrb[0].mxu0 %v539
  %v1427 = vpop.f32.mrb[0].mxu0
  %v1428 = vadd.f32 %v1331, %v1427
  %v1429 = vpop.f32.mrb[0].mxu0
  %v1430 = vpop.f32.mrb[0].mxu0
  %v1431 = vadd.f32 %v1334, %v1430
  %v1432 = vpop.f32.mrb[0].mxu0
  %1433 = vdwg.mxu0
  %1434 = vmatprep.subr.bf16.mxu0 0
  %1435 = vmatpush1.bf16.msra.mxu0 %v966
  %1436 = vmatprep.subr.bf16.mxu0 0
  %1437 = vmatpush1.bf16.msra.mxu0 %v967
  %1438 = vmatprep.subr.bf16.mxu0 0
  %1439 = vmatpush1.bf16.msra.mxu0 %v968
  %1440 = vmatprep.subr.bf16.mxu0 0
  %1441 = vmatpush1.bf16.msra.mxu0 %v969
  %1442 = vmatprep.subr.bf16.mxu0 0
  %1443 = vmatpush1.bf16.msra.mxu0 %v970
  %1444 = vmatprep.subr.bf16.mxu0 0
  %1445 = vmatpush1.bf16.msra.mxu0 %v971
  %1446 = vmatprep.subr.bf16.mxu0 0
  %1447 = vmatpush1.bf16.msra.mxu0 %v972
  %1448 = vmatprep.subr.bf16.mxu0 0
  %1449 = vmatpush1.bf16.msra.mxu0 %v973
  %1450 = vmatprep.subr.bf16.mxu0 0
  %1451 = vmatpush1.bf16.msra.mxu0 0
  %1452 = vmatprep.subr.bf16.mxu0 0
  %1453 = vmatpush1.bf16.msra.mxu0 0
  %1454 = vmatprep.subr.bf16.mxu0 0
  %1455 = vmatpush1.bf16.msra.mxu0 0
  %1456 = vmatprep.subr.bf16.mxu0 0
  %1457 = vmatpush1.bf16.msra.mxu0 0
  %1458 = vmatprep.subr.bf16.mxu0 0
  %1459 = vmatpush1.bf16.msra.mxu0 0
  %1460 = vmatprep.subr.bf16.mxu0 0
  %1461 = vmatpush1.bf16.msra.mxu0 0
  %1462 = vmatprep.subr.bf16.mxu0 0
  %1463 = vmatpush1.bf16.msra.mxu0 0
  %1464 = vmatprep.subr.bf16.mxu0 0
  %1465 = vmatpush1.bf16.msra.mxu0 0
  %1466 = vmatprep.mubr.bf16.mxu0 0
  %1467 = vmatmul.mubr.bf16.gmra.mrb[0].mxu0 %v478
  %v1468 = vpop.f32.mrb[0].mxu0
  %v1469 = vadd.f32 %v1372, %v1468
  %v1470 = vpop.f32.mrb[0].mxu0
  %v1471 = vpop.f32.mrb[0].mxu0
  %v1472 = vadd.f32 %v1375, %v1471
  %v1473 = vpop.f32.mrb[0].mxu0
  %1474 = vmatprep.mubr.bf16.mxu0 0
  %1475 = vmatmul.mubr.bf16.gmra.mrb[0].mxu0 %v487
  %v1476 = vpop.f32.mrb[0].mxu0
  %v1477 = vadd.f32 %v1380, %v1476
  %v1478 = vpop.f32.mrb[0].mxu0
  %v1479 = vpop.f32.mrb[0].mxu0
  %v1480 = vadd.f32 %v1383, %v1479
  %v1481 = vpop.f32.mrb[0].mxu0
  %1482 = vmatprep.mubr.bf16.mxu0 0
  %1483 = vmatmul.mubr.bf16.gmra.mrb[0].mxu0 %v496
  %v1484 = vpop.f32.mrb[0].mxu0
  %v1485 = vadd.f32 %v1388, %v1484
  %v1486 = vpop.f32.mrb[0].mxu0
  %v1487 = vpop.f32.mrb[0].mxu0
  %v1488 = vadd.f32 %v1391, %v1487
  %v1489 = vpop.f32.mrb[0].mxu0
  %1490 = vmatprep.mubr.bf16.mxu0 0
  %1491 = vmatmul.mubr.bf16.gmra.mrb[0].mxu0 %v505
  %v1492 = vpop.f32.mrb[0].mxu0
  %v1493 = vadd.f32 %v1396, %v1492
  %v1494 = vpop.f32.mrb[0].mxu0
  %v1495 = vpop.f32.mrb[0].mxu0
  %v1496 = vadd.f32 %v1399, %v1495
  %v1497 = vpop.f32.mrb[0].mxu0
  %1498 = vmatprep.mubr.bf16.mxu0 0
  %1499 = vmatmul.mubr.bf16.gmra.mrb[0].mxu0 %v514
  %v1500 = vpop.f32.mrb[0].mxu0
  %v1501 = vadd.f32 %v1404, %v1500
  %v1502 = vpop.f32.mrb[0].mxu0
  %v1503 = vpop.f32.mrb[0].mxu0
  %v1504 = vadd.f32 %v1407, %v1503
  %v1505 = vpop.f32.mrb[0].mxu0
  %1506 = vmatprep.mubr.bf16.mxu0 0
  %1507 = vmatmul.mubr.bf16.gmra.mrb[0].mxu0 %v523
  %v1508 = vpop.f32.mrb[0].mxu0
  %v1509 = vadd.f32 %v1412, %v1508
  %v1510 = vpop.f32.mrb[0].mxu0
  %v1511 = vpop.f32.mrb[0].mxu0
  %v1512 = vadd.f32 %v1415, %v1511
  %v1513 = vpop.f32.mrb[0].mxu0
  %1514 = vmatprep.mubr.bf16.mxu0 0
  %1515 = vmatmul.mubr.bf16.gmra.mrb[0].mxu0 %v532
  %v1516 = vpop.f32.mrb[0].mxu0
  %v1517 = vadd.f32 %v1420, %v1516
  %v1518 = vpop.f32.mrb[0].mxu0
  %v1519 = vpop.f32.mrb[0].mxu0
  %v1520 = vadd.f32 %v1423, %v1519
  %v1521 = vpop.f32.mrb[0].mxu0
  %1522 = vmatprep.mubr.bf16.mxu0 0
  %1523 = vmatmul.mubr.bf16.gmra.mrb[0].mxu0 %v541
  %v1524 = vpop.f32.mrb[0].mxu0
  %v1525 = vadd.f32 %v1428, %v1524
  %v1526 = vpop.f32.mrb[0].mxu0
  %v1527 = vpop.f32.mrb[0].mxu0
  %v1528 = vadd.f32 %v1431, %v1527
  %v1529 = vpop.f32.mrb[0].mxu0
  %1530 = vdwg.mxu0
  %v1531 = vmax.f32 %v1469, 0.0
  %v1532 = vmax.f32 %v1472, 0.0
  %v1533 = vmax.f32 %v1477, 0.0
  %v1534 = vmax.f32 %v1480, 0.0
  %v1535 = vmax.f32 %v1485, 0.0
  %v1536 = vmax.f32 %v1488, 0.0
  %v1537 = vmax.f32 %v1493, 0.0
  %v1538 = vmax.f32 %v1496, 0.0
  %v1539 = vmax.f32 %v1501, 0.0
  %v1540 = vmax.f32 %v1504, 0.0
  %v1541 = vmax.f32 %v1509, 0.0
  %v1542 = vmax.f32 %v1512, 0.0
  %v1543 = vmax.f32 %v1517, 0.0
  %v1544 = vmax.f32 %v1520, 0.0
  %v1545 = vmax.f32 %v1525, 0.0
  %v1546 = vmax.f32 %v1528, 0.0
  %v1547 = vpack.c.bf16 %v1532, %v1531
  %v1548 = vpack.c.bf16 %v1534, %v1533
  %v1549 = vpack.c.bf16 %v1536, %v1535
  %v1550 = vpack.c.bf16 %v1538, %v1537
  %v1551 = vpack.c.bf16 %v1540, %v1539
  %v1552 = vpack.c.bf16 %v1542, %v1541
  %v1553 = vpack.c.bf16 %v1544, %v1543
  %v1554 = vpack.c.bf16 %v1546, %v1545
  %v1563 = vunpack.c.l.b16 %v1547
  %v1564 = vunpack.c.h.b16 %v1547
  %v1565 = vunpack.c.l.b16 %v1548
  %v1566 = vunpack.c.h.b16 %v1548
  %v1567 = vunpack.c.l.b16 %v1549
  %v1568 = vunpack.c.h.b16 %v1549
  %v1569 = vunpack.c.l.b16 %v1550
  %v1570 = vunpack.c.h.b16 %v1550
  %v1571 = vunpack.c.l.b16 %v1551
  %v1572 = vunpack.c.h.b16 %v1551
  %v1573 = vunpack.c.l.b16 %v1552
  %v1574 = vunpack.c.h.b16 %v1552
  %v1575 = vunpack.c.l.b16 %v1553
  %v1576 = vunpack.c.h.b16 %v1553
  %v1577 = vunpack.c.l.b16 %v1554
  %v1578 = vunpack.c.h.b16 %v1554
  %v1579 = vpack.c.b16 %v1563, %v1563
  %v1580 = vpack.c.b16 %v1564, %v1564
  %v1581 = vpack.c.b16 %v1565, %v1565
  %v1582 = vpack.c.b16 %v1566, %v1566
  %v1583 = vpack.c.b16 %v1567, %v1567
  %v1584 = vpack.c.b16 %v1568, %v1568
  %v1585 = vpack.c.b16 %v1569, %v1569
  %v1586 = vpack.c.b16 %v1570, %v1570
  %v1587 = vpack.c.b16 %v1571, %v1571
  %v1588 = vpack.c.b16 %v1572, %v1572
  %v1589 = vpack.c.b16 %v1573, %v1573
  %v1590 = vpack.c.b16 %v1574, %v1574
  %v1591 = vpack.c.b16 %v1575, %v1575
  %v1592 = vpack.c.b16 %v1576, %v1576
  %v1593 = vpack.c.b16 %v1577, %v1577
  %v1594 = vpack.c.b16 %v1578, %v1578
  %1611 = vst [vmem:[%s3] sm:$0xf] %v1579
  %1612 = vst [vmem:[%s3 + $0x4] sm:$0xf] %v1580
  %1613 = vst [vmem:[%s3 + $0x8] sm:$0xf] %v1581
  %1614 = vst [vmem:[%s3 + $0xc] sm:$0xf] %v1582
  %1615 = vst [vmem:[%s3 + $0x10] sm:$0xf] %v1583
  %1616 = vst [vmem:[%s3 + $0x14] sm:$0xf] %v1584
  %1617 = vst [vmem:[%s3 + $0x18] sm:$0xf] %v1585
  %1618 = vst [vmem:[%s3 + $0x1c] sm:$0xf] %v1586
  %1619 = vst [vmem:[%s3 + $0x20] sm:$0xf] %v1587
  %1620 = vst [vmem:[%s3 + $0x24] sm:$0xf] %v1588
  %1621 = vst [vmem:[%s3 + $0x28] sm:$0xf] %v1589
  %1622 = vst [vmem:[%s3 + $0x2c] sm:$0xf] %v1590
  %1623 = vst [vmem:[%s3 + $0x30] sm:$0xf] %v1591
  %1624 = vst [vmem:[%s3 + $0x34] sm:$0xf] %v1592
  %1625 = vst [vmem:[%s3 + $0x38] sm:$0xf] %v1593
  %1626 = vst [vmem:[%s3 + $0x3c] sm:$0xf] %v1594
  // Predicated region
  $region14: #{forward.5} parent=0 // pred_check
    _
  $region15: #{forward.5} parent=0 // pred_check_branch
    %1628 = sbr.rel (0) target = $region17
  $region16: #{forward.5} parent=0 // pred_region
    _
  $region17: #{forward.5} parent=0 // pred_fallthru
    _
  // Predicated region
  $region18: #{forward.5} parent=0 // pred_check
    _
  $region19: #{forward.5} parent=0 // pred_check_branch
    %1630 = sbr.rel (0) target = $region21
  $region20: #{forward.5} parent=0 // pred_region
    _
  $region21: #{forward.5} parent=0 // pred_fallthru
    _

// kernel: forward.7
$region0: #{forward.7}
  #allocation0 [shape = 'u32[]', space=smem, size = 0x4, offset = 0x4, fixed_abs, tag = 'smem constant byte address 0x4 - core index']
  #allocation1 [shape = 'u32[144,128]{1,0:T(1,128)}', space=vmem, size = 0x12000, scoped, tag = 'internal scratch']
  %s0 = inlined_call_operand.vmem [shape: bf16[48,128], index: 0, kind: input, shape index: {}]
  %s1 = inlined_call_operand.vmem [shape: bf16[128,512], index: 1, kind: input, shape index: {}]
  %s2 = inlined_call_operand.vmem [shape: bf16[128,512], index: 2, kind: input, shape index: {}]
  %s3 = inlined_call_operand.vmem [shape: f32[1,512], index: 3, kind: input, shape index: {}]
  %s4 = inlined_call_operand.vmem [shape: bf16[256,512], index: 4, kind: input, shape index: {}]
  %s5 = inlined_call_operand.vmem [shape: f32[1,512], index: 5, kind: input, shape index: {}]
  %s6 = inlined_call_operand.vmem [shape: bf16[128,128], index: 6, kind: input, shape index: {}]
  %s7 = inlined_call_operand.vmem [shape: f32[1,128], index: 7, kind: input, shape index: {}]
  %s8 = inlined_call_operand.vmem [shape: bf16[128,128], index: 8, kind: input, shape index: {}]
  %s9 = inlined_call_operand.vmem [shape: f32[1,128], index: 9, kind: input, shape index: {}]
  %s10 = inlined_call_operand.vmem [shape: f32[8,128], index: 10, kind: output, shape index: {}]
  %s11 = sld [smem:[#allocation0]]
  $region50: #{forward.7} parent=0
    _
  %s13 = ssub.s32 1, %s11
  %s14 = scalar_select 0, %s13, %s11
  // Predicated region
  $region2: #{forward.7} parent=0 // pred_check
    _
  $region3: #{forward.7} parent=0 // pred_check_branch
    %16 = sbr.rel (0) target = $region5
  $region4: #{forward.7} parent=0 // pred_region
    _
  $region5: #{forward.7} parent=0 // pred_fallthru
    _
  // Predicated region
  $region6: #{forward.7} parent=0 // pred_check
    _
  $region7: #{forward.7} parent=0 // pred_check_branch
    %18 = sbr.rel (0) target = $region9
  $region8: #{forward.7} parent=0 // pred_region
    _
  $region9: #{forward.7} parent=0 // pred_fallthru
    _
  // Predicated region
  $region10: #{forward.7} parent=0 // pred_check
    _
  $region11: #{forward.7} parent=0 // pred_check_branch
    %20 = sbr.rel (0) target = $region13
  $region12: #{forward.7} parent=0 // pred_region
    _
  $region13: #{forward.7} parent=0 // pred_fallthru
    _
  // Predicated region
  $region14: #{forward.7} parent=0 // pred_check
    _
  $region15: #{forward.7} parent=0 // pred_check_branch
    %22 = sbr.rel (0) target = $region17
  $region16: #{forward.7} parent=0 // pred_region
    _
  $region17: #{forward.7} parent=0 // pred_fallthru
    _
  // Predicated region
  $region18: #{forward.7} parent=0 // pred_check
    _
  $region19: #{forward.7} parent=0 // pred_check_branch
    %24 = sbr.rel (0) target = $region21
  $region20: #{forward.7} parent=0 // pred_region
    _
  $region21: #{forward.7} parent=0 // pred_fallthru
    _
  // Predicated region
  $region22: #{forward.7} parent=0 // pred_check
    _
  $region23: #{forward.7} parent=0 // pred_check_branch
    %26 = sbr.rel (0) target = $region25
  $region24: #{forward.7} parent=0 // pred_region
    _
  $region25: #{forward.7} parent=0 // pred_fallthru
    _
  // Predicated region
  $region26: #{forward.7} parent=0 // pred_check
    _
  $region27: #{forward.7} parent=0 // pred_check_branch
    %28 = sbr.rel (0) target = $region29
  $region28: #{forward.7} parent=0 // pred_region
    _
  $region29: #{forward.7} parent=0 // pred_fallthru
    _
  // Predicated region
  $region30: #{forward.7} parent=0 // pred_check
    _
  $region31: #{forward.7} parent=0 // pred_check_branch
    %30 = sbr.rel (0) target = $region33
  $region32: #{forward.7} parent=0 // pred_region
    _
  $region33: #{forward.7} parent=0 // pred_fallthru
    _
  // Predicated region
  $region34: #{forward.7} parent=0 // pred_check
    _
  $region35: #{forward.7} parent=0 // pred_check_branch
    %32 = sbr.rel (0) target = $region37
  $region36: #{forward.7} parent=0 // pred_region
    _
  $region37: #{forward.7} parent=0 // pred_fallthru
    _
  // Predicated region
  $region38: #{forward.7} parent=0 // pred_check
    _
  $region39: #{forward.7} parent=0 // pred_check_branch
    %34 = sbr.rel (0) target = $region41
  $region40: #{forward.7} parent=0 // pred_region
    _
  $region41: #{forward.7} parent=0 // pred_fallthru
    _
  %v36 = vld [vmem:[%s0] sm:$0xf]
  %v37 = vld [vmem:[%s0 + $0x4] sm:$0xf]
  %v38 = vld [vmem:[%s0 + $0x8] sm:$0xf]
  %v39 = vld [vmem:[%s0 + $0xc] sm:$0xf]
  %v40 = vld [vmem:[%s0 + $0x10] sm:$0xf]
  %v41 = vld [vmem:[%s0 + $0x14] sm:$0xf]
  %v42 = vld [vmem:[%s1] sm:$0xff]
  %v43 = vld [vmem:[%s1 + $0x8] sm:$0xff]
  %v44 = vld [vmem:[%s1 + $0x10] sm:$0xff]
  %v45 = vld [vmem:[%s1 + $0x18] sm:$0xff]
  %v46 = vld [vmem:[%s1 + $0x20] sm:$0xff]
  %v47 = vld [vmem:[%s1 + $0x28] sm:$0xff]
  %v48 = vld [vmem:[%s1 + $0x30] sm:$0xff]
  %v49 = vld [vmem:[%s1 + $0x38] sm:$0xff]
  %v50 = vld [vmem:[%s1 + $0x40] sm:$0xff]
  %v51 = vld [vmem:[%s1 + $0x48] sm:$0xff]
  %v52 = vld [vmem:[%s1 + $0x50] sm:$0xff]
  %v53 = vld [vmem:[%s1 + $0x58] sm:$0xff]
  %v54 = vld [vmem:[%s1 + $0x60] sm:$0xff]
  %v55 = vld [vmem:[%s1 + $0x68] sm:$0xff]
  %v56 = vld [vmem:[%s1 + $0x70] sm:$0xff]
  %v57 = vld [vmem:[%s1 + $0x78] sm:$0xff]
  %v58 = vld [vmem:[%s1 + $0x80] sm:$0xff]
  %v59 = vld [vmem:[%s1 + $0x88] sm:$0xff]
  %v60 = vld [vmem:[%s1 + $0x90] sm:$0xff]
  %v61 = vld [vmem:[%s1 + $0x98] sm:$0xff]
  %v62 = vld [vmem:[%s1 + $0xa0] sm:$0xff]
  %v63 = vld [vmem:[%s1 + $0xa8] sm:$0xff]
  %v64 = vld [vmem:[%s1 + $0xb0] sm:$0xff]
  %v65 = vld [vmem:[%s1 + $0xb8] sm:$0xff]
  %v66 = vld [vmem:[%s1 + $0xc0] sm:$0xff]
  %v67 = vld [vmem:[%s1 + $0xc8] sm:$0xff]
  %v68 = vld [vmem:[%s1 + $0xd0] sm:$0xff]
  %v69 = vld [vmem:[%s1 + $0xd8] sm:$0xff]
  %v70 = vld [vmem:[%s1 + $0xe0] sm:$0xff]
  %v71 = vld [vmem:[%s1 + $0xe8] sm:$0xff]
  %v72 = vld [vmem:[%s1 + $0xf0] sm:$0xff]
  %v73 = vld [vmem:[%s1 + $0xf8] sm:$0xff]
  %v74 = vld [vmem:[%s3] sm:$0xf]
  %v76 = vlaneseq
  %v77 = vshrl.u32 %v76, 7
  %v78 = vsub.s32 0, %v77
  %v79 = vrot.slane %v74, %v78
  %v80 = vlaneseq
  %v81 = vshrl.u32 %v80, 7
  %v82 = vsub.s32 1, %v81
  %v83 = vrot.slane %v74, %v82
  %v84 = vlaneseq
  %v85 = vshrl.u32 %v84, 7
  %v86 = vsub.s32 2, %v85
  %v87 = vrot.slane %v74, %v86
  %v88 = vlaneseq
  %v89 = vshrl.u32 %v88, 7
  %v90 = vsub.s32 3, %v89
  %v91 = vrot.slane %v74, %v90
  %v102 = vunpack.c.l.b16 %v36
  %v103 = vunpack.c.l.b16 %v37
  %v104 = vunpack.c.l.b16 %v38
  %v105 = vunpack.c.l.b16 %v39
  %v106 = vunpack.c.l.b16 %v40
  %v107 = vunpack.c.l.b16 %v41
  %v108 = vpack.c.b16 %v103, %v102
  %v109 = vpack.c.b16 %v105, %v104
  %v110 = vpack.c.b16 %v107, %v106
  %v146 = vunpack.c.l.b16 %v42
  %v147 = vunpack.c.h.b16 %v42
  %v148 = vunpack.c.l.b16 %v43
  %v149 = vunpack.c.h.b16 %v43
  %v150 = vunpack.c.l.b16 %v44
  %v151 = vunpack.c.h.b16 %v44
  %v152 = vunpack.c.l.b16 %v45
  %v153 = vunpack.c.h.b16 %v45
  %v154 = vunpack.c.l.b16 %v46
  %v155 = vunpack.c.h.b16 %v46
  %v156 = vunpack.c.l.b16 %v47
  %v157 = vunpack.c.h.b16 %v47
  %v158 = vunpack.c.l.b16 %v48
  %v159 = vunpack.c.h.b16 %v48
  %v160 = vunpack.c.l.b16 %v49
  %v161 = vunpack.c.h.b16 %v49
  %v162 = vunpack.c.l.b16 %v50
  %v163 = vunpack.c.h.b16 %v50
  %v164 = vunpack.c.l.b16 %v51
  %v165 = vunpack.c.h.b16 %v51
  %v166 = vunpack.c.l.b16 %v52
  %v167 = vunpack.c.h.b16 %v52
  %v168 = vunpack.c.l.b16 %v53
  %v169 = vunpack.c.h.b16 %v53
  %v170 = vunpack.c.l.b16 %v54
  %v171 = vunpack.c.h.b16 %v54
  %v172 = vunpack.c.l.b16 %v55
  %v173 = vunpack.c.h.b16 %v55
  %v174 = vunpack.c.l.b16 %v56
  %v175 = vunpack.c.h.b16 %v56
  %v176 = vunpack.c.l.b16 %v57
  %v177 = vunpack.c.h.b16 %v57
  %v178 = vunpack.c.l.b16 %v58
  %v179 = vunpack.c.h.b16 %v58
  %v180 = vunpack.c.l.b16 %v59
  %v181 = vunpack.c.h.b16 %v59
  %v182 = vunpack.c.l.b16 %v60
  %v183 = vunpack.c.h.b16 %v60
  %v184 = vunpack.c.l.b16 %v61
  %v185 = vunpack.c.h.b16 %v61
  %v186 = vunpack.c.l.b16 %v62
  %v187 = vunpack.c.h.b16 %v62
  %v188 = vunpack.c.l.b16 %v63
  %v189 = vunpack.c.h.b16 %v63
  %v190 = vunpack.c.l.b16 %v64
  %v191 = vunpack.c.h.b16 %v64
  %v192 = vunpack.c.l.b16 %v65
  %v193 = vunpack.c.h.b16 %v65
  %v194 = vunpack.c.l.b16 %v66
  %v195 = vunpack.c.h.b16 %v66
  %v196 = vunpack.c.l.b16 %v67
  %v197 = vunpack.c.h.b16 %v67
  %v198 = vunpack.c.l.b16 %v68
  %v199 = vunpack.c.h.b16 %v68
  %v200 = vunpack.c.l.b16 %v69
  %v201 = vunpack.c.h.b16 %v69
  %v202 = vunpack.c.l.b16 %v70
  %v203 = vunpack.c.h.b16 %v70
  %v204 = vunpack.c.l.b16 %v71
  %v205 = vunpack.c.h.b16 %v71
  %v206 = vunpack.c.l.b16 %v72
  %v207 = vunpack.c.h.b16 %v72
  %v208 = vunpack.c.l.b16 %v73
  %v209 = vunpack.c.h.b16 %v73
  %v210 = vpack.c.b16 %v150, %v146
  %v211 = vpack.c.b16 %v151, %v147
  %v212 = vpack.c.b16 %v152, %v148
  %v213 = vpack.c.b16 %v153, %v149
  %v214 = vpack.c.b16 %v158, %v154
  %v215 = vpack.c.b16 %v159, %v155
  %v216 = vpack.c.b16 %v160, %v156
  %v217 = vpack.c.b16 %v161, %v157
  %v218 = vpack.c.b16 %v166, %v162
  %v219 = vpack.c.b16 %v167, %v163
  %v220 = vpack.c.b16 %v168, %v164
  %v221 = vpack.c.b16 %v169, %v165
  %v222 = vpack.c.b16 %v174, %v170
  %v223 = vpack.c.b16 %v175, %v171
  %v224 = vpack.c.b16 %v176, %v172
  %v225 = vpack.c.b16 %v177, %v173
  %v226 = vpack.c.b16 %v182, %v178
  %v227 = vpack.c.b16 %v183, %v179
  %v228 = vpack.c.b16 %v184, %v180
  %v229 = vpack.c.b16 %v185, %v181
  %v230 = vpack.c.b16 %v190, %v186
  %v231 = vpack.c.b16 %v191, %v187
  %v232 = vpack.c.b16 %v192, %v188
  %v233 = vpack.c.b16 %v193, %v189
  %v234 = vpack.c.b16 %v198, %v194
  %v235 = vpack.c.b16 %v199, %v195
  %v236 = vpack.c.b16 %v200, %v196
  %v237 = vpack.c.b16 %v201, %v197
  %v238 = vpack.c.b16 %v206, %v202
  %v239 = vpack.c.b16 %v207, %v203
  %v240 = vpack.c.b16 %v208, %v204
  %v241 = vpack.c.b16 %v209, %v205
  %274 = vmatprep.subr.bf16.mxu0 %v211
  %275 = vmatpush1.bf16.msra.mxu0 %v210
  %276 = vmatprep.subr.bf16.mxu0 %v215
  %277 = vmatpush1.bf16.msra.mxu0 %v214
  %278 = vmatprep.subr.bf16.mxu0 %v219
  %279 = vmatpush1.bf16.msra.mxu0 %v218
  %280 = vmatprep.subr.bf16.mxu0 %v223
  %281 = vmatpush1.bf16.msra.mxu0 %v222
  %282 = vmatprep.subr.bf16.mxu0 %v227
  %283 = vmatpush1.bf16.msra.mxu0 %v226
  %284 = vmatprep.subr.bf16.mxu0 %v231
  %285 = vmatpush1.bf16.msra.mxu0 %v230
  %286 = vmatprep.subr.bf16.mxu0 %v235
  %287 = vmatpush1.bf16.msra.mxu0 %v234
  %288 = vmatprep.subr.bf16.mxu0 %v239
  %289 = vmatpush1.bf16.msra.mxu0 %v238
  %290 = vmatprep.subr.bf16.mxu0 0
  %291 = vmatpush1.bf16.msra.mxu0 0
  %292 = vmatprep.subr.bf16.mxu0 0
  %293 = vmatpush1.bf16.msra.mxu0 0
  %294 = vmatprep.subr.bf16.mxu0 0
  %295 = vmatpush1.bf16.msra.mxu0 0
  %296 = vmatprep.subr.bf16.mxu0 0
  %297 = vmatpush1.bf16.msra.mxu0 0
  %298 = vmatprep.subr.bf16.mxu0 0
  %299 = vmatpush1.bf16.msra.mxu0 0
  %300 = vmatprep.subr.bf16.mxu0 0
  %301 = vmatpush1.bf16.msra.mxu0 0
  %302 = vmatprep.subr.bf16.mxu0 0
  %303 = vmatpush1.bf16.msra.mxu0 0
  %304 = vmatprep.subr.bf16.mxu0 0
  %305 = vmatpush1.bf16.msra.mxu0 0
  %306 = vmatprep.mubr.bf16.mxu0 0
  %307 = vmatmul.mubr.bf16.gmra.mrb[0].mxu0 %v108
  %v308 = vpop.f32.mrb[0].mxu0
  %v309 = vadd.f32 %v79, %v308
  %v310 = vpop.f32.mrb[0].mxu0
  %v311 = vadd.f32 %v83, %v310
  %v312 = vpop.f32.mrb[0].mxu0
  %v313 = vadd.f32 %v79, %v312
  %v314 = vpop.f32.mrb[0].mxu0
  %v315 = vadd.f32 %v83, %v314
  %316 = vmatprep.mubr.bf16.mxu0 0
  %317 = vmatmul.mubr.bf16.gmra.mrb[0].mxu0 %v109
  %v318 = vpop.f32.mrb[0].mxu0
  %v319 = vadd.f32 %v79, %v318
  %v320 = vpop.f32.mrb[0].mxu0
  %v321 = vadd.f32 %v83, %v320
  %v322 = vpop.f32.mrb[0].mxu0
  %v323 = vadd.f32 %v79, %v322
  %v324 = vpop.f32.mrb[0].mxu0
  %v325 = vadd.f32 %v83, %v324
  %326 = vmatprep.mubr.bf16.mxu0 0
  %327 = vmatmul.mubr.bf16.gmra.mrb[0].mxu0 %v110
  %v328 = vpop.f32.mrb[0].mxu0
  %v329 = vadd.f32 %v79, %v328
  %v330 = vpop.f32.mrb[0].mxu0
  %v331 = vadd.f32 %v83, %v330
  %v332 = vpop.f32.mrb[0].mxu0
  %v333 = vadd.f32 %v79, %v332
  %v334 = vpop.f32.mrb[0].mxu0
  %v335 = vadd.f32 %v83, %v334
  %336 = vdwg.mxu0
  %337 = vmatprep.subr.bf16.mxu0 %v213
  %338 = vmatpush1.bf16.msra.mxu0 %v212
  %339 = vmatprep.subr.bf16.mxu0 %v217
  %340 = vmatpush1.bf16.msra.mxu0 %v216
  %341 = vmatprep.subr.bf16.mxu0 %v221
  %342 = vmatpush1.bf16.msra.mxu0 %v220
  %343 = vmatprep.subr.bf16.mxu0 %v225
  %344 = vmatpush1.bf16.msra.mxu0 %v224
  %345 = vmatprep.subr.bf16.mxu0 %v229
  %346 = vmatpush1.bf16.msra.mxu0 %v228
  %347 = vmatprep.subr.bf16.mxu0 %v233
  %348 = vmatpush1.bf16.msra.mxu0 %v232
  %349 = vmatprep.subr.bf16.mxu0 %v237
  %350 = vmatpush1.bf16.msra.mxu0 %v236
  %351 = vmatprep.subr.bf16.mxu0 %v241
  %352 = vmatpush1.bf16.msra.mxu0 %v240
  %353 = vmatprep.subr.bf16.mxu0 0
  %354 = vmatpush1.bf16.msra.mxu0 0
  %355 = vmatprep.subr.bf16.mxu0 0
  %356 = vmatpush1.bf16.msra.mxu0 0
  %357 = vmatprep.subr.bf16.mxu0 0
  %358 = vmatpush1.bf16.msra.mxu0 0
  %359 = vmatprep.subr.bf16.mxu0 0
  %360 = vmatpush1.bf16.msra.mxu0 0
  %361 = vmatprep.subr.bf16.mxu0 0
  %362 = vmatpush1.bf16.msra.mxu0 0
  %363 = vmatprep.subr.bf16.mxu0 0
  %364 = vmatpush1.bf16.msra.mxu0 0
  %365 = vmatprep.subr.bf16.mxu0 0
  %366 = vmatpush1.bf16.msra.mxu0 0
  %367 = vmatprep.subr.bf16.mxu0 0
  %368 = vmatpush1.bf16.msra.mxu0 0
  %369 = vmatprep.mubr.bf16.mxu0 0
  %370 = vmatmul.mubr.bf16.gmra.mrb[0].mxu0 %v108
  %v371 = vpop.f32.mrb[0].mxu0
  %v372 = vadd.f32 %v87, %v371
  %v373 = vpop.f32.mrb[0].mxu0
  %v374 = vadd.f32 %v91, %v373
  %v375 = vpop.f32.mrb[0].mxu0
  %v376 = vadd.f32 %v87, %v375
  %v377 = vpop.f32.mrb[0].mxu0
  %v378 = vadd.f32 %v91, %v377
  %379 = vmatprep.mubr.bf16.mxu0 0
  %380 = vmatmul.mubr.bf16.gmra.mrb[0].mxu0 %v109
  %v381 = vpop.f32.mrb[0].mxu0
  %v382 = vadd.f32 %v87, %v381
  %v383 = vpop.f32.mrb[0].mxu0
  %v384 = vadd.f32 %v91, %v383
  %v385 = vpop.f32.mrb[0].mxu0
  %v386 = vadd.f32 %v87, %v385
  %v387 = vpop.f32.mrb[0].mxu0
  %v388 = vadd.f32 %v91, %v387
  %389 = vmatprep.mubr.bf16.mxu0 0
  %390 = vmatmul.mubr.bf16.gmra.mrb[0].mxu0 %v110
  %v391 = vpop.f32.mrb[0].mxu0
  %v392 = vadd.f32 %v87, %v391
  %v393 = vpop.f32.mrb[0].mxu0
  %v394 = vadd.f32 %v91, %v393
  %v395 = vpop.f32.mrb[0].mxu0
  %v396 = vadd.f32 %v87, %v395
  %v397 = vpop.f32.mrb[0].mxu0
  %v398 = vadd.f32 %v91, %v397
  %399 = vdwg.mxu0
  %v400 = vld [vmem:[%s2] sm:$0xff]
  %v401 = vld [vmem:[%s2 + $0x8] sm:$0xff]
  %v402 = vld [vmem:[%s2 + $0x10] sm:$0xff]
  %v403 = vld [vmem:[%s2 + $0x18] sm:$0xff]
  %v404 = vld [vmem:[%s2 + $0x20] sm:$0xff]
  %v405 = vld [vmem:[%s2 + $0x28] sm:$0xff]
  %v406 = vld [vmem:[%s2 + $0x30] sm:$0xff]
  %v407 = vld [vmem:[%s2 + $0x38] sm:$0xff]
  %v408 = vld [vmem:[%s2 + $0x40] sm:$0xff]
  %v409 = vld [vmem:[%s2 + $0x48] sm:$0xff]
  %v410 = vld [vmem:[%s2 + $0x50] sm:$0xff]
  %v411 = vld [vmem:[%s2 + $0x58] sm:$0xff]
  %v412 = vld [vmem:[%s2 + $0x60] sm:$0xff]
  %v413 = vld [vmem:[%s2 + $0x68] sm:$0xff]
  %v414 = vld [vmem:[%s2 + $0x70] sm:$0xff]
  %v415 = vld [vmem:[%s2 + $0x78] sm:$0xff]
  %v416 = vld [vmem:[%s2 + $0x80] sm:$0xff]
  %v417 = vld [vmem:[%s2 + $0x88] sm:$0xff]
  %v418 = vld [vmem:[%s2 + $0x90] sm:$0xff]
  %v419 = vld [vmem:[%s2 + $0x98] sm:$0xff]
  %v420 = vld [vmem:[%s2 + $0xa0] sm:$0xff]
  %v421 = vld [vmem:[%s2 + $0xa8] sm:$0xff]
  %v422 = vld [vmem:[%s2 + $0xb0] sm:$0xff]
  %v423 = vld [vmem:[%s2 + $0xb8] sm:$0xff]
  %v424 = vld [vmem:[%s2 + $0xc0] sm:$0xff]
  %v425 = vld [vmem:[%s2 + $0xc8] sm:$0xff]
  %v426 = vld [vmem:[%s2 + $0xd0] sm:$0xff]
  %v427 = vld [vmem:[%s2 + $0xd8] sm:$0xff]
  %v428 = vld [vmem:[%s2 + $0xe0] sm:$0xff]
  %v429 = vld [vmem:[%s2 + $0xe8] sm:$0xff]
  %v430 = vld [vmem:[%s2 + $0xf0] sm:$0xff]
  %v431 = vld [vmem:[%s2 + $0xf8] sm:$0xff]
  %v464 = vunpack.c.l.b16 %v400
  %v465 = vunpack.c.h.b16 %v400
  %v466 = vunpack.c.l.b16 %v401
  %v467 = vunpack.c.h.b16 %v401
  %v468 = vunpack.c.l.b16 %v402
  %v469 = vunpack.c.h.b16 %v402
  %v470 = vunpack.c.l.b16 %v403
  %v471 = vunpack.c.h.b16 %v403
  %v472 = vunpack.c.l.b16 %v404
  %v473 = vunpack.c.h.b16 %v404
  %v474 = vunpack.c.l.b16 %v405
  %v475 = vunpack.c.h.b16 %v405
  %v476 = vunpack.c.l.b16 %v406
  %v477 = vunpack.c.h.b16 %v406
  %v478 = vunpack.c.l.b16 %v407
  %v479 = vunpack.c.h.b16 %v407
  %v480 = vunpack.c.l.b16 %v408
  %v481 = vunpack.c.h.b16 %v408
  %v482 = vunpack.c.l.b16 %v409
  %v483 = vunpack.c.h.b16 %v409
  %v484 = vunpack.c.l.b16 %v410
  %v485 = vunpack.c.h.b16 %v410
  %v486 = vunpack.c.l.b16 %v411
  %v487 = vunpack.c.h.b16 %v411
  %v488 = vunpack.c.l.b16 %v412
  %v489 = vunpack.c.h.b16 %v412
  %v490 = vunpack.c.l.b16 %v413
  %v491 = vunpack.c.h.b16 %v413
  %v492 = vunpack.c.l.b16 %v414
  %v493 = vunpack.c.h.b16 %v414
  %v494 = vunpack.c.l.b16 %v415
  %v495 = vunpack.c.h.b16 %v415
  %v496 = vunpack.c.l.b16 %v416
  %v497 = vunpack.c.h.b16 %v416
  %v498 = vunpack.c.l.b16 %v417
  %v499 = vunpack.c.h.b16 %v417
  %v500 = vunpack.c.l.b16 %v418
  %v501 = vunpack.c.h.b16 %v418
  %v502 = vunpack.c.l.b16 %v419
  %v503 = vunpack.c.h.b16 %v419
  %v504 = vunpack.c.l.b16 %v420
  %v505 = vunpack.c.h.b16 %v420
  %v506 = vunpack.c.l.b16 %v421
  %v507 = vunpack.c.h.b16 %v421
  %v508 = vunpack.c.l.b16 %v422
  %v509 = vunpack.c.h.b16 %v422
  %v510 = vunpack.c.l.b16 %v423
  %v511 = vunpack.c.h.b16 %v423
  %v512 = vunpack.c.l.b16 %v424
  %v513 = vunpack.c.h.b16 %v424
  %v514 = vunpack.c.l.b16 %v425
  %v515 = vunpack.c.h.b16 %v425
  %v516 = vunpack.c.l.b16 %v426
  %v517 = vunpack.c.h.b16 %v426
  %v518 = vunpack.c.l.b16 %v427
  %v519 = vunpack.c.h.b16 %v427
  %v520 = vunpack.c.l.b16 %v428
  %v521 = vunpack.c.h.b16 %v428
  %v522 = vunpack.c.l.b16 %v429
  %v523 = vunpack.c.h.b16 %v429
  %v524 = vunpack.c.l.b16 %v430
  %v525 = vunpack.c.h.b16 %v430
  %v526 = vunpack.c.l.b16 %v431
  %v527 = vunpack.c.h.b16 %v431
  %v528 = vpack.c.b16 %v468, %v464
  %v529 = vpack.c.b16 %v469, %v465
  %v530 = vpack.c.b16 %v470, %v466
  %v531 = vpack.c.b16 %v471, %v467
  %v532 = vpack.c.b16 %v476, %v472
  %v533 = vpack.c.b16 %v477, %v473
  %v534 = vpack.c.b16 %v478, %v474
  %v535 = vpack.c.b16 %v479, %v475
  %v536 = vpack.c.b16 %v484, %v480
  %v537 = vpack.c.b16 %v485, %v481
  %v538 = vpack.c.b16 %v486, %v482
  %v539 = vpack.c.b16 %v487, %v483
  %v540 = vpack.c.b16 %v492, %v488
  %v541 = vpack.c.b16 %v493, %v489
  %v542 = vpack.c.b16 %v494, %v490
  %v543 = vpack.c.b16 %v495, %v491
  %v544 = vpack.c.b16 %v500, %v496
  %v545 = vpack.c.b16 %v501, %v497
  %v546 = vpack.c.b16 %v502, %v498
  %v547 = vpack.c.b16 %v503, %v499
  %v548 = vpack.c.b16 %v508, %v504
  %v549 = vpack.c.b16 %v509, %v505
  %v550 = vpack.c.b16 %v510, %v506
  %v551 = vpack.c.b16 %v511, %v507
  %v552 = vpack.c.b16 %v516, %v512
  %v553 = vpack.c.b16 %v517, %v513
  %v554 = vpack.c.b16 %v518, %v514
  %v555 = vpack.c.b16 %v519, %v515
  %v556 = vpack.c.b16 %v524, %v520
  %v557 = vpack.c.b16 %v525, %v521
  %v558 = vpack.c.b16 %v526, %v522
  %v559 = vpack.c.b16 %v527, %v523
  %592 = vmatprep.subr.bf16.mxu0 %v529
  %593 = vmatpush1.bf16.msra.mxu0 %v528
  %594 = vmatprep.subr.bf16.mxu0 %v533
  %595 = vmatpush1.bf16.msra.mxu0 %v532
  %596 = vmatprep.subr.bf16.mxu0 %v537
  %597 = vmatpush1.bf16.msra.mxu0 %v536
  %598 = vmatprep.subr.bf16.mxu0 %v541
  %599 = vmatpush1.bf16.msra.mxu0 %v540
  %600 = vmatprep.subr.bf16.mxu0 %v545
  %601 = vmatpush1.bf16.msra.mxu0 %v544
  %602 = vmatprep.subr.bf16.mxu0 %v549
  %603 = vmatpush1.bf16.msra.mxu0 %v548
  %604 = vmatprep.subr.bf16.mxu0 %v553
  %605 = vmatpush1.bf16.msra.mxu0 %v552
  %606 = vmatprep.subr.bf16.mxu0 %v557
  %607 = vmatpush1.bf16.msra.mxu0 %v556
  %608 = vmatprep.subr.bf16.mxu0 0
  %609 = vmatpush1.bf16.msra.mxu0 0
  %610 = vmatprep.subr.bf16.mxu0 0
  %611 = vmatpush1.bf16.msra.mxu0 0
  %612 = vmatprep.subr.bf16.mxu0 0
  %613 = vmatpush1.bf16.msra.mxu0 0
  %614 = vmatprep.subr.bf16.mxu0 0
  %615 = vmatpush1.bf16.msra.mxu0 0
  %616 = vmatprep.subr.bf16.mxu0 0
  %617 = vmatpush1.bf16.msra.mxu0 0
  %618 = vmatprep.subr.bf16.mxu0 0
  %619 = vmatpush1.bf16.msra.mxu0 0
  %620 = vmatprep.subr.bf16.mxu0 0
  %621 = vmatpush1.bf16.msra.mxu0 0
  %622 = vmatprep.subr.bf16.mxu0 0
  %623 = vmatpush1.bf16.msra.mxu0 0
  %624 = vmatprep.mubr.bf16.mxu0 0
  %625 = vmatmul.mubr.bf16.gmra.mrb[0].mxu0 0
  %v626 = vpop.f32.mrb[0].mxu0
  %v627 = vadd.f32 0.0, %v626
  %v628 = vpop.f32.mrb[0].mxu0
  %v629 = vadd.f32 0.0, %v628
  %v630 = vpop.f32.mrb[0].mxu0
  %v631 = vpop.f32.mrb[0].mxu0
  %632 = vdwg.mxu0
  %633 = vmatprep.subr.bf16.mxu0 %v531
  %634 = vmatpush1.bf16.msra.mxu0 %v530
  %635 = vmatprep.subr.bf16.mxu0 %v535
  %636 = vmatpush1.bf16.msra.mxu0 %v534
  %637 = vmatprep.subr.bf16.mxu0 %v539
  %638 = vmatpush1.bf16.msra.mxu0 %v538
  %639 = vmatprep.subr.bf16.mxu0 %v543
  %640 = vmatpush1.bf16.msra.mxu0 %v542
  %641 = vmatprep.subr.bf16.mxu0 %v547
  %642 = vmatpush1.bf16.msra.mxu0 %v546
  %643 = vmatprep.subr.bf16.mxu0 %v551
  %644 = vmatpush1.bf16.msra.mxu0 %v550
  %645 = vmatprep.subr.bf16.mxu0 %v555
  %646 = vmatpush1.bf16.msra.mxu0 %v554
  %647 = vmatprep.subr.bf16.mxu0 %v559
  %648 = vmatpush1.bf16.msra.mxu0 %v558
  %649 = vmatprep.subr.bf16.mxu0 0
  %650 = vmatpush1.bf16.msra.mxu0 0
  %651 = vmatprep.subr.bf16.mxu0 0
  %652 = vmatpush1.bf16.msra.mxu0 0
  %653 = vmatprep.subr.bf16.mxu0 0
  %654 = vmatpush1.bf16.msra.mxu0 0
  %655 = vmatprep.subr.bf16.mxu0 0
  %656 = vmatpush1.bf16.msra.mxu0 0
  %657 = vmatprep.subr.bf16.mxu0 0
  %658 = vmatpush1.bf16.msra.mxu0 0
  %659 = vmatprep.subr.bf16.mxu0 0
  %660 = vmatpush1.bf16.msra.mxu0 0
  %661 = vmatprep.subr.bf16.mxu0 0
  %662 = vmatpush1.bf16.msra.mxu0 0
  %663 = vmatprep.subr.bf16.mxu0 0
  %664 = vmatpush1.bf16.msra.mxu0 0
  %665 = vmatprep.mubr.bf16.mxu0 0
  %666 = vmatmul.mubr.bf16.gmra.mrb[0].mxu0 0
  %v667 = vpop.f32.mrb[0].mxu0
  %v668 = vadd.f32 0.0, %v667
  %v669 = vpop.f32.mrb[0].mxu0
  %v670 = vadd.f32 0.0, %v669
  %v671 = vpop.f32.mrb[0].mxu0
  %v672 = vpop.f32.mrb[0].mxu0
  %673 = vdwg.mxu0
  %v674 = vadd.f32 %v309, %v627
  %v675 = vadd.f32 %v311, %v629
  %v676 = vadd.f32 %v372, %v668
  %v677 = vadd.f32 %v374, %v670
  %v678 = vxor.u32 %v674, 2147483648
  %v679 = vmul.f32 %v678, 1.442695
  %v680 = vpow.pop %v679
  %v681 = vadd.f32 %v680, 1.0
  %v682 = vrcp.pop %v681
  %v683 = vmul.f32 1.0, %v682
  %v684 = vxor.u32 %v675, 2147483648
  %v685 = vmul.f32 %v684, 1.442695
  %v686 = vpow.pop %v685
  %v687 = vadd.f32 %v686, 1.0
  %v688 = vrcp.pop %v687
  %v689 = vmul.f32 1.0, %v688
  %v690 = vtanh.pop %v676
  %v691 = vxor.u32 %v677, 2147483648
  %v692 = vmul.f32 %v691, 1.442695
  %v693 = vpow.pop %v692
  %v694 = vadd.f32 %v693, 1.0
  %v695 = vrcp.pop %v694
  %v696 = vmul.f32 1.0, %v695
  %v697 = vmul.f32 %v689, 0.0
  %v698 = vmul.f32 %v683, %v690
  %v699 = vadd.f32 %v697, %v698
  %v700 = vtanh.pop %v699
  %v701 = vmul.f32 %v696, %v700
  %v702 = vpack.c.bf16 %v701, %v701
  %v703 = vpack.c.bf16 0.0, 0.0
  %v704 = vld [vmem:[%s4] sm:$0xff]
  %v705 = vld [vmem:[%s4 + $0x8] sm:$0xff]
  %v706 = vld [vmem:[%s4 + $0x10] sm:$0xff]
  %v707 = vld [vmem:[%s4 + $0x18] sm:$0xff]
  %v708 = vld [vmem:[%s4 + $0x20] sm:$0xff]
  %v709 = vld [vmem:[%s4 + $0x28] sm:$0xff]
  %v710 = vld [vmem:[%s4 + $0x30] sm:$0xff]
  %v711 = vld [vmem:[%s4 + $0x38] sm:$0xff]
  %v712 = vld [vmem:[%s4 + $0x40] sm:$0xff]
  %v713 = vld [vmem:[%s4 + $0x48] sm:$0xff]
  %v714 = vld [vmem:[%s4 + $0x50] sm:$0xff]
  %v715 = vld [vmem:[%s4 + $0x58] sm:$0xff]
  %v716 = vld [vmem:[%s4 + $0x60] sm:$0xff]
  %v717 = vld [vmem:[%s4 + $0x68] sm:$0xff]
  %v718 = vld [vmem:[%s4 + $0x70] sm:$0xff]
  %v719 = vld [vmem:[%s4 + $0x78] sm:$0xff]
  %v720 = vld [vmem:[%s4 + $0x80] sm:$0xff]
  %v721 = vld [vmem:[%s4 + $0x88] sm:$0xff]
  %v722 = vld [vmem:[%s4 + $0x90] sm:$0xff]
  %v723 = vld [vmem:[%s4 + $0x98] sm:$0xff]
  %v724 = vld [vmem:[%s4 + $0xa0] sm:$0xff]
  %v725 = vld [vmem:[%s4 + $0xa8] sm:$0xff]
  %v726 = vld [vmem:[%s4 + $0xb0] sm:$0xff]
  %v727 = vld [vmem:[%s4 + $0xb8] sm:$0xff]
  %v728 = vld [vmem:[%s4 + $0xc0] sm:$0xff]
  %v729 = vld [vmem:[%s4 + $0xc8] sm:$0xff]
  %v730 = vld [vmem:[%s4 + $0xd0] sm:$0xff]
  %v731 = vld [vmem:[%s4 + $0xd8] sm:$0xff]
  %v732 = vld [vmem:[%s4 + $0xe0] sm:$0xff]
  %v733 = vld [vmem:[%s4 + $0xe8] sm:$0xff]
  %v734 = vld [vmem:[%s4 + $0xf0] sm:$0xff]
  %v735 = vld [vmem:[%s4 + $0xf8] sm:$0xff]
  %v736 = vld [vmem:[%s4 + $0x100] sm:$0xff]
  %v737 = vld [vmem:[%s4 + $0x108] sm:$0xff]
  %v738 = vld [vmem:[%s4 + $0x110] sm:$0xff]
  %v739 = vld [vmem:[%s4 + $0x118] sm:$0xff]
  %v740 = vld [vmem:[%s4 + $0x120] sm:$0xff]
  %v741 = vld [vmem:[%s4 + $0x128] sm:$0xff]
  %v742 = vld [vmem:[%s4 + $0x130] sm:$0xff]
  %v743 = vld [vmem:[%s4 + $0x138] sm:$0xff]
  %v744 = vld [vmem:[%s4 + $0x140] sm:$0xff]
  %v745 = vld [vmem:[%s4 + $0x148] sm:$0xff]
  %v746 = vld [vmem:[%s4 + $0x150] sm:$0xff]
  %v747 = vld [vmem:[%s4 + $0x158] sm:$0xff]
  %v748 = vld [vmem:[%s4 + $0x160] sm:$0xff]
  %v749 = vld [vmem:[%s4 + $0x168] sm:$0xff]
  %v750 = vld [vmem:[%s4 + $0x170] sm:$0xff]
  %v751 = vld [vmem:[%s4 + $0x178] sm:$0xff]
  %v752 = vld [vmem:[%s4 + $0x180] sm:$0xff]
  %v753 = vld [vmem:[%s4 + $0x188] sm:$0xff]
  %v754 = vld [vmem:[%s4 + $0x190] sm:$0xff]
  %v755 = vld [vmem:[%s4 + $0x198] sm:$0xff]
  %v756 = vld [vmem:[%s4 + $0x1a0] sm:$0xff]
  %v757 = vld [vmem:[%s4 + $0x1a8] sm:$0xff]
  %v758 = vld [vmem:[%s4 + $0x1b0] sm:$0xff]
  %v759 = vld [vmem:[%s4 + $0x1b8] sm:$0xff]
  %v760 = vld [vmem:[%s4 + $0x1c0] sm:$0xff]
  %v761 = vld [vmem:[%s4 + $0x1c8] sm:$0xff]
  %v762 = vld [vmem:[%s4 + $0x1d0] sm:$0xff]
  %v763 = vld [vmem:[%s4 + $0x1d8] sm:$0xff]
  %v764 = vld [vmem:[%s4 + $0x1e0] sm:$0xff]
  %v765 = vld [vmem:[%s4 + $0x1e8] sm:$0xff]
  %v766 = vld [vmem:[%s4 + $0x1f0] sm:$0xff]
  %v767 = vld [vmem:[%s4 + $0x1f8] sm:$0xff]
  %v768 = vld [vmem:[%s5] sm:$0xf]
  %v770 = vlaneseq
  %v771 = vshrl.u32 %v770, 7
  %v772 = vsub.s32 0, %v771
  %v773 = vrot.slane %v768, %v772
  %v774 = vlaneseq
  %v775 = vshrl.u32 %v774, 7
  %v776 = vsub.s32 1, %v775
  %v777 = vrot.slane %v768, %v776
  %v778 = vlaneseq
  %v779 = vshrl.u32 %v778, 7
  %v780 = vsub.s32 2, %v779
  %v781 = vrot.slane %v768, %v780
  %v782 = vlaneseq
  %v783 = vshrl.u32 %v782, 7
  %v784 = vsub.s32 3, %v783
  %v785 = vrot.slane %v768, %v784
  %v854 = vunpack.c.l.b16 %v704
  %v855 = vunpack.c.h.b16 %v704
  %v856 = vunpack.c.l.b16 %v705
  %v857 = vunpack.c.h.b16 %v705
  %v858 = vunpack.c.l.b16 %v706
  %v859 = vunpack.c.h.b16 %v706
  %v860 = vunpack.c.l.b16 %v707
  %v861 = vunpack.c.h.b16 %v707
  %v862 = vunpack.c.l.b16 %v708
  %v863 = vunpack.c.h.b16 %v708
  %v864 = vunpack.c.l.b16 %v709
  %v865 = vunpack.c.h.b16 %v709
  %v866 = vunpack.c.l.b16 %v710
  %v867 = vunpack.c.h.b16 %v710
  %v868 = vunpack.c.l.b16 %v711
  %v869 = vunpack.c.h.b16 %v711
  %v870 = vunpack.c.l.b16 %v712
  %v871 = vunpack.c.h.b16 %v712
  %v872 = vunpack.c.l.b16 %v713
  %v873 = vunpack.c.h.b16 %v713
  %v874 = vunpack.c.l.b16 %v714
  %v875 = vunpack.c.h.b16 %v714
  %v876 = vunpack.c.l.b16 %v715
  %v877 = vunpack.c.h.b16 %v715
  %v878 = vunpack.c.l.b16 %v716
  %v879 = vunpack.c.h.b16 %v716
  %v880 = vunpack.c.l.b16 %v717
  %v881 = vunpack.c.h.b16 %v717
  %v882 = vunpack.c.l.b16 %v718
  %v883 = vunpack.c.h.b16 %v718
  %v884 = vunpack.c.l.b16 %v719
  %v885 = vunpack.c.h.b16 %v719
  %v886 = vunpack.c.l.b16 %v720
  %v887 = vunpack.c.h.b16 %v720
  %v888 = vunpack.c.l.b16 %v721
  %v889 = vunpack.c.h.b16 %v721
  %v890 = vunpack.c.l.b16 %v722
  %v891 = vunpack.c.h.b16 %v722
  %v892 = vunpack.c.l.b16 %v723
  %v893 = vunpack.c.h.b16 %v723
  %v894 = vunpack.c.l.b16 %v724
  %v895 = vunpack.c.h.b16 %v724
  %v896 = vunpack.c.l.b16 %v725
  %v897 = vunpack.c.h.b16 %v725
  %v898 = vunpack.c.l.b16 %v726
  %v899 = vunpack.c.h.b16 %v726
  %v900 = vunpack.c.l.b16 %v727
  %v901 = vunpack.c.h.b16 %v727
  %v902 = vunpack.c.l.b16 %v728
  %v903 = vunpack.c.h.b16 %v728
  %v904 = vunpack.c.l.b16 %v729
  %v905 = vunpack.c.h.b16 %v729
  %v906 = vunpack.c.l.b16 %v730
  %v907 = vunpack.c.h.b16 %v730
  %v908 = vunpack.c.l.b16 %v731
  %v909 = vunpack.c.h.b16 %v731
  %v910 = vunpack.c.l.b16 %v732
  %v911 = vunpack.c.h.b16 %v732
  %v912 = vunpack.c.l.b16 %v733
  %v913 = vunpack.c.h.b16 %v733
  %v914 = vunpack.c.l.b16 %v734
  %v915 = vunpack.c.h.b16 %v734
  %v916 = vunpack.c.l.b16 %v735
  %v917 = vunpack.c.h.b16 %v735
  %v918 = vunpack.c.l.b16 %v736
  %v919 = vunpack.c.h.b16 %v736
  %v920 = vunpack.c.l.b16 %v737
  %v921 = vunpack.c.h.b16 %v737
  %v922 = vunpack.c.l.b16 %v738
  %v923 = vunpack.c.h.b16 %v738
  %v924 = vunpack.c.l.b16 %v739
  %v925 = vunpack.c.h.b16 %v739
  %v926 = vunpack.c.l.b16 %v740
  %v927 = vunpack.c.h.b16 %v740
  %v928 = vunpack.c.l.b16 %v741
  %v929 = vunpack.c.h.b16 %v741
  %v930 = vunpack.c.l.b16 %v742
  %v931 = vunpack.c.h.b16 %v742
  %v932 = vunpack.c.l.b16 %v743
  %v933 = vunpack.c.h.b16 %v743
  %v934 = vunpack.c.l.b16 %v744
  %v935 = vunpack.c.h.b16 %v744
  %v936 = vunpack.c.l.b16 %v745
  %v937 = vunpack.c.h.b16 %v745
  %v938 = vunpack.c.l.b16 %v746
  %v939 = vunpack.c.h.b16 %v746
  %v940 = vunpack.c.l.b16 %v747
  %v941 = vunpack.c.h.b16 %v747
  %v942 = vunpack.c.l.b16 %v748
  %v943 = vunpack.c.h.b16 %v748
  %v944 = vunpack.c.l.b16 %v749
  %v945 = vunpack.c.h.b16 %v749
  %v946 = vunpack.c.l.b16 %v750
  %v947 = vunpack.c.h.b16 %v750
  %v948 = vunpack.c.l.b16 %v751
  %v949 = vunpack.c.h.b16 %v751
  %v950 = vunpack.c.l.b16 %v752
  %v951 = vunpack.c.h.b16 %v752
  %v952 = vunpack.c.l.b16 %v753
  %v953 = vunpack.c.h.b16 %v753
  %v954 = vunpack.c.l.b16 %v754
  %v955 = vunpack.c.h.b16 %v754
  %v956 = vunpack.c.l.b16 %v755
  %v957 = vunpack.c.h.b16 %v755
  %v958 = vunpack.c.l.b16 %v756
  %v959 = vunpack.c.h.b16 %v756
  %v960 = vunpack.c.l.b16 %v757
  %v961 = vunpack.c.h.b16 %v757
  %v962 = vunpack.c.l.b16 %v758
  %v963 = vunpack.c.h.b16 %v758
  %v964 = vunpack.c.l.b16 %v759
  %v965 = vunpack.c.h.b16 %v759
  %v966 = vunpack.c.l.b16 %v760
  %v967 = vunpack.c.h.b16 %v760
  %v968 = vunpack.c.l.b16 %v761
  %v969 = vunpack.c.h.b16 %v761
  %v970 = vunpack.c.l.b16 %v762
  %v971 = vunpack.c.h.b16 %v762
  %v972 = vunpack.c.l.b16 %v763
  %v973 = vunpack.c.h.b16 %v763
  %v974 = vunpack.c.l.b16 %v764
  %v975 = vunpack.c.h.b16 %v764
  %v976 = vunpack.c.l.b16 %v765
  %v977 = vunpack.c.h.b16 %v765
  %v978 = vunpack.c.l.b16 %v766
  %v979 = vunpack.c.h.b16 %v766
  %v980 = vunpack.c.l.b16 %v767
  %v981 = vunpack.c.h.b16 %v767
  %v982 = vpack.c.b16 %v858, %v854
  %v983 = vpack.c.b16 %v859, %v855
  %v984 = vpack.c.b16 %v860, %v856
  %v985 = vpack.c.b16 %v861, %v857
  %v986 = vpack.c.b16 %v866, %v862
  %v987 = vpack.c.b16 %v867, %v863
  %v988 = vpack.c.b16 %v868, %v864
  %v989 = vpack.c.b16 %v869, %v865
  %v990 = vpack.c.b16 %v874, %v870
  %v991 = vpack.c.b16 %v875, %v871
  %v992 = vpack.c.b16 %v876, %v872
  %v993 = vpack.c.b16 %v877, %v873
  %v994 = vpack.c.b16 %v882, %v878
  %v995 = vpack.c.b16 %v883, %v879
  %v996 = vpack.c.b16 %v884, %v880
  %v997 = vpack.c.b16 %v885, %v881
  %v998 = vpack.c.b16 %v890, %v886
  %v999 = vpack.c.b16 %v891, %v887
  %v1000 = vpack.c.b16 %v892, %v888
  %v1001 = vpack.c.b16 %v893, %v889
  %v1002 = vpack.c.b16 %v898, %v894
  %v1003 = vpack.c.b16 %v899, %v895
  %v1004 = vpack.c.b16 %v900, %v896
  %v1005 = vpack.c.b16 %v901, %v897
  %v1006 = vpack.c.b16 %v906, %v902
  %v1007 = vpack.c.b16 %v907, %v903
  %v1008 = vpack.c.b16 %v908, %v904
  %v1009 = vpack.c.b16 %v909, %v905
  %v1010 = vpack.c.b16 %v914, %v910
  %v1011 = vpack.c.b16 %v915, %v911
  %v1012 = vpack.c.b16 %v916, %v912
  %v1013 = vpack.c.b16 %v917, %v913
  %v1014 = vpack.c.b16 %v922, %v918
  %v1015 = vpack.c.b16 %v923, %v919
  %v1016 = vpack.c.b16 %v924, %v920
  %v1017 = vpack.c.b16 %v925, %v921
  %v1018 = vpack.c.b16 %v930, %v926
  %v1019 = vpack.c.b16 %v931, %v927
  %v1020 = vpack.c.b16 %v932, %v928
  %v1021 = vpack.c.b16 %v933, %v929
  %v1022 = vpack.c.b16 %v938, %v934
  %v1023 = vpack.c.b16 %v939, %v935
  %v1024 = vpack.c.b16 %v940, %v936
  %v1025 = vpack.c.b16 %v941, %v937
  %v1026 = vpack.c.b16 %v946, %v942
  %v1027 = vpack.c.b16 %v947, %v943
  %v1028 = vpack.c.b16 %v948, %v944
  %v1029 = vpack.c.b16 %v949, %v945
  %v1030 = vpack.c.b16 %v954, %v950
  %v1031 = vpack.c.b16 %v955, %v951
  %v1032 = vpack.c.b16 %v956, %v952
  %v1033 = vpack.c.b16 %v957, %v953
  %v1034 = vpack.c.b16 %v962, %v958
  %v1035 = vpack.c.b16 %v963, %v959
  %v1036 = vpack.c.b16 %v964, %v960
  %v1037 = vpack.c.b16 %v965, %v961
  %v1038 = vpack.c.b16 %v970, %v966
  %v1039 = vpack.c.b16 %v971, %v967
  %v1040 = vpack.c.b16 %v972, %v968
  %v1041 = vpack.c.b16 %v973, %v969
  %v1042 = vpack.c.b16 %v978, %v974
  %v1043 = vpack.c.b16 %v979, %v975
  %v1044 = vpack.c.b16 %v980, %v976
  %v1045 = vpack.c.b16 %v981, %v977
  %1110 = vmatprep.subr.bf16.mxu0 %v983
  %1111 = vmatpush1.bf16.msra.mxu0 %v982
  %1112 = vmatprep.subr.bf16.mxu0 %v987
  %1113 = vmatpush1.bf16.msra.mxu0 %v986
  %1114 = vmatprep.subr.bf16.mxu0 %v991
  %1115 = vmatpush1.bf16.msra.mxu0 %v990
  %1116 = vmatprep.subr.bf16.mxu0 %v995
  %1117 = vmatpush1.bf16.msra.mxu0 %v994
  %1118 = vmatprep.subr.bf16.mxu0 %v999
  %1119 = vmatpush1.bf16.msra.mxu0 %v998
  %1120 = vmatprep.subr.bf16.mxu0 %v1003
  %1121 = vmatpush1.bf16.msra.mxu0 %v1002
  %1122 = vmatprep.subr.bf16.mxu0 %v1007
  %1123 = vmatpush1.bf16.msra.mxu0 %v1006
  %1124 = vmatprep.subr.bf16.mxu0 %v1011
  %1125 = vmatpush1.bf16.msra.mxu0 %v1010
  %1126 = vmatprep.subr.bf16.mxu0 %v1015
  %1127 = vmatpush1.bf16.msra.mxu0 %v1014
  %1128 = vmatprep.subr.bf16.mxu0 %v1019
  %1129 = vmatpush1.bf16.msra.mxu0 %v1018
  %1130 = vmatprep.subr.bf16.mxu0 %v1023
  %1131 = vmatpush1.bf16.msra.mxu0 %v1022
  %1132 = vmatprep.subr.bf16.mxu0 %v1027
  %1133 = vmatpush1.bf16.msra.mxu0 %v1026
  %1134 = vmatprep.subr.bf16.mxu0 %v1031
  %1135 = vmatpush1.bf16.msra.mxu0 %v1030
  %1136 = vmatprep.subr.bf16.mxu0 %v1035
  %1137 = vmatpush1.bf16.msra.mxu0 %v1034
  %1138 = vmatprep.subr.bf16.mxu0 %v1039
  %1139 = vmatpush1.bf16.msra.mxu0 %v1038
  %1140 = vmatprep.subr.bf16.mxu0 %v1043
  %1141 = vmatpush1.bf16.msra.mxu0 %v1042
  %1142 = vmatprep.mubr.bf16.mxu0 %v703
  %1143 = vmatmul.mubr.bf16.gmra.mrb[0].mxu0 %v702
  %v1144 = vpop.f32.mrb[0].mxu0
  %v1145 = vadd.f32 %v773, %v1144
  %v1146 = vpop.f32.mrb[0].mxu0
  %v1147 = vadd.f32 %v777, %v1146
  %v1148 = vpop.f32.mrb[0].mxu0
  %v1149 = vpop.f32.mrb[0].mxu0
  %1150 = vdwg.mxu0
  %1151 = vmatprep.subr.bf16.mxu0 %v985
  %1152 = vmatpush1.bf16.msra.mxu0 %v984
  %1153 = vmatprep.subr.bf16.mxu0 %v989
  %1154 = vmatpush1.bf16.msra.mxu0 %v988
  %1155 = vmatprep.subr.bf16.mxu0 %v993
  %1156 = vmatpush1.bf16.msra.mxu0 %v992
  %1157 = vmatprep.subr.bf16.mxu0 %v997
  %1158 = vmatpush1.bf16.msra.mxu0 %v996
  %1159 = vmatprep.subr.bf16.mxu0 %v1001
  %1160 = vmatpush1.bf16.msra.mxu0 %v1000
  %1161 = vmatprep.subr.bf16.mxu0 %v1005
  %1162 = vmatpush1.bf16.msra.mxu0 %v1004
  %1163 = vmatprep.subr.bf16.mxu0 %v1009
  %1164 = vmatpush1.bf16.msra.mxu0 %v1008
  %1165 = vmatprep.subr.bf16.mxu0 %v1013
  %1166 = vmatpush1.bf16.msra.mxu0 %v1012
  %1167 = vmatprep.subr.bf16.mxu0 %v1017
  %1168 = vmatpush1.bf16.msra.mxu0 %v1016
  %1169 = vmatprep.subr.bf16.mxu0 %v1021
  %1170 = vmatpush1.bf16.msra.mxu0 %v1020
  %1171 = vmatprep.subr.bf16.mxu0 %v1025
  %1172 = vmatpush1.bf16.msra.mxu0 %v1024
  %1173 = vmatprep.subr.bf16.mxu0 %v1029
  %1174 = vmatpush1.bf16.msra.mxu0 %v1028
  %1175 = vmatprep.subr.bf16.mxu0 %v1033
  %1176 = vmatpush1.bf16.msra.mxu0 %v1032
  %1177 = vmatprep.subr.bf16.mxu0 %v1037
  %1178 = vmatpush1.bf16.msra.mxu0 %v1036
  %1179 = vmatprep.subr.bf16.mxu0 %v1041
  %1180 = vmatpush1.bf16.msra.mxu0 %v1040
  %1181 = vmatprep.subr.bf16.mxu0 %v1045
  %1182 = vmatpush1.bf16.msra.mxu0 %v1044
  %1183 = vmatprep.mubr.bf16.mxu0 %v703
  %1184 = vmatmul.mubr.bf16.gmra.mrb[0].mxu0 %v702
  %v1185 = vpop.f32.mrb[0].mxu0
  %v1186 = vadd.f32 %v781, %v1185
  %v1187 = vpop.f32.mrb[0].mxu0
  %v1188 = vadd.f32 %v785, %v1187
  %v1189 = vpop.f32.mrb[0].mxu0
  %v1190 = vpop.f32.mrb[0].mxu0
  %1191 = vdwg.mxu0
  %v1192 = vxor.u32 %v1145, 2147483648
  %v1193 = vmul.f32 %v1192, 1.442695
  %v1194 = vpow.pop %v1193
  %v1195 = vadd.f32 %v1194, 1.0
  %v1196 = vrcp.pop %v1195
  %v1197 = vmul.f32 1.0, %v1196
  %v1198 = vxor.u32 %v1147, 2147483648
  %v1199 = vmul.f32 %v1198, 1.442695
  %v1200 = vpow.pop %v1199
  %v1201 = vadd.f32 %v1200, 1.0
  %v1202 = vrcp.pop %v1201
  %v1203 = vmul.f32 1.0, %v1202
  %v1204 = vtanh.pop %v1186
  %v1205 = vxor.u32 %v1188, 2147483648
  %v1206 = vmul.f32 %v1205, 1.442695
  %v1207 = vpow.pop %v1206
  %v1208 = vadd.f32 %v1207, 1.0
  %v1209 = vrcp.pop %v1208
  %v1210 = vmul.f32 1.0, %v1209
  %v1211 = vmul.f32 %v1203, 0.0
  %v1212 = vmul.f32 %v1197, %v1204
  %v1213 = vadd.f32 %v1211, %v1212
  %v1214 = vtanh.pop %v1213
  %v1215 = vmul.f32 %v1210, %v1214
  %1216 = vmatprep.subr.bf16.mxu0 %v529
  %1217 = vmatpush1.bf16.msra.mxu0 %v528
  %1218 = vmatprep.subr.bf16.mxu0 %v533
  %1219 = vmatpush1.bf16.msra.mxu0 %v532
  %1220 = vmatprep.subr.bf16.mxu0 %v537
  %1221 = vmatpush1.bf16.msra.mxu0 %v536
  %1222 = vmatprep.subr.bf16.mxu0 %v541
  %1223 = vmatpush1.bf16.msra.mxu0 %v540
  %1224 = vmatprep.subr.bf16.mxu0 %v545
  %1225 = vmatpush1.bf16.msra.mxu0 %v544
  %1226 = vmatprep.subr.bf16.mxu0 %v549
  %1227 = vmatpush1.bf16.msra.mxu0 %v548
  %1228 = vmatprep.subr.bf16.mxu0 %v553
  %1229 = vmatpush1.bf16.msra.mxu0 %v552
  %1230 = vmatprep.subr.bf16.mxu0 %v557
  %1231 = vmatpush1.bf16.msra.mxu0 %v556
  %1232 = vmatprep.subr.bf16.mxu0 0
  %1233 = vmatpush1.bf16.msra.mxu0 0
  %1234 = vmatprep.subr.bf16.mxu0 0
  %1235 = vmatpush1.bf16.msra.mxu0 0
  %1236 = vmatprep.subr.bf16.mxu0 0
  %1237 = vmatpush1.bf16.msra.mxu0 0
  %1238 = vmatprep.subr.bf16.mxu0 0
  %1239 = vmatpush1.bf16.msra.mxu0 0
  %1240 = vmatprep.subr.bf16.mxu0 0
  %1241 = vmatpush1.bf16.msra.mxu0 0
  %1242 = vmatprep.subr.bf16.mxu0 0
  %1243 = vmatpush1.bf16.msra.mxu0 0
  %1244 = vmatprep.subr.bf16.mxu0 0
  %1245 = vmatpush1.bf16.msra.mxu0 0
  %1246 = vmatprep.subr.bf16.mxu0 0
  %1247 = vmatpush1.bf16.msra.mxu0 0
  %1248 = vmatprep.mubr.bf16.mxu0 0
  %1249 = vmatmul.mubr.bf16.gmra.mrb[0].mxu0 %v702
  %v1250 = vpop.f32.mrb[0].mxu0
  %v1251 = vadd.f32 0.0, %v1250
  %v1252 = vpop.f32.mrb[0].mxu0
  %v1253 = vadd.f32 0.0, %v1252
  %v1254 = vpop.f32.mrb[0].mxu0
  %v1255 = vpop.f32.mrb[0].mxu0
  %1256 = vdwg.mxu0
  %1257 = vmatprep.subr.bf16.mxu0 %v531
  %1258 = vmatpush1.bf16.msra.mxu0 %v530
  %1259 = vmatprep.subr.bf16.mxu0 %v535
  %1260 = vmatpush1.bf16.msra.mxu0 %v534
  %1261 = vmatprep.subr.bf16.mxu0 %v539
  %1262 = vmatpush1.bf16.msra.mxu0 %v538
  %1263 = vmatprep.subr.bf16.mxu0 %v543
  %1264 = vmatpush1.bf16.msra.mxu0 %v542
  %1265 = vmatprep.subr.bf16.mxu0 %v547
  %1266 = vmatpush1.bf16.msra.mxu0 %v546
  %1267 = vmatprep.subr.bf16.mxu0 %v551
  %1268 = vmatpush1.bf16.msra.mxu0 %v550
  %1269 = vmatprep.subr.bf16.mxu0 %v555
  %1270 = vmatpush1.bf16.msra.mxu0 %v554
  %1271 = vmatprep.subr.bf16.mxu0 %v559
  %1272 = vmatpush1.bf16.msra.mxu0 %v558
  %1273 = vmatprep.subr.bf16.mxu0 0
  %1274 = vmatpush1.bf16.msra.mxu0 0
  %1275 = vmatprep.subr.bf16.mxu0 0
  %1276 = vmatpush1.bf16.msra.mxu0 0
  %1277 = vmatprep.subr.bf16.mxu0 0
  %1278 = vmatpush1.bf16.msra.mxu0 0
  %1279 = vmatprep.subr.bf16.mxu0 0
  %1280 = vmatpush1.bf16.msra.mxu0 0
  %1281 = vmatprep.subr.bf16.mxu0 0
  %1282 = vmatpush1.bf16.msra.mxu0 0
  %1283 = vmatprep.subr.bf16.mxu0 0
  %1284 = vmatpush1.bf16.msra.mxu0 0
  %1285 = vmatprep.subr.bf16.mxu0 0
  %1286 = vmatpush1.bf16.msra.mxu0 0
  %1287 = vmatprep.subr.bf16.mxu0 0
  %1288 = vmatpush1.bf16.msra.mxu0 0
  %1289 = vmatprep.mubr.bf16.mxu0 0
  %1290 = vmatmul.mubr.bf16.gmra.mrb[0].mxu0 %v702
  %v1291 = vpop.f32.mrb[0].mxu0
  %v1292 = vadd.f32 0.0, %v1291
  %v1293 = vpop.f32.mrb[0].mxu0
  %v1294 = vadd.f32 0.0, %v1293
  %v1295 = vpop.f32.mrb[0].mxu0
  %v1296 = vpop.f32.mrb[0].mxu0
  %1297 = vdwg.mxu0
  %v1298 = vadd.f32 %v313, %v1251
  %v1299 = vadd.f32 %v315, %v1253
  %v1300 = vadd.f32 %v376, %v1292
  %v1301 = vadd.f32 %v378, %v1294
  %v1302 = vxor.u32 %v1298, 2147483648
  %v1303 = vmul.f32 %v1302, 1.442695
  %v1304 = vpow.pop %v1303
  %v1305 = vadd.f32 %v1304, 1.0
  %v1306 = vrcp.pop %v1305
  %v1307 = vmul.f32 1.0, %v1306
  %v1308 = vxor.u32 %v1299, 2147483648
  %v1309 = vmul.f32 %v1308, 1.442695
  %v1310 = vpow.pop %v1309
  %v1311 = vadd.f32 %v1310, 1.0
  %v1312 = vrcp.pop %v1311
  %v1313 = vmul.f32 1.0, %v1312
  %v1314 = vtanh.pop %v1300
  %v1315 = vxor.u32 %v1301, 2147483648
  %v1316 = vmul.f32 %v1315, 1.442695
  %v1317 = vpow.pop %v1316
  %v1318 = vadd.f32 %v1317, 1.0
  %v1319 = vrcp.pop %v1318
  %v1320 = vmul.f32 1.0, %v1319
  %v1321 = vmul.f32 %v1313, %v699
  %v1322 = vmul.f32 %v1307, %v1314
  %v1323 = vadd.f32 %v1321, %v1322
  %v1324 = vtanh.pop %v1323
  %v1325 = vmul.f32 %v1320, %v1324
  %v1326 = vpack.c.bf16 %v1325, %v1325
  %v1327 = vpack.c.bf16 %v1215, %v1215
  %1328 = vmatprep.subr.bf16.mxu0 %v983
  %1329 = vmatpush1.bf16.msra.mxu0 %v982
  %1330 = vmatprep.subr.bf16.mxu0 %v987
  %1331 = vmatpush1.bf16.msra.mxu0 %v986
  %1332 = vmatprep.subr.bf16.mxu0 %v991
  %1333 = vmatpush1.bf16.msra.mxu0 %v990
  %1334 = vmatprep.subr.bf16.mxu0 %v995
  %1335 = vmatpush1.bf16.msra.mxu0 %v994
  %1336 = vmatprep.subr.bf16.mxu0 %v999
  %1337 = vmatpush1.bf16.msra.mxu0 %v998
  %1338 = vmatprep.subr.bf16.mxu0 %v1003
  %1339 = vmatpush1.bf16.msra.mxu0 %v1002
  %1340 = vmatprep.subr.bf16.mxu0 %v1007
  %1341 = vmatpush1.bf16.msra.mxu0 %v1006
  %1342 = vmatprep.subr.bf16.mxu0 %v1011
  %1343 = vmatpush1.bf16.msra.mxu0 %v1010
  %1344 = vmatprep.subr.bf16.mxu0 %v1015
  %1345 = vmatpush1.bf16.msra.mxu0 %v1014
  %1346 = vmatprep.subr.bf16.mxu0 %v1019
  %1347 = vmatpush1.bf16.msra.mxu0 %v1018
  %1348 = vmatprep.subr.bf16.mxu0 %v1023
  %1349 = vmatpush1.bf16.msra.mxu0 %v1022
  %1350 = vmatprep.subr.bf16.mxu0 %v1027
  %1351 = vmatpush1.bf16.msra.mxu0 %v1026
  %1352 = vmatprep.subr.bf16.mxu0 %v1031
  %1353 = vmatpush1.bf16.msra.mxu0 %v1030
  %1354 = vmatprep.subr.bf16.mxu0 %v1035
  %1355 = vmatpush1.bf16.msra.mxu0 %v1034
  %1356 = vmatprep.subr.bf16.mxu0 %v1039
  %1357 = vmatpush1.bf16.msra.mxu0 %v1038
  %1358 = vmatprep.subr.bf16.mxu0 %v1043
  %1359 = vmatpush1.bf16.msra.mxu0 %v1042
  %1360 = vmatprep.mubr.bf16.mxu0 %v1327
  %1361 = vmatmul.mubr.bf16.gmra.mrb[0].mxu0 %v1326
  %v1362 = vpop.f32.mrb[0].mxu0
  %v1363 = vadd.f32 %v773, %v1362
  %v1364 = vpop.f32.mrb[0].mxu0
  %v1365 = vadd.f32 %v777, %v1364
  %v1366 = vpop.f32.mrb[0].mxu0
  %v1367 = vpop.f32.mrb[0].mxu0
  %1368 = vdwg.mxu0
  %1369 = vmatprep.subr.bf16.mxu0 %v985
  %1370 = vmatpush1.bf16.msra.mxu0 %v984
  %1371 = vmatprep.subr.bf16.mxu0 %v989
  %1372 = vmatpush1.bf16.msra.mxu0 %v988
  %1373 = vmatprep.subr.bf16.mxu0 %v993
  %1374 = vmatpush1.bf16.msra.mxu0 %v992
  %1375 = vmatprep.subr.bf16.mxu0 %v997
  %1376 = vmatpush1.bf16.msra.mxu0 %v996
  %1377 = vmatprep.subr.bf16.mxu0 %v1001
  %1378 = vmatpush1.bf16.msra.mxu0 %v1000
  %1379 = vmatprep.subr.bf16.mxu0 %v1005
  %1380 = vmatpush1.bf16.msra.mxu0 %v1004
  %1381 = vmatprep.subr.bf16.mxu0 %v1009
  %1382 = vmatpush1.bf16.msra.mxu0 %v1008
  %1383 = vmatprep.subr.bf16.mxu0 %v1013
  %1384 = vmatpush1.bf16.msra.mxu0 %v1012
  %1385 = vmatprep.subr.bf16.mxu0 %v1017
  %1386 = vmatpush1.bf16.msra.mxu0 %v1016
  %1387 = vmatprep.subr.bf16.mxu0 %v1021
  %1388 = vmatpush1.bf16.msra.mxu0 %v1020
  %1389 = vmatprep.subr.bf16.mxu0 %v1025
  %1390 = vmatpush1.bf16.msra.mxu0 %v1024
  %1391 = vmatprep.subr.bf16.mxu0 %v1029
  %1392 = vmatpush1.bf16.msra.mxu0 %v1028
  %1393 = vmatprep.subr.bf16.mxu0 %v1033
  %1394 = vmatpush1.bf16.msra.mxu0 %v1032
  %1395 = vmatprep.subr.bf16.mxu0 %v1037
  %1396 = vmatpush1.bf16.msra.mxu0 %v1036
  %1397 = vmatprep.subr.bf16.mxu0 %v1041
  %1398 = vmatpush1.bf16.msra.mxu0 %v1040
  %1399 = vmatprep.subr.bf16.mxu0 %v1045
  %1400 = vmatpush1.bf16.msra.mxu0 %v1044
  %1401 = vmatprep.mubr.bf16.mxu0 %v1327
  %1402 = vmatmul.mubr.bf16.gmra.mrb[0].mxu0 %v1326
  %v1403 = vpop.f32.mrb[0].mxu0
  %v1404 = vadd.f32 %v781, %v1403
  %v1405 = vpop.f32.mrb[0].mxu0
  %v1406 = vadd.f32 %v785, %v1405
  %v1407 = vpop.f32.mrb[0].mxu0
  %v1408 = vpop.f32.mrb[0].mxu0
  %1409 = vdwg.mxu0
  %v1410 = vxor.u32 %v1363, 2147483648
  %v1411 = vmul.f32 %v1410, 1.442695
  %v1412 = vpow.pop %v1411
  %v1413 = vadd.f32 %v1412, 1.0
  %v1414 = vrcp.pop %v1413
  %v1415 = vmul.f32 1.0, %v1414
  %v1416 = vxor.u32 %v1365, 2147483648
  %v1417 = vmul.f32 %v1416, 1.442695
  %v1418 = vpow.pop %v1417
  %v1419 = vadd.f32 %v1418, 1.0
  %v1420 = vrcp.pop %v1419
  %v1421 = vmul.f32 1.0, %v1420
  %v1422 = vtanh.pop %v1404
  %v1423 = vxor.u32 %v1406, 2147483648
  %v1424 = vmul.f32 %v1423, 1.442695
  %v1425 = vpow.pop %v1424
  %v1426 = vadd.f32 %v1425, 1.0
  %v1427 = vrcp.pop %v1426
  %v1428 = vmul.f32 1.0, %v1427
  %v1429 = vmul.f32 %v1421, %v1213
  %v1430 = vmul.f32 %v1415, %v1422
  %v1431 = vadd.f32 %v1429, %v1430
  %v1432 = vtanh.pop %v1431
  %v1433 = vmul.f32 %v1428, %v1432
  %1434 = vmatprep.subr.bf16.mxu0 %v529
  %1435 = vmatpush1.bf16.msra.mxu0 %v528
  %1436 = vmatprep.subr.bf16.mxu0 %v533
  %1437 = vmatpush1.bf16.msra.mxu0 %v532
  %1438 = vmatprep.subr.bf16.mxu0 %v537
  %1439 = vmatpush1.bf16.msra.mxu0 %v536
  %1440 = vmatprep.subr.bf16.mxu0 %v541
  %1441 = vmatpush1.bf16.msra.mxu0 %v540
  %1442 = vmatprep.subr.bf16.mxu0 %v545
  %1443 = vmatpush1.bf16.msra.mxu0 %v544
  %1444 = vmatprep.subr.bf16.mxu0 %v549
  %1445 = vmatpush1.bf16.msra.mxu0 %v548
  %1446 = vmatprep.subr.bf16.mxu0 %v553
  %1447 = vmatpush1.bf16.msra.mxu0 %v552
  %1448 = vmatprep.subr.bf16.mxu0 %v557
  %1449 = vmatpush1.bf16.msra.mxu0 %v556
  %1450 = vmatprep.subr.bf16.mxu0 0
  %1451 = vmatpush1.bf16.msra.mxu0 0
  %1452 = vmatprep.subr.bf16.mxu0 0
  %1453 = vmatpush1.bf16.msra.mxu0 0
  %1454 = vmatprep.subr.bf16.mxu0 0
  %1455 = vmatpush1.bf16.msra.mxu0 0
  %1456 = vmatprep.subr.bf16.mxu0 0
  %1457 = vmatpush1.bf16.msra.mxu0 0
  %1458 = vmatprep.subr.bf16.mxu0 0
  %1459 = vmatpush1.bf16.msra.mxu0 0
  %1460 = vmatprep.subr.bf16.mxu0 0
  %1461 = vmatpush1.bf16.msra.mxu0 0
  %1462 = vmatprep.subr.bf16.mxu0 0
  %1463 = vmatpush1.bf16.msra.mxu0 0
  %1464 = vmatprep.subr.bf16.mxu0 0
  %1465 = vmatpush1.bf16.msra.mxu0 0
  %1466 = vmatprep.mubr.bf16.mxu0 0
  %1467 = vmatmul.mubr.bf16.gmra.mrb[0].mxu0 %v1326
  %v1468 = vpop.f32.mrb[0].mxu0
  %v1469 = vadd.f32 0.0, %v1468
  %v1470 = vpop.f32.mrb[0].mxu0
  %v1471 = vadd.f32 0.0, %v1470
  %v1472 = vpop.f32.mrb[0].mxu0
  %v1473 = vpop.f32.mrb[0].mxu0
  %1474 = vdwg.mxu0
  %1475 = vmatprep.subr.bf16.mxu0 %v531
  %1476 = vmatpush1.bf16.msra.mxu0 %v530
  %1477 = vmatprep.subr.bf16.mxu0 %v535
  %1478 = vmatpush1.bf16.msra.mxu0 %v534
  %1479 = vmatprep.subr.bf16.mxu0 %v539
  %1480 = vmatpush1.bf16.msra.mxu0 %v538
  %1481 = vmatprep.subr.bf16.mxu0 %v543
  %1482 = vmatpush1.bf16.msra.mxu0 %v542
  %1483 = vmatprep.subr.bf16.mxu0 %v547
  %1484 = vmatpush1.bf16.msra.mxu0 %v546
  %1485 = vmatprep.subr.bf16.mxu0 %v551
  %1486 = vmatpush1.bf16.msra.mxu0 %v550
  %1487 = vmatprep.subr.bf16.mxu0 %v555
  %1488 = vmatpush1.bf16.msra.mxu0 %v554
  %1489 = vmatprep.subr.bf16.mxu0 %v559
  %1490 = vmatpush1.bf16.msra.mxu0 %v558
  %1491 = vmatprep.subr.bf16.mxu0 0
  %1492 = vmatpush1.bf16.msra.mxu0 0
  %1493 = vmatprep.subr.bf16.mxu0 0
  %1494 = vmatpush1.bf16.msra.mxu0 0
  %1495 = vmatprep.subr.bf16.mxu0 0
  %1496 = vmatpush1.bf16.msra.mxu0 0
  %1497 = vmatprep.subr.bf16.mxu0 0
  %1498 = vmatpush1.bf16.msra.mxu0 0
  %1499 = vmatprep.subr.bf16.mxu0 0
  %1500 = vmatpush1.bf16.msra.mxu0 0
  %1501 = vmatprep.subr.bf16.mxu0 0
  %1502 = vmatpush1.bf16.msra.mxu0 0
  %1503 = vmatprep.subr.bf16.mxu0 0
  %1504 = vmatpush1.bf16.msra.mxu0 0
  %1505 = vmatprep.subr.bf16.mxu0 0
  %1506 = vmatpush1.bf16.msra.mxu0 0
  %1507 = vmatprep.mubr.bf16.mxu0 0
  %1508 = vmatmul.mubr.bf16.gmra.mrb[0].mxu0 %v1326
  %v1509 = vpop.f32.mrb[0].mxu0
  %v1510 = vadd.f32 0.0, %v1509
  %v1511 = vpop.f32.mrb[0].mxu0
  %v1512 = vadd.f32 0.0, %v1511
  %v1513 = vpop.f32.mrb[0].mxu0
  %v1514 = vpop.f32.mrb[0].mxu0
  %1515 = vdwg.mxu0
  %v1516 = vadd.f32 %v319, %v1469
  %v1517 = vadd.f32 %v321, %v1471
  %v1518 = vadd.f32 %v382, %v1510
  %v1519 = vadd.f32 %v384, %v1512
  %v1520 = vxor.u32 %v1516, 2147483648
  %v1521 = vmul.f32 %v1520, 1.442695
  %v1522 = vpow.pop %v1521
  %v1523 = vadd.f32 %v1522, 1.0
  %v1524 = vrcp.pop %v1523
  %v1525 = vmul.f32 1.0, %v1524
  %v1526 = vxor.u32 %v1517, 2147483648
  %v1527 = vmul.f32 %v1526, 1.442695
  %v1528 = vpow.pop %v1527
  %v1529 = vadd.f32 %v1528, 1.0
  %v1530 = vrcp.pop %v1529
  %v1531 = vmul.f32 1.0, %v1530
  %v1532 = vtanh.pop %v1518
  %v1533 = vxor.u32 %v1519, 2147483648
  %v1534 = vmul.f32 %v1533, 1.442695
  %v1535 = vpow.pop %v1534
  %v1536 = vadd.f32 %v1535, 1.0
  %v1537 = vrcp.pop %v1536
  %v1538 = vmul.f32 1.0, %v1537
  %v1539 = vmul.f32 %v1531, %v1323
  %v1540 = vmul.f32 %v1525, %v1532
  %v1541 = vadd.f32 %v1539, %v1540
  %v1542 = vtanh.pop %v1541
  %v1543 = vmul.f32 %v1538, %v1542
  %v1544 = vpack.c.bf16 %v1543, %v1543
  %v1545 = vpack.c.bf16 %v1433, %v1433
  %1546 = vmatprep.subr.bf16.mxu0 %v983
  %1547 = vmatpush1.bf16.msra.mxu0 %v982
  %1548 = vmatprep.subr.bf16.mxu0 %v987
  %1549 = vmatpush1.bf16.msra.mxu0 %v986
  %1550 = vmatprep.subr.bf16.mxu0 %v991
  %1551 = vmatpush1.bf16.msra.mxu0 %v990
  %1552 = vmatprep.subr.bf16.mxu0 %v995
  %1553 = vmatpush1.bf16.msra.mxu0 %v994
  %1554 = vmatprep.subr.bf16.mxu0 %v999
  %1555 = vmatpush1.bf16.msra.mxu0 %v998
  %1556 = vmatprep.subr.bf16.mxu0 %v1003
  %1557 = vmatpush1.bf16.msra.mxu0 %v1002
  %1558 = vmatprep.subr.bf16.mxu0 %v1007
  %1559 = vmatpush1.bf16.msra.mxu0 %v1006
  %1560 = vmatprep.subr.bf16.mxu0 %v1011
  %1561 = vmatpush1.bf16.msra.mxu0 %v1010
  %1562 = vmatprep.subr.bf16.mxu0 %v1015
  %1563 = vmatpush1.bf16.msra.mxu0 %v1014
  %1564 = vmatprep.subr.bf16.mxu0 %v1019
  %1565 = vmatpush1.bf16.msra.mxu0 %v1018
  %1566 = vmatprep.subr.bf16.mxu0 %v1023
  %1567 = vmatpush1.bf16.msra.mxu0 %v1022
  %1568 = vmatprep.subr.bf16.mxu0 %v1027
  %1569 = vmatpush1.bf16.msra.mxu0 %v1026
  %1570 = vmatprep.subr.bf16.mxu0 %v1031
  %1571 = vmatpush1.bf16.msra.mxu0 %v1030
  %1572 = vmatprep.subr.bf16.mxu0 %v1035
  %1573 = vmatpush1.bf16.msra.mxu0 %v1034
  %1574 = vmatprep.subr.bf16.mxu0 %v1039
  %1575 = vmatpush1.bf16.msra.mxu0 %v1038
  %1576 = vmatprep.subr.bf16.mxu0 %v1043
  %1577 = vmatpush1.bf16.msra.mxu0 %v1042
  %1578 = vmatprep.mubr.bf16.mxu0 %v1545
  %1579 = vmatmul.mubr.bf16.gmra.mrb[0].mxu0 %v1544
  %v1580 = vpop.f32.mrb[0].mxu0
  %v1581 = vadd.f32 %v773, %v1580
  %v1582 = vpop.f32.mrb[0].mxu0
  %v1583 = vadd.f32 %v777, %v1582
  %v1584 = vpop.f32.mrb[0].mxu0
  %v1585 = vpop.f32.mrb[0].mxu0
  %1586 = vdwg.mxu0
  %1587 = vmatprep.subr.bf16.mxu0 %v985
  %1588 = vmatpush1.bf16.msra.mxu0 %v984
  %1589 = vmatprep.subr.bf16.mxu0 %v989
  %1590 = vmatpush1.bf16.msra.mxu0 %v988
  %1591 = vmatprep.subr.bf16.mxu0 %v993
  %1592 = vmatpush1.bf16.msra.mxu0 %v992
  %1593 = vmatprep.subr.bf16.mxu0 %v997
  %1594 = vmatpush1.bf16.msra.mxu0 %v996
  %1595 = vmatprep.subr.bf16.mxu0 %v1001
  %1596 = vmatpush1.bf16.msra.mxu0 %v1000
  %1597 = vmatprep.subr.bf16.mxu0 %v1005
  %1598 = vmatpush1.bf16.msra.mxu0 %v1004
  %1599 = vmatprep.subr.bf16.mxu0 %v1009
  %1600 = vmatpush1.bf16.msra.mxu0 %v1008
  %1601 = vmatprep.subr.bf16.mxu0 %v1013
  %1602 = vmatpush1.bf16.msra.mxu0 %v1012
  %1603 = vmatprep.subr.bf16.mxu0 %v1017
  %1604 = vmatpush1.bf16.msra.mxu0 %v1016
  %1605 = vmatprep.subr.bf16.mxu0 %v1021
  %1606 = vmatpush1.bf16.msra.mxu0 %v1020
  %1607 = vmatprep.subr.bf16.mxu0 %v1025
  %1608 = vmatpush1.bf16.msra.mxu0 %v1024
  %1609 = vmatprep.subr.bf16.mxu0 %v1029
  %1610 = vmatpush1.bf16.msra.mxu0 %v1028
  %1611 = vmatprep.subr.bf16.mxu0 %v1033
  %1612 = vmatpush1.bf16.msra.mxu0 %v1032
  %1613 = vmatprep.subr.bf16.mxu0 %v1037
  %1614 = vmatpush1.bf16.msra.mxu0 %v1036
  %1615 = vmatprep.subr.bf16.mxu0 %v1041
  %1616 = vmatpush1.bf16.msra.mxu0 %v1040
  %1617 = vmatprep.subr.bf16.mxu0 %v1045
  %1618 = vmatpush1.bf16.msra.mxu0 %v1044
  %1619 = vmatprep.mubr.bf16.mxu0 %v1545
  %1620 = vmatmul.mubr.bf16.gmra.mrb[0].mxu0 %v1544
  %v1621 = vpop.f32.mrb[0].mxu0
  %v1622 = vadd.f32 %v781, %v1621
  %v1623 = vpop.f32.mrb[0].mxu0
  %v1624 = vadd.f32 %v785, %v1623
  %v1625 = vpop.f32.mrb[0].mxu0
  %v1626 = vpop.f32.mrb[0].mxu0
  %1627 = vdwg.mxu0
  %v1628 = vxor.u32 %v1581, 2147483648
  %v1629 = vmul.f32 %v1628, 1.442695
  %v1630 = vpow.pop %v1629
  %v1631 = vadd.f32 %v1630, 1.0
  %v1632 = vrcp.pop %v1631
  %v1633 = vmul.f32 1.0, %v1632
  %v1634 = vxor.u32 %v1583, 2147483648
  %v1635 = vmul.f32 %v1634, 1.442695
  %v1636 = vpow.pop %v1635
  %v1637 = vadd.f32 %v1636, 1.0
  %v1638 = vrcp.pop %v1637
  %v1639 = vmul.f32 1.0, %v1638
  %v1640 = vtanh.pop %v1622
  %v1641 = vxor.u32 %v1624, 2147483648
  %v1642 = vmul.f32 %v1641, 1.442695
  %v1643 = vpow.pop %v1642
  %v1644 = vadd.f32 %v1643, 1.0
  %v1645 = vrcp.pop %v1644
  %v1646 = vmul.f32 1.0, %v1645
  %v1647 = vmul.f32 %v1639, %v1431
  %v1648 = vmul.f32 %v1633, %v1640
  %v1649 = vadd.f32 %v1647, %v1648
  %v1650 = vtanh.pop %v1649
  %v1651 = vmul.f32 %v1646, %v1650
  %1652 = vmatprep.subr.bf16.mxu0 %v529
  %1653 = vmatpush1.bf16.msra.mxu0 %v528
  %1654 = vmatprep.subr.bf16.mxu0 %v533
  %1655 = vmatpush1.bf16.msra.mxu0 %v532
  %1656 = vmatprep.subr.bf16.mxu0 %v537
  %1657 = vmatpush1.bf16.msra.mxu0 %v536
  %1658 = vmatprep.subr.bf16.mxu0 %v541
  %1659 = vmatpush1.bf16.msra.mxu0 %v540
  %1660 = vmatprep.subr.bf16.mxu0 %v545
  %1661 = vmatpush1.bf16.msra.mxu0 %v544
  %1662 = vmatprep.subr.bf16.mxu0 %v549
  %1663 = vmatpush1.bf16.msra.mxu0 %v548
  %1664 = vmatprep.subr.bf16.mxu0 %v553
  %1665 = vmatpush1.bf16.msra.mxu0 %v552
  %1666 = vmatprep.subr.bf16.mxu0 %v557
  %1667 = vmatpush1.bf16.msra.mxu0 %v556
  %1668 = vmatprep.subr.bf16.mxu0 0
  %1669 = vmatpush1.bf16.msra.mxu0 0
  %1670 = vmatprep.subr.bf16.mxu0 0
  %1671 = vmatpush1.bf16.msra.mxu0 0
  %1672 = vmatprep.subr.bf16.mxu0 0
  %1673 = vmatpush1.bf16.msra.mxu0 0
  %1674 = vmatprep.subr.bf16.mxu0 0
  %1675 = vmatpush1.bf16.msra.mxu0 0
  %1676 = vmatprep.subr.bf16.mxu0 0
  %1677 = vmatpush1.bf16.msra.mxu0 0
  %1678 = vmatprep.subr.bf16.mxu0 0
  %1679 = vmatpush1.bf16.msra.mxu0 0
  %1680 = vmatprep.subr.bf16.mxu0 0
  %1681 = vmatpush1.bf16.msra.mxu0 0
  %1682 = vmatprep.subr.bf16.mxu0 0
  %1683 = vmatpush1.bf16.msra.mxu0 0
  %1684 = vmatprep.mubr.bf16.mxu0 0
  %1685 = vmatmul.mubr.bf16.gmra.mrb[0].mxu0 %v1544
  %v1686 = vpop.f32.mrb[0].mxu0
  %v1687 = vadd.f32 0.0, %v1686
  %v1688 = vpop.f32.mrb[0].mxu0
  %v1689 = vadd.f32 0.0, %v1688
  %v1690 = vpop.f32.mrb[0].mxu0
  %v1691 = vpop.f32.mrb[0].mxu0
  %1692 = vdwg.mxu0
  %1693 = vmatprep.subr.bf16.mxu0 %v531
  %1694 = vmatpush1.bf16.msra.mxu0 %v530
  %1695 = vmatprep.subr.bf16.mxu0 %v535
  %1696 = vmatpush1.bf16.msra.mxu0 %v534
  %1697 = vmatprep.subr.bf16.mxu0 %v539
  %1698 = vmatpush1.bf16.msra.mxu0 %v538
  %1699 = vmatprep.subr.bf16.mxu0 %v543
  %1700 = vmatpush1.bf16.msra.mxu0 %v542
  %1701 = vmatprep.subr.bf16.mxu0 %v547
  %1702 = vmatpush1.bf16.msra.mxu0 %v546
  %1703 = vmatprep.subr.bf16.mxu0 %v551
  %1704 = vmatpush1.bf16.msra.mxu0 %v550
  %1705 = vmatprep.subr.bf16.mxu0 %v555
  %1706 = vmatpush1.bf16.msra.mxu0 %v554
  %1707 = vmatprep.subr.bf16.mxu0 %v559
  %1708 = vmatpush1.bf16.msra.mxu0 %v558
  %1709 = vmatprep.subr.bf16.mxu0 0
  %1710 = vmatpush1.bf16.msra.mxu0 0
  %1711 = vmatprep.subr.bf16.mxu0 0
  %1712 = vmatpush1.bf16.msra.mxu0 0
  %1713 = vmatprep.subr.bf16.mxu0 0
  %1714 = vmatpush1.bf16.msra.mxu0 0
  %1715 = vmatprep.subr.bf16.mxu0 0
  %1716 = vmatpush1.bf16.msra.mxu0 0
  %1717 = vmatprep.subr.bf16.mxu0 0
  %1718 = vmatpush1.bf16.msra.mxu0 0
  %1719 = vmatprep.subr.bf16.mxu0 0
  %1720 = vmatpush1.bf16.msra.mxu0 0
  %1721 = vmatprep.subr.bf16.mxu0 0
  %1722 = vmatpush1.bf16.msra.mxu0 0
  %1723 = vmatprep.subr.bf16.mxu0 0
  %1724 = vmatpush1.bf16.msra.mxu0 0
  %1725 = vmatprep.mubr.bf16.mxu0 0
  %1726 = vmatmul.mubr.bf16.gmra.mrb[0].mxu0 %v1544
  %v1727 = vpop.f32.mrb[0].mxu0
  %v1728 = vadd.f32 0.0, %v1727
  %v1729 = vpop.f32.mrb[0].mxu0
  %v1730 = vadd.f32 0.0, %v1729
  %v1731 = vpop.f32.mrb[0].mxu0
  %v1732 = vpop.f32.mrb[0].mxu0
  %1733 = vdwg.mxu0
  %v1734 = vadd.f32 %v323, %v1687
  %v1735 = vadd.f32 %v325, %v1689
  %v1736 = vadd.f32 %v386, %v1728
  %v1737 = vadd.f32 %v388, %v1730
  %v1738 = vxor.u32 %v1734, 2147483648
  %v1739 = vmul.f32 %v1738, 1.442695
  %v1740 = vpow.pop %v1739
  %v1741 = vadd.f32 %v1740, 1.0
  %v1742 = vrcp.pop %v1741
  %v1743 = vmul.f32 1.0, %v1742
  %v1744 = vxor.u32 %v1735, 2147483648
  %v1745 = vmul.f32 %v1744, 1.442695
  %v1746 = vpow.pop %v1745
  %v1747 = vadd.f32 %v1746, 1.0
  %v1748 = vrcp.pop %v1747
  %v1749 = vmul.f32 1.0, %v1748
  %v1750 = vtanh.pop %v1736
  %v1751 = vxor.u32 %v1737, 2147483648
  %v1752 = vmul.f32 %v1751, 1.442695
  %v1753 = vpow.pop %v1752
  %v1754 = vadd.f32 %v1753, 1.0
  %v1755 = vrcp.pop %v1754
  %v1756 = vmul.f32 1.0, %v1755
  %v1757 = vmul.f32 %v1749, %v1541
  %v1758 = vmul.f32 %v1743, %v1750
  %v1759 = vadd.f32 %v1757, %v1758
  %v1760 = vtanh.pop %v1759
  %v1761 = vmul.f32 %v1756, %v1760
  %v1762 = vpack.c.bf16 %v1761, %v1761
  %v1763 = vpack.c.bf16 %v1651, %v1651
  %1764 = vmatprep.subr.bf16.mxu0 %v983
  %1765 = vmatpush1.bf16.msra.mxu0 %v982
  %1766 = vmatprep.subr.bf16.mxu0 %v987
  %1767 = vmatpush1.bf16.msra.mxu0 %v986
  %1768 = vmatprep.subr.bf16.mxu0 %v991
  %1769 = vmatpush1.bf16.msra.mxu0 %v990
  %1770 = vmatprep.subr.bf16.mxu0 %v995
  %1771 = vmatpush1.bf16.msra.mxu0 %v994
  %1772 = vmatprep.subr.bf16.mxu0 %v999
  %1773 = vmatpush1.bf16.msra.mxu0 %v998
  %1774 = vmatprep.subr.bf16.mxu0 %v1003
  %1775 = vmatpush1.bf16.msra.mxu0 %v1002
  %1776 = vmatprep.subr.bf16.mxu0 %v1007
  %1777 = vmatpush1.bf16.msra.mxu0 %v1006
  %1778 = vmatprep.subr.bf16.mxu0 %v1011
  %1779 = vmatpush1.bf16.msra.mxu0 %v1010
  %1780 = vmatprep.subr.bf16.mxu0 %v1015
  %1781 = vmatpush1.bf16.msra.mxu0 %v1014
  %1782 = vmatprep.subr.bf16.mxu0 %v1019
  %1783 = vmatpush1.bf16.msra.mxu0 %v1018
  %1784 = vmatprep.subr.bf16.mxu0 %v1023
  %1785 = vmatpush1.bf16.msra.mxu0 %v1022
  %1786 = vmatprep.subr.bf16.mxu0 %v1027
  %1787 = vmatpush1.bf16.msra.mxu0 %v1026
  %1788 = vmatprep.subr.bf16.mxu0 %v1031
  %1789 = vmatpush1.bf16.msra.mxu0 %v1030
  %1790 = vmatprep.subr.bf16.mxu0 %v1035
  %1791 = vmatpush1.bf16.msra.mxu0 %v1034
  %1792 = vmatprep.subr.bf16.mxu0 %v1039
  %1793 = vmatpush1.bf16.msra.mxu0 %v1038
  %1794 = vmatprep.subr.bf16.mxu0 %v1043
  %1795 = vmatpush1.bf16.msra.mxu0 %v1042
  %1796 = vmatprep.mubr.bf16.mxu0 %v1763
  %1797 = vmatmul.mubr.bf16.gmra.mrb[0].mxu0 %v1762
  %v1798 = vpop.f32.mrb[0].mxu0
  %v1799 = vadd.f32 %v773, %v1798
  %v1800 = vpop.f32.mrb[0].mxu0
  %v1801 = vadd.f32 %v777, %v1800
  %v1802 = vpop.f32.mrb[0].mxu0
  %v1803 = vpop.f32.mrb[0].mxu0
  %1804 = vdwg.mxu0
  %1805 = vmatprep.subr.bf16.mxu0 %v985
  %1806 = vmatpush1.bf16.msra.mxu0 %v984
  %1807 = vmatprep.subr.bf16.mxu0 %v989
  %1808 = vmatpush1.bf16.msra.mxu0 %v988
  %1809 = vmatprep.subr.bf16.mxu0 %v993
  %1810 = vmatpush1.bf16.msra.mxu0 %v992
  %1811 = vmatprep.subr.bf16.mxu0 %v997
  %1812 = vmatpush1.bf16.msra.mxu0 %v996
  %1813 = vmatprep.subr.bf16.mxu0 %v1001
  %1814 = vmatpush1.bf16.msra.mxu0 %v1000
  %1815 = vmatprep.subr.bf16.mxu0 %v1005
  %1816 = vmatpush1.bf16.msra.mxu0 %v1004
  %1817 = vmatprep.subr.bf16.mxu0 %v1009
  %1818 = vmatpush1.bf16.msra.mxu0 %v1008
  %1819 = vmatprep.subr.bf16.mxu0 %v1013
  %1820 = vmatpush1.bf16.msra.mxu0 %v1012
  %1821 = vmatprep.subr.bf16.mxu0 %v1017
  %1822 = vmatpush1.bf16.msra.mxu0 %v1016
  %1823 = vmatprep.subr.bf16.mxu0 %v1021
  %1824 = vmatpush1.bf16.msra.mxu0 %v1020
  %1825 = vmatprep.subr.bf16.mxu0 %v1025
  %1826 = vmatpush1.bf16.msra.mxu0 %v1024
  %1827 = vmatprep.subr.bf16.mxu0 %v1029
  %1828 = vmatpush1.bf16.msra.mxu0 %v1028
  %1829 = vmatprep.subr.bf16.mxu0 %v1033
  %1830 = vmatpush1.bf16.msra.mxu0 %v1032
  %1831 = vmatprep.subr.bf16.mxu0 %v1037
  %1832 = vmatpush1.bf16.msra.mxu0 %v1036
  %1833 = vmatprep.subr.bf16.mxu0 %v1041
  %1834 = vmatpush1.bf16.msra.mxu0 %v1040
  %1835 = vmatprep.subr.bf16.mxu0 %v1045
  %1836 = vmatpush1.bf16.msra.mxu0 %v1044
  %1837 = vmatprep.mubr.bf16.mxu0 %v1763
  %1838 = vmatmul.mubr.bf16.gmra.mrb[0].mxu0 %v1762
  %v1839 = vpop.f32.mrb[0].mxu0
  %v1840 = vadd.f32 %v781, %v1839
  %v1841 = vpop.f32.mrb[0].mxu0
  %v1842 = vadd.f32 %v785, %v1841
  %v1843 = vpop.f32.mrb[0].mxu0
  %v1844 = vpop.f32.mrb[0].mxu0
  %1845 = vdwg.mxu0
  %v1846 = vxor.u32 %v1799, 2147483648
  %v1847 = vmul.f32 %v1846, 1.442695
  %v1848 = vpow.pop %v1847
  %v1849 = vadd.f32 %v1848, 1.0
  %v1850 = vrcp.pop %v1849
  %v1851 = vmul.f32 1.0, %v1850
  %v1852 = vxor.u32 %v1801, 2147483648
  %v1853 = vmul.f32 %v1852, 1.442695
  %v1854 = vpow.pop %v1853
  %v1855 = vadd.f32 %v1854, 1.0
  %v1856 = vrcp.pop %v1855
  %v1857 = vmul.f32 1.0, %v1856
  %v1858 = vtanh.pop %v1840
  %v1859 = vxor.u32 %v1842, 2147483648
  %v1860 = vmul.f32 %v1859, 1.442695
  %v1861 = vpow.pop %v1860
  %v1862 = vadd.f32 %v1861, 1.0
  %v1863 = vrcp.pop %v1862
  %v1864 = vmul.f32 1.0, %v1863
  %v1865 = vmul.f32 %v1857, %v1649
  %v1866 = vmul.f32 %v1851, %v1858
  %v1867 = vadd.f32 %v1865, %v1866
  %v1868 = vtanh.pop %v1867
  %v1869 = vmul.f32 %v1864, %v1868
  %1870 = vmatprep.subr.bf16.mxu0 %v529
  %1871 = vmatpush1.bf16.msra.mxu0 %v528
  %1872 = vmatprep.subr.bf16.mxu0 %v533
  %1873 = vmatpush1.bf16.msra.mxu0 %v532
  %1874 = vmatprep.subr.bf16.mxu0 %v537
  %1875 = vmatpush1.bf16.msra.mxu0 %v536
  %1876 = vmatprep.subr.bf16.mxu0 %v541
  %1877 = vmatpush1.bf16.msra.mxu0 %v540
  %1878 = vmatprep.subr.bf16.mxu0 %v545
  %1879 = vmatpush1.bf16.msra.mxu0 %v544
  %1880 = vmatprep.subr.bf16.mxu0 %v549
  %1881 = vmatpush1.bf16.msra.mxu0 %v548
  %1882 = vmatprep.subr.bf16.mxu0 %v553
  %1883 = vmatpush1.bf16.msra.mxu0 %v552
  %1884 = vmatprep.subr.bf16.mxu0 %v557
  %1885 = vmatpush1.bf16.msra.mxu0 %v556
  %1886 = vmatprep.subr.bf16.mxu0 0
  %1887 = vmatpush1.bf16.msra.mxu0 0
  %1888 = vmatprep.subr.bf16.mxu0 0
  %1889 = vmatpush1.bf16.msra.mxu0 0
  %1890 = vmatprep.subr.bf16.mxu0 0
  %1891 = vmatpush1.bf16.msra.mxu0 0
  %1892 = vmatprep.subr.bf16.mxu0 0
  %1893 = vmatpush1.bf16.msra.mxu0 0
  %1894 = vmatprep.subr.bf16.mxu0 0
  %1895 = vmatpush1.bf16.msra.mxu0 0
  %1896 = vmatprep.subr.bf16.mxu0 0
  %1897 = vmatpush1.bf16.msra.mxu0 0
  %1898 = vmatprep.subr.bf16.mxu0 0
  %1899 = vmatpush1.bf16.msra.mxu0 0
  %1900 = vmatprep.subr.bf16.mxu0 0
  %1901 = vmatpush1.bf16.msra.mxu0 0
  %1902 = vmatprep.mubr.bf16.mxu0 0
  %1903 = vmatmul.mubr.bf16.gmra.mrb[0].mxu0 %v1762
  %v1904 = vpop.f32.mrb[0].mxu0
  %v1905 = vadd.f32 0.0, %v1904
  %v1906 = vpop.f32.mrb[0].mxu0
  %v1907 = vadd.f32 0.0, %v1906
  %v1908 = vpop.f32.mrb[0].mxu0
  %v1909 = vpop.f32.mrb[0].mxu0
  %1910 = vdwg.mxu0
  %1911 = vmatprep.subr.bf16.mxu0 %v531
  %1912 = vmatpush1.bf16.msra.mxu0 %v530
  %1913 = vmatprep.subr.bf16.mxu0 %v535
  %1914 = vmatpush1.bf16.msra.mxu0 %v534
  %1915 = vmatprep.subr.bf16.mxu0 %v539
  %1916 = vmatpush1.bf16.msra.mxu0 %v538
  %1917 = vmatprep.subr.bf16.mxu0 %v543
  %1918 = vmatpush1.bf16.msra.mxu0 %v542
  %1919 = vmatprep.subr.bf16.mxu0 %v547
  %1920 = vmatpush1.bf16.msra.mxu0 %v546
  %1921 = vmatprep.subr.bf16.mxu0 %v551
  %1922 = vmatpush1.bf16.msra.mxu0 %v550
  %1923 = vmatprep.subr.bf16.mxu0 %v555
  %1924 = vmatpush1.bf16.msra.mxu0 %v554
  %1925 = vmatprep.subr.bf16.mxu0 %v559
  %1926 = vmatpush1.bf16.msra.mxu0 %v558
  %1927 = vmatprep.subr.bf16.mxu0 0
  %1928 = vmatpush1.bf16.msra.mxu0 0
  %1929 = vmatprep.subr.bf16.mxu0 0
  %1930 = vmatpush1.bf16.msra.mxu0 0
  %1931 = vmatprep.subr.bf16.mxu0 0
  %1932 = vmatpush1.bf16.msra.mxu0 0
  %1933 = vmatprep.subr.bf16.mxu0 0
  %1934 = vmatpush1.bf16.msra.mxu0 0
  %1935 = vmatprep.subr.bf16.mxu0 0
  %1936 = vmatpush1.bf16.msra.mxu0 0
  %1937 = vmatprep.subr.bf16.mxu0 0
  %1938 = vmatpush1.bf16.msra.mxu0 0
  %1939 = vmatprep.subr.bf16.mxu0 0
  %1940 = vmatpush1.bf16.msra.mxu0 0
  %1941 = vmatprep.subr.bf16.mxu0 0
  %1942 = vmatpush1.bf16.msra.mxu0 0
  %1943 = vmatprep.mubr.bf16.mxu0 0
  %1944 = vmatmul.mubr.bf16.gmra.mrb[0].mxu0 %v1762
  %v1945 = vpop.f32.mrb[0].mxu0
  %v1946 = vadd.f32 0.0, %v1945
  %v1947 = vpop.f32.mrb[0].mxu0
  %v1948 = vadd.f32 0.0, %v1947
  %v1949 = vpop.f32.mrb[0].mxu0
  %v1950 = vpop.f32.mrb[0].mxu0
  %1951 = vdwg.mxu0
  %v1952 = vadd.f32 %v329, %v1905
  %v1953 = vadd.f32 %v331, %v1907
  %v1954 = vadd.f32 %v392, %v1946
  %v1955 = vadd.f32 %v394, %v1948
  %v1956 = vxor.u32 %v1952, 2147483648
  %v1957 = vmul.f32 %v1956, 1.442695
  %v1958 = vpow.pop %v1957
  %v1959 = vadd.f32 %v1958, 1.0
  %v1960 = vrcp.pop %v1959
  %v1961 = vmul.f32 1.0, %v1960
  %v1962 = vxor.u32 %v1953, 2147483648
  %v1963 = vmul.f32 %v1962, 1.442695
  %v1964 = vpow.pop %v1963
  %v1965 = vadd.f32 %v1964, 1.0
  %v1966 = vrcp.pop %v1965
  %v1967 = vmul.f32 1.0, %v1966
  %v1968 = vtanh.pop %v1954
  %v1969 = vxor.u32 %v1955, 2147483648
  %v1970 = vmul.f32 %v1969, 1.442695
  %v1971 = vpow.pop %v1970
  %v1972 = vadd.f32 %v1971, 1.0
  %v1973 = vrcp.pop %v1972
  %v1974 = vmul.f32 1.0, %v1973
  %v1975 = vmul.f32 %v1967, %v1759
  %v1976 = vmul.f32 %v1961, %v1968
  %v1977 = vadd.f32 %v1975, %v1976
  %v1978 = vtanh.pop %v1977
  %v1979 = vmul.f32 %v1974, %v1978
  %v1980 = vpack.c.bf16 %v1979, %v1979
  %v1981 = vpack.c.bf16 %v1869, %v1869
  %1982 = vmatprep.subr.bf16.mxu0 %v983
  %1983 = vmatpush1.bf16.msra.mxu0 %v982
  %1984 = vmatprep.subr.bf16.mxu0 %v987
  %1985 = vmatpush1.bf16.msra.mxu0 %v986
  %1986 = vmatprep.subr.bf16.mxu0 %v991
  %1987 = vmatpush1.bf16.msra.mxu0 %v990
  %1988 = vmatprep.subr.bf16.mxu0 %v995
  %1989 = vmatpush1.bf16.msra.mxu0 %v994
  %1990 = vmatprep.subr.bf16.mxu0 %v999
  %1991 = vmatpush1.bf16.msra.mxu0 %v998
  %1992 = vmatprep.subr.bf16.mxu0 %v1003
  %1993 = vmatpush1.bf16.msra.mxu0 %v1002
  %1994 = vmatprep.subr.bf16.mxu0 %v1007
  %1995 = vmatpush1.bf16.msra.mxu0 %v1006
  %1996 = vmatprep.subr.bf16.mxu0 %v1011
  %1997 = vmatpush1.bf16.msra.mxu0 %v1010
  %1998 = vmatprep.subr.bf16.mxu0 %v1015
  %1999 = vmatpush1.bf16.msra.mxu0 %v1014
  %2000 = vmatprep.subr.bf16.mxu0 %v1019
  %2001 = vmatpush1.bf16.msra.mxu0 %v1018
  %2002 = vmatprep.subr.bf16.mxu0 %v1023
  %2003 = vmatpush1.bf16.msra.mxu0 %v1022
  %2004 = vmatprep.subr.bf16.mxu0 %v1027
  %2005 = vmatpush1.bf16.msra.mxu0 %v1026
  %2006 = vmatprep.subr.bf16.mxu0 %v1031
  %2007 = vmatpush1.bf16.msra.mxu0 %v1030
  %2008 = vmatprep.subr.bf16.mxu0 %v1035
  %2009 = vmatpush1.bf16.msra.mxu0 %v1034
  %2010 = vmatprep.subr.bf16.mxu0 %v1039
  %2011 = vmatpush1.bf16.msra.mxu0 %v1038
  %2012 = vmatprep.subr.bf16.mxu0 %v1043
  %2013 = vmatpush1.bf16.msra.mxu0 %v1042
  %2014 = vmatprep.mubr.bf16.mxu0 %v1981
  %2015 = vmatmul.mubr.bf16.gmra.mrb[0].mxu0 %v1980
  %v2016 = vpop.f32.mrb[0].mxu0
  %v2017 = vadd.f32 %v773, %v2016
  %v2018 = vpop.f32.mrb[0].mxu0
  %v2019 = vadd.f32 %v777, %v2018
  %v2020 = vpop.f32.mrb[0].mxu0
  %v2021 = vpop.f32.mrb[0].mxu0
  %2022 = vdwg.mxu0
  %2023 = vmatprep.subr.bf16.mxu0 %v985
  %2024 = vmatpush1.bf16.msra.mxu0 %v984
  %2025 = vmatprep.subr.bf16.mxu0 %v989
  %2026 = vmatpush1.bf16.msra.mxu0 %v988
  %2027 = vmatprep.subr.bf16.mxu0 %v993
  %2028 = vmatpush1.bf16.msra.mxu0 %v992
  %2029 = vmatprep.subr.bf16.mxu0 %v997
  %2030 = vmatpush1.bf16.msra.mxu0 %v996
  %2031 = vmatprep.subr.bf16.mxu0 %v1001
  %2032 = vmatpush1.bf16.msra.mxu0 %v1000
  %2033 = vmatprep.subr.bf16.mxu0 %v1005
  %2034 = vmatpush1.bf16.msra.mxu0 %v1004
  %2035 = vmatprep.subr.bf16.mxu0 %v1009
  %2036 = vmatpush1.bf16.msra.mxu0 %v1008
  %2037 = vmatprep.subr.bf16.mxu0 %v1013
  %2038 = vmatpush1.bf16.msra.mxu0 %v1012
  %2039 = vmatprep.subr.bf16.mxu0 %v1017
  %2040 = vmatpush1.bf16.msra.mxu0 %v1016
  %2041 = vmatprep.subr.bf16.mxu0 %v1021
  %2042 = vmatpush1.bf16.msra.mxu0 %v1020
  %2043 = vmatprep.subr.bf16.mxu0 %v1025
  %2044 = vmatpush1.bf16.msra.mxu0 %v1024
  %2045 = vmatprep.subr.bf16.mxu0 %v1029
  %2046 = vmatpush1.bf16.msra.mxu0 %v1028
  %2047 = vmatprep.subr.bf16.mxu0 %v1033
  %2048 = vmatpush1.bf16.msra.mxu0 %v1032
  %2049 = vmatprep.subr.bf16.mxu0 %v1037
  %2050 = vmatpush1.bf16.msra.mxu0 %v1036
  %2051 = vmatprep.subr.bf16.mxu0 %v1041
  %2052 = vmatpush1.bf16.msra.mxu0 %v1040
  %2053 = vmatprep.subr.bf16.mxu0 %v1045
  %2054 = vmatpush1.bf16.msra.mxu0 %v1044
  %2055 = vmatprep.mubr.bf16.mxu0 %v1981
  %2056 = vmatmul.mubr.bf16.gmra.mrb[0].mxu0 %v1980
  %v2057 = vpop.f32.mrb[0].mxu0
  %v2058 = vadd.f32 %v781, %v2057
  %v2059 = vpop.f32.mrb[0].mxu0
  %v2060 = vadd.f32 %v785, %v2059
  %v2061 = vpop.f32.mrb[0].mxu0
  %v2062 = vpop.f32.mrb[0].mxu0
  %2063 = vdwg.mxu0
  %v2064 = vxor.u32 %v2017, 2147483648
  %v2065 = vmul.f32 %v2064, 1.442695
  %v2066 = vpow.pop %v2065
  %v2067 = vadd.f32 %v2066, 1.0
  %v2068 = vrcp.pop %v2067
  %v2069 = vmul.f32 1.0, %v2068
  %v2070 = vxor.u32 %v2019, 2147483648
  %v2071 = vmul.f32 %v2070, 1.442695
  %v2072 = vpow.pop %v2071
  %v2073 = vadd.f32 %v2072, 1.0
  %v2074 = vrcp.pop %v2073
  %v2075 = vmul.f32 1.0, %v2074
  %v2076 = vtanh.pop %v2058
  %v2077 = vxor.u32 %v2060, 2147483648
  %v2078 = vmul.f32 %v2077, 1.442695
  %v2079 = vpow.pop %v2078
  %v2080 = vadd.f32 %v2079, 1.0
  %v2081 = vrcp.pop %v2080
  %v2082 = vmul.f32 1.0, %v2081
  %v2083 = vmul.f32 %v2075, %v1867
  %v2084 = vmul.f32 %v2069, %v2076
  %v2085 = vadd.f32 %v2083, %v2084
  %v2086 = vtanh.pop %v2085
  %v2087 = vmul.f32 %v2082, %v2086
  %2088 = vmatprep.subr.bf16.mxu0 %v529
  %2089 = vmatpush1.bf16.msra.mxu0 %v528
  %2090 = vmatprep.subr.bf16.mxu0 %v533
  %2091 = vmatpush1.bf16.msra.mxu0 %v532
  %2092 = vmatprep.subr.bf16.mxu0 %v537
  %2093 = vmatpush1.bf16.msra.mxu0 %v536
  %2094 = vmatprep.subr.bf16.mxu0 %v541
  %2095 = vmatpush1.bf16.msra.mxu0 %v540
  %2096 = vmatprep.subr.bf16.mxu0 %v545
  %2097 = vmatpush1.bf16.msra.mxu0 %v544
  %2098 = vmatprep.subr.bf16.mxu0 %v549
  %2099 = vmatpush1.bf16.msra.mxu0 %v548
  %2100 = vmatprep.subr.bf16.mxu0 %v553
  %2101 = vmatpush1.bf16.msra.mxu0 %v552
  %2102 = vmatprep.subr.bf16.mxu0 %v557
  %2103 = vmatpush1.bf16.msra.mxu0 %v556
  %2104 = vmatprep.subr.bf16.mxu0 0
  %2105 = vmatpush1.bf16.msra.mxu0 0
  %2106 = vmatprep.subr.bf16.mxu0 0
  %2107 = vmatpush1.bf16.msra.mxu0 0
  %2108 = vmatprep.subr.bf16.mxu0 0
  %2109 = vmatpush1.bf16.msra.mxu0 0
  %2110 = vmatprep.subr.bf16.mxu0 0
  %2111 = vmatpush1.bf16.msra.mxu0 0
  %2112 = vmatprep.subr.bf16.mxu0 0
  %2113 = vmatpush1.bf16.msra.mxu0 0
  %2114 = vmatprep.subr.bf16.mxu0 0
  %2115 = vmatpush1.bf16.msra.mxu0 0
  %2116 = vmatprep.subr.bf16.mxu0 0
  %2117 = vmatpush1.bf16.msra.mxu0 0
  %2118 = vmatprep.subr.bf16.mxu0 0
  %2119 = vmatpush1.bf16.msra.mxu0 0
  %2120 = vmatprep.mubr.bf16.mxu0 0
  %2121 = vmatmul.mubr.bf16.gmra.mrb[0].mxu0 %v1980
  %v2122 = vpop.f32.mrb[0].mxu0
  %v2123 = vadd.f32 0.0, %v2122
  %v2124 = vpop.f32.mrb[0].mxu0
  %v2125 = vadd.f32 0.0, %v2124
  %v2126 = vpop.f32.mrb[0].mxu0
  %v2127 = vpop.f32.mrb[0].mxu0
  %2128 = vdwg.mxu0
  %2129 = vmatprep.subr.bf16.mxu0 %v531
  %2130 = vmatpush1.bf16.msra.mxu0 %v530
  %2131 = vmatprep.subr.bf16.mxu0 %v535
  %2132 = vmatpush1.bf16.msra.mxu0 %v534
  %2133 = vmatprep.subr.bf16.mxu0 %v539
  %2134 = vmatpush1.bf16.msra.mxu0 %v538
  %2135 = vmatprep.subr.bf16.mxu0 %v543
  %2136 = vmatpush1.bf16.msra.mxu0 %v542
  %2137 = vmatprep.subr.bf16.mxu0 %v547
  %2138 = vmatpush1.bf16.msra.mxu0 %v546
  %2139 = vmatprep.subr.bf16.mxu0 %v551
  %2140 = vmatpush1.bf16.msra.mxu0 %v550
  %2141 = vmatprep.subr.bf16.mxu0 %v555
  %2142 = vmatpush1.bf16.msra.mxu0 %v554
  %2143 = vmatprep.subr.bf16.mxu0 %v559
  %2144 = vmatpush1.bf16.msra.mxu0 %v558
  %2145 = vmatprep.subr.bf16.mxu0 0
  %2146 = vmatpush1.bf16.msra.mxu0 0
  %2147 = vmatprep.subr.bf16.mxu0 0
  %2148 = vmatpush1.bf16.msra.mxu0 0
  %2149 = vmatprep.subr.bf16.mxu0 0
  %2150 = vmatpush1.bf16.msra.mxu0 0
  %2151 = vmatprep.subr.bf16.mxu0 0
  %2152 = vmatpush1.bf16.msra.mxu0 0
  %2153 = vmatprep.subr.bf16.mxu0 0
  %2154 = vmatpush1.bf16.msra.mxu0 0
  %2155 = vmatprep.subr.bf16.mxu0 0
  %2156 = vmatpush1.bf16.msra.mxu0 0
  %2157 = vmatprep.subr.bf16.mxu0 0
  %2158 = vmatpush1.bf16.msra.mxu0 0
  %2159 = vmatprep.subr.bf16.mxu0 0
  %2160 = vmatpush1.bf16.msra.mxu0 0
  %2161 = vmatprep.mubr.bf16.mxu0 0
  %2162 = vmatmul.mubr.bf16.gmra.mrb[0].mxu0 %v1980
  %v2163 = vpop.f32.mrb[0].mxu0
  %v2164 = vadd.f32 0.0, %v2163
  %v2165 = vpop.f32.mrb[0].mxu0
  %v2166 = vadd.f32 0.0, %v2165
  %v2167 = vpop.f32.mrb[0].mxu0
  %v2168 = vpop.f32.mrb[0].mxu0
  %2169 = vdwg.mxu0
  %v2170 = vadd.f32 %v333, %v2123
  %v2171 = vadd.f32 %v335, %v2125
  %v2172 = vadd.f32 %v396, %v2164
  %v2173 = vadd.f32 %v398, %v2166
  %v2174 = vxor.u32 %v2170, 2147483648
  %v2175 = vmul.f32 %v2174, 1.442695
  %v2176 = vpow.pop %v2175
  %v2177 = vadd.f32 %v2176, 1.0
  %v2178 = vrcp.pop %v2177
  %v2179 = vmul.f32 1.0, %v2178
  %v2180 = vxor.u32 %v2171, 2147483648
  %v2181 = vmul.f32 %v2180, 1.442695
  %v2182 = vpow.pop %v2181
  %v2183 = vadd.f32 %v2182, 1.0
  %v2184 = vrcp.pop %v2183
  %v2185 = vmul.f32 1.0, %v2184
  %v2186 = vtanh.pop %v2172
  %v2187 = vxor.u32 %v2173, 2147483648
  %v2188 = vmul.f32 %v2187, 1.442695
  %v2189 = vpow.pop %v2188
  %v2190 = vadd.f32 %v2189, 1.0
  %v2191 = vrcp.pop %v2190
  %v2192 = vmul.f32 1.0, %v2191
  %v2193 = vmul.f32 %v2185, %v1977
  %v2194 = vmul.f32 %v2179, %v2186
  %v2195 = vadd.f32 %v2193, %v2194
  %v2196 = vtanh.pop %v2195
  %v2197 = vmul.f32 %v2192, %v2196
  %v2198 = vpack.c.bf16 %v2197, %v2197
  %v2199 = vpack.c.bf16 %v2087, %v2087
  %2200 = vmatprep.subr.bf16.mxu0 %v983
  %2201 = vmatpush1.bf16.msra.mxu0 %v982
  %2202 = vmatprep.subr.bf16.mxu0 %v987
  %2203 = vmatpush1.bf16.msra.mxu0 %v986
  %2204 = vmatprep.subr.bf16.mxu0 %v991
  %2205 = vmatpush1.bf16.msra.mxu0 %v990
  %2206 = vmatprep.subr.bf16.mxu0 %v995
  %2207 = vmatpush1.bf16.msra.mxu0 %v994
  %2208 = vmatprep.subr.bf16.mxu0 %v999
  %2209 = vmatpush1.bf16.msra.mxu0 %v998
  %2210 = vmatprep.subr.bf16.mxu0 %v1003
  %2211 = vmatpush1.bf16.msra.mxu0 %v1002
  %2212 = vmatprep.subr.bf16.mxu0 %v1007
  %2213 = vmatpush1.bf16.msra.mxu0 %v1006
  %2214 = vmatprep.subr.bf16.mxu0 %v1011
  %2215 = vmatpush1.bf16.msra.mxu0 %v1010
  %2216 = vmatprep.subr.bf16.mxu0 %v1015
  %2217 = vmatpush1.bf16.msra.mxu0 %v1014
  %2218 = vmatprep.subr.bf16.mxu0 %v1019
  %2219 = vmatpush1.bf16.msra.mxu0 %v1018
  %2220 = vmatprep.subr.bf16.mxu0 %v1023
  %2221 = vmatpush1.bf16.msra.mxu0 %v1022
  %2222 = vmatprep.subr.bf16.mxu0 %v1027
  %2223 = vmatpush1.bf16.msra.mxu0 %v1026
  %2224 = vmatprep.subr.bf16.mxu0 %v1031
  %2225 = vmatpush1.bf16.msra.mxu0 %v1030
  %2226 = vmatprep.subr.bf16.mxu0 %v1035
  %2227 = vmatpush1.bf16.msra.mxu0 %v1034
  %2228 = vmatprep.subr.bf16.mxu0 %v1039
  %2229 = vmatpush1.bf16.msra.mxu0 %v1038
  %2230 = vmatprep.subr.bf16.mxu0 %v1043
  %2231 = vmatpush1.bf16.msra.mxu0 %v1042
  %2232 = vmatprep.mubr.bf16.mxu0 %v2199
  %2233 = vmatmul.mubr.bf16.gmra.mrb[0].mxu0 %v2198
  %v2234 = vpop.f32.mrb[0].mxu0
  %v2235 = vadd.f32 %v773, %v2234
  %v2236 = vpop.f32.mrb[0].mxu0
  %v2237 = vadd.f32 %v777, %v2236
  %v2238 = vpop.f32.mrb[0].mxu0
  %v2239 = vpop.f32.mrb[0].mxu0
  %2240 = vdwg.mxu0
  %2241 = vmatprep.subr.bf16.mxu0 %v985
  %2242 = vmatpush1.bf16.msra.mxu0 %v984
  %2243 = vmatprep.subr.bf16.mxu0 %v989
  %2244 = vmatpush1.bf16.msra.mxu0 %v988
  %2245 = vmatprep.subr.bf16.mxu0 %v993
  %2246 = vmatpush1.bf16.msra.mxu0 %v992
  %2247 = vmatprep.subr.bf16.mxu0 %v997
  %2248 = vmatpush1.bf16.msra.mxu0 %v996
  %2249 = vmatprep.subr.bf16.mxu0 %v1001
  %2250 = vmatpush1.bf16.msra.mxu0 %v1000
  %2251 = vmatprep.subr.bf16.mxu0 %v1005
  %2252 = vmatpush1.bf16.msra.mxu0 %v1004
  %2253 = vmatprep.subr.bf16.mxu0 %v1009
  %2254 = vmatpush1.bf16.msra.mxu0 %v1008
  %2255 = vmatprep.subr.bf16.mxu0 %v1013
  %2256 = vmatpush1.bf16.msra.mxu0 %v1012
  %2257 = vmatprep.subr.bf16.mxu0 %v1017
  %2258 = vmatpush1.bf16.msra.mxu0 %v1016
  %2259 = vmatprep.subr.bf16.mxu0 %v1021
  %2260 = vmatpush1.bf16.msra.mxu0 %v1020
  %2261 = vmatprep.subr.bf16.mxu0 %v1025
  %2262 = vmatpush1.bf16.msra.mxu0 %v1024
  %2263 = vmatprep.subr.bf16.mxu0 %v1029
  %2264 = vmatpush1.bf16.msra.mxu0 %v1028
  %2265 = vmatprep.subr.bf16.mxu0 %v1033
  %2266 = vmatpush1.bf16.msra.mxu0 %v1032
  %2267 = vmatprep.subr.bf16.mxu0 %v1037
  %2268 = vmatpush1.bf16.msra.mxu0 %v1036
  %2269 = vmatprep.subr.bf16.mxu0 %v1041
  %2270 = vmatpush1.bf16.msra.mxu0 %v1040
  %2271 = vmatprep.subr.bf16.mxu0 %v1045
  %2272 = vmatpush1.bf16.msra.mxu0 %v1044
  %2273 = vmatprep.mubr.bf16.mxu0 %v2199
  %2274 = vmatmul.mubr.bf16.gmra.mrb[0].mxu0 %v2198
  %v2275 = vpop.f32.mrb[0].mxu0
  %v2276 = vadd.f32 %v781, %v2275
  %v2277 = vpop.f32.mrb[0].mxu0
  %v2278 = vadd.f32 %v785, %v2277
  %v2279 = vpop.f32.mrb[0].mxu0
  %v2280 = vpop.f32.mrb[0].mxu0
  %2281 = vdwg.mxu0
  %v2282 = vxor.u32 %v2235, 2147483648
  %v2283 = vmul.f32 %v2282, 1.442695
  %v2284 = vpow.pop %v2283
  %v2285 = vadd.f32 %v2284, 1.0
  %v2286 = vrcp.pop %v2285
  %v2287 = vmul.f32 1.0, %v2286
  %v2288 = vxor.u32 %v2237, 2147483648
  %v2289 = vmul.f32 %v2288, 1.442695
  %v2290 = vpow.pop %v2289
  %v2291 = vadd.f32 %v2290, 1.0
  %v2292 = vrcp.pop %v2291
  %v2293 = vmul.f32 1.0, %v2292
  %v2294 = vtanh.pop %v2276
  %v2295 = vxor.u32 %v2278, 2147483648
  %v2296 = vmul.f32 %v2295, 1.442695
  %v2297 = vpow.pop %v2296
  %v2298 = vadd.f32 %v2297, 1.0
  %v2299 = vrcp.pop %v2298
  %v2300 = vmul.f32 1.0, %v2299
  %v2301 = vmul.f32 %v2293, %v2085
  %v2302 = vmul.f32 %v2287, %v2294
  %v2303 = vadd.f32 %v2301, %v2302
  %v2304 = vtanh.pop %v2303
  %v2305 = vmul.f32 %v2300, %v2304
  %v2306 = vpack.c.bf16 %v2305, %v2305
  %v2307 = vld [vmem:[%s6] sm:$0xf]
  %v2308 = vld [vmem:[%s6 + $0x4] sm:$0xf]
  %v2309 = vld [vmem:[%s6 + $0x8] sm:$0xf]
  %v2310 = vld [vmem:[%s6 + $0xc] sm:$0xf]
  %v2311 = vld [vmem:[%s6 + $0x10] sm:$0xf]
  %v2312 = vld [vmem:[%s6 + $0x14] sm:$0xf]
  %v2313 = vld [vmem:[%s6 + $0x18] sm:$0xf]
  %v2314 = vld [vmem:[%s6 + $0x1c] sm:$0xf]
  %v2315 = vld [vmem:[%s6 + $0x20] sm:$0xf]
  %v2316 = vld [vmem:[%s6 + $0x24] sm:$0xf]
  %v2317 = vld [vmem:[%s6 + $0x28] sm:$0xf]
  %v2318 = vld [vmem:[%s6 + $0x2c] sm:$0xf]
  %v2319 = vld [vmem:[%s6 + $0x30] sm:$0xf]
  %v2320 = vld [vmem:[%s6 + $0x34] sm:$0xf]
  %v2321 = vld [vmem:[%s6 + $0x38] sm:$0xf]
  %v2322 = vld [vmem:[%s6 + $0x3c] sm:$0xf]
  %v2323 = vld [vmem:[%s7] sm:$0x1]
  %v2325 = vlaneseq
  %v2326 = vshrl.u32 %v2325, 7
  %v2327 = vsub.s32 0, %v2326
  %v2328 = vrot.slane %v2323, %v2327
  %v2346 = vunpack.c.l.b16 %v2307
  %v2347 = vunpack.c.l.b16 %v2308
  %v2348 = vunpack.c.l.b16 %v2309
  %v2349 = vunpack.c.l.b16 %v2310
  %v2350 = vunpack.c.l.b16 %v2311
  %v2351 = vunpack.c.l.b16 %v2312
  %v2352 = vunpack.c.l.b16 %v2313
  %v2353 = vunpack.c.l.b16 %v2314
  %v2354 = vunpack.c.l.b16 %v2315
  %v2355 = vunpack.c.l.b16 %v2316
  %v2356 = vunpack.c.l.b16 %v2317
  %v2357 = vunpack.c.l.b16 %v2318
  %v2358 = vunpack.c.l.b16 %v2319
  %v2359 = vunpack.c.l.b16 %v2320
  %v2360 = vunpack.c.l.b16 %v2321
  %v2361 = vunpack.c.l.b16 %v2322
  %v2362 = vpack.c.b16 %v2347, %v2346
  %v2363 = vpack.c.b16 %v2349, %v2348
  %v2364 = vpack.c.b16 %v2351, %v2350
  %v2365 = vpack.c.b16 %v2353, %v2352
  %v2366 = vpack.c.b16 %v2355, %v2354
  %v2367 = vpack.c.b16 %v2357, %v2356
  %v2368 = vpack.c.b16 %v2359, %v2358
  %v2369 = vpack.c.b16 %v2361, %v2360
  %2378 = vmatprep.subr.bf16.mxu0 0
  %2379 = vmatpush1.bf16.msra.mxu0 %v2362
  %2380 = vmatprep.subr.bf16.mxu0 0
  %2381 = vmatpush1.bf16.msra.mxu0 %v2363
  %2382 = vmatprep.subr.bf16.mxu0 0
  %2383 = vmatpush1.bf16.msra.mxu0 %v2364
  %2384 = vmatprep.subr.bf16.mxu0 0
  %2385 = vmatpush1.bf16.msra.mxu0 %v2365
  %2386 = vmatprep.subr.bf16.mxu0 0
  %2387 = vmatpush1.bf16.msra.mxu0 %v2366
  %2388 = vmatprep.subr.bf16.mxu0 0
  %2389 = vmatpush1.bf16.msra.mxu0 %v2367
  %2390 = vmatprep.subr.bf16.mxu0 0
  %2391 = vmatpush1.bf16.msra.mxu0 %v2368
  %2392 = vmatprep.subr.bf16.mxu0 0
  %2393 = vmatpush1.bf16.msra.mxu0 %v2369
  %2394 = vmatprep.subr.bf16.mxu0 0
  %2395 = vmatpush1.bf16.msra.mxu0 0
  %2396 = vmatprep.subr.bf16.mxu0 0
  %2397 = vmatpush1.bf16.msra.mxu0 0
  %2398 = vmatprep.subr.bf16.mxu0 0
  %2399 = vmatpush1.bf16.msra.mxu0 0
  %2400 = vmatprep.subr.bf16.mxu0 0
  %2401 = vmatpush1.bf16.msra.mxu0 0
  %2402 = vmatprep.subr.bf16.mxu0 0
  %2403 = vmatpush1.bf16.msra.mxu0 0
  %2404 = vmatprep.subr.bf16.mxu0 0
  %2405 = vmatpush1.bf16.msra.mxu0 0
  %2406 = vmatprep.subr.bf16.mxu0 0
  %2407 = vmatpush1.bf16.msra.mxu0 0
  %2408 = vmatprep.subr.bf16.mxu0 0
  %2409 = vmatpush1.bf16.msra.mxu0 0
  %2410 = vmatprep.mubr.bf16.mxu0 0
  %2411 = vmatmul.mubr.bf16.gmra.mrb[0].mxu0 %v2306
  %v2412 = vpop.f32.mrb[0].mxu0
  %v2413 = vadd.f32 %v2328, %v2412
  %v2414 = vpop.f32.mrb[0].mxu0
  %v2415 = vpop.f32.mrb[0].mxu0
  %v2416 = vpop.f32.mrb[0].mxu0
  %2417 = vdwg.mxu0
  %v2418 = vmax.f32 %v2413, 0.0
  %v2419 = vpack.c.bf16 %v2418, %v2418
  %v2420 = vld [vmem:[%s8] sm:$0xf]
  %v2421 = vld [vmem:[%s8 + $0x4] sm:$0xf]
  %v2422 = vld [vmem:[%s8 + $0x8] sm:$0xf]
  %v2423 = vld [vmem:[%s8 + $0xc] sm:$0xf]
  %v2424 = vld [vmem:[%s8 + $0x10] sm:$0xf]
  %v2425 = vld [vmem:[%s8 + $0x14] sm:$0xf]
  %v2426 = vld [vmem:[%s8 + $0x18] sm:$0xf]
  %v2427 = vld [vmem:[%s8 + $0x1c] sm:$0xf]
  %v2428 = vld [vmem:[%s8 + $0x20] sm:$0xf]
  %v2429 = vld [vmem:[%s8 + $0x24] sm:$0xf]
  %v2430 = vld [vmem:[%s8 + $0x28] sm:$0xf]
  %v2431 = vld [vmem:[%s8 + $0x2c] sm:$0xf]
  %v2432 = vld [vmem:[%s8 + $0x30] sm:$0xf]
  %v2433 = vld [vmem:[%s8 + $0x34] sm:$0xf]
  %v2434 = vld [vmem:[%s8 + $0x38] sm:$0xf]
  %v2435 = vld [vmem:[%s8 + $0x3c] sm:$0xf]
  %v2436 = vld [vmem:[%s9] sm:$0x1]
  %v2438 = vlaneseq
  %v2439 = vshrl.u32 %v2438, 7
  %v2440 = vsub.s32 0, %v2439
  %v2441 = vrot.slane %v2436, %v2440
  %v2459 = vunpack.c.l.b16 %v2420
  %v2460 = vunpack.c.l.b16 %v2421
  %v2461 = vunpack.c.l.b16 %v2422
  %v2462 = vunpack.c.l.b16 %v2423
  %v2463 = vunpack.c.l.b16 %v2424
  %v2464 = vunpack.c.l.b16 %v2425
  %v2465 = vunpack.c.l.b16 %v2426
  %v2466 = vunpack.c.l.b16 %v2427
  %v2467 = vunpack.c.l.b16 %v2428
  %v2468 = vunpack.c.l.b16 %v2429
  %v2469 = vunpack.c.l.b16 %v2430
  %v2470 = vunpack.c.l.b16 %v2431
  %v2471 = vunpack.c.l.b16 %v2432
  %v2472 = vunpack.c.l.b16 %v2433
  %v2473 = vunpack.c.l.b16 %v2434
  %v2474 = vunpack.c.l.b16 %v2435
  %v2475 = vpack.c.b16 %v2460, %v2459
  %v2476 = vpack.c.b16 %v2462, %v2461
  %v2477 = vpack.c.b16 %v2464, %v2463
  %v2478 = vpack.c.b16 %v2466, %v2465
  %v2479 = vpack.c.b16 %v2468, %v2467
  %v2480 = vpack.c.b16 %v2470, %v2469
  %v2481 = vpack.c.b16 %v2472, %v2471
  %v2482 = vpack.c.b16 %v2474, %v2473
  %2491 = vmatprep.subr.bf16.mxu0 0
  %2492 = vmatpush1.bf16.msra.mxu0 %v2475
  %2493 = vmatprep.subr.bf16.mxu0 0
  %2494 = vmatpush1.bf16.msra.mxu0 %v2476
  %2495 = vmatprep.subr.bf16.mxu0 0
  %2496 = vmatpush1.bf16.msra.mxu0 %v2477
  %2497 = vmatprep.subr.bf16.mxu0 0
  %2498 = vmatpush1.bf16.msra.mxu0 %v2478
  %2499 = vmatprep.subr.bf16.mxu0 0
  %2500 = vmatpush1.bf16.msra.mxu0 %v2479
  %2501 = vmatprep.subr.bf16.mxu0 0
  %2502 = vmatpush1.bf16.msra.mxu0 %v2480
  %2503 = vmatprep.subr.bf16.mxu0 0
  %2504 = vmatpush1.bf16.msra.mxu0 %v2481
  %2505 = vmatprep.subr.bf16.mxu0 0
  %2506 = vmatpush1.bf16.msra.mxu0 %v2482
  %2507 = vmatprep.subr.bf16.mxu0 0
  %2508 = vmatpush1.bf16.msra.mxu0 0
  %2509 = vmatprep.subr.bf16.mxu0 0
  %2510 = vmatpush1.bf16.msra.mxu0 0
  %2511 = vmatprep.subr.bf16.mxu0 0
  %2512 = vmatpush1.bf16.msra.mxu0 0
  %2513 = vmatprep.subr.bf16.mxu0 0
  %2514 = vmatpush1.bf16.msra.mxu0 0
  %2515 = vmatprep.subr.bf16.mxu0 0
  %2516 = vmatpush1.bf16.msra.mxu0 0
  %2517 = vmatprep.subr.bf16.mxu0 0
  %2518 = vmatpush1.bf16.msra.mxu0 0
  %2519 = vmatprep.subr.bf16.mxu0 0
  %2520 = vmatpush1.bf16.msra.mxu0 0
  %2521 = vmatprep.subr.bf16.mxu0 0
  %2522 = vmatpush1.bf16.msra.mxu0 0
  %2523 = vmatprep.mubr.bf16.mxu0 0
  %2524 = vmatmul.mubr.bf16.gmra.mrb[0].mxu0 %v2419
  %v2525 = vpop.f32.mrb[0].mxu0
  %v2526 = vadd.f32 %v2441, %v2525
  %v2527 = vpop.f32.mrb[0].mxu0
  %v2528 = vpop.f32.mrb[0].mxu0
  %v2529 = vpop.f32.mrb[0].mxu0
  %2530 = vdwg.mxu0
  %2531 = vst [vmem:[%s10] sm:$0xff] %v2526
  // Predicated region
  $region42: #{forward.7} parent=0 // pred_check
    _
  $region43: #{forward.7} parent=0 // pred_check_branch
    %2533 = sbr.rel (0) target = $region45
  $region44: #{forward.7} parent=0 // pred_region
    _
  $region45: #{forward.7} parent=0 // pred_fallthru
    _
  // Predicated region
  $region46: #{forward.7} parent=0 // pred_check
    _
  $region47: #{forward.7} parent=0 // pred_check_branch
    %2535 = sbr.rel (0) target = $region49
  $region48: #{forward.7} parent=0 // pred_region
    _
  $region49: #{forward.7} parent=0 // pred_fallthru
    _

// kernel: forward.6
$region0: #{forward.6}
  #allocation0 [shape = 'u32[]', space=smem, size = 0x4, offset = 0x4, fixed_abs, tag = 'smem constant byte address 0x4 - core index']
  #allocation1 [shape = 'u32[144,128]{1,0:T(1,128)}', space=vmem, size = 0x12000, scoped, tag = 'internal scratch']
  %s0 = inlined_call_operand.vmem [shape: bf16[128,1152], index: 0, kind: input, shape index: {}]
  %s1 = inlined_call_operand.vmem [shape: bf16[1152,128], index: 1, kind: input, shape index: {}]
  %s2 = inlined_call_operand.vmem [shape: f32[1,128], index: 2, kind: input, shape index: {}]
  %s3 = inlined_call_operand.vmem [shape: bf16[128,768], index: 3, kind: input, shape index: {}]
  %s4 = inlined_call_operand.vmem [shape: f32[1,768], index: 4, kind: input, shape index: {}]
  %s5 = inlined_call_operand.vmem [shape: bf16[8,768], index: 5, kind: output, shape index: {}]
  %s6 = sld [smem:[#allocation0]]
  $region30: #{forward.6} parent=0
    _
  %s8 = ssub.s32 1, %s6
  %s9 = scalar_select 0, %s8, %s6
  // Predicated region
  $region2: #{forward.6} parent=0 // pred_check
    _
  $region3: #{forward.6} parent=0 // pred_check_branch
    %11 = sbr.rel (0) target = $region5
  $region4: #{forward.6} parent=0 // pred_region
    _
  $region5: #{forward.6} parent=0 // pred_fallthru
    _
  // Predicated region
  $region6: #{forward.6} parent=0 // pred_check
    _
  $region7: #{forward.6} parent=0 // pred_check_branch
    %13 = sbr.rel (0) target = $region9
  $region8: #{forward.6} parent=0 // pred_region
    _
  $region9: #{forward.6} parent=0 // pred_fallthru
    _
  // Predicated region
  $region10: #{forward.6} parent=0 // pred_check
    _
  $region11: #{forward.6} parent=0 // pred_check_branch
    %15 = sbr.rel (0) target = $region13
  $region12: #{forward.6} parent=0 // pred_region
    _
  $region13: #{forward.6} parent=0 // pred_fallthru
    _
  // Predicated region
  $region14: #{forward.6} parent=0 // pred_check
    _
  $region15: #{forward.6} parent=0 // pred_check_branch
    %17 = sbr.rel (0) target = $region17
  $region16: #{forward.6} parent=0 // pred_region
    _
  $region17: #{forward.6} parent=0 // pred_fallthru
    _
  // Predicated region
  $region18: #{forward.6} parent=0 // pred_check
    _
  $region19: #{forward.6} parent=0 // pred_check_branch
    %19 = sbr.rel (0) target = $region21
  $region20: #{forward.6} parent=0 // pred_region
    _
  $region21: #{forward.6} parent=0 // pred_fallthru
    _
  %v21 = vld [vmem:[%s0] sm:$0xff]
  %v22 = vld [vmem:[%s0 + $0x8] sm:$0xff]
  %v23 = vld [vmem:[%s0 + $0x10] sm:$0xff]
  %v24 = vld [vmem:[%s0 + $0x18] sm:$0xff]
  %v25 = vld [vmem:[%s0 + $0x20] sm:$0xf]
  %v26 = vld [vmem:[%s0 + $0x24] sm:$0xff]
  %v27 = vld [vmem:[%s0 + $0x2c] sm:$0xff]
  %v28 = vld [vmem:[%s0 + $0x34] sm:$0xff]
  %v29 = vld [vmem:[%s0 + $0x3c] sm:$0xff]
  %v30 = vld [vmem:[%s0 + $0x44] sm:$0xf]
  %v31 = vld [vmem:[%s0 + $0x48] sm:$0xff]
  %v32 = vld [vmem:[%s0 + $0x50] sm:$0xff]
  %v33 = vld [vmem:[%s0 + $0x58] sm:$0xff]
  %v34 = vld [vmem:[%s0 + $0x60] sm:$0xff]
  %v35 = vld [vmem:[%s0 + $0x68] sm:$0xf]
  %v36 = vld [vmem:[%s0 + $0x6c] sm:$0xff]
  %v37 = vld [vmem:[%s0 + $0x74] sm:$0xff]
  %v38 = vld [vmem:[%s0 + $0x7c] sm:$0xff]
  %v39 = vld [vmem:[%s0 + $0x84] sm:$0xff]
  %v40 = vld [vmem:[%s0 + $0x8c] sm:$0xf]
  %v41 = vld [vmem:[%s0 + $0x90] sm:$0xff]
  %v42 = vld [vmem:[%s0 + $0x98] sm:$0xff]
  %v43 = vld [vmem:[%s0 + $0xa0] sm:$0xff]
  %v44 = vld [vmem:[%s0 + $0xa8] sm:$0xff]
  %v45 = vld [vmem:[%s0 + $0xb0] sm:$0xf]
  %v46 = vld [vmem:[%s0 + $0xb4] sm:$0xff]
  %v47 = vld [vmem:[%s0 + $0xbc] sm:$0xff]
  %v48 = vld [vmem:[%s0 + $0xc4] sm:$0xff]
  %v49 = vld [vmem:[%s0 + $0xcc] sm:$0xff]
  %v50 = vld [vmem:[%s0 + $0xd4] sm:$0xf]
  %v51 = vld [vmem:[%s0 + $0xd8] sm:$0xff]
  %v52 = vld [vmem:[%s0 + $0xe0] sm:$0xff]
  %v53 = vld [vmem:[%s0 + $0xe8] sm:$0xff]
  %v54 = vld [vmem:[%s0 + $0xf0] sm:$0xff]
  %v55 = vld [vmem:[%s0 + $0xf8] sm:$0xf]
  %v56 = vld [vmem:[%s0 + $0xfc] sm:$0xff]
  %v57 = vld [vmem:[%s0 + $0x104] sm:$0xff]
  %v58 = vld [vmem:[%s0 + $0x10c] sm:$0xff]
  %v59 = vld [vmem:[%s0 + $0x114] sm:$0xff]
  %v60 = vld [vmem:[%s0 + $0x11c] sm:$0xf]
  %v61 = vld [vmem:[%s0 + $0x120] sm:$0xff]
  %v62 = vld [vmem:[%s0 + $0x128] sm:$0xff]
  %v63 = vld [vmem:[%s0 + $0x130] sm:$0xff]
  %v64 = vld [vmem:[%s0 + $0x138] sm:$0xff]
  %v65 = vld [vmem:[%s0 + $0x140] sm:$0xf]
  %v66 = vld [vmem:[%s0 + $0x144] sm:$0xff]
  %v67 = vld [vmem:[%s0 + $0x14c] sm:$0xff]
  %v68 = vld [vmem:[%s0 + $0x154] sm:$0xff]
  %v69 = vld [vmem:[%s0 + $0x15c] sm:$0xff]
  %v70 = vld [vmem:[%s0 + $0x164] sm:$0xf]
  %v71 = vld [vmem:[%s0 + $0x168] sm:$0xff]
  %v72 = vld [vmem:[%s0 + $0x170] sm:$0xff]
  %v73 = vld [vmem:[%s0 + $0x178] sm:$0xff]
  %v74 = vld [vmem:[%s0 + $0x180] sm:$0xff]
  %v75 = vld [vmem:[%s0 + $0x188] sm:$0xf]
  %v76 = vld [vmem:[%s0 + $0x18c] sm:$0xff]
  %v77 = vld [vmem:[%s0 + $0x194] sm:$0xff]
  %v78 = vld [vmem:[%s0 + $0x19c] sm:$0xff]
  %v79 = vld [vmem:[%s0 + $0x1a4] sm:$0xff]
  %v80 = vld [vmem:[%s0 + $0x1ac] sm:$0xf]
  %v81 = vld [vmem:[%s0 + $0x1b0] sm:$0xff]
  %v82 = vld [vmem:[%s0 + $0x1b8] sm:$0xff]
  %v83 = vld [vmem:[%s0 + $0x1c0] sm:$0xff]
  %v84 = vld [vmem:[%s0 + $0x1c8] sm:$0xff]
  %v85 = vld [vmem:[%s0 + $0x1d0] sm:$0xf]
  %v86 = vld [vmem:[%s0 + $0x1d4] sm:$0xff]
  %v87 = vld [vmem:[%s0 + $0x1dc] sm:$0xff]
  %v88 = vld [vmem:[%s0 + $0x1e4] sm:$0xff]
  %v89 = vld [vmem:[%s0 + $0x1ec] sm:$0xff]
  %v90 = vld [vmem:[%s0 + $0x1f4] sm:$0xf]
  %v91 = vld [vmem:[%s0 + $0x1f8] sm:$0xff]
  %v92 = vld [vmem:[%s0 + $0x200] sm:$0xff]
  %v93 = vld [vmem:[%s0 + $0x208] sm:$0xff]
  %v94 = vld [vmem:[%s0 + $0x210] sm:$0xff]
  %v95 = vld [vmem:[%s0 + $0x218] sm:$0xf]
  %v96 = vld [vmem:[%s0 + $0x21c] sm:$0xff]
  %v97 = vld [vmem:[%s0 + $0x224] sm:$0xff]
  %v98 = vld [vmem:[%s0 + $0x22c] sm:$0xff]
  %v99 = vld [vmem:[%s0 + $0x234] sm:$0xff]
  %v100 = vld [vmem:[%s0 + $0x23c] sm:$0xf]
  %v101 = vld [vmem:[%s1] sm:$0xf]
  %v102 = vld [vmem:[%s1 + $0x4] sm:$0xf]
  %v103 = vld [vmem:[%s1 + $0x8] sm:$0xf]
  %v104 = vld [vmem:[%s1 + $0xc] sm:$0xf]
  %v105 = vld [vmem:[%s1 + $0x10] sm:$0xf]
  %v106 = vld [vmem:[%s1 + $0x14] sm:$0xf]
  %v107 = vld [vmem:[%s1 + $0x18] sm:$0xf]
  %v108 = vld [vmem:[%s1 + $0x1c] sm:$0xf]
  %v109 = vld [vmem:[%s1 + $0x20] sm:$0xf]
  %v110 = vld [vmem:[%s1 + $0x24] sm:$0xf]
  %v111 = vld [vmem:[%s1 + $0x28] sm:$0xf]
  %v112 = vld [vmem:[%s1 + $0x2c] sm:$0xf]
  %v113 = vld [vmem:[%s1 + $0x30] sm:$0xf]
  %v114 = vld [vmem:[%s1 + $0x34] sm:$0xf]
  %v115 = vld [vmem:[%s1 + $0x38] sm:$0xf]
  %v116 = vld [vmem:[%s1 + $0x3c] sm:$0xf]
  %v117 = vld [vmem:[%s1 + $0x40] sm:$0xf]
  %v118 = vld [vmem:[%s1 + $0x44] sm:$0xf]
  %v119 = vld [vmem:[%s1 + $0x48] sm:$0xf]
  %v120 = vld [vmem:[%s1 + $0x4c] sm:$0xf]
  %v121 = vld [vmem:[%s1 + $0x50] sm:$0xf]
  %v122 = vld [vmem:[%s1 + $0x54] sm:$0xf]
  %v123 = vld [vmem:[%s1 + $0x58] sm:$0xf]
  %v124 = vld [vmem:[%s1 + $0x5c] sm:$0xf]
  %v125 = vld [vmem:[%s1 + $0x60] sm:$0xf]
  %v126 = vld [vmem:[%s1 + $0x64] sm:$0xf]
  %v127 = vld [vmem:[%s1 + $0x68] sm:$0xf]
  %v128 = vld [vmem:[%s1 + $0x6c] sm:$0xf]
  %v129 = vld [vmem:[%s1 + $0x70] sm:$0xf]
  %v130 = vld [vmem:[%s1 + $0x74] sm:$0xf]
  %v131 = vld [vmem:[%s1 + $0x78] sm:$0xf]
  %v132 = vld [vmem:[%s1 + $0x7c] sm:$0xf]
  %v133 = vld [vmem:[%s1 + $0x80] sm:$0xf]
  %v134 = vld [vmem:[%s1 + $0x84] sm:$0xf]
  %v135 = vld [vmem:[%s1 + $0x88] sm:$0xf]
  %v136 = vld [vmem:[%s1 + $0x8c] sm:$0xf]
  %v137 = vld [vmem:[%s1 + $0x90] sm:$0xf]
  %v138 = vld [vmem:[%s1 + $0x94] sm:$0xf]
  %v139 = vld [vmem:[%s1 + $0x98] sm:$0xf]
  %v140 = vld [vmem:[%s1 + $0x9c] sm:$0xf]
  %v141 = vld [vmem:[%s1 + $0xa0] sm:$0xf]
  %v142 = vld [vmem:[%s1 + $0xa4] sm:$0xf]
  %v143 = vld [vmem:[%s1 + $0xa8] sm:$0xf]
  %v144 = vld [vmem:[%s1 + $0xac] sm:$0xf]
  %v145 = vld [vmem:[%s1 + $0xb0] sm:$0xf]
  %v146 = vld [vmem:[%s1 + $0xb4] sm:$0xf]
  %v147 = vld [vmem:[%s1 + $0xb8] sm:$0xf]
  %v148 = vld [vmem:[%s1 + $0xbc] sm:$0xf]
  %v149 = vld [vmem:[%s1 + $0xc0] sm:$0xf]
  %v150 = vld [vmem:[%s1 + $0xc4] sm:$0xf]
  %v151 = vld [vmem:[%s1 + $0xc8] sm:$0xf]
  %v152 = vld [vmem:[%s1 + $0xcc] sm:$0xf]
  %v153 = vld [vmem:[%s1 + $0xd0] sm:$0xf]
  %v154 = vld [vmem:[%s1 + $0xd4] sm:$0xf]
  %v155 = vld [vmem:[%s1 + $0xd8] sm:$0xf]
  %v156 = vld [vmem:[%s1 + $0xdc] sm:$0xf]
  %v157 = vld [vmem:[%s1 + $0xe0] sm:$0xf]
  %v158 = vld [vmem:[%s1 + $0xe4] sm:$0xf]
  %v159 = vld [vmem:[%s1 + $0xe8] sm:$0xf]
  %v160 = vld [vmem:[%s1 + $0xec] sm:$0xf]
  %v161 = vld [vmem:[%s1 + $0xf0] sm:$0xf]
  %v162 = vld [vmem:[%s1 + $0xf4] sm:$0xf]
  %v163 = vld [vmem:[%s1 + $0xf8] sm:$0xf]
  %v164 = vld [vmem:[%s1 + $0xfc] sm:$0xf]
  %v165 = vld [vmem:[%s1 + $0x100] sm:$0xf]
  %v166 = vld [vmem:[%s1 + $0x104] sm:$0xf]
  %v167 = vld [vmem:[%s1 + $0x108] sm:$0xf]
  %v168 = vld [vmem:[%s1 + $0x10c] sm:$0xf]
  %v169 = vld [vmem:[%s1 + $0x110] sm:$0xf]
  %v170 = vld [vmem:[%s1 + $0x114] sm:$0xf]
  %v171 = vld [vmem:[%s1 + $0x118] sm:$0xf]
  %v172 = vld [vmem:[%s1 + $0x11c] sm:$0xf]
  %v173 = vld [vmem:[%s1 + $0x120] sm:$0xf]
  %v174 = vld [vmem:[%s1 + $0x124] sm:$0xf]
  %v175 = vld [vmem:[%s1 + $0x128] sm:$0xf]
  %v176 = vld [vmem:[%s1 + $0x12c] sm:$0xf]
  %v177 = vld [vmem:[%s1 + $0x130] sm:$0xf]
  %v178 = vld [vmem:[%s1 + $0x134] sm:$0xf]
  %v179 = vld [vmem:[%s1 + $0x138] sm:$0xf]
  %v180 = vld [vmem:[%s1 + $0x13c] sm:$0xf]
  %v181 = vld [vmem:[%s1 + $0x140] sm:$0xf]
  %v182 = vld [vmem:[%s1 + $0x144] sm:$0xf]
  %v183 = vld [vmem:[%s1 + $0x148] sm:$0xf]
  %v184 = vld [vmem:[%s1 + $0x14c] sm:$0xf]
  %v185 = vld [vmem:[%s1 + $0x150] sm:$0xf]
  %v186 = vld [vmem:[%s1 + $0x154] sm:$0xf]
  %v187 = vld [vmem:[%s1 + $0x158] sm:$0xf]
  %v188 = vld [vmem:[%s1 + $0x15c] sm:$0xf]
  %v189 = vld [vmem:[%s1 + $0x160] sm:$0xf]
  %v190 = vld [vmem:[%s1 + $0x164] sm:$0xf]
  %v191 = vld [vmem:[%s1 + $0x168] sm:$0xf]
  %v192 = vld [vmem:[%s1 + $0x16c] sm:$0xf]
  %v193 = vld [vmem:[%s1 + $0x170] sm:$0xf]
  %v194 = vld [vmem:[%s1 + $0x174] sm:$0xf]
  %v195 = vld [vmem:[%s1 + $0x178] sm:$0xf]
  %v196 = vld [vmem:[%s1 + $0x17c] sm:$0xf]
  %v197 = vld [vmem:[%s1 + $0x180] sm:$0xf]
  %v198 = vld [vmem:[%s1 + $0x184] sm:$0xf]
  %v199 = vld [vmem:[%s1 + $0x188] sm:$0xf]
  %v200 = vld [vmem:[%s1 + $0x18c] sm:$0xf]
  %v201 = vld [vmem:[%s1 + $0x190] sm:$0xf]
  %v202 = vld [vmem:[%s1 + $0x194] sm:$0xf]
  %v203 = vld [vmem:[%s1 + $0x198] sm:$0xf]
  %v204 = vld [vmem:[%s1 + $0x19c] sm:$0xf]
  %v205 = vld [vmem:[%s1 + $0x1a0] sm:$0xf]
  %v206 = vld [vmem:[%s1 + $0x1a4] sm:$0xf]
  %v207 = vld [vmem:[%s1 + $0x1a8] sm:$0xf]
  %v208 = vld [vmem:[%s1 + $0x1ac] sm:$0xf]
  %v209 = vld [vmem:[%s1 + $0x1b0] sm:$0xf]
  %v210 = vld [vmem:[%s1 + $0x1b4] sm:$0xf]
  %v211 = vld [vmem:[%s1 + $0x1b8] sm:$0xf]
  %v212 = vld [vmem:[%s1 + $0x1bc] sm:$0xf]
  %v213 = vld [vmem:[%s1 + $0x1c0] sm:$0xf]
  %v214 = vld [vmem:[%s1 + $0x1c4] sm:$0xf]
  %v215 = vld [vmem:[%s1 + $0x1c8] sm:$0xf]
  %v216 = vld [vmem:[%s1 + $0x1cc] sm:$0xf]
  %v217 = vld [vmem:[%s1 + $0x1d0] sm:$0xf]
  %v218 = vld [vmem:[%s1 + $0x1d4] sm:$0xf]
  %v219 = vld [vmem:[%s1 + $0x1d8] sm:$0xf]
  %v220 = vld [vmem:[%s1 + $0x1dc] sm:$0xf]
  %v221 = vld [vmem:[%s1 + $0x1e0] sm:$0xf]
  %v222 = vld [vmem:[%s1 + $0x1e4] sm:$0xf]
  %v223 = vld [vmem:[%s1 + $0x1e8] sm:$0xf]
  %v224 = vld [vmem:[%s1 + $0x1ec] sm:$0xf]
  %v225 = vld [vmem:[%s1 + $0x1f0] sm:$0xf]
  %v226 = vld [vmem:[%s1 + $0x1f4] sm:$0xf]
  %v227 = vld [vmem:[%s1 + $0x1f8] sm:$0xf]
  %v228 = vld [vmem:[%s1 + $0x1fc] sm:$0xf]
  %v229 = vld [vmem:[%s1 + $0x200] sm:$0xf]
  %v230 = vld [vmem:[%s1 + $0x204] sm:$0xf]
  %v231 = vld [vmem:[%s1 + $0x208] sm:$0xf]
  %v232 = vld [vmem:[%s1 + $0x20c] sm:$0xf]
  %v233 = vld [vmem:[%s1 + $0x210] sm:$0xf]
  %v234 = vld [vmem:[%s1 + $0x214] sm:$0xf]
  %v235 = vld [vmem:[%s1 + $0x218] sm:$0xf]
  %v236 = vld [vmem:[%s1 + $0x21c] sm:$0xf]
  %v237 = vld [vmem:[%s1 + $0x220] sm:$0xf]
  %v238 = vld [vmem:[%s1 + $0x224] sm:$0xf]
  %v239 = vld [vmem:[%s1 + $0x228] sm:$0xf]
  %v240 = vld [vmem:[%s1 + $0x22c] sm:$0xf]
  %v241 = vld [vmem:[%s1 + $0x230] sm:$0xf]
  %v242 = vld [vmem:[%s1 + $0x234] sm:$0xf]
  %v243 = vld [vmem:[%s1 + $0x238] sm:$0xf]
  %v244 = vld [vmem:[%s1 + $0x23c] sm:$0xf]
  %v245 = vld [vmem:[%s2] sm:$0x1]
  %v247 = vlaneseq
  %v248 = vshrl.u32 %v247, 7
  %v249 = vsub.s32 0, %v248
  %v250 = vrot.slane %v245, %v249
  %v332 = vunpack.c.l.b16 %v21
  %v333 = vunpack.c.h.b16 %v21
  %v334 = vunpack.c.l.b16 %v22
  %v335 = vunpack.c.h.b16 %v22
  %v336 = vunpack.c.l.b16 %v23
  %v337 = vunpack.c.h.b16 %v23
  %v338 = vunpack.c.l.b16 %v24
  %v339 = vunpack.c.h.b16 %v24
  %v340 = vunpack.c.l.b16 %v25
  %v341 = vunpack.c.l.b16 %v26
  %v342 = vunpack.c.h.b16 %v26
  %v343 = vunpack.c.l.b16 %v27
  %v344 = vunpack.c.h.b16 %v27
  %v345 = vunpack.c.l.b16 %v28
  %v346 = vunpack.c.h.b16 %v28
  %v347 = vunpack.c.l.b16 %v29
  %v348 = vunpack.c.h.b16 %v29
  %v349 = vunpack.c.l.b16 %v30
  %v350 = vunpack.c.l.b16 %v31
  %v351 = vunpack.c.h.b16 %v31
  %v352 = vunpack.c.l.b16 %v32
  %v353 = vunpack.c.h.b16 %v32
  %v354 = vunpack.c.l.b16 %v33
  %v355 = vunpack.c.h.b16 %v33
  %v356 = vunpack.c.l.b16 %v34
  %v357 = vunpack.c.h.b16 %v34
  %v358 = vunpack.c.l.b16 %v35
  %v359 = vunpack.c.l.b16 %v36
  %v360 = vunpack.c.h.b16 %v36
  %v361 = vunpack.c.l.b16 %v37
  %v362 = vunpack.c.h.b16 %v37
  %v363 = vunpack.c.l.b16 %v38
  %v364 = vunpack.c.h.b16 %v38
  %v365 = vunpack.c.l.b16 %v39
  %v366 = vunpack.c.h.b16 %v39
  %v367 = vunpack.c.l.b16 %v40
  %v368 = vunpack.c.l.b16 %v41
  %v369 = vunpack.c.h.b16 %v41
  %v370 = vunpack.c.l.b16 %v42
  %v371 = vunpack.c.h.b16 %v42
  %v372 = vunpack.c.l.b16 %v43
  %v373 = vunpack.c.h.b16 %v43
  %v374 = vunpack.c.l.b16 %v44
  %v375 = vunpack.c.h.b16 %v44
  %v376 = vunpack.c.l.b16 %v45
  %v377 = vunpack.c.l.b16 %v46
  %v378 = vunpack.c.h.b16 %v46
  %v379 = vunpack.c.l.b16 %v47
  %v380 = vunpack.c.h.b16 %v47
  %v381 = vunpack.c.l.b16 %v48
  %v382 = vunpack.c.h.b16 %v48
  %v383 = vunpack.c.l.b16 %v49
  %v384 = vunpack.c.h.b16 %v49
  %v385 = vunpack.c.l.b16 %v50
  %v386 = vunpack.c.l.b16 %v51
  %v387 = vunpack.c.h.b16 %v51
  %v388 = vunpack.c.l.b16 %v52
  %v389 = vunpack.c.h.b16 %v52
  %v390 = vunpack.c.l.b16 %v53
  %v391 = vunpack.c.h.b16 %v53
  %v392 = vunpack.c.l.b16 %v54
  %v393 = vunpack.c.h.b16 %v54
  %v394 = vunpack.c.l.b16 %v55
  %v395 = vunpack.c.l.b16 %v56
  %v396 = vunpack.c.h.b16 %v56
  %v397 = vunpack.c.l.b16 %v57
  %v398 = vunpack.c.h.b16 %v57
  %v399 = vunpack.c.l.b16 %v58
  %v400 = vunpack.c.h.b16 %v58
  %v401 = vunpack.c.l.b16 %v59
  %v402 = vunpack.c.h.b16 %v59
  %v403 = vunpack.c.l.b16 %v60
  %v404 = vunpack.c.l.b16 %v61
  %v405 = vunpack.c.h.b16 %v61
  %v406 = vunpack.c.l.b16 %v62
  %v407 = vunpack.c.h.b16 %v62
  %v408 = vunpack.c.l.b16 %v63
  %v409 = vunpack.c.h.b16 %v63
  %v410 = vunpack.c.l.b16 %v64
  %v411 = vunpack.c.h.b16 %v64
  %v412 = vunpack.c.l.b16 %v65
  %v413 = vunpack.c.l.b16 %v66
  %v414 = vunpack.c.h.b16 %v66
  %v415 = vunpack.c.l.b16 %v67
  %v416 = vunpack.c.h.b16 %v67
  %v417 = vunpack.c.l.b16 %v68
  %v418 = vunpack.c.h.b16 %v68
  %v419 = vunpack.c.l.b16 %v69
  %v420 = vunpack.c.h.b16 %v69
  %v421 = vunpack.c.l.b16 %v70
  %v422 = vunpack.c.l.b16 %v71
  %v423 = vunpack.c.h.b16 %v71
  %v424 = vunpack.c.l.b16 %v72
  %v425 = vunpack.c.h.b16 %v72
  %v426 = vunpack.c.l.b16 %v73
  %v427 = vunpack.c.h.b16 %v73
  %v428 = vunpack.c.l.b16 %v74
  %v429 = vunpack.c.h.b16 %v74
  %v430 = vunpack.c.l.b16 %v75
  %v431 = vunpack.c.l.b16 %v76
  %v432 = vunpack.c.h.b16 %v76
  %v433 = vunpack.c.l.b16 %v77
  %v434 = vunpack.c.h.b16 %v77
  %v435 = vunpack.c.l.b16 %v78
  %v436 = vunpack.c.h.b16 %v78
  %v437 = vunpack.c.l.b16 %v79
  %v438 = vunpack.c.h.b16 %v79
  %v439 = vunpack.c.l.b16 %v80
  %v440 = vunpack.c.l.b16 %v81
  %v441 = vunpack.c.h.b16 %v81
  %v442 = vunpack.c.l.b16 %v82
  %v443 = vunpack.c.h.b16 %v82
  %v444 = vunpack.c.l.b16 %v83
  %v445 = vunpack.c.h.b16 %v83
  %v446 = vunpack.c.l.b16 %v84
  %v447 = vunpack.c.h.b16 %v84
  %v448 = vunpack.c.l.b16 %v85
  %v449 = vunpack.c.l.b16 %v86
  %v450 = vunpack.c.h.b16 %v86
  %v451 = vunpack.c.l.b16 %v87
  %v452 = vunpack.c.h.b16 %v87
  %v453 = vunpack.c.l.b16 %v88
  %v454 = vunpack.c.h.b16 %v88
  %v455 = vunpack.c.l.b16 %v89
  %v456 = vunpack.c.h.b16 %v89
  %v457 = vunpack.c.l.b16 %v90
  %v458 = vunpack.c.l.b16 %v91
  %v459 = vunpack.c.h.b16 %v91
  %v460 = vunpack.c.l.b16 %v92
  %v461 = vunpack.c.h.b16 %v92
  %v462 = vunpack.c.l.b16 %v93
  %v463 = vunpack.c.h.b16 %v93
  %v464 = vunpack.c.l.b16 %v94
  %v465 = vunpack.c.h.b16 %v94
  %v466 = vunpack.c.l.b16 %v95
  %v467 = vunpack.c.l.b16 %v96
  %v468 = vunpack.c.h.b16 %v96
  %v469 = vunpack.c.l.b16 %v97
  %v470 = vunpack.c.h.b16 %v97
  %v471 = vunpack.c.l.b16 %v98
  %v472 = vunpack.c.h.b16 %v98
  %v473 = vunpack.c.l.b16 %v99
  %v474 = vunpack.c.h.b16 %v99
  %v475 = vunpack.c.l.b16 %v100
  %v476 = vpack.c.b16 %v341, %v332
  %v477 = vpack.c.b16 %v342, %v333
  %v478 = vpack.c.b16 %v343, %v334
  %v479 = vpack.c.b16 %v344, %v335
  %v480 = vpack.c.b16 %v345, %v336
  %v481 = vpack.c.b16 %v346, %v337
  %v482 = vpack.c.b16 %v347, %v338
  %v483 = vpack.c.b16 %v348, %v339
  %v484 = vpack.c.b16 %v349, %v340
  %v485 = vpack.c.b16 %v359, %v350
  %v486 = vpack.c.b16 %v360, %v351
  %v487 = vpack.c.b16 %v361, %v352
  %v488 = vpack.c.b16 %v362, %v353
  %v489 = vpack.c.b16 %v363, %v354
  %v490 = vpack.c.b16 %v364, %v355
  %v491 = vpack.c.b16 %v365, %v356
  %v492 = vpack.c.b16 %v366, %v357
  %v493 = vpack.c.b16 %v367, %v358
  %v494 = vpack.c.b16 %v377, %v368
  %v495 = vpack.c.b16 %v378, %v369
  %v496 = vpack.c.b16 %v379, %v370
  %v497 = vpack.c.b16 %v380, %v371
  %v498 = vpack.c.b16 %v381, %v372
  %v499 = vpack.c.b16 %v382, %v373
  %v500 = vpack.c.b16 %v383, %v374
  %v501 = vpack.c.b16 %v384, %v375
  %v502 = vpack.c.b16 %v385, %v376
  %v503 = vpack.c.b16 %v395, %v386
  %v504 = vpack.c.b16 %v396, %v387
  %v505 = vpack.c.b16 %v397, %v388
  %v506 = vpack.c.b16 %v398, %v389
  %v507 = vpack.c.b16 %v399, %v390
  %v508 = vpack.c.b16 %v400, %v391
  %v509 = vpack.c.b16 %v401, %v392
  %v510 = vpack.c.b16 %v402, %v393
  %v511 = vpack.c.b16 %v403, %v394
  %v512 = vpack.c.b16 %v413, %v404
  %v513 = vpack.c.b16 %v414, %v405
  %v514 = vpack.c.b16 %v415, %v406
  %v515 = vpack.c.b16 %v416, %v407
  %v516 = vpack.c.b16 %v417, %v408
  %v517 = vpack.c.b16 %v418, %v409
  %v518 = vpack.c.b16 %v419, %v410
  %v519 = vpack.c.b16 %v420, %v411
  %v520 = vpack.c.b16 %v421, %v412
  %v521 = vpack.c.b16 %v431, %v422
  %v522 = vpack.c.b16 %v432, %v423
  %v523 = vpack.c.b16 %v433, %v424
  %v524 = vpack.c.b16 %v434, %v425
  %v525 = vpack.c.b16 %v435, %v426
  %v526 = vpack.c.b16 %v436, %v427
  %v527 = vpack.c.b16 %v437, %v428
  %v528 = vpack.c.b16 %v438, %v429
  %v529 = vpack.c.b16 %v439, %v430
  %v530 = vpack.c.b16 %v449, %v440
  %v531 = vpack.c.b16 %v450, %v441
  %v532 = vpack.c.b16 %v451, %v442
  %v533 = vpack.c.b16 %v452, %v443
  %v534 = vpack.c.b16 %v453, %v444
  %v535 = vpack.c.b16 %v454, %v445
  %v536 = vpack.c.b16 %v455, %v446
  %v537 = vpack.c.b16 %v456, %v447
  %v538 = vpack.c.b16 %v457, %v448
  %v539 = vpack.c.b16 %v467, %v458
  %v540 = vpack.c.b16 %v468, %v459
  %v541 = vpack.c.b16 %v469, %v460
  %v542 = vpack.c.b16 %v470, %v461
  %v543 = vpack.c.b16 %v471, %v462
  %v544 = vpack.c.b16 %v472, %v463
  %v545 = vpack.c.b16 %v473, %v464
  %v546 = vpack.c.b16 %v474, %v465
  %v547 = vpack.c.b16 %v475, %v466
  %v764 = vunpack.c.l.b16 %v101
  %v765 = vunpack.c.l.b16 %v102
  %v766 = vunpack.c.l.b16 %v103
  %v767 = vunpack.c.l.b16 %v104
  %v768 = vunpack.c.l.b16 %v105
  %v769 = vunpack.c.l.b16 %v106
  %v770 = vunpack.c.l.b16 %v107
  %v771 = vunpack.c.l.b16 %v108
  %v772 = vunpack.c.l.b16 %v109
  %v773 = vunpack.c.l.b16 %v110
  %v774 = vunpack.c.l.b16 %v111
  %v775 = vunpack.c.l.b16 %v112
  %v776 = vunpack.c.l.b16 %v113
  %v777 = vunpack.c.l.b16 %v114
  %v778 = vunpack.c.l.b16 %v115
  %v779 = vunpack.c.l.b16 %v116
  %v780 = vunpack.c.l.b16 %v117
  %v781 = vunpack.c.l.b16 %v118
  %v782 = vunpack.c.l.b16 %v119
  %v783 = vunpack.c.l.b16 %v120
  %v784 = vunpack.c.l.b16 %v121
  %v785 = vunpack.c.l.b16 %v122
  %v786 = vunpack.c.l.b16 %v123
  %v787 = vunpack.c.l.b16 %v124
  %v788 = vunpack.c.l.b16 %v125
  %v789 = vunpack.c.l.b16 %v126
  %v790 = vunpack.c.l.b16 %v127
  %v791 = vunpack.c.l.b16 %v128
  %v792 = vunpack.c.l.b16 %v129
  %v793 = vunpack.c.l.b16 %v130
  %v794 = vunpack.c.l.b16 %v131
  %v795 = vunpack.c.l.b16 %v132
  %v796 = vunpack.c.l.b16 %v133
  %v797 = vunpack.c.l.b16 %v134
  %v798 = vunpack.c.l.b16 %v135
  %v799 = vunpack.c.l.b16 %v136
  %v800 = vunpack.c.l.b16 %v137
  %v801 = vunpack.c.l.b16 %v138
  %v802 = vunpack.c.l.b16 %v139
  %v803 = vunpack.c.l.b16 %v140
  %v804 = vunpack.c.l.b16 %v141
  %v805 = vunpack.c.l.b16 %v142
  %v806 = vunpack.c.l.b16 %v143
  %v807 = vunpack.c.l.b16 %v144
  %v808 = vunpack.c.l.b16 %v145
  %v809 = vunpack.c.l.b16 %v146
  %v810 = vunpack.c.l.b16 %v147
  %v811 = vunpack.c.l.b16 %v148
  %v812 = vunpack.c.l.b16 %v149
  %v813 = vunpack.c.l.b16 %v150
  %v814 = vunpack.c.l.b16 %v151
  %v815 = vunpack.c.l.b16 %v152
  %v816 = vunpack.c.l.b16 %v153
  %v817 = vunpack.c.l.b16 %v154
  %v818 = vunpack.c.l.b16 %v155
  %v819 = vunpack.c.l.b16 %v156
  %v820 = vunpack.c.l.b16 %v157
  %v821 = vunpack.c.l.b16 %v158
  %v822 = vunpack.c.l.b16 %v159
  %v823 = vunpack.c.l.b16 %v160
  %v824 = vunpack.c.l.b16 %v161
  %v825 = vunpack.c.l.b16 %v162
  %v826 = vunpack.c.l.b16 %v163
  %v827 = vunpack.c.l.b16 %v164
  %v828 = vunpack.c.l.b16 %v165
  %v829 = vunpack.c.l.b16 %v166
  %v830 = vunpack.c.l.b16 %v167
  %v831 = vunpack.c.l.b16 %v168
  %v832 = vunpack.c.l.b16 %v169
  %v833 = vunpack.c.l.b16 %v170
  %v834 = vunpack.c.l.b16 %v171
  %v835 = vunpack.c.l.b16 %v172
  %v836 = vunpack.c.l.b16 %v173
  %v837 = vunpack.c.l.b16 %v174
  %v838 = vunpack.c.l.b16 %v175
  %v839 = vunpack.c.l.b16 %v176
  %v840 = vunpack.c.l.b16 %v177
  %v841 = vunpack.c.l.b16 %v178
  %v842 = vunpack.c.l.b16 %v179
  %v843 = vunpack.c.l.b16 %v180
  %v844 = vunpack.c.l.b16 %v181
  %v845 = vunpack.c.l.b16 %v182
  %v846 = vunpack.c.l.b16 %v183
  %v847 = vunpack.c.l.b16 %v184
  %v848 = vunpack.c.l.b16 %v185
  %v849 = vunpack.c.l.b16 %v186
  %v850 = vunpack.c.l.b16 %v187
  %v851 = vunpack.c.l.b16 %v188
  %v852 = vunpack.c.l.b16 %v189
  %v853 = vunpack.c.l.b16 %v190
  %v854 = vunpack.c.l.b16 %v191
  %v855 = vunpack.c.l.b16 %v192
  %v856 = vunpack.c.l.b16 %v193
  %v857 = vunpack.c.l.b16 %v194
  %v858 = vunpack.c.l.b16 %v195
  %v859 = vunpack.c.l.b16 %v196
  %v860 = vunpack.c.l.b16 %v197
  %v861 = vunpack.c.l.b16 %v198
  %v862 = vunpack.c.l.b16 %v199
  %v863 = vunpack.c.l.b16 %v200
  %v864 = vunpack.c.l.b16 %v201
  %v865 = vunpack.c.l.b16 %v202
  %v866 = vunpack.c.l.b16 %v203
  %v867 = vunpack.c.l.b16 %v204
  %v868 = vunpack.c.l.b16 %v205
  %v869 = vunpack.c.l.b16 %v206
  %v870 = vunpack.c.l.b16 %v207
  %v871 = vunpack.c.l.b16 %v208
  %v872 = vunpack.c.l.b16 %v209
  %v873 = vunpack.c.l.b16 %v210
  %v874 = vunpack.c.l.b16 %v211
  %v875 = vunpack.c.l.b16 %v212
  %v876 = vunpack.c.l.b16 %v213
  %v877 = vunpack.c.l.b16 %v214
  %v878 = vunpack.c.l.b16 %v215
  %v879 = vunpack.c.l.b16 %v216
  %v880 = vunpack.c.l.b16 %v217
  %v881 = vunpack.c.l.b16 %v218
  %v882 = vunpack.c.l.b16 %v219
  %v883 = vunpack.c.l.b16 %v220
  %v884 = vunpack.c.l.b16 %v221
  %v885 = vunpack.c.l.b16 %v222
  %v886 = vunpack.c.l.b16 %v223
  %v887 = vunpack.c.l.b16 %v224
  %v888 = vunpack.c.l.b16 %v225
  %v889 = vunpack.c.l.b16 %v226
  %v890 = vunpack.c.l.b16 %v227
  %v891 = vunpack.c.l.b16 %v228
  %v892 = vunpack.c.l.b16 %v229
  %v893 = vunpack.c.l.b16 %v230
  %v894 = vunpack.c.l.b16 %v231
  %v895 = vunpack.c.l.b16 %v232
  %v896 = vunpack.c.l.b16 %v233
  %v897 = vunpack.c.l.b16 %v234
  %v898 = vunpack.c.l.b16 %v235
  %v899 = vunpack.c.l.b16 %v236
  %v900 = vunpack.c.l.b16 %v237
  %v901 = vunpack.c.l.b16 %v238
  %v902 = vunpack.c.l.b16 %v239
  %v903 = vunpack.c.l.b16 %v240
  %v904 = vunpack.c.l.b16 %v241
  %v905 = vunpack.c.l.b16 %v242
  %v906 = vunpack.c.l.b16 %v243
  %v907 = vunpack.c.l.b16 %v244
  %v908 = vpack.c.b16 %v765, %v764
  %v909 = vpack.c.b16 %v767, %v766
  %v910 = vpack.c.b16 %v769, %v768
  %v911 = vpack.c.b16 %v771, %v770
  %v912 = vpack.c.b16 %v773, %v772
  %v913 = vpack.c.b16 %v775, %v774
  %v914 = vpack.c.b16 %v777, %v776
  %v915 = vpack.c.b16 %v779, %v778
  %v916 = vpack.c.b16 %v781, %v780
  %v917 = vpack.c.b16 %v783, %v782
  %v918 = vpack.c.b16 %v785, %v784
  %v919 = vpack.c.b16 %v787, %v786
  %v920 = vpack.c.b16 %v789, %v788
  %v921 = vpack.c.b16 %v791, %v790
  %v922 = vpack.c.b16 %v793, %v792
  %v923 = vpack.c.b16 %v795, %v794
  %v924 = vpack.c.b16 %v797, %v796
  %v925 = vpack.c.b16 %v799, %v798
  %v926 = vpack.c.b16 %v801, %v800
  %v927 = vpack.c.b16 %v803, %v802
  %v928 = vpack.c.b16 %v805, %v804
  %v929 = vpack.c.b16 %v807, %v806
  %v930 = vpack.c.b16 %v809, %v808
  %v931 = vpack.c.b16 %v811, %v810
  %v932 = vpack.c.b16 %v813, %v812
  %v933 = vpack.c.b16 %v815, %v814
  %v934 = vpack.c.b16 %v817, %v816
  %v935 = vpack.c.b16 %v819, %v818
  %v936 = vpack.c.b16 %v821, %v820
  %v937 = vpack.c.b16 %v823, %v822
  %v938 = vpack.c.b16 %v825, %v824
  %v939 = vpack.c.b16 %v827, %v826
  %v940 = vpack.c.b16 %v829, %v828
  %v941 = vpack.c.b16 %v831, %v830
  %v942 = vpack.c.b16 %v833, %v832
  %v943 = vpack.c.b16 %v835, %v834
  %v944 = vpack.c.b16 %v837, %v836
  %v945 = vpack.c.b16 %v839, %v838
  %v946 = vpack.c.b16 %v841, %v840
  %v947 = vpack.c.b16 %v843, %v842
  %v948 = vpack.c.b16 %v845, %v844
  %v949 = vpack.c.b16 %v847, %v846
  %v950 = vpack.c.b16 %v849, %v848
  %v951 = vpack.c.b16 %v851, %v850
  %v952 = vpack.c.b16 %v853, %v852
  %v953 = vpack.c.b16 %v855, %v854
  %v954 = vpack.c.b16 %v857, %v856
  %v955 = vpack.c.b16 %v859, %v858
  %v956 = vpack.c.b16 %v861, %v860
  %v957 = vpack.c.b16 %v863, %v862
  %v958 = vpack.c.b16 %v865, %v864
  %v959 = vpack.c.b16 %v867, %v866
  %v960 = vpack.c.b16 %v869, %v868
  %v961 = vpack.c.b16 %v871, %v870
  %v962 = vpack.c.b16 %v873, %v872
  %v963 = vpack.c.b16 %v875, %v874
  %v964 = vpack.c.b16 %v877, %v876
  %v965 = vpack.c.b16 %v879, %v878
  %v966 = vpack.c.b16 %v881, %v880
  %v967 = vpack.c.b16 %v883, %v882
  %v968 = vpack.c.b16 %v885, %v884
  %v969 = vpack.c.b16 %v887, %v886
  %v970 = vpack.c.b16 %v889, %v888
  %v971 = vpack.c.b16 %v891, %v890
  %v972 = vpack.c.b16 %v893, %v892
  %v973 = vpack.c.b16 %v895, %v894
  %v974 = vpack.c.b16 %v897, %v896
  %v975 = vpack.c.b16 %v899, %v898
  %v976 = vpack.c.b16 %v901, %v900
  %v977 = vpack.c.b16 %v903, %v902
  %v978 = vpack.c.b16 %v905, %v904
  %v979 = vpack.c.b16 %v907, %v906
  %1052 = vmatprep.subr.bf16.mxu0 0
  %1053 = vmatpush1.bf16.msra.mxu0 %v908
  %1054 = vmatprep.subr.bf16.mxu0 0
  %1055 = vmatpush1.bf16.msra.mxu0 %v909
  %1056 = vmatprep.subr.bf16.mxu0 0
  %1057 = vmatpush1.bf16.msra.mxu0 %v910
  %1058 = vmatprep.subr.bf16.mxu0 0
  %1059 = vmatpush1.bf16.msra.mxu0 %v911
  %1060 = vmatprep.subr.bf16.mxu0 0
  %1061 = vmatpush1.bf16.msra.mxu0 %v912
  %1062 = vmatprep.subr.bf16.mxu0 0
  %1063 = vmatpush1.bf16.msra.mxu0 %v913
  %1064 = vmatprep.subr.bf16.mxu0 0
  %1065 = vmatpush1.bf16.msra.mxu0 %v914
  %1066 = vmatprep.subr.bf16.mxu0 0
  %1067 = vmatpush1.bf16.msra.mxu0 %v915
  %1068 = vmatprep.subr.bf16.mxu0 0
  %1069 = vmatpush1.bf16.msra.mxu0 %v916
  %1070 = vmatprep.subr.bf16.mxu0 0
  %1071 = vmatpush1.bf16.msra.mxu0 %v917
  %1072 = vmatprep.subr.bf16.mxu0 0
  %1073 = vmatpush1.bf16.msra.mxu0 %v918
  %1074 = vmatprep.subr.bf16.mxu0 0
  %1075 = vmatpush1.bf16.msra.mxu0 %v919
  %1076 = vmatprep.subr.bf16.mxu0 0
  %1077 = vmatpush1.bf16.msra.mxu0 %v920
  %1078 = vmatprep.subr.bf16.mxu0 0
  %1079 = vmatpush1.bf16.msra.mxu0 %v921
  %1080 = vmatprep.subr.bf16.mxu0 0
  %1081 = vmatpush1.bf16.msra.mxu0 %v922
  %1082 = vmatprep.subr.bf16.mxu0 0
  %1083 = vmatpush1.bf16.msra.mxu0 %v923
  %1084 = vmatprep.mubr.bf16.mxu0 %v477
  %1085 = vmatmul.mubr.bf16.gmra.mrb[0].mxu0 %v476
  %v1086 = vpop.f32.mrb[0].mxu0
  %v1087 = vadd.f32 %v250, %v1086
  %v1088 = vpop.f32.mrb[0].mxu0
  %v1089 = vpop.f32.mrb[0].mxu0
  %v1090 = vadd.f32 %v250, %v1089
  %v1091 = vpop.f32.mrb[0].mxu0
  %1092 = vmatprep.mubr.bf16.mxu0 %v486
  %1093 = vmatmul.mubr.bf16.gmra.mrb[0].mxu0 %v485
  %v1094 = vpop.f32.mrb[0].mxu0
  %v1095 = vadd.f32 %v250, %v1094
  %v1096 = vpop.f32.mrb[0].mxu0
  %v1097 = vpop.f32.mrb[0].mxu0
  %v1098 = vadd.f32 %v250, %v1097
  %v1099 = vpop.f32.mrb[0].mxu0
  %1100 = vmatprep.mubr.bf16.mxu0 %v495
  %1101 = vmatmul.mubr.bf16.gmra.mrb[0].mxu0 %v494
  %v1102 = vpop.f32.mrb[0].mxu0
  %v1103 = vadd.f32 %v250, %v1102
  %v1104 = vpop.f32.mrb[0].mxu0
  %v1105 = vpop.f32.mrb[0].mxu0
  %v1106 = vadd.f32 %v250, %v1105
  %v1107 = vpop.f32.mrb[0].mxu0
  %1108 = vmatprep.mubr.bf16.mxu0 %v504
  %1109 = vmatmul.mubr.bf16.gmra.mrb[0].mxu0 %v503
  %v1110 = vpop.f32.mrb[0].mxu0
  %v1111 = vadd.f32 %v250, %v1110
  %v1112 = vpop.f32.mrb[0].mxu0
  %v1113 = vpop.f32.mrb[0].mxu0
  %v1114 = vadd.f32 %v250, %v1113
  %v1115 = vpop.f32.mrb[0].mxu0
  %1116 = vmatprep.mubr.bf16.mxu0 %v513
  %1117 = vmatmul.mubr.bf16.gmra.mrb[0].mxu0 %v512
  %v1118 = vpop.f32.mrb[0].mxu0
  %v1119 = vadd.f32 %v250, %v1118
  %v1120 = vpop.f32.mrb[0].mxu0
  %v1121 = vpop.f32.mrb[0].mxu0
  %v1122 = vadd.f32 %v250, %v1121
  %v1123 = vpop.f32.mrb[0].mxu0
  %1124 = vmatprep.mubr.bf16.mxu0 %v522
  %1125 = vmatmul.mubr.bf16.gmra.mrb[0].mxu0 %v521
  %v1126 = vpop.f32.mrb[0].mxu0
  %v1127 = vadd.f32 %v250, %v1126
  %v1128 = vpop.f32.mrb[0].mxu0
  %v1129 = vpop.f32.mrb[0].mxu0
  %v1130 = vadd.f32 %v250, %v1129
  %v1131 = vpop.f32.mrb[0].mxu0
  %1132 = vmatprep.mubr.bf16.mxu0 %v531
  %1133 = vmatmul.mubr.bf16.gmra.mrb[0].mxu0 %v530
  %v1134 = vpop.f32.mrb[0].mxu0
  %v1135 = vadd.f32 %v250, %v1134
  %v1136 = vpop.f32.mrb[0].mxu0
  %v1137 = vpop.f32.mrb[0].mxu0
  %v1138 = vadd.f32 %v250, %v1137
  %v1139 = vpop.f32.mrb[0].mxu0
  %1140 = vmatprep.mubr.bf16.mxu0 %v540
  %1141 = vmatmul.mubr.bf16.gmra.mrb[0].mxu0 %v539
  %v1142 = vpop.f32.mrb[0].mxu0
  %v1143 = vadd.f32 %v250, %v1142
  %v1144 = vpop.f32.mrb[0].mxu0
  %v1145 = vpop.f32.mrb[0].mxu0
  %v1146 = vadd.f32 %v250, %v1145
  %v1147 = vpop.f32.mrb[0].mxu0
  %1148 = vdwg.mxu0
  %1149 = vmatprep.subr.bf16.mxu0 0
  %1150 = vmatpush1.bf16.msra.mxu0 %v924
  %1151 = vmatprep.subr.bf16.mxu0 0
  %1152 = vmatpush1.bf16.msra.mxu0 %v925
  %1153 = vmatprep.subr.bf16.mxu0 0
  %1154 = vmatpush1.bf16.msra.mxu0 %v926
  %1155 = vmatprep.subr.bf16.mxu0 0
  %1156 = vmatpush1.bf16.msra.mxu0 %v927
  %1157 = vmatprep.subr.bf16.mxu0 0
  %1158 = vmatpush1.bf16.msra.mxu0 %v928
  %1159 = vmatprep.subr.bf16.mxu0 0
  %1160 = vmatpush1.bf16.msra.mxu0 %v929
  %1161 = vmatprep.subr.bf16.mxu0 0
  %1162 = vmatpush1.bf16.msra.mxu0 %v930
  %1163 = vmatprep.subr.bf16.mxu0 0
  %1164 = vmatpush1.bf16.msra.mxu0 %v931
  %1165 = vmatprep.subr.bf16.mxu0 0
  %1166 = vmatpush1.bf16.msra.mxu0 %v932
  %1167 = vmatprep.subr.bf16.mxu0 0
  %1168 = vmatpush1.bf16.msra.mxu0 %v933
  %1169 = vmatprep.subr.bf16.mxu0 0
  %1170 = vmatpush1.bf16.msra.mxu0 %v934
  %1171 = vmatprep.subr.bf16.mxu0 0
  %1172 = vmatpush1.bf16.msra.mxu0 %v935
  %1173 = vmatprep.subr.bf16.mxu0 0
  %1174 = vmatpush1.bf16.msra.mxu0 %v936
  %1175 = vmatprep.subr.bf16.mxu0 0
  %1176 = vmatpush1.bf16.msra.mxu0 %v937
  %1177 = vmatprep.subr.bf16.mxu0 0
  %1178 = vmatpush1.bf16.msra.mxu0 %v938
  %1179 = vmatprep.subr.bf16.mxu0 0
  %1180 = vmatpush1.bf16.msra.mxu0 %v939
  %1181 = vmatprep.mubr.bf16.mxu0 %v479
  %1182 = vmatmul.mubr.bf16.gmra.mrb[0].mxu0 %v478
  %v1183 = vpop.f32.mrb[0].mxu0
  %v1184 = vadd.f32 %v1087, %v1183
  %v1185 = vpop.f32.mrb[0].mxu0
  %v1186 = vpop.f32.mrb[0].mxu0
  %v1187 = vadd.f32 %v1090, %v1186
  %v1188 = vpop.f32.mrb[0].mxu0
  %1189 = vmatprep.mubr.bf16.mxu0 %v488
  %1190 = vmatmul.mubr.bf16.gmra.mrb[0].mxu0 %v487
  %v1191 = vpop.f32.mrb[0].mxu0
  %v1192 = vadd.f32 %v1095, %v1191
  %v1193 = vpop.f32.mrb[0].mxu0
  %v1194 = vpop.f32.mrb[0].mxu0
  %v1195 = vadd.f32 %v1098, %v1194
  %v1196 = vpop.f32.mrb[0].mxu0
  %1197 = vmatprep.mubr.bf16.mxu0 %v497
  %1198 = vmatmul.mubr.bf16.gmra.mrb[0].mxu0 %v496
  %v1199 = vpop.f32.mrb[0].mxu0
  %v1200 = vadd.f32 %v1103, %v1199
  %v1201 = vpop.f32.mrb[0].mxu0
  %v1202 = vpop.f32.mrb[0].mxu0
  %v1203 = vadd.f32 %v1106, %v1202
  %v1204 = vpop.f32.mrb[0].mxu0
  %1205 = vmatprep.mubr.bf16.mxu0 %v506
  %1206 = vmatmul.mubr.bf16.gmra.mrb[0].mxu0 %v505
  %v1207 = vpop.f32.mrb[0].mxu0
  %v1208 = vadd.f32 %v1111, %v1207
  %v1209 = vpop.f32.mrb[0].mxu0
  %v1210 = vpop.f32.mrb[0].mxu0
  %v1211 = vadd.f32 %v1114, %v1210
  %v1212 = vpop.f32.mrb[0].mxu0
  %1213 = vmatprep.mubr.bf16.mxu0 %v515
  %1214 = vmatmul.mubr.bf16.gmra.mrb[0].mxu0 %v514
  %v1215 = vpop.f32.mrb[0].mxu0
  %v1216 = vadd.f32 %v1119, %v1215
  %v1217 = vpop.f32.mrb[0].mxu0
  %v1218 = vpop.f32.mrb[0].mxu0
  %v1219 = vadd.f32 %v1122, %v1218
  %v1220 = vpop.f32.mrb[0].mxu0
  %1221 = vmatprep.mubr.bf16.mxu0 %v524
  %1222 = vmatmul.mubr.bf16.gmra.mrb[0].mxu0 %v523
  %v1223 = vpop.f32.mrb[0].mxu0
  %v1224 = vadd.f32 %v1127, %v1223
  %v1225 = vpop.f32.mrb[0].mxu0
  %v1226 = vpop.f32.mrb[0].mxu0
  %v1227 = vadd.f32 %v1130, %v1226
  %v1228 = vpop.f32.mrb[0].mxu0
  %1229 = vmatprep.mubr.bf16.mxu0 %v533
  %1230 = vmatmul.mubr.bf16.gmra.mrb[0].mxu0 %v532
  %v1231 = vpop.f32.mrb[0].mxu0
  %v1232 = vadd.f32 %v1135, %v1231
  %v1233 = vpop.f32.mrb[0].mxu0
  %v1234 = vpop.f32.mrb[0].mxu0
  %v1235 = vadd.f32 %v1138, %v1234
  %v1236 = vpop.f32.mrb[0].mxu0
  %1237 = vmatprep.mubr.bf16.mxu0 %v542
  %1238 = vmatmul.mubr.bf16.gmra.mrb[0].mxu0 %v541
  %v1239 = vpop.f32.mrb[0].mxu0
  %v1240 = vadd.f32 %v1143, %v1239
  %v1241 = vpop.f32.mrb[0].mxu0
  %v1242 = vpop.f32.mrb[0].mxu0
  %v1243 = vadd.f32 %v1146, %v1242
  %v1244 = vpop.f32.mrb[0].mxu0
  %1245 = vdwg.mxu0
  %1246 = vmatprep.subr.bf16.mxu0 0
  %1247 = vmatpush1.bf16.msra.mxu0 %v940
  %1248 = vmatprep.subr.bf16.mxu0 0
  %1249 = vmatpush1.bf16.msra.mxu0 %v941
  %1250 = vmatprep.subr.bf16.mxu0 0
  %1251 = vmatpush1.bf16.msra.mxu0 %v942
  %1252 = vmatprep.subr.bf16.mxu0 0
  %1253 = vmatpush1.bf16.msra.mxu0 %v943
  %1254 = vmatprep.subr.bf16.mxu0 0
  %1255 = vmatpush1.bf16.msra.mxu0 %v944
  %1256 = vmatprep.subr.bf16.mxu0 0
  %1257 = vmatpush1.bf16.msra.mxu0 %v945
  %1258 = vmatprep.subr.bf16.mxu0 0
  %1259 = vmatpush1.bf16.msra.mxu0 %v946
  %1260 = vmatprep.subr.bf16.mxu0 0
  %1261 = vmatpush1.bf16.msra.mxu0 %v947
  %1262 = vmatprep.subr.bf16.mxu0 0
  %1263 = vmatpush1.bf16.msra.mxu0 %v948
  %1264 = vmatprep.subr.bf16.mxu0 0
  %1265 = vmatpush1.bf16.msra.mxu0 %v949
  %1266 = vmatprep.subr.bf16.mxu0 0
  %1267 = vmatpush1.bf16.msra.mxu0 %v950
  %1268 = vmatprep.subr.bf16.mxu0 0
  %1269 = vmatpush1.bf16.msra.mxu0 %v951
  %1270 = vmatprep.subr.bf16.mxu0 0
  %1271 = vmatpush1.bf16.msra.mxu0 %v952
  %1272 = vmatprep.subr.bf16.mxu0 0
  %1273 = vmatpush1.bf16.msra.mxu0 %v953
  %1274 = vmatprep.subr.bf16.mxu0 0
  %1275 = vmatpush1.bf16.msra.mxu0 %v954
  %1276 = vmatprep.subr.bf16.mxu0 0
  %1277 = vmatpush1.bf16.msra.mxu0 %v955
  %1278 = vmatprep.mubr.bf16.mxu0 %v481
  %1279 = vmatmul.mubr.bf16.gmra.mrb[0].mxu0 %v480
  %v1280 = vpop.f32.mrb[0].mxu0
  %v1281 = vadd.f32 %v1184, %v1280
  %v1282 = vpop.f32.mrb[0].mxu0
  %v1283 = vpop.f32.mrb[0].mxu0
  %v1284 = vadd.f32 %v1187, %v1283
  %v1285 = vpop.f32.mrb[0].mxu0
  %1286 = vmatprep.mubr.bf16.mxu0 %v490
  %1287 = vmatmul.mubr.bf16.gmra.mrb[0].mxu0 %v489
  %v1288 = vpop.f32.mrb[0].mxu0
  %v1289 = vadd.f32 %v1192, %v1288
  %v1290 = vpop.f32.mrb[0].mxu0
  %v1291 = vpop.f32.mrb[0].mxu0
  %v1292 = vadd.f32 %v1195, %v1291
  %v1293 = vpop.f32.mrb[0].mxu0
  %1294 = vmatprep.mubr.bf16.mxu0 %v499
  %1295 = vmatmul.mubr.bf16.gmra.mrb[0].mxu0 %v498
  %v1296 = vpop.f32.mrb[0].mxu0
  %v1297 = vadd.f32 %v1200, %v1296
  %v1298 = vpop.f32.mrb[0].mxu0
  %v1299 = vpop.f32.mrb[0].mxu0
  %v1300 = vadd.f32 %v1203, %v1299
  %v1301 = vpop.f32.mrb[0].mxu0
  %1302 = vmatprep.mubr.bf16.mxu0 %v508
  %1303 = vmatmul.mubr.bf16.gmra.mrb[0].mxu0 %v507
  %v1304 = vpop.f32.mrb[0].mxu0
  %v1305 = vadd.f32 %v1208, %v1304
  %v1306 = vpop.f32.mrb[0].mxu0
  %v1307 = vpop.f32.mrb[0].mxu0
  %v1308 = vadd.f32 %v1211, %v1307
  %v1309 = vpop.f32.mrb[0].mxu0
  %1310 = vmatprep.mubr.bf16.mxu0 %v517
  %1311 = vmatmul.mubr.bf16.gmra.mrb[0].mxu0 %v516
  %v1312 = vpop.f32.mrb[0].mxu0
  %v1313 = vadd.f32 %v1216, %v1312
  %v1314 = vpop.f32.mrb[0].mxu0
  %v1315 = vpop.f32.mrb[0].mxu0
  %v1316 = vadd.f32 %v1219, %v1315
  %v1317 = vpop.f32.mrb[0].mxu0
  %1318 = vmatprep.mubr.bf16.mxu0 %v526
  %1319 = vmatmul.mubr.bf16.gmra.mrb[0].mxu0 %v525
  %v1320 = vpop.f32.mrb[0].mxu0
  %v1321 = vadd.f32 %v1224, %v1320
  %v1322 = vpop.f32.mrb[0].mxu0
  %v1323 = vpop.f32.mrb[0].mxu0
  %v1324 = vadd.f32 %v1227, %v1323
  %v1325 = vpop.f32.mrb[0].mxu0
  %1326 = vmatprep.mubr.bf16.mxu0 %v535
  %1327 = vmatmul.mubr.bf16.gmra.mrb[0].mxu0 %v534
  %v1328 = vpop.f32.mrb[0].mxu0
  %v1329 = vadd.f32 %v1232, %v1328
  %v1330 = vpop.f32.mrb[0].mxu0
  %v1331 = vpop.f32.mrb[0].mxu0
  %v1332 = vadd.f32 %v1235, %v1331
  %v1333 = vpop.f32.mrb[0].mxu0
  %1334 = vmatprep.mubr.bf16.mxu0 %v544
  %1335 = vmatmul.mubr.bf16.gmra.mrb[0].mxu0 %v543
  %v1336 = vpop.f32.mrb[0].mxu0
  %v1337 = vadd.f32 %v1240, %v1336
  %v1338 = vpop.f32.mrb[0].mxu0
  %v1339 = vpop.f32.mrb[0].mxu0
  %v1340 = vadd.f32 %v1243, %v1339
  %v1341 = vpop.f32.mrb[0].mxu0
  %1342 = vdwg.mxu0
  %1343 = vmatprep.subr.bf16.mxu0 0
  %1344 = vmatpush1.bf16.msra.mxu0 %v956
  %1345 = vmatprep.subr.bf16.mxu0 0
  %1346 = vmatpush1.bf16.msra.mxu0 %v957
  %1347 = vmatprep.subr.bf16.mxu0 0
  %1348 = vmatpush1.bf16.msra.mxu0 %v958
  %1349 = vmatprep.subr.bf16.mxu0 0
  %1350 = vmatpush1.bf16.msra.mxu0 %v959
  %1351 = vmatprep.subr.bf16.mxu0 0
  %1352 = vmatpush1.bf16.msra.mxu0 %v960
  %1353 = vmatprep.subr.bf16.mxu0 0
  %1354 = vmatpush1.bf16.msra.mxu0 %v961
  %1355 = vmatprep.subr.bf16.mxu0 0
  %1356 = vmatpush1.bf16.msra.mxu0 %v962
  %1357 = vmatprep.subr.bf16.mxu0 0
  %1358 = vmatpush1.bf16.msra.mxu0 %v963
  %1359 = vmatprep.subr.bf16.mxu0 0
  %1360 = vmatpush1.bf16.msra.mxu0 %v964
  %1361 = vmatprep.subr.bf16.mxu0 0
  %1362 = vmatpush1.bf16.msra.mxu0 %v965
  %1363 = vmatprep.subr.bf16.mxu0 0
  %1364 = vmatpush1.bf16.msra.mxu0 %v966
  %1365 = vmatprep.subr.bf16.mxu0 0
  %1366 = vmatpush1.bf16.msra.mxu0 %v967
  %1367 = vmatprep.subr.bf16.mxu0 0
  %1368 = vmatpush1.bf16.msra.mxu0 %v968
  %1369 = vmatprep.subr.bf16.mxu0 0
  %1370 = vmatpush1.bf16.msra.mxu0 %v969
  %1371 = vmatprep.subr.bf16.mxu0 0
  %1372 = vmatpush1.bf16.msra.mxu0 %v970
  %1373 = vmatprep.subr.bf16.mxu0 0
  %1374 = vmatpush1.bf16.msra.mxu0 %v971
  %1375 = vmatprep.mubr.bf16.mxu0 %v483
  %1376 = vmatmul.mubr.bf16.gmra.mrb[0].mxu0 %v482
  %v1377 = vpop.f32.mrb[0].mxu0
  %v1378 = vadd.f32 %v1281, %v1377
  %v1379 = vpop.f32.mrb[0].mxu0
  %v1380 = vpop.f32.mrb[0].mxu0
  %v1381 = vadd.f32 %v1284, %v1380
  %v1382 = vpop.f32.mrb[0].mxu0
  %1383 = vmatprep.mubr.bf16.mxu0 %v492
  %1384 = vmatmul.mubr.bf16.gmra.mrb[0].mxu0 %v491
  %v1385 = vpop.f32.mrb[0].mxu0
  %v1386 = vadd.f32 %v1289, %v1385
  %v1387 = vpop.f32.mrb[0].mxu0
  %v1388 = vpop.f32.mrb[0].mxu0
  %v1389 = vadd.f32 %v1292, %v1388
  %v1390 = vpop.f32.mrb[0].mxu0
  %1391 = vmatprep.mubr.bf16.mxu0 %v501
  %1392 = vmatmul.mubr.bf16.gmra.mrb[0].mxu0 %v500
  %v1393 = vpop.f32.mrb[0].mxu0
  %v1394 = vadd.f32 %v1297, %v1393
  %v1395 = vpop.f32.mrb[0].mxu0
  %v1396 = vpop.f32.mrb[0].mxu0
  %v1397 = vadd.f32 %v1300, %v1396
  %v1398 = vpop.f32.mrb[0].mxu0
  %1399 = vmatprep.mubr.bf16.mxu0 %v510
  %1400 = vmatmul.mubr.bf16.gmra.mrb[0].mxu0 %v509
  %v1401 = vpop.f32.mrb[0].mxu0
  %v1402 = vadd.f32 %v1305, %v1401
  %v1403 = vpop.f32.mrb[0].mxu0
  %v1404 = vpop.f32.mrb[0].mxu0
  %v1405 = vadd.f32 %v1308, %v1404
  %v1406 = vpop.f32.mrb[0].mxu0
  %1407 = vmatprep.mubr.bf16.mxu0 %v519
  %1408 = vmatmul.mubr.bf16.gmra.mrb[0].mxu0 %v518
  %v1409 = vpop.f32.mrb[0].mxu0
  %v1410 = vadd.f32 %v1313, %v1409
  %v1411 = vpop.f32.mrb[0].mxu0
  %v1412 = vpop.f32.mrb[0].mxu0
  %v1413 = vadd.f32 %v1316, %v1412
  %v1414 = vpop.f32.mrb[0].mxu0
  %1415 = vmatprep.mubr.bf16.mxu0 %v528
  %1416 = vmatmul.mubr.bf16.gmra.mrb[0].mxu0 %v527
  %v1417 = vpop.f32.mrb[0].mxu0
  %v1418 = vadd.f32 %v1321, %v1417
  %v1419 = vpop.f32.mrb[0].mxu0
  %v1420 = vpop.f32.mrb[0].mxu0
  %v1421 = vadd.f32 %v1324, %v1420
  %v1422 = vpop.f32.mrb[0].mxu0
  %1423 = vmatprep.mubr.bf16.mxu0 %v537
  %1424 = vmatmul.mubr.bf16.gmra.mrb[0].mxu0 %v536
  %v1425 = vpop.f32.mrb[0].mxu0
  %v1426 = vadd.f32 %v1329, %v1425
  %v1427 = vpop.f32.mrb[0].mxu0
  %v1428 = vpop.f32.mrb[0].mxu0
  %v1429 = vadd.f32 %v1332, %v1428
  %v1430 = vpop.f32.mrb[0].mxu0
  %1431 = vmatprep.mubr.bf16.mxu0 %v546
  %1432 = vmatmul.mubr.bf16.gmra.mrb[0].mxu0 %v545
  %v1433 = vpop.f32.mrb[0].mxu0
  %v1434 = vadd.f32 %v1337, %v1433
  %v1435 = vpop.f32.mrb[0].mxu0
  %v1436 = vpop.f32.mrb[0].mxu0
  %v1437 = vadd.f32 %v1340, %v1436
  %v1438 = vpop.f32.mrb[0].mxu0
  %1439 = vdwg.mxu0
  %1440 = vmatprep.subr.bf16.mxu0 0
  %1441 = vmatpush1.bf16.msra.mxu0 %v972
  %1442 = vmatprep.subr.bf16.mxu0 0
  %1443 = vmatpush1.bf16.msra.mxu0 %v973
  %1444 = vmatprep.subr.bf16.mxu0 0
  %1445 = vmatpush1.bf16.msra.mxu0 %v974
  %1446 = vmatprep.subr.bf16.mxu0 0
  %1447 = vmatpush1.bf16.msra.mxu0 %v975
  %1448 = vmatprep.subr.bf16.mxu0 0
  %1449 = vmatpush1.bf16.msra.mxu0 %v976
  %1450 = vmatprep.subr.bf16.mxu0 0
  %1451 = vmatpush1.bf16.msra.mxu0 %v977
  %1452 = vmatprep.subr.bf16.mxu0 0
  %1453 = vmatpush1.bf16.msra.mxu0 %v978
  %1454 = vmatprep.subr.bf16.mxu0 0
  %1455 = vmatpush1.bf16.msra.mxu0 %v979
  %1456 = vmatprep.subr.bf16.mxu0 0
  %1457 = vmatpush1.bf16.msra.mxu0 0
  %1458 = vmatprep.subr.bf16.mxu0 0
  %1459 = vmatpush1.bf16.msra.mxu0 0
  %1460 = vmatprep.subr.bf16.mxu0 0
  %1461 = vmatpush1.bf16.msra.mxu0 0
  %1462 = vmatprep.subr.bf16.mxu0 0
  %1463 = vmatpush1.bf16.msra.mxu0 0
  %1464 = vmatprep.subr.bf16.mxu0 0
  %1465 = vmatpush1.bf16.msra.mxu0 0
  %1466 = vmatprep.subr.bf16.mxu0 0
  %1467 = vmatpush1.bf16.msra.mxu0 0
  %1468 = vmatprep.subr.bf16.mxu0 0
  %1469 = vmatpush1.bf16.msra.mxu0 0
  %1470 = vmatprep.subr.bf16.mxu0 0
  %1471 = vmatpush1.bf16.msra.mxu0 0
  %1472 = vmatprep.mubr.bf16.mxu0 0
  %1473 = vmatmul.mubr.bf16.gmra.mrb[0].mxu0 %v484
  %v1474 = vpop.f32.mrb[0].mxu0
  %v1475 = vadd.f32 %v1378, %v1474
  %v1476 = vpop.f32.mrb[0].mxu0
  %v1477 = vpop.f32.mrb[0].mxu0
  %v1478 = vadd.f32 %v1381, %v1477
  %v1479 = vpop.f32.mrb[0].mxu0
  %1480 = vmatprep.mubr.bf16.mxu0 0
  %1481 = vmatmul.mubr.bf16.gmra.mrb[0].mxu0 %v493
  %v1482 = vpop.f32.mrb[0].mxu0
  %v1483 = vadd.f32 %v1386, %v1482
  %v1484 = vpop.f32.mrb[0].mxu0
  %v1485 = vpop.f32.mrb[0].mxu0
  %v1486 = vadd.f32 %v1389, %v1485
  %v1487 = vpop.f32.mrb[0].mxu0
  %1488 = vmatprep.mubr.bf16.mxu0 0
  %1489 = vmatmul.mubr.bf16.gmra.mrb[0].mxu0 %v502
  %v1490 = vpop.f32.mrb[0].mxu0
  %v1491 = vadd.f32 %v1394, %v1490
  %v1492 = vpop.f32.mrb[0].mxu0
  %v1493 = vpop.f32.mrb[0].mxu0
  %v1494 = vadd.f32 %v1397, %v1493
  %v1495 = vpop.f32.mrb[0].mxu0
  %1496 = vmatprep.mubr.bf16.mxu0 0
  %1497 = vmatmul.mubr.bf16.gmra.mrb[0].mxu0 %v511
  %v1498 = vpop.f32.mrb[0].mxu0
  %v1499 = vadd.f32 %v1402, %v1498
  %v1500 = vpop.f32.mrb[0].mxu0
  %v1501 = vpop.f32.mrb[0].mxu0
  %v1502 = vadd.f32 %v1405, %v1501
  %v1503 = vpop.f32.mrb[0].mxu0
  %1504 = vmatprep.mubr.bf16.mxu0 0
  %1505 = vmatmul.mubr.bf16.gmra.mrb[0].mxu0 %v520
  %v1506 = vpop.f32.mrb[0].mxu0
  %v1507 = vadd.f32 %v1410, %v1506
  %v1508 = vpop.f32.mrb[0].mxu0
  %v1509 = vpop.f32.mrb[0].mxu0
  %v1510 = vadd.f32 %v1413, %v1509
  %v1511 = vpop.f32.mrb[0].mxu0
  %1512 = vmatprep.mubr.bf16.mxu0 0
  %1513 = vmatmul.mubr.bf16.gmra.mrb[0].mxu0 %v529
  %v1514 = vpop.f32.mrb[0].mxu0
  %v1515 = vadd.f32 %v1418, %v1514
  %v1516 = vpop.f32.mrb[0].mxu0
  %v1517 = vpop.f32.mrb[0].mxu0
  %v1518 = vadd.f32 %v1421, %v1517
  %v1519 = vpop.f32.mrb[0].mxu0
  %1520 = vmatprep.mubr.bf16.mxu0 0
  %1521 = vmatmul.mubr.bf16.gmra.mrb[0].mxu0 %v538
  %v1522 = vpop.f32.mrb[0].mxu0
  %v1523 = vadd.f32 %v1426, %v1522
  %v1524 = vpop.f32.mrb[0].mxu0
  %v1525 = vpop.f32.mrb[0].mxu0
  %v1526 = vadd.f32 %v1429, %v1525
  %v1527 = vpop.f32.mrb[0].mxu0
  %1528 = vmatprep.mubr.bf16.mxu0 0
  %1529 = vmatmul.mubr.bf16.gmra.mrb[0].mxu0 %v547
  %v1530 = vpop.f32.mrb[0].mxu0
  %v1531 = vadd.f32 %v1434, %v1530
  %v1532 = vpop.f32.mrb[0].mxu0
  %v1533 = vpop.f32.mrb[0].mxu0
  %v1534 = vadd.f32 %v1437, %v1533
  %v1535 = vpop.f32.mrb[0].mxu0
  %1536 = vdwg.mxu0
  %v1537 = vmax.f32 %v1475, %v1478
  %v1538 = vmax.f32 %v1537, %v1491
  %v1539 = vmax.f32 %v1538, %v1494
  %v1540 = vadd.f32 %v1539, 0.0
  %v1541 = vmax.f32 %v1478, %v1483
  %v1542 = vmax.f32 %v1541, %v1486
  %v1543 = vmax.f32 %v1542, %v1494
  %v1544 = vmax.f32 %v1543, %v1499
  %v1545 = vmax.f32 %v1544, %v1502
  %v1546 = vadd.f32 %v1540, %v1545
  %v1547 = vmax.f32 %v1491, %v1494
  %v1548 = vmax.f32 %v1547, %v1507
  %v1549 = vmax.f32 %v1548, %v1510
  %v1550 = vmax.f32 %v1549, %v1523
  %v1551 = vmax.f32 %v1550, %v1526
  %v1552 = vadd.f32 %v1546, %v1551
  %v1553 = vmax.f32 %v1494, %v1499
  %v1554 = vmax.f32 %v1553, %v1502
  %v1555 = vmax.f32 %v1554, %v1510
  %v1556 = vmax.f32 %v1555, %v1515
  %v1557 = vmax.f32 %v1556, %v1518
  %v1558 = vmax.f32 %v1557, %v1526
  %v1559 = vmax.f32 %v1558, %v1531
  %v1560 = vmax.f32 %v1559, %v1534
  %v1561 = vadd.f32 %v1552, %v1560
  %v1562 = vmul.f32 %v1561, 0.25
  %v1563 = vpack.c.bf16 %v1562, %v1562
  %v1564 = vld [vmem:[%s3] sm:$0xff]
  %v1565 = vld [vmem:[%s3 + $0x8] sm:$0xff]
  %v1566 = vld [vmem:[%s3 + $0x10] sm:$0xff]
  %v1567 = vld [vmem:[%s3 + $0x18] sm:$0xff]
  %v1568 = vld [vmem:[%s3 + $0x20] sm:$0xff]
  %v1569 = vld [vmem:[%s3 + $0x28] sm:$0xff]
  %v1570 = vld [vmem:[%s3 + $0x30] sm:$0xff]
  %v1571 = vld [vmem:[%s3 + $0x38] sm:$0xff]
  %v1572 = vld [vmem:[%s3 + $0x40] sm:$0xff]
  %v1573 = vld [vmem:[%s3 + $0x48] sm:$0xff]
  %v1574 = vld [vmem:[%s3 + $0x50] sm:$0xff]
  %v1575 = vld [vmem:[%s3 + $0x58] sm:$0xff]
  %v1576 = vld [vmem:[%s3 + $0x60] sm:$0xff]
  %v1577 = vld [vmem:[%s3 + $0x68] sm:$0xff]
  %v1578 = vld [vmem:[%s3 + $0x70] sm:$0xff]
  %v1579 = vld [vmem:[%s3 + $0x78] sm:$0xff]
  %v1580 = vld [vmem:[%s3 + $0x80] sm:$0xff]
  %v1581 = vld [vmem:[%s3 + $0x88] sm:$0xff]
  %v1582 = vld [vmem:[%s3 + $0x90] sm:$0xff]
  %v1583 = vld [vmem:[%s3 + $0x98] sm:$0xff]
  %v1584 = vld [vmem:[%s3 + $0xa0] sm:$0xff]
  %v1585 = vld [vmem:[%s3 + $0xa8] sm:$0xff]
  %v1586 = vld [vmem:[%s3 + $0xb0] sm:$0xff]
  %v1587 = vld [vmem:[%s3 + $0xb8] sm:$0xff]
  %v1588 = vld [vmem:[%s3 + $0xc0] sm:$0xff]
  %v1589 = vld [vmem:[%s3 + $0xc8] sm:$0xff]
  %v1590 = vld [vmem:[%s3 + $0xd0] sm:$0xff]
  %v1591 = vld [vmem:[%s3 + $0xd8] sm:$0xff]
  %v1592 = vld [vmem:[%s3 + $0xe0] sm:$0xff]
  %v1593 = vld [vmem:[%s3 + $0xe8] sm:$0xff]
  %v1594 = vld [vmem:[%s3 + $0xf0] sm:$0xff]
  %v1595 = vld [vmem:[%s3 + $0xf8] sm:$0xff]
  %v1596 = vld [vmem:[%s3 + $0x100] sm:$0xff]
  %v1597 = vld [vmem:[%s3 + $0x108] sm:$0xff]
  %v1598 = vld [vmem:[%s3 + $0x110] sm:$0xff]
  %v1599 = vld [vmem:[%s3 + $0x118] sm:$0xff]
  %v1600 = vld [vmem:[%s3 + $0x120] sm:$0xff]
  %v1601 = vld [vmem:[%s3 + $0x128] sm:$0xff]
  %v1602 = vld [vmem:[%s3 + $0x130] sm:$0xff]
  %v1603 = vld [vmem:[%s3 + $0x138] sm:$0xff]
  %v1604 = vld [vmem:[%s3 + $0x140] sm:$0xff]
  %v1605 = vld [vmem:[%s3 + $0x148] sm:$0xff]
  %v1606 = vld [vmem:[%s3 + $0x150] sm:$0xff]
  %v1607 = vld [vmem:[%s3 + $0x158] sm:$0xff]
  %v1608 = vld [vmem:[%s3 + $0x160] sm:$0xff]
  %v1609 = vld [vmem:[%s3 + $0x168] sm:$0xff]
  %v1610 = vld [vmem:[%s3 + $0x170] sm:$0xff]
  %v1611 = vld [vmem:[%s3 + $0x178] sm:$0xff]
  %v1612 = vld [vmem:[%s4] sm:$0x3f]
  %v1614 = vlaneseq
  %v1615 = vshrl.u32 %v1614, 7
  %v1616 = vsub.s32 0, %v1615
  %v1617 = vrot.slane %v1612, %v1616
  %v1618 = vlaneseq
  %v1619 = vshrl.u32 %v1618, 7
  %v1620 = vsub.s32 1, %v1619
  %v1621 = vrot.slane %v1612, %v1620
  %v1622 = vlaneseq
  %v1623 = vshrl.u32 %v1622, 7
  %v1624 = vsub.s32 2, %v1623
  %v1625 = vrot.slane %v1612, %v1624
  %v1626 = vlaneseq
  %v1627 = vshrl.u32 %v1626, 7
  %v1628 = vsub.s32 3, %v1627
  %v1629 = vrot.slane %v1612, %v1628
  %v1630 = vlaneseq
  %v1631 = vshrl.u32 %v1630, 7
  %v1632 = vsub.s32 4, %v1631
  %v1633 = vrot.slane %v1612, %v1632
  %v1634 = vlaneseq
  %v1635 = vshrl.u32 %v1634, 7
  %v1636 = vsub.s32 5, %v1635
  %v1637 = vrot.slane %v1612, %v1636
  %v1692 = vunpack.c.l.b16 %v1564
  %v1693 = vunpack.c.h.b16 %v1564
  %v1694 = vunpack.c.l.b16 %v1565
  %v1695 = vunpack.c.h.b16 %v1565
  %v1696 = vunpack.c.l.b16 %v1566
  %v1697 = vunpack.c.h.b16 %v1566
  %v1698 = vunpack.c.l.b16 %v1567
  %v1699 = vunpack.c.h.b16 %v1567
  %v1700 = vunpack.c.l.b16 %v1568
  %v1701 = vunpack.c.h.b16 %v1568
  %v1702 = vunpack.c.l.b16 %v1569
  %v1703 = vunpack.c.h.b16 %v1569
  %v1704 = vunpack.c.l.b16 %v1570
  %v1705 = vunpack.c.h.b16 %v1570
  %v1706 = vunpack.c.l.b16 %v1571
  %v1707 = vunpack.c.h.b16 %v1571
  %v1708 = vunpack.c.l.b16 %v1572
  %v1709 = vunpack.c.h.b16 %v1572
  %v1710 = vunpack.c.l.b16 %v1573
  %v1711 = vunpack.c.h.b16 %v1573
  %v1712 = vunpack.c.l.b16 %v1574
  %v1713 = vunpack.c.h.b16 %v1574
  %v1714 = vunpack.c.l.b16 %v1575
  %v1715 = vunpack.c.h.b16 %v1575
  %v1716 = vunpack.c.l.b16 %v1576
  %v1717 = vunpack.c.h.b16 %v1576
  %v1718 = vunpack.c.l.b16 %v1577
  %v1719 = vunpack.c.h.b16 %v1577
  %v1720 = vunpack.c.l.b16 %v1578
  %v1721 = vunpack.c.h.b16 %v1578
  %v1722 = vunpack.c.l.b16 %v1579
  %v1723 = vunpack.c.h.b16 %v1579
  %v1724 = vunpack.c.l.b16 %v1580
  %v1725 = vunpack.c.h.b16 %v1580
  %v1726 = vunpack.c.l.b16 %v1581
  %v1727 = vunpack.c.h.b16 %v1581
  %v1728 = vunpack.c.l.b16 %v1582
  %v1729 = vunpack.c.h.b16 %v1582
  %v1730 = vunpack.c.l.b16 %v1583
  %v1731 = vunpack.c.h.b16 %v1583
  %v1732 = vunpack.c.l.b16 %v1584
  %v1733 = vunpack.c.h.b16 %v1584
  %v1734 = vunpack.c.l.b16 %v1585
  %v1735 = vunpack.c.h.b16 %v1585
  %v1736 = vunpack.c.l.b16 %v1586
  %v1737 = vunpack.c.h.b16 %v1586
  %v1738 = vunpack.c.l.b16 %v1587
  %v1739 = vunpack.c.h.b16 %v1587
  %v1740 = vunpack.c.l.b16 %v1588
  %v1741 = vunpack.c.h.b16 %v1588
  %v1742 = vunpack.c.l.b16 %v1589
  %v1743 = vunpack.c.h.b16 %v1589
  %v1744 = vunpack.c.l.b16 %v1590
  %v1745 = vunpack.c.h.b16 %v1590
  %v1746 = vunpack.c.l.b16 %v1591
  %v1747 = vunpack.c.h.b16 %v1591
  %v1748 = vunpack.c.l.b16 %v1592
  %v1749 = vunpack.c.h.b16 %v1592
  %v1750 = vunpack.c.l.b16 %v1593
  %v1751 = vunpack.c.h.b16 %v1593
  %v1752 = vunpack.c.l.b16 %v1594
  %v1753 = vunpack.c.h.b16 %v1594
  %v1754 = vunpack.c.l.b16 %v1595
  %v1755 = vunpack.c.h.b16 %v1595
  %v1756 = vunpack.c.l.b16 %v1596
  %v1757 = vunpack.c.h.b16 %v1596
  %v1758 = vunpack.c.l.b16 %v1597
  %v1759 = vunpack.c.h.b16 %v1597
  %v1760 = vunpack.c.l.b16 %v1598
  %v1761 = vunpack.c.h.b16 %v1598
  %v1762 = vunpack.c.l.b16 %v1599
  %v1763 = vunpack.c.h.b16 %v1599
  %v1764 = vunpack.c.l.b16 %v1600
  %v1765 = vunpack.c.h.b16 %v1600
  %v1766 = vunpack.c.l.b16 %v1601
  %v1767 = vunpack.c.h.b16 %v1601
  %v1768 = vunpack.c.l.b16 %v1602
  %v1769 = vunpack.c.h.b16 %v1602
  %v1770 = vunpack.c.l.b16 %v1603
  %v1771 = vunpack.c.h.b16 %v1603
  %v1772 = vunpack.c.l.b16 %v1604
  %v1773 = vunpack.c.h.b16 %v1604
  %v1774 = vunpack.c.l.b16 %v1605
  %v1775 = vunpack.c.h.b16 %v1605
  %v1776 = vunpack.c.l.b16 %v1606
  %v1777 = vunpack.c.h.b16 %v1606
  %v1778 = vunpack.c.l.b16 %v1607
  %v1779 = vunpack.c.h.b16 %v1607
  %v1780 = vunpack.c.l.b16 %v1608
  %v1781 = vunpack.c.h.b16 %v1608
  %v1782 = vunpack.c.l.b16 %v1609
  %v1783 = vunpack.c.h.b16 %v1609
  %v1784 = vunpack.c.l.b16 %v1610
  %v1785 = vunpack.c.h.b16 %v1610
  %v1786 = vunpack.c.l.b16 %v1611
  %v1787 = vunpack.c.h.b16 %v1611
  %v1788 = vpack.c.b16 %v1698, %v1692
  %v1789 = vpack.c.b16 %v1699, %v1693
  %v1790 = vpack.c.b16 %v1700, %v1694
  %v1791 = vpack.c.b16 %v1701, %v1695
  %v1792 = vpack.c.b16 %v1702, %v1696
  %v1793 = vpack.c.b16 %v1703, %v1697
  %v1794 = vpack.c.b16 %v1710, %v1704
  %v1795 = vpack.c.b16 %v1711, %v1705
  %v1796 = vpack.c.b16 %v1712, %v1706
  %v1797 = vpack.c.b16 %v1713, %v1707
  %v1798 = vpack.c.b16 %v1714, %v1708
  %v1799 = vpack.c.b16 %v1715, %v1709
  %v1800 = vpack.c.b16 %v1722, %v1716
  %v1801 = vpack.c.b16 %v1723, %v1717
  %v1802 = vpack.c.b16 %v1724, %v1718
  %v1803 = vpack.c.b16 %v1725, %v1719
  %v1804 = vpack.c.b16 %v1726, %v1720
  %v1805 = vpack.c.b16 %v1727, %v1721
  %v1806 = vpack.c.b16 %v1734, %v1728
  %v1807 = vpack.c.b16 %v1735, %v1729
  %v1808 = vpack.c.b16 %v1736, %v1730
  %v1809 = vpack.c.b16 %v1737, %v1731
  %v1810 = vpack.c.b16 %v1738, %v1732
  %v1811 = vpack.c.b16 %v1739, %v1733
  %v1812 = vpack.c.b16 %v1746, %v1740
  %v1813 = vpack.c.b16 %v1747, %v1741
  %v1814 = vpack.c.b16 %v1748, %v1742
  %v1815 = vpack.c.b16 %v1749, %v1743
  %v1816 = vpack.c.b16 %v1750, %v1744
  %v1817 = vpack.c.b16 %v1751, %v1745
  %v1818 = vpack.c.b16 %v1758, %v1752
  %v1819 = vpack.c.b16 %v1759, %v1753
  %v1820 = vpack.c.b16 %v1760, %v1754
  %v1821 = vpack.c.b16 %v1761, %v1755
  %v1822 = vpack.c.b16 %v1762, %v1756
  %v1823 = vpack.c.b16 %v1763, %v1757
  %v1824 = vpack.c.b16 %v1770, %v1764
  %v1825 = vpack.c.b16 %v1771, %v1765
  %v1826 = vpack.c.b16 %v1772, %v1766
  %v1827 = vpack.c.b16 %v1773, %v1767
  %v1828 = vpack.c.b16 %v1774, %v1768
  %v1829 = vpack.c.b16 %v1775, %v1769
  %v1830 = vpack.c.b16 %v1782, %v1776
  %v1831 = vpack.c.b16 %v1783, %v1777
  %v1832 = vpack.c.b16 %v1784, %v1778
  %v1833 = vpack.c.b16 %v1785, %v1779
  %v1834 = vpack.c.b16 %v1786, %v1780
  %v1835 = vpack.c.b16 %v1787, %v1781
  %1884 = vmatprep.subr.bf16.mxu0 %v1789
  %1885 = vmatpush1.bf16.msra.mxu0 %v1788
  %1886 = vmatprep.subr.bf16.mxu0 %v1795
  %1887 = vmatpush1.bf16.msra.mxu0 %v1794
  %1888 = vmatprep.subr.bf16.mxu0 %v1801
  %1889 = vmatpush1.bf16.msra.mxu0 %v1800
  %1890 = vmatprep.subr.bf16.mxu0 %v1807
  %1891 = vmatpush1.bf16.msra.mxu0 %v1806
  %1892 = vmatprep.subr.bf16.mxu0 %v1813
  %1893 = vmatpush1.bf16.msra.mxu0 %v1812
  %1894 = vmatprep.subr.bf16.mxu0 %v1819
  %1895 = vmatpush1.bf16.msra.mxu0 %v1818
  %1896 = vmatprep.subr.bf16.mxu0 %v1825
  %1897 = vmatpush1.bf16.msra.mxu0 %v1824
  %1898 = vmatprep.subr.bf16.mxu0 %v1831
  %1899 = vmatpush1.bf16.msra.mxu0 %v1830
  %1900 = vmatprep.subr.bf16.mxu0 0
  %1901 = vmatpush1.bf16.msra.mxu0 0
  %1902 = vmatprep.subr.bf16.mxu0 0
  %1903 = vmatpush1.bf16.msra.mxu0 0
  %1904 = vmatprep.subr.bf16.mxu0 0
  %1905 = vmatpush1.bf16.msra.mxu0 0
  %1906 = vmatprep.subr.bf16.mxu0 0
  %1907 = vmatpush1.bf16.msra.mxu0 0
  %1908 = vmatprep.subr.bf16.mxu0 0
  %1909 = vmatpush1.bf16.msra.mxu0 0
  %1910 = vmatprep.subr.bf16.mxu0 0
  %1911 = vmatpush1.bf16.msra.mxu0 0
  %1912 = vmatprep.subr.bf16.mxu0 0
  %1913 = vmatpush1.bf16.msra.mxu0 0
  %1914 = vmatprep.subr.bf16.mxu0 0
  %1915 = vmatpush1.bf16.msra.mxu0 0
  %1916 = vmatprep.mubr.bf16.mxu0 0
  %1917 = vmatmul.mubr.bf16.gmra.mrb[0].mxu0 %v1563
  %v1918 = vpop.f32.mrb[0].mxu0
  %v1919 = vadd.f32 %v1617, %v1918
  %v1920 = vpop.f32.mrb[0].mxu0
  %v1921 = vadd.f32 %v1621, %v1920
  %v1922 = vpop.f32.mrb[0].mxu0
  %v1923 = vpop.f32.mrb[0].mxu0
  %1924 = vdwg.mxu0
  %1925 = vmatprep.subr.bf16.mxu0 %v1791
  %1926 = vmatpush1.bf16.msra.mxu0 %v1790
  %1927 = vmatprep.subr.bf16.mxu0 %v1797
  %1928 = vmatpush1.bf16.msra.mxu0 %v1796
  %1929 = vmatprep.subr.bf16.mxu0 %v1803
  %1930 = vmatpush1.bf16.msra.mxu0 %v1802
  %1931 = vmatprep.subr.bf16.mxu0 %v1809
  %1932 = vmatpush1.bf16.msra.mxu0 %v1808
  %1933 = vmatprep.subr.bf16.mxu0 %v1815
  %1934 = vmatpush1.bf16.msra.mxu0 %v1814
  %1935 = vmatprep.subr.bf16.mxu0 %v1821
  %1936 = vmatpush1.bf16.msra.mxu0 %v1820
  %1937 = vmatprep.subr.bf16.mxu0 %v1827
  %1938 = vmatpush1.bf16.msra.mxu0 %v1826
  %1939 = vmatprep.subr.bf16.mxu0 %v1833
  %1940 = vmatpush1.bf16.msra.mxu0 %v1832
  %1941 = vmatprep.subr.bf16.mxu0 0
  %1942 = vmatpush1.bf16.msra.mxu0 0
  %1943 = vmatprep.subr.bf16.mxu0 0
  %1944 = vmatpush1.bf16.msra.mxu0 0
  %1945 = vmatprep.subr.bf16.mxu0 0
  %1946 = vmatpush1.bf16.msra.mxu0 0
  %1947 = vmatprep.subr.bf16.mxu0 0
  %1948 = vmatpush1.bf16.msra.mxu0 0
  %1949 = vmatprep.subr.bf16.mxu0 0
  %1950 = vmatpush1.bf16.msra.mxu0 0
  %1951 = vmatprep.subr.bf16.mxu0 0
  %1952 = vmatpush1.bf16.msra.mxu0 0
  %1953 = vmatprep.subr.bf16.mxu0 0
  %1954 = vmatpush1.bf16.msra.mxu0 0
  %1955 = vmatprep.subr.bf16.mxu0 0
  %1956 = vmatpush1.bf16.msra.mxu0 0
  %1957 = vmatprep.mubr.bf16.mxu0 0
  %1958 = vmatmul.mubr.bf16.gmra.mrb[0].mxu0 %v1563
  %v1959 = vpop.f32.mrb[0].mxu0
  %v1960 = vadd.f32 %v1625, %v1959
  %v1961 = vpop.f32.mrb[0].mxu0
  %v1962 = vadd.f32 %v1629, %v1961
  %v1963 = vpop.f32.mrb[0].mxu0
  %v1964 = vpop.f32.mrb[0].mxu0
  %1965 = vdwg.mxu0
  %1966 = vmatprep.subr.bf16.mxu0 %v1793
  %1967 = vmatpush1.bf16.msra.mxu0 %v1792
  %1968 = vmatprep.subr.bf16.mxu0 %v1799
  %1969 = vmatpush1.bf16.msra.mxu0 %v1798
  %1970 = vmatprep.subr.bf16.mxu0 %v1805
  %1971 = vmatpush1.bf16.msra.mxu0 %v1804
  %1972 = vmatprep.subr.bf16.mxu0 %v1811
  %1973 = vmatpush1.bf16.msra.mxu0 %v1810
  %1974 = vmatprep.subr.bf16.mxu0 %v1817
  %1975 = vmatpush1.bf16.msra.mxu0 %v1816
  %1976 = vmatprep.subr.bf16.mxu0 %v1823
  %1977 = vmatpush1.bf16.msra.mxu0 %v1822
  %1978 = vmatprep.subr.bf16.mxu0 %v1829
  %1979 = vmatpush1.bf16.msra.mxu0 %v1828
  %1980 = vmatprep.subr.bf16.mxu0 %v1835
  %1981 = vmatpush1.bf16.msra.mxu0 %v1834
  %1982 = vmatprep.subr.bf16.mxu0 0
  %1983 = vmatpush1.bf16.msra.mxu0 0
  %1984 = vmatprep.subr.bf16.mxu0 0
  %1985 = vmatpush1.bf16.msra.mxu0 0
  %1986 = vmatprep.subr.bf16.mxu0 0
  %1987 = vmatpush1.bf16.msra.mxu0 0
  %1988 = vmatprep.subr.bf16.mxu0 0
  %1989 = vmatpush1.bf16.msra.mxu0 0
  %1990 = vmatprep.subr.bf16.mxu0 0
  %1991 = vmatpush1.bf16.msra.mxu0 0
  %1992 = vmatprep.subr.bf16.mxu0 0
  %1993 = vmatpush1.bf16.msra.mxu0 0
  %1994 = vmatprep.subr.bf16.mxu0 0
  %1995 = vmatpush1.bf16.msra.mxu0 0
  %1996 = vmatprep.subr.bf16.mxu0 0
  %1997 = vmatpush1.bf16.msra.mxu0 0
  %1998 = vmatprep.mubr.bf16.mxu0 0
  %1999 = vmatmul.mubr.bf16.gmra.mrb[0].mxu0 %v1563
  %v2000 = vpop.f32.mrb[0].mxu0
  %v2001 = vadd.f32 %v1633, %v2000
  %v2002 = vpop.f32.mrb[0].mxu0
  %v2003 = vadd.f32 %v1637, %v2002
  %v2004 = vpop.f32.mrb[0].mxu0
  %v2005 = vpop.f32.mrb[0].mxu0
  %2006 = vdwg.mxu0
  %v2007 = vmax.f32 %v1919, 0.0
  %v2008 = vmax.f32 %v1921, 0.0
  %v2009 = vmax.f32 %v1960, 0.0
  %v2010 = vmax.f32 %v1962, 0.0
  %v2011 = vmax.f32 %v2001, 0.0
  %v2012 = vmax.f32 %v2003, 0.0
  %v2013 = vpack.c.bf16 %v2007, %v2007
  %v2014 = vpack.c.bf16 %v2008, %v2008
  %v2015 = vpack.c.bf16 %v2009, %v2009
  %v2016 = vpack.c.bf16 %v2010, %v2010
  %v2017 = vpack.c.bf16 %v2011, %v2011
  %v2018 = vpack.c.bf16 %v2012, %v2012
  %v2025 = vunpack.c.l.b16 %v2013
  %v2026 = vunpack.c.l.b16 %v2014
  %v2027 = vunpack.c.l.b16 %v2015
  %v2028 = vunpack.c.l.b16 %v2016
  %v2029 = vunpack.c.l.b16 %v2017
  %v2030 = vunpack.c.l.b16 %v2018
  %v2031 = vpack.c.b16 %v2026, %v2025
  %v2032 = vpack.c.b16 %v2028, %v2027
  %v2033 = vpack.c.b16 %v2030, %v2029
  %2037 = vst [vmem:[%s5] sm:$0xff] %v2031
  %2038 = vst [vmem:[%s5 + $0x8] sm:$0xff] %v2032
  %2039 = vst [vmem:[%s5 + $0x10] sm:$0xff] %v2033
  // Predicated region
  $region22: #{forward.6} parent=0 // pred_check
    _
  $region23: #{forward.6} parent=0 // pred_check_branch
    %2041 = sbr.rel (0) target = $region25
  $region24: #{forward.6} parent=0 // pred_region
    _
  $region25: #{forward.6} parent=0 // pred_fallthru
    _
  // Predicated region
  $region26: #{forward.6} parent=0 // pred_check
    _
  $region27: #{forward.6} parent=0 // pred_check_branch
    %2043 = sbr.rel (0) target = $region29
  $region28: #{forward.6} parent=0 // pred_region
    _
  $region29: #{forward.6} parent=0 // pred_fallthru
    _

</llo_original>
